<compile_context>
chip_gen: v6e
topology: v6e:2x2x1
jax: 0.10.0
libtpu: 0.0.40
codegen_flags: <defaults>
</compile_context>

<pallas_src>
import numpy as np
import jax
import jax.numpy as jnp
from jax.experimental import pallas as pl
from jax.experimental.pallas import tpu as pltpu


# ---------------------------------------------------------------------------
# Small helpers (VMEM budget / tiling choices)
# ---------------------------------------------------------------------------
def _vmem_capacity_bytes():
    cap = 128 << 20
    try:
        info = pltpu.get_tpu_info()
        cap = int(getattr(info, "vmem_capacity_bytes", cap) or cap)
    except Exception:
        pass
    return cap


def _vmem_limit_bytes(request):
    cap = _vmem_capacity_bytes()
    ceiling = min((cap * 3) // 4, 100 << 20)          # headroom (v7x: 64 MiB -> ~48 MiB)
    return int(min(ceiling, max(int(request), 16 << 20)))


def _default_target_positions():
    # bigger row tiles on 128 MiB parts (v5e/v6e), smaller on v7x (64 MiB)
    return 8192 if _vmem_capacity_bytes() <= (64 << 20) else 16384


def _pick_row_tile(h, w, target_positions):
    """Row-block height tm and #blocks nr (h % tm == 0).

    Multi-block tilings need even tm (2-row halo blocks) and a lane-dense output slab
    ((tm*w) % 128 == 0). Prefer >=2 blocks (v7x megacore) and the largest tm whose
    block stays under `target_positions`.
    """
    multi = []
    for nb in range(2, h + 1):
        if h % nb:
            continue
        tm = h // nb
        if tm % 2 or (tm * w) % 128:
            continue
        multi.append((tm, nb))
    fitting = [c for c in multi if c[0] * w <= target_positions]
    if fitting:
        return max(fitting)
    if multi:
        return min(multi)
    # TODO(synk): for very large images with no legal multi-block tiling this falls back
    # to a single full-image block and may exceed the VMEM budget.
    return h, 1


def _pick_ho_tile(ho, c, wo, target_bytes=6 << 20):
    cands = [t for t in range(8, ho + 1, 8) if ho % t == 0]
    if not cands:
        return ho, 1
    multi = [t for t in cands if ho // t >= 2] or cands
    fitting = [t for t in multi if c * t * wo * 4 <= target_bytes]
    t = max(fitting) if fitting else min(multi)
    return t, ho // t


# ---------------------------------------------------------------------------
# Fused head kernel: conv3x3+ReLU -> conv3x3+ReLU -> conv1x1 (+bias)
# ---------------------------------------------------------------------------
def _fused_head_kernel(xm_ref, xt_ref, xb_ref, w1_ref, b1_ref, w2_ref, b2_ref,
                       wp_ref, bp_ref, o_ref, xpad_ref, y1_ref):
    r = pl.program_id(1)
    nr = pl.num_programs(1)

    tm, w, cin = xm_ref.shape[1], xm_ref.shape[2], xm_ref.shape[3]
    c1 = w1_ref.shape[2]
    c2 = w2_ref.shape[2]
    rows1, cols1 = tm + 2, w + 2
    m1, m2 = rows1 * cols1, tm * w

    # ---- assemble the zero-padded bf16 halo block in VMEM (no wrapper pad/concat) ----
    xpad_ref[:, 0:2, :] = jnp.zeros((tm + 4, 2, cin), jnp.bfloat16)
    xpad_ref[:, w + 2:w + 4, :] = jnp.zeros((tm + 4, 2, cin), jnp.bfloat16)
    xpad_ref[2:tm + 2, 2:w + 2, :] = xm_ref[0]

    @pl.when(r > 0)
    def _():
        xpad_ref[0:2, 2:w + 2, :] = xt_ref[0]

    @pl.when(r == 0)
    def _():
        xpad_ref[0:2, 2:w + 2, :] = jnp.zeros((2, w, cin), jnp.bfloat16)

    @pl.when(r < nr - 1)
    def _():
        xpad_ref[tm + 2:tm + 4, 2:w + 2, :] = xb_ref[0]

    @pl.when(r == nr - 1)
    def _():
        xpad_ref[tm + 2:tm + 4, 2:w + 2, :] = jnp.zeros((2, w, cin), jnp.bfloat16)

    def im2col3(src_ref, dy, rows, cols):
        # concat the 3 dx-shifted channel slabs -> K = 3 * channels per dot
        slabs = [src_ref[dy:dy + rows, dx:dx + cols, :] for dx in range(3)]
        p = jnp.concatenate(slabs, axis=-1)
        return p.reshape(rows * cols, p.shape[-1])

    # ---- conv1: 3x3, pad=1, bias, ReLU over (tm+2) rows x (w+2) cols ----
    acc1 = jnp.zeros((m1, c1), jnp.float32)
    for dy in range(3):
        acc1 = acc1 + jnp.dot(im2col3(xpad_ref, dy, rows1, cols1), w1_ref[dy],
                              preferred_element_type=jnp.float32)
    y1 = jnp.maximum(acc1 + b1_ref[...], 0.0)
    y1_ref[...] = y1.astype(jnp.bfloat16).reshape(rows1, cols1, c1)

    # conv2's zero padding: border columns always; halo rows only at the image edge
    y1_ref[:, 0:1, :] = jnp.zeros((rows1, 1, c1), jnp.bfloat16)
    y1_ref[:, cols1 - 1:cols1, :] = jnp.zeros((rows1, 1, c1), jnp.bfloat16)

    @pl.when(r == 0)
    def _():
        y1_ref[0:1, :, :] = jnp.zeros((1, cols1, c1), jnp.bfloat16)

    @pl.when(r == nr - 1)
    def _():
        y1_ref[rows1 - 1:rows1, :, :] = jnp.zeros((1, cols1, c1), jnp.bfloat16)

    # ---- conv2: 3x3, pad=1, bias, ReLU over tm rows x w cols ----
    acc2 = jnp.zeros((m2, c2), jnp.float32)
    for dy in range(3):
        acc2 = acc2 + jnp.dot(im2col3(y1_ref, dy, tm, w), w2_ref[dy],
                              preferred_element_type=jnp.float32)
    y2 = jnp.maximum(acc2 + b2_ref[...], 0.0)

    # ---- fused 1x1 predictor (kept f32); lane-dense (num_classes, tm*w) store ----
    logits = jnp.dot(y2, wp_ref[...], preferred_element_type=jnp.float32) + bp_ref[...]
    o_ref[0] = jnp.transpose(logits, (1, 0))


def fused_head_predict(x_nchw, w1, b1, w2, b2, wp, bp):
    """x_nchw: [N,Cin,H,W] f32 -> logits [N,num_classes,H,W] f32 (NCHW)."""
    n, cin, h, w = x_nchw.shape
    c1 = w1.shape[-1]
    c2 = w2.shape[-1]
    nc = wp.shape[-1]

    # Single fused layout+cast pass (the pad / bf16-halo concatenate of v2 are gone).
    # TODO(synk): accept NHWC directly from the upstream decoder to drop this pass too.
    x = jnp.transpose(x_nchw, (0, 2, 3, 1)).astype(jnp.bfloat16)

    tm, nr = _pick_row_tile(h, w, _default_target_positions())

    main_map = lambda b, r: (b, r, 0, 0)
    if nr == 1:
        top_map = lambda b, r: (b, 0, 0, 0)
        bot_map = lambda b, r: (b, 0, 0, 0)
    else:
        hb = tm // 2                     # halo block index stride (2-row blocks)
        nhb = h // 2
        top_map = lambda b, r: (b, jnp.maximum(r * hb - 1, 0), 0, 0)
        bot_map = lambda b, r: (b, jnp.minimum((r + 1) * hb, nhb - 1), 0, 0)

    m1 = (tm + 2) * (w + 2)
    m2 = tm * w
    flops = n * nr * (18 * m1 * cin * c1 + 18 * m2 * c1 * c2 + 2 * m2 * c2 * nc)
    bytes_accessed = int(n * h * w * cin * 2 * (1.0 + 4.0 / tm)
                         + (w1.size + w2.size) * 2 + wp.size * 4
                         + n * nc * h * w * 4)

    w_bytes = w1.size * 2 + w2.size * 2 + wp.size * 4 + (b1.size + b2.size + bp.size) * 4
    vmem_need = int(
        2 * (tm * w * cin * 2 + 2 * 2 * w * cin * 2)        # double-buffered x blocks
        + 2 * w_bytes                                       # resident weights / biases
        + 2 * nc * m2 * 4                                   # double-buffered out block
        + (tm + 4) * (w + 4) * cin * 2                      # xpad scratch
        + (tm + 2) * (w + 2) * c1 * 2                       # y1 scratch
        + m1 * (3 * cin * 2 + c1 * 4)                       # conv1 patch + acc
        + m2 * (3 * c1 * 2 + c2 * 4 + 2 * nc * 4))          # conv2/predictor live values

    out = pl.pallas_call(
        _fused_head_kernel,
        out_shape=jax.ShapeDtypeStruct((n, nc, h * w), jnp.float32),
        grid_spec=pltpu.PrefetchScalarGridSpec(
            num_scalar_prefetch=0,
            grid=(n, nr),
            in_specs=[
                pl.BlockSpec((1, tm, w, cin), main_map),
                pl.BlockSpec((1, 2, w, cin), top_map),
                pl.BlockSpec((1, 2, w, cin), bot_map),
                pl.BlockSpec((3, 3 * cin, c1), lambda b, r: (0, 0, 0)),
                pl.BlockSpec((1, c1), lambda b, r: (0, 0)),
                pl.BlockSpec((3, 3 * c1, c2), lambda b, r: (0, 0, 0)),
                pl.BlockSpec((1, c2), lambda b, r: (0, 0)),
                pl.BlockSpec((c2, nc), lambda b, r: (0, 0)),
                pl.BlockSpec((1, nc), lambda b, r: (0, 0)),
            ],
            out_specs=pl.BlockSpec((1, nc, tm * w), lambda b, r: (b, 0, r)),
            scratch_shapes=[
                pltpu.VMEM((tm + 4, w + 4, cin), jnp.bfloat16),
                pltpu.VMEM((tm + 2, w + 2, c1), jnp.bfloat16),
            ],
        ),
        compiler_params=pltpu.CompilerParams(
            dimension_semantics=("parallel", "parallel"),
            vmem_limit_bytes=_vmem_limit_bytes(vmem_need + (8 << 20))),
        cost_estimate=pl.CostEstimate(flops=int(flops), transcendentals=0,
                                      bytes_accessed=bytes_accessed),
    )(x, x, x, w1, b1, w2, b2, wp, bp)
    return out.reshape(n, nc, h, w)


# ---------------------------------------------------------------------------
# Bilinear upsample (align_corners=False) as separable static matmuls,
# tiled over output rows.
# ---------------------------------------------------------------------------
def _bilinear_matrix(out_size, in_size):
    """A[o, i] = bilinear (align_corners=False) weight of input i for output o."""
    src = (jnp.arange(out_size, dtype=jnp.float32) + 0.5) * (in_size / out_size) - 0.5
    src = jnp.clip(src, 0.0, in_size - 1.0)
    idx = jnp.arange(in_size, dtype=jnp.float32)
    return jnp.maximum(0.0, 1.0 - jnp.abs(src[:, None] - idx[None, :]))


def _upsample_kernel(x_ref, ah_ref, awt_ref, o_ref):
    xb = x_ref[0].astype(jnp.bfloat16)               # (C, H, W)
    c, h, w = xb.shape
    tho = ah_ref.shape[0]
    wo = awt_ref.shape[1]

    # H-contraction first (small input, no recompute across row blocks): one batched dot.
    ahb = jnp.broadcast_to(ah_ref[...][None], (c, tho, h))
    u = jnp.einsum('coh,chw->cow', ahb, xb,
                   preferred_element_type=jnp.float32)        # (C, t_ho, W) f32
    # W-expansion: one lane-dense dot, f32 accumulation.
    out = jnp.dot(u.astype(jnp.bfloat16).reshape(c * tho, w), awt_ref[...],
                  preferred_element_type=jnp.float32)          # (C*t_ho, Wo)
    o_ref[0] = out.reshape(c, tho, wo)


def upsample_bilinear_pallas(x_nchw, scale):
    n, c, h, w = x_nchw.shape
    ho, wo = h * scale, w * scale
    # Bilinear weights are exactly representable in bf16 for power-of-two strides.
    a_h = _bilinear_matrix(ho, h).astype(jnp.bfloat16)        # (Ho, H)
    a_wt = _bilinear_matrix(wo, w).T.astype(jnp.bfloat16)     # (W, Wo)

    tho, nrb = _pick_ho_tile(ho, c, wo)

    flops = n * (2 * c * ho * h * w + 2 * c * ho * w * wo)
    bytes_accessed = int(n * (c * h * w * 4 * nrb + c * ho * wo * 4)
                         + (a_h.size + a_wt.size) * 2)
    vmem_need = int(
        2 * c * h * w * 4 + 2 * (tho * h + w * wo) * 2        # double-buffered inputs
        + 2 * c * tho * wo * 4                                # double-buffered out block
        + c * h * w * 2 + c * tho * h * 2                     # bf16 x and broadcast A_h
        + c * tho * w * 6 + c * tho * wo * 4)                 # intermediates

    return pl.pallas_call(
        _upsample_kernel,
        out_shape=jax.ShapeDtypeStruct((n, c, ho, wo), jnp.float32),
        grid_spec=pltpu.PrefetchScalarGridSpec(
            num_scalar_prefetch=0,
            grid=(n, nrb),
            in_specs=[
                pl.BlockSpec((1, c, h, w), lambda b, rb: (b, 0, 0, 0)),
                pl.BlockSpec((tho, h), lambda b, rb: (rb, 0)),
                pl.BlockSpec((w, wo), lambda b, rb: (0, 0)),
            ],
            out_specs=pl.BlockSpec((1, c, tho, wo), lambda b, rb: (b, 0, rb, 0)),
        ),
        compiler_params=pltpu.CompilerParams(
            dimension_semantics=("parallel", "parallel"),
            vmem_limit_bytes=_vmem_limit_bytes(vmem_need + (8 << 20))),
        cost_estimate=pl.CostEstimate(flops=int(flops), transcendentals=0,
                                      bytes_accessed=bytes_accessed),
    )(x_nchw, a_h, a_wt)


# ---------------------------------------------------------------------------
# PoDSSemSegHead (inference forward), parameters built deterministically
# ---------------------------------------------------------------------------
class PoDSSemSegHeadPallas:
    def __init__(self, key, *, decoder_channels0, cross_channels, head_channels,
                 num_classes, common_stride):
        self.common_stride = common_stride
        cin1 = decoder_channels0 + cross_channels
        k1, k2, k3 = jax.random.split(key, 3)

        def xavier(k, shape, fan_in, fan_out):
            std = (2.0 / (fan_in + fan_out)) ** 0.5
            return std * jax.random.normal(k, shape, dtype=jnp.float32)

        # head[0]: Conv2d(cin1 -> decoder_channels0, 3x3, bias, ReLU)
        # Weight layout for the kernel: (3 dy, 3*Cin (dx-major), Cout), bf16 MXU operand.
        # NOTE: real PyTorch OIHW checkpoints must be permuted to (kh, kw, in, out) first.
        w1 = xavier(k1, (3, 3, cin1, decoder_channels0), 9 * cin1, decoder_channels0)
        self.w1 = w1.reshape(3, 3 * cin1, decoder_channels0).astype(jnp.bfloat16)
        self.b1 = jnp.zeros((1, decoder_channels0), jnp.float32)
        # head[1]: Conv2d(decoder_channels0 -> head_channels, 3x3, bias, ReLU)
        w2 = xavier(k2, (3, 3, decoder_channels0, head_channels),
                    9 * decoder_channels0, head_channels)
        self.w2 = w2.reshape(3, 3 * decoder_channels0, head_channels).astype(jnp.bfloat16)
        self.b2 = jnp.zeros((1, head_channels), jnp.float32)
        # predictor: Conv2d(head_channels -> num_classes, 1x1), init normal(0, 0.001),
        # bias 0.  Kept in f32 (negligible FLOPs, preserves logits precision).
        self.wp = 0.001 * jax.random.normal(k3, (head_channels, num_classes),
                                            dtype=jnp.float32)
        self.bp = jnp.zeros((1, num_classes), jnp.float32)

    def __call__(self, features_nchw):
        logits = fused_head_predict(features_nchw, self.w1, self.b1, self.w2, self.b2,
                                    self.wp, self.bp)            # (N, nc, H, W) f32
        y = upsample_bilinear_pallas(logits, self.common_stride)  # (N, nc, s*H, s*W) f32
        return y, {}
        # TODO(synk): training branch (CrossEntropy / DeepLabCE hard-pixel-mining) not implemented.


# ---------------------------------------------------------------------------
# Plain-JAX reference (mirrors the kernel's operand precision) for in-script check
# ---------------------------------------------------------------------------
def _reference_forward(x_nchw, head):
    dn = ("NHWC", "HWIO", "NHWC")
    cin = head.w1.shape[1] // 3
    c1 = head.w1.shape[2]
    c2 = head.w2.shape[2]
    x = jnp.transpose(x_nchw, (0, 2, 3, 1)).astype(jnp.bfloat16)
    w1 = head.w1.reshape(3, 3, cin, c1)
    w2 = head.w2.reshape(3, 3, c1, c2)
    y = jax.lax.conv_general_dilated(x, w1, (1, 1), ((1, 1), (1, 1)),
                                     dimension_numbers=dn,
                                     preferred_element_type=jnp.float32)
    y = jnp.maximum(y + head.b1.reshape(1, 1, 1, -1), 0.0).astype(jnp.bfloat16)
    y = jax.lax.conv_general_dilated(y, w2, (1, 1), ((1, 1), (1, 1)),
                                     dimension_numbers=dn,
                                     preferred_element_type=jnp.float32)
    y = jnp.maximum(y + head.b2.reshape(1, 1, 1, -1), 0.0)       # f32 (predictor is f32)
    n, h, w, _ = y.shape
    nc = head.wp.shape[-1]
    logits = jnp.dot(y.reshape(-1, c2), head.wp,
                     preferred_element_type=jnp.float32) + head.bp
    logits = jnp.transpose(logits.reshape(n, h, w, nc), (0, 3, 1, 2))
    s = head.common_stride
    a_h = _bilinear_matrix(h * s, h).astype(jnp.bfloat16)
    a_wt = _bilinear_matrix(w * s, w).T.astype(jnp.bfloat16)
    lb = logits.astype(jnp.bfloat16)
    u = jnp.einsum("oh,nchw->ncow", a_h, lb, preferred_element_type=jnp.float32)
    u = u.astype(jnp.bfloat16)
    up = jnp.einsum("ncow,wv->ncov", u, a_wt, preferred_element_type=jnp.float32)
    return up


if __name__ == "__main__":
    key = jax.random.PRNGKey(0)
    k_param, k_in = jax.random.split(key)

    # Small shapes consistent with the module's __init__:
    #   decoder_channels[0]=32, cross_channels=16 -> head input has 48 channels
    #   head_channels=32, num_classes=8, common_stride=4
    N, H, W = 2, 16, 16
    decoder_channels0, cross_channels = 32, 16
    head_channels, num_classes, common_stride = 32, 8, 4

    head = PoDSSemSegHeadPallas(
        k_param,
        decoder_channels0=decoder_channels0,
        cross_channels=cross_channels,
        head_channels=head_channels,
        num_classes=num_classes,
        common_stride=common_stride,
    )

    x = jax.random.normal(k_in, (N, decoder_channels0 + cross_channels, H, W),
                          dtype=jnp.float32)

    fwd = jax.jit(lambda inp: head(inp))
    logits, losses = fwd(x)
    jax.block_until_ready(logits)

    assert logits.shape == (N, num_classes, H * common_stride, W * common_stride)
    assert losses == {}

    # numerical check against a plain-JAX reference using the same operand precision
    ref = jax.jit(lambda inp: _reference_forward(inp, head))(x)
    jax.block_until_ready(ref)
    np.testing.assert_allclose(np.asarray(logits), np.asarray(ref),
                               rtol=2e-2, atol=5e-4)

    print("KERNEL_OK")
</pallas_src>

<mosaic_0001>
module attributes {stable_mosaic.version = 11 : i64} {
  func.func @_upsample_kernel(%arg0: i32, %arg1: i32, %arg2: memref<1x8x16x16xf32, #tpu.memory_space<vmem>>, %arg3: memref<32x16xbf16, #tpu.memory_space<vmem>>, %arg4: memref<16x64xbf16, #tpu.memory_space<vmem>>, %arg5: memref<1x8x32x64xf32, #tpu.memory_space<vmem>>) attributes {dimension_semantics = [#tpu.dimension_semantics<parallel>, #tpu.dimension_semantics<parallel>], iteration_bounds = array<i64: 2, 2>, scalar_prefetch = 0 : i64, scratch_operands = 0 : i64, tpu.core_type = #tpu.core_type<tc>, window_params = [{transform_indices = @transform_0, window_bounds = array<i64: 1, 8, 16, 16>}, {transform_indices = @transform_1, window_bounds = array<i64: 32, 16>}, {pipeline_mode = #tpu.pipeline_mode<synchronous>, transform_indices = @transform_2, window_bounds = array<i64: 16, 64>}, {transform_indices = @transform_3, window_bounds = array<i64: 1, 8, 32, 64>}]} {
    %c0 = arith.constant 0 : index
    %c0_0 = arith.constant 0 : index
    %c0_1 = arith.constant 0 : index
    %c0_2 = arith.constant 0 : index
    %0 = vector.load %arg2[%c0, %c0_0, %c0_1, %c0_2] : memref<1x8x16x16xf32, #tpu.memory_space<vmem>>, vector<1x8x16x16xf32>
    %1 = vector.shape_cast %0 : vector<1x8x16x16xf32> to vector<8x16x16xf32>
    %2 = arith.truncf %1 : vector<8x16x16xf32> to vector<8x16x16xbf16>
    %c0_3 = arith.constant 0 : index
    %c0_4 = arith.constant 0 : index
    %3 = vector.load %arg3[%c0_3, %c0_4] : memref<32x16xbf16, #tpu.memory_space<vmem>>, vector<32x16xbf16>
    %4 = vector.shape_cast %3 : vector<32x16xbf16> to vector<1x32x16xbf16>
    %5 = vector.shape_cast %4 : vector<1x32x16xbf16> to vector<1x32x16xbf16>
    %6 = vector.broadcast %5 : vector<1x32x16xbf16> to vector<8x32x16xbf16>
    "tpu.trace_start"() <{level = 10 : i32, message = "coh,chw->cow"}> : () -> ()
    %cst = arith.constant dense<0.000000e+00> : vector<8x32x16xf32>
    %7 = tpu.matmul %6, %2, %cst {dimension_numbers = #tpu.dot_dimension_numbers<[2], [1], [1], [2], [0, 0, 0, 1, 1, 2], [0], [0]>} : vector<8x32x16xbf16>, vector<8x16x16xbf16>, vector<8x32x16xf32> -> vector<8x32x16xf32>
    "tpu.trace_stop"() : () -> ()
    %8 = arith.truncf %7 : vector<8x32x16xf32> to vector<8x32x16xbf16>
    %9 = vector.shape_cast %8 : vector<8x32x16xbf16> to vector<256x16xbf16>
    %c0_5 = arith.constant 0 : index
    %c0_6 = arith.constant 0 : index
    %10 = vector.load %arg4[%c0_5, %c0_6] : memref<16x64xbf16, #tpu.memory_space<vmem>>, vector<16x64xbf16>
    %cst_7 = arith.constant dense<0.000000e+00> : vector<256x64xf32>
    %11 = tpu.matmul %9, %10, %cst_7 {dimension_numbers = #tpu.dot_dimension_numbers<[1], [0], [0], [1], [0, 0, 1, 1], [], []>} : vector<256x16xbf16>, vector<16x64xbf16>, vector<256x64xf32> -> vector<256x64xf32>
    %12 = vector.shape_cast %11 : vector<256x64xf32> to vector<8x32x64xf32>
    %c0_8 = arith.constant 0 : index
    %c0_9 = arith.constant 0 : index
    %c0_10 = arith.constant 0 : index
    %c0_11 = arith.constant 0 : index
    %13 = vector.load %arg5[%c0_8, %c0_9, %c0_10, %c0_11] : memref<1x8x32x64xf32, #tpu.memory_space<vmem>>, vector<1x8x32x64xf32>
    %14 = vector.shape_cast %13 : vector<1x8x32x64xf32> to vector<8x32x64xf32>
    %15 = vector.shape_cast %12 : vector<8x32x64xf32> to vector<1x8x32x64xf32>
    tpu.vector_store %arg5[%c0_8, %c0_9, %c0_10, %c0_11], %15 {strides = array<i32>} : memref<1x8x32x64xf32, #tpu.memory_space<vmem>>, vector<1x8x32x64xf32>,
    return
  }
  func.func @transform_0(%arg0: i32, %arg1: i32) -> (i32, i32, i32, i32) {
    %c0_i32 = arith.constant 0 : i32
    %c0_i32_0 = arith.constant 0 : i32
    %c0_i32_1 = arith.constant 0 : i32
    %c0_i32_2 = arith.constant 0 : i32
    return %arg0, %c0_i32, %c0_i32_0, %c0_i32_1 : i32, i32, i32, i32
  }
  func.func @transform_1(%arg0: i32, %arg1: i32) -> (i32, i32) {
    %c0_i32 = arith.constant 0 : i32
    %c0_i32_0 = arith.constant 0 : i32
    return %arg1, %c0_i32 : i32, i32
  }
  func.func @transform_2(%arg0: i32, %arg1: i32) -> (i32, i32) {
    %c0_i32 = arith.constant 0 : i32
    %c0_i32_0 = arith.constant 0 : i32
    %c0_i32_1 = arith.constant 0 : i32
    return %c0_i32, %c0_i32_0 : i32, i32
  }
  func.func @transform_3(%arg0: i32, %arg1: i32) -> (i32, i32, i32, i32) {
    %c0_i32 = arith.constant 0 : i32
    %c0_i32_0 = arith.constant 0 : i32
    %c0_i32_1 = arith.constant 0 : i32
    return %arg0, %c0_i32, %arg1, %c0_i32_0 : i32, i32, i32, i32
  }
}

module attributes {stable_mosaic.version = 11 : i64} {
  func.func @_fused_head_kernel(%arg0: i32, %arg1: i32, %arg2: memref<1x8x16x48xbf16, #tpu.memory_space<vmem>>, %arg3: memref<1x2x16x48xbf16, #tpu.memory_space<vmem>>, %arg4: memref<1x2x16x48xbf16, #tpu.memory_space<vmem>>, %arg5: memref<3x144x32xbf16, #tpu.memory_space<vmem>>, %arg6: memref<1x32xf32, #tpu.memory_space<vmem>>, %arg7: memref<3x96x32xbf16, #tpu.memory_space<vmem>>, %arg8: memref<1x32xf32, #tpu.memory_space<vmem>>, %arg9: memref<32x8xf32, #tpu.memory_space<vmem>>, %arg10: memref<1x8xf32, #tpu.memory_space<vmem>>, %arg11: memref<1x8x128xf32, #tpu.memory_space<vmem>>, %arg12: memref<12x20x48xbf16, #tpu.memory_space<vmem>>, %arg13: memref<10x18x32xbf16, #tpu.memory_space<vmem>>) attributes {dimension_semantics = [#tpu.dimension_semantics<parallel>, #tpu.dimension_semantics<parallel>], iteration_bounds = array<i64: 2, 2>, scalar_prefetch = 0 : i64, scratch_operands = 2 : i64, tpu.core_type = #tpu.core_type<tc>, window_params = [{transform_indices = @transform_0, window_bounds = array<i64: 1, 8, 16, 48>}, {transform_indices = @transform_1, window_bounds = array<i64: 1, 2, 16, 48>}, {transform_indices = @transform_2, window_bounds = array<i64: 1, 2, 16, 48>}, {pipeline_mode = #tpu.pipeline_mode<synchronous>, transform_indices = @transform_3, window_bounds = array<i64: 3, 144, 32>}, {pipeline_mode = #tpu.pipeline_mode<synchronous>, transform_indices = @transform_4, window_bounds = array<i64: 1, 32>}, {pipeline_mode = #tpu.pipeline_mode<synchronous>, transform_indices = @transform_5, window_bounds = array<i64: 3, 96, 32>}, {pipeline_mode = #tpu.pipeline_mode<synchronous>, transform_indices = @transform_6, window_bounds = array<i64: 1, 32>}, {pipeline_mode = #tpu.pipeline_mode<synchronous>, transform_indices = @transform_7, window_bounds = array<i64: 32, 8>}, {pipeline_mode = #tpu.pipeline_mode<synchronous>, transform_indices = @transform_8, window_bounds = array<i64: 1, 8>}, {transform_indices = @transform_9, window_bounds = array<i64: 1, 8, 128>}]} {
    %cst = arith.constant 0.000000e+00 : bf16
    %0 = vector.broadcast %cst : bf16 to vector<12x2x48xbf16>
    %c0 = arith.constant 0 : index
    %c0_0 = arith.constant 0 : index
    %c0_1 = arith.constant 0 : index
    %1 = vector.load %arg12[%c0, %c0_0, %c0_1] : memref<12x20x48xbf16, #tpu.memory_space<vmem>>, vector<12x2x48xbf16>
    tpu.vector_store %arg12[%c0, %c0_0, %c0_1], %0 {strides = array<i32>} : memref<12x20x48xbf16, #tpu.memory_space<vmem>>, vector<12x2x48xbf16>,
    %cst_2 = arith.constant 0.000000e+00 : bf16
    %2 = vector.broadcast %cst_2 : bf16 to vector<12x2x48xbf16>
    %c0_3 = arith.constant 0 : index
    %c18 = arith.constant 18 : index
    %c0_4 = arith.constant 0 : index
    %3 = vector.load %arg12[%c0_3, %c18, %c0_4] : memref<12x20x48xbf16, #tpu.memory_space<vmem>>, vector<12x2x48xbf16>
    tpu.vector_store %arg12[%c0_3, %c18, %c0_4], %2 {strides = array<i32>} : memref<12x20x48xbf16, #tpu.memory_space<vmem>>, vector<12x2x48xbf16>,
    %c0_5 = arith.constant 0 : index
    %c0_6 = arith.constant 0 : index
    %c0_7 = arith.constant 0 : index
    %c0_8 = arith.constant 0 : index
    %4 = vector.load %arg2[%c0_5, %c0_6, %c0_7, %c0_8] : memref<1x8x16x48xbf16, #tpu.memory_space<vmem>>, vector<1x8x16x48xbf16>
    %5 = vector.shape_cast %4 : vector<1x8x16x48xbf16> to vector<8x16x48xbf16>
    %c2 = arith.constant 2 : index
    %c2_9 = arith.constant 2 : index
    %c0_10 = arith.constant 0 : index
    %6 = vector.load %arg12[%c2, %c2_9, %c0_10] : memref<12x20x48xbf16, #tpu.memory_space<vmem>>, vector<8x16x48xbf16>
    tpu.vector_store %arg12[%c2, %c2_9, %c0_10], %5 {strides = array<i32>} : memref<12x20x48xbf16, #tpu.memory_space<vmem>>, vector<8x16x48xbf16>,
    %c0_i32 = arith.constant 0 : i32
    %7 = arith.cmpi sgt, %arg1, %c0_i32 : i32
    %8 = arith.extui %7 : i1 to i32
    %c0_i32_11 = arith.constant 0 : i32
    %9 = arith.cmpi ne, %8, %c0_i32_11 : i32
    scf.if %9 {
      %c0_124 = arith.constant 0 : index
      %c0_125 = arith.constant 0 : index
      %c0_126 = arith.constant 0 : index
      %c0_127 = arith.constant 0 : index
      %107 = vector.load %arg3[%c0_124, %c0_125, %c0_126, %c0_127] : memref<1x2x16x48xbf16, #tpu.memory_space<vmem>>, vector<1x2x16x48xbf16>
      %108 = vector.shape_cast %107 : vector<1x2x16x48xbf16> to vector<2x16x48xbf16>
      %c0_128 = arith.constant 0 : index
      %c2_129 = arith.constant 2 : index
      %c0_130 = arith.constant 0 : index
      %109 = vector.load %arg12[%c0_128, %c2_129, %c0_130] : memref<12x20x48xbf16, #tpu.memory_space<vmem>>, vector<2x16x48xbf16>
      tpu.vector_store %arg12[%c0_128, %c2_129, %c0_130], %108 {strides = array<i32>} : memref<12x20x48xbf16, #tpu.memory_space<vmem>>, vector<2x16x48xbf16>,
    } else {
    }
    %c0_i32_12 = arith.constant 0 : i32
    %10 = arith.cmpi eq, %arg1, %c0_i32_12 : i32
    %11 = arith.extui %10 : i1 to i32
    %c0_i32_13 = arith.constant 0 : i32
    %12 = arith.cmpi ne, %11, %c0_i32_13 : i32
    scf.if %12 {
      %cst_124 = arith.constant 0.000000e+00 : bf16
      %107 = vector.broadcast %cst_124 : bf16 to vector<2x16x48xbf16>
      %c0_125 = arith.constant 0 : index
      %c2_126 = arith.constant 2 : index
      %c0_127 = arith.constant 0 : index
      %108 = vector.load %arg12[%c0_125, %c2_126, %c0_127] : memref<12x20x48xbf16, #tpu.memory_space<vmem>>, vector<2x16x48xbf16>
      tpu.vector_store %arg12[%c0_125, %c2_126, %c0_127], %107 {strides = array<i32>} : memref<12x20x48xbf16, #tpu.memory_space<vmem>>, vector<2x16x48xbf16>,
    } else {
    }
    %c1_i32 = arith.constant 1 : i32
    %13 = arith.cmpi slt, %arg1, %c1_i32 : i32
    %14 = arith.extui %13 : i1 to i32
    %c0_i32_14 = arith.constant 0 : i32
    %15 = arith.cmpi ne, %14, %c0_i32_14 : i32
    scf.if %15 {
      %c0_124 = arith.constant 0 : index
      %c0_125 = arith.constant 0 : index
      %c0_126 = arith.constant 0 : index
      %c0_127 = arith.constant 0 : index
      %107 = vector.load %arg4[%c0_124, %c0_125, %c0_126, %c0_127] : memref<1x2x16x48xbf16, #tpu.memory_space<vmem>>, vector<1x2x16x48xbf16>
      %108 = vector.shape_cast %107 : vector<1x2x16x48xbf16> to vector<2x16x48xbf16>
      %c10 = arith.constant 10 : index
      %c2_128 = arith.constant 2 : index
      %c0_129 = arith.constant 0 : index
      %109 = vector.load %arg12[%c10, %c2_128, %c0_129] : memref<12x20x48xbf16, #tpu.memory_space<vmem>>, vector<2x16x48xbf16>
      tpu.vector_store %arg12[%c10, %c2_128, %c0_129], %108 {strides = array<i32>} : memref<12x20x48xbf16, #tpu.memory_space<vmem>>, vector<2x16x48xbf16>,
    } else {
    }
    %c1_i32_15 = arith.constant 1 : i32
    %16 = arith.cmpi eq, %arg1, %c1_i32_15 : i32
    %17 = arith.extui %16 : i1 to i32
    %c0_i32_16 = arith.constant 0 : i32
    %18 = arith.cmpi ne, %17, %c0_i32_16 : i32
    scf.if %18 {
      %cst_124 = arith.constant 0.000000e+00 : bf16
      %107 = vector.broadcast %cst_124 : bf16 to vector<2x16x48xbf16>
      %c10 = arith.constant 10 : index
      %c2_125 = arith.constant 2 : index
      %c0_126 = arith.constant 0 : index
      %108 = vector.load %arg12[%c10, %c2_125, %c0_126] : memref<12x20x48xbf16, #tpu.memory_space<vmem>>, vector<2x16x48xbf16>
      tpu.vector_store %arg12[%c10, %c2_125, %c0_126], %107 {strides = array<i32>} : memref<12x20x48xbf16, #tpu.memory_space<vmem>>, vector<2x16x48xbf16>,
    } else {
    }
    %cst_17 = arith.constant 0.000000e+00 : f32
    %19 = vector.broadcast %cst_17 : f32 to vector<180x32xf32>
    %c0_18 = arith.constant 0 : index
    %c0_19 = arith.constant 0 : index
    %c0_20 = arith.constant 0 : index
    %20 = vector.load %arg12[%c0_18, %c0_19, %c0_20] : memref<12x20x48xbf16, #tpu.memory_space<vmem>>, vector<10x18x48xbf16>
    %c0_21 = arith.constant 0 : index
    %c1 = arith.constant 1 : index
    %c0_22 = arith.constant 0 : index
    %21 = vector.load %arg12[%c0_21, %c1, %c0_22] : memref<12x20x48xbf16, #tpu.memory_space<vmem>>, vector<10x18x48xbf16>
    %c0_23 = arith.constant 0 : index
    %c2_24 = arith.constant 2 : index
    %c0_25 = arith.constant 0 : index
    %22 = vector.load %arg12[%c0_23, %c2_24, %c0_25] : memref<12x20x48xbf16, #tpu.memory_space<vmem>>, vector<10x18x48xbf16>
    %23 = tpu.concatenate %20, %21, %22 in 2 : vector<10x18x48xbf16>, vector<10x18x48xbf16>, vector<10x18x48xbf16> -> vector<10x18x144xbf16>
    %24 = vector.shape_cast %23 : vector<10x18x144xbf16> to vector<180x144xbf16>
    %c0_26 = arith.constant 0 : index
    %c0_27 = arith.constant 0 : index
    %c0_28 = arith.constant 0 : index
    %25 = vector.load %arg5[%c0_26, %c0_27, %c0_28] : memref<3x144x32xbf16, #tpu.memory_space<vmem>>, vector<1x144x32xbf16>
    %26 = vector.shape_cast %25 : vector<1x144x32xbf16> to vector<144x32xbf16>
    %cst_29 = arith.constant dense<0.000000e+00> : vector<180x32xf32>
    %27 = tpu.matmul %24, %26, %cst_29 {dimension_numbers = #tpu.dot_dimension_numbers<[1], [0], [0], [1], [0, 0, 1, 1], [], []>} : vector<180x144xbf16>, vector<144x32xbf16>, vector<180x32xf32> -> vector<180x32xf32>
    %28 = arith.addf %19, %27 : vector<180x32xf32>
    %c1_30 = arith.constant 1 : index
    %c0_31 = arith.constant 0 : index
    %c0_32 = arith.constant 0 : index
    %29 = vector.load %arg12[%c1_30, %c0_31, %c0_32] : memref<12x20x48xbf16, #tpu.memory_space<vmem>>, vector<10x18x48xbf16>
    %c1_33 = arith.constant 1 : index
    %c1_34 = arith.constant 1 : index
    %c0_35 = arith.constant 0 : index
    %30 = vector.load %arg12[%c1_33, %c1_34, %c0_35] : memref<12x20x48xbf16, #tpu.memory_space<vmem>>, vector<10x18x48xbf16>
    %c1_36 = arith.constant 1 : index
    %c2_37 = arith.constant 2 : index
    %c0_38 = arith.constant 0 : index
    %31 = vector.load %arg12[%c1_36, %c2_37, %c0_38] : memref<12x20x48xbf16, #tpu.memory_space<vmem>>, vector<10x18x48xbf16>
    %32 = tpu.concatenate %29, %30, %31 in 2 : vector<10x18x48xbf16>, vector<10x18x48xbf16>, vector<10x18x48xbf16> -> vector<10x18x144xbf16>
    %33 = vector.shape_cast %32 : vector<10x18x144xbf16> to vector<180x144xbf16>
    %c1_39 = arith.constant 1 : index
    %c0_40 = arith.constant 0 : index
    %c0_41 = arith.constant 0 : index
    %34 = vector.load %arg5[%c1_39, %c0_40, %c0_41] : memref<3x144x32xbf16, #tpu.memory_space<vmem>>, vector<1x144x32xbf16>
    %35 = vector.shape_cast %34 : vector<1x144x32xbf16> to vector<144x32xbf16>
    %cst_42 = arith.constant dense<0.000000e+00> : vector<180x32xf32>
    %36 = tpu.matmul %33, %35, %cst_42 {dimension_numbers = #tpu.dot_dimension_numbers<[1], [0], [0], [1], [0, 0, 1, 1], [], []>} : vector<180x144xbf16>, vector<144x32xbf16>, vector<180x32xf32> -> vector<180x32xf32>
    %37 = arith.addf %28, %36 : vector<180x32xf32>
    %c2_43 = arith.constant 2 : index
    %c0_44 = arith.constant 0 : index
    %c0_45 = arith.constant 0 : index
    %38 = vector.load %arg12[%c2_43, %c0_44, %c0_45] : memref<12x20x48xbf16, #tpu.memory_space<vmem>>, vector<10x18x48xbf16>
    %c2_46 = arith.constant 2 : index
    %c1_47 = arith.constant 1 : index
    %c0_48 = arith.constant 0 : index
    %39 = vector.load %arg12[%c2_46, %c1_47, %c0_48] : memref<12x20x48xbf16, #tpu.memory_space<vmem>>, vector<10x18x48xbf16>
    %c2_49 = arith.constant 2 : index
    %c2_50 = arith.constant 2 : index
    %c0_51 = arith.constant 0 : index
    %40 = vector.load %arg12[%c2_49, %c2_50, %c0_51] : memref<12x20x48xbf16, #tpu.memory_space<vmem>>, vector<10x18x48xbf16>
    %41 = tpu.concatenate %38, %39, %40 in 2 : vector<10x18x48xbf16>, vector<10x18x48xbf16>, vector<10x18x48xbf16> -> vector<10x18x144xbf16>
    %42 = vector.shape_cast %41 : vector<10x18x144xbf16> to vector<180x144xbf16>
    %c2_52 = arith.constant 2 : index
    %c0_53 = arith.constant 0 : index
    %c0_54 = arith.constant 0 : index
    %43 = vector.load %arg5[%c2_52, %c0_53, %c0_54] : memref<3x144x32xbf16, #tpu.memory_space<vmem>>, vector<1x144x32xbf16>
    %44 = vector.shape_cast %43 : vector<1x144x32xbf16> to vector<144x32xbf16>
    %cst_55 = arith.constant dense<0.000000e+00> : vector<180x32xf32>
    %45 = tpu.matmul %42, %44, %cst_55 {dimension_numbers = #tpu.dot_dimension_numbers<[1], [0], [0], [1], [0, 0, 1, 1], [], []>} : vector<180x144xbf16>, vector<144x32xbf16>, vector<180x32xf32> -> vector<180x32xf32>
    %46 = arith.addf %37, %45 : vector<180x32xf32>
    %c0_56 = arith.constant 0 : index
    %c0_57 = arith.constant 0 : index
    %47 = vector.load %arg6[%c0_56, %c0_57] : memref<1x32xf32, #tpu.memory_space<vmem>>, vector<1x32xf32>
    %48 = vector.broadcast %47 : vector<1x32xf32> to vector<180x32xf32>
    %49 = arith.addf %46, %48 : vector<180x32xf32>
    %cst_58 = arith.constant 0.000000e+00 : f32
    %50 = vector.broadcast %cst_58 : f32 to vector<180x32xf32>
    %51 = arith.maximumf %49, %50 : vector<180x32xf32>
    %52 = arith.truncf %51 : vector<180x32xf32> to vector<180x32xbf16>
    %53 = vector.shape_cast %52 : vector<180x32xbf16> to vector<10x18x32xbf16>
    %c0_59 = arith.constant 0 : index
    %c0_60 = arith.constant 0 : index
    %c0_61 = arith.constant 0 : index
    %54 = vector.load %arg13[%c0_59, %c0_60, %c0_61] : memref<10x18x32xbf16, #tpu.memory_space<vmem>>, vector<10x18x32xbf16>
    tpu.vector_store %arg13[%c0_59, %c0_60, %c0_61], %53 {strides = array<i32>} : memref<10x18x32xbf16, #tpu.memory_space<vmem>>, vector<10x18x32xbf16>,
    %cst_62 = arith.constant 0.000000e+00 : bf16
    %55 = vector.broadcast %cst_62 : bf16 to vector<10x1x32xbf16>
    %c0_63 = arith.constant 0 : index
    %c0_64 = arith.constant 0 : index
    %c0_65 = arith.constant 0 : index
    %56 = vector.load %arg13[%c0_63, %c0_64, %c0_65] : memref<10x18x32xbf16, #tpu.memory_space<vmem>>, vector<10x1x32xbf16>
    tpu.vector_store %arg13[%c0_63, %c0_64, %c0_65], %55 {strides = array<i32>} : memref<10x18x32xbf16, #tpu.memory_space<vmem>>, vector<10x1x32xbf16>,
    %cst_66 = arith.constant 0.000000e+00 : bf16
    %57 = vector.broadcast %cst_66 : bf16 to vector<10x1x32xbf16>
    %c0_67 = arith.constant 0 : index
    %c17 = arith.constant 17 : index
    %c0_68 = arith.constant 0 : index
    %58 = vector.load %arg13[%c0_67, %c17, %c0_68] : memref<10x18x32xbf16, #tpu.memory_space<vmem>>, vector<10x1x32xbf16>
    tpu.vector_store %arg13[%c0_67, %c17, %c0_68], %57 {strides = array<i32>} : memref<10x18x32xbf16, #tpu.memory_space<vmem>>, vector<10x1x32xbf16>,
    %c0_i32_69 = arith.constant 0 : i32
    %59 = arith.cmpi eq, %arg1, %c0_i32_69 : i32
    %60 = arith.extui %59 : i1 to i32
    %c0_i32_70 = arith.constant 0 : i32
    %61 = arith.cmpi ne, %60, %c0_i32_70 : i32
    scf.if %61 {
      %cst_124 = arith.constant 0.000000e+00 : bf16
      %107 = vector.broadcast %cst_124 : bf16 to vector<1x18x32xbf16>
      %c0_125 = arith.constant 0 : index
      %c0_126 = arith.constant 0 : index
      %c0_127 = arith.constant 0 : index
      %108 = vector.load %arg13[%c0_125, %c0_126, %c0_127] : memref<10x18x32xbf16, #tpu.memory_space<vmem>>, vector<1x18x32xbf16>
      tpu.vector_store %arg13[%c0_125, %c0_126, %c0_127], %107 {strides = array<i32>} : memref<10x18x32xbf16, #tpu.memory_space<vmem>>, vector<1x18x32xbf16>,
    } else {
    }
    %c1_i32_71 = arith.constant 1 : i32
    %62 = arith.cmpi eq, %arg1, %c1_i32_71 : i32
    %63 = arith.extui %62 : i1 to i32
    %c0_i32_72 = arith.constant 0 : i32
    %64 = arith.cmpi ne, %63, %c0_i32_72 : i32
    scf.if %64 {
      %cst_124 = arith.constant 0.000000e+00 : bf16
      %107 = vector.broadcast %cst_124 : bf16 to vector<1x18x32xbf16>
      %c9 = arith.constant 9 : index
      %c0_125 = arith.constant 0 : index
      %c0_126 = arith.constant 0 : index
      %108 = vector.load %arg13[%c9, %c0_125, %c0_126] : memref<10x18x32xbf16, #tpu.memory_space<vmem>>, vector<1x18x32xbf16>
      tpu.vector_store %arg13[%c9, %c0_125, %c0_126], %107 {strides = array<i32>} : memref<10x18x32xbf16, #tpu.memory_space<vmem>>, vector<1x18x32xbf16>,
    } else {
    }
    %cst_73 = arith.constant 0.000000e+00 : f32
    %65 = vector.broadcast %cst_73 : f32 to vector<128x32xf32>
    %c0_74 = arith.constant 0 : index
    %c0_75 = arith.constant 0 : index
    %c0_76 = arith.constant 0 : index
    %66 = vector.load %arg13[%c0_74, %c0_75, %c0_76] : memref<10x18x32xbf16, #tpu.memory_space<vmem>>, vector<8x16x32xbf16>
    %c0_77 = arith.constant 0 : index
    %c1_78 = arith.constant 1 : index
    %c0_79 = arith.constant 0 : index
    %67 = vector.load %arg13[%c0_77, %c1_78, %c0_79] : memref<10x18x32xbf16, #tpu.memory_space<vmem>>, vector<8x16x32xbf16>
    %c0_80 = arith.constant 0 : index
    %c2_81 = arith.constant 2 : index
    %c0_82 = arith.constant 0 : index
    %68 = vector.load %arg13[%c0_80, %c2_81, %c0_82] : memref<10x18x32xbf16, #tpu.memory_space<vmem>>, vector<8x16x32xbf16>
    %69 = tpu.concatenate %66, %67, %68 in 2 : vector<8x16x32xbf16>, vector<8x16x32xbf16>, vector<8x16x32xbf16> -> vector<8x16x96xbf16>
    %70 = vector.shape_cast %69 : vector<8x16x96xbf16> to vector<128x96xbf16>
    %c0_83 = arith.constant 0 : index
    %c0_84 = arith.constant 0 : index
    %c0_85 = arith.constant 0 : index
    %71 = vector.load %arg7[%c0_83, %c0_84, %c0_85] : memref<3x96x32xbf16, #tpu.memory_space<vmem>>, vector<1x96x32xbf16>
    %72 = vector.shape_cast %71 : vector<1x96x32xbf16> to vector<96x32xbf16>
    %cst_86 = arith.constant dense<0.000000e+00> : vector<128x32xf32>
    %73 = tpu.matmul %70, %72, %cst_86 {dimension_numbers = #tpu.dot_dimension_numbers<[1], [0], [0], [1], [0, 0, 1, 1], [], []>} : vector<128x96xbf16>, vector<96x32xbf16>, vector<128x32xf32> -> vector<128x32xf32>
    %74 = arith.addf %65, %73 : vector<128x32xf32>
    %c1_87 = arith.constant 1 : index
    %c0_88 = arith.constant 0 : index
    %c0_89 = arith.constant 0 : index
    %75 = vector.load %arg13[%c1_87, %c0_88, %c0_89] : memref<10x18x32xbf16, #tpu.memory_space<vmem>>, vector<8x16x32xbf16>
    %c1_90 = arith.constant 1 : index
    %c1_91 = arith.constant 1 : index
    %c0_92 = arith.constant 0 : index
    %76 = vector.load %arg13[%c1_90, %c1_91, %c0_92] : memref<10x18x32xbf16, #tpu.memory_space<vmem>>, vector<8x16x32xbf16>
    %c1_93 = arith.constant 1 : index
    %c2_94 = arith.constant 2 : index
    %c0_95 = arith.constant 0 : index
    %77 = vector.load %arg13[%c1_93, %c2_94, %c0_95] : memref<10x18x32xbf16, #tpu.memory_space<vmem>>, vector<8x16x32xbf16>
    %78 = tpu.concatenate %75, %76, %77 in 2 : vector<8x16x32xbf16>, vector<8x16x32xbf16>, vector<8x16x32xbf16> -> vector<8x16x96xbf16>
    %79 = vector.shape_cast %78 : vector<8x16x96xbf16> to vector<128x96xbf16>
    %c1_96 = arith.constant 1 : index
    %c0_97 = arith.constant 0 : index
    %c0_98 = arith.constant 0 : index
    %80 = vector.load %arg7[%c1_96, %c0_97, %c0_98] : memref<3x96x32xbf16, #tpu.memory_space<vmem>>, vector<1x96x32xbf16>
    %81 = vector.shape_cast %80 : vector<1x96x32xbf16> to vector<96x32xbf16>
    %cst_99 = arith.constant dense<0.000000e+00> : vector<128x32xf32>
    %82 = tpu.matmul %79, %81, %cst_99 {dimension_numbers = #tpu.dot_dimension_numbers<[1], [0], [0], [1], [0, 0, 1, 1], [], []>} : vector<128x96xbf16>, vector<96x32xbf16>, vector<128x32xf32> -> vector<128x32xf32>
    %83 = arith.addf %74, %82 : vector<128x32xf32>
    %c2_100 = arith.constant 2 : index
    %c0_101 = arith.constant 0 : index
    %c0_102 = arith.constant 0 : index
    %84 = vector.load %arg13[%c2_100, %c0_101, %c0_102] : memref<10x18x32xbf16, #tpu.memory_space<vmem>>, vector<8x16x32xbf16>
    %c2_103 = arith.constant 2 : index
    %c1_104 = arith.constant 1 : index
    %c0_105 = arith.constant 0 : index
    %85 = vector.load %arg13[%c2_103, %c1_104, %c0_105] : memref<10x18x32xbf16, #tpu.memory_space<vmem>>, vector<8x16x32xbf16>
    %c2_106 = arith.constant 2 : index
    %c2_107 = arith.constant 2 : index
    %c0_108 = arith.constant 0 : index
    %86 = vector.load %arg13[%c2_106, %c2_107, %c0_108] : memref<10x18x32xbf16, #tpu.memory_space<vmem>>, vector<8x16x32xbf16>
    %87 = tpu.concatenate %84, %85, %86 in 2 : vector<8x16x32xbf16>, vector<8x16x32xbf16>, vector<8x16x32xbf16> -> vector<8x16x96xbf16>
    %88 = vector.shape_cast %87 : vector<8x16x96xbf16> to vector<128x96xbf16>
    %c2_109 = arith.constant 2 : index
    %c0_110 = arith.constant 0 : index
    %c0_111 = arith.constant 0 : index
    %89 = vector.load %arg7[%c2_109, %c0_110, %c0_111] : memref<3x96x32xbf16, #tpu.memory_space<vmem>>, vector<1x96x32xbf16>
    %90 = vector.shape_cast %89 : vector<1x96x32xbf16> to vector<96x32xbf16>
    %cst_112 = arith.constant dense<0.000000e+00> : vector<128x32xf32>
    %91 = tpu.matmul %88, %90, %cst_112 {dimension_numbers = #tpu.dot_dimension_numbers<[1], [0], [0], [1], [0, 0, 1, 1], [], []>} : vector<128x96xbf16>, vector<96x32xbf16>, vector<128x32xf32> -> vector<128x32xf32>
    %92 = arith.addf %83, %91 : vector<128x32xf32>
    %c0_113 = arith.constant 0 : index
    %c0_114 = arith.constant 0 : index
    %93 = vector.load %arg8[%c0_113, %c0_114] : memref<1x32xf32, #tpu.memory_space<vmem>>, vector<1x32xf32>
    %94 = vector.broadcast %93 : vector<1x32xf32> to vector<128x32xf32>
    %95 = arith.addf %92, %94 : vector<128x32xf32>
    %cst_115 = arith.constant 0.000000e+00 : f32
    %96 = vector.broadcast %cst_115 : f32 to vector<128x32xf32>
    %97 = arith.maximumf %95, %96 : vector<128x32xf32>
    %c0_116 = arith.constant 0 : index
    %c0_117 = arith.constant 0 : index
    %98 = vector.load %arg9[%c0_116, %c0_117] : memref<32x8xf32, #tpu.memory_space<vmem>>, vector<32x8xf32>
    %cst_118 = arith.constant dense<0.000000e+00> : vector<128x8xf32>
    %99 = tpu.matmul %97, %98, %cst_118 {dimension_numbers = #tpu.dot_dimension_numbers<[1], [0], [0], [1], [0, 0, 1, 1], [], []>} : vector<128x32xf32>, vector<32x8xf32>, vector<128x8xf32> -> vector<128x8xf32>
    %c0_119 = arith.constant 0 : index
    %c0_120 = arith.constant 0 : index
    %100 = vector.load %arg10[%c0_119, %c0_120] : memref<1x8xf32, #tpu.memory_space<vmem>>, vector<1x8xf32>
    %101 = vector.broadcast %100 : vector<1x8xf32> to vector<128x8xf32>
    %102 = arith.addf %99, %101 : vector<128x8xf32>
    %103 = tpu.transpose %102, [1, 0] : vector<128x8xf32> -> vector<8x128xf32>
    %c0_121 = arith.constant 0 : index
    %c0_122 = arith.constant 0 : index
    %c0_123 = arith.constant 0 : index
    %104 = vector.load %arg11[%c0_121, %c0_122, %c0_123] : memref<1x8x128xf32, #tpu.memory_space<vmem>>, vector<1x8x128xf32>
    %105 = vector.shape_cast %104 : vector<1x8x128xf32> to vector<8x128xf32>
    %106 = vector.shape_cast %103 : vector<8x128xf32> to vector<1x8x128xf32>
    tpu.vector_store %arg11[%c0_121, %c0_122, %c0_123], %106 {strides = array<i32>} : memref<1x8x128xf32, #tpu.memory_space<vmem>>, vector<1x8x128xf32>,
    return
  }
  func.func @transform_0(%arg0: i32, %arg1: i32) -> (i32, i32, i32, i32) {
    %c0_i32 = arith.constant 0 : i32
    %c0_i32_0 = arith.constant 0 : i32
    %c0_i32_1 = arith.constant 0 : i32
    return %arg0, %arg1, %c0_i32, %c0_i32_0 : i32, i32, i32, i32
  }
  func.func @transform_1(%arg0: i32, %arg1: i32) -> (i32, i32, i32, i32) {
    %c4_i32 = arith.constant 4 : i32
    %0 = arith.muli %arg1, %c4_i32 : i32
    %c1_i32 = arith.constant 1 : i32
    %1 = arith.subi %0, %c1_i32 : i32
    %c0_i32 = arith.constant 0 : i32
    %2 = arith.maxsi %1, %c0_i32 : i32
    %c0_i32_0 = arith.constant 0 : i32
    %c0_i32_1 = arith.constant 0 : i32
    %c0_i32_2 = arith.constant 0 : i32
    return %arg0, %2, %c0_i32_0, %c0_i32_1 : i32, i32, i32, i32
  }
  func.func @transform_2(%arg0: i32, %arg1: i32) -> (i32, i32, i32, i32) {
    %c1_i32 = arith.constant 1 : i32
    %0 = arith.addi %arg1, %c1_i32 : i32
    %c4_i32 = arith.constant 4 : i32
    %1 = arith.muli %0, %c4_i32 : i32
    %c7_i32 = arith.constant 7 : i32
    %2 = arith.minsi %1, %c7_i32 : i32
    %c0_i32 = arith.constant 0 : i32
    %c0_i32_0 = arith.constant 0 : i32
    %c0_i32_1 = arith.constant 0 : i32
    return %arg0, %2, %c0_i32, %c0_i32_0 : i32, i32, i32, i32
  }
  func.func @transform_3(%arg0: i32, %arg1: i32) -> (i32, i32, i32) {
    %c0_i32 = arith.constant 0 : i32
    %c0_i32_0 = arith.constant 0 : i32
    %c0_i32_1 = arith.constant 0 : i32
    %c0_i32_2 = arith.constant 0 : i32
    return %c0_i32, %c0_i32_0, %c0_i32_1 : i32, i32, i32
  }
  func.func @transform_4(%arg0: i32, %arg1: i32) -> (i32, i32) {
    %c0_i32 = arith.constant 0 : i32
    %c0_i32_0 = arith.constant 0 : i32
    %c0_i32_1 = arith.constant 0 : i32
    return %c0_i32, %c0_i32_0 : i32, i32
  }
  func.func @transform_5(%arg0: i32, %arg1: i32) -> (i32, i32, i32) {
    %c0_i32 = arith.constant 0 : i32
    %c0_i32_0 = arith.constant 0 : i32
    %c0_i32_1 = arith.constant 0 : i32
    %c0_i32_2 = arith.constant 0 : i32
    return %c0_i32, %c0_i32_0, %c0_i32_1 : i32, i32, i32
  }
  func.func @transform_6(%arg0: i32, %arg1: i32) -> (i32, i32) {
    %c0_i32 = arith.constant 0 : i32
    %c0_i32_0 = arith.constant 0 : i32
    %c0_i32_1 = arith.constant 0 : i32
    return %c0_i32, %c0_i32_0 : i32, i32
  }
  func.func @transform_7(%arg0: i32, %arg1: i32) -> (i32, i32) {
    %c0_i32 = arith.constant 0 : i32
    %c0_i32_0 = arith.constant 0 : i32
    %c0_i32_1 = arith.constant 0 : i32
    return %c0_i32, %c0_i32_0 : i32, i32
  }
  func.func @transform_8(%arg0: i32, %arg1: i32) -> (i32, i32) {
    %c0_i32 = arith.constant 0 : i32
    %c0_i32_0 = arith.constant 0 : i32
    %c0_i32_1 = arith.constant 0 : i32
    return %c0_i32, %c0_i32_0 : i32, i32
  }
  func.func @transform_9(%arg0: i32, %arg1: i32) -> (i32, i32, i32) {
    %c0_i32 = arith.constant 0 : i32
    %c0_i32_0 = arith.constant 0 : i32
    return %arg0, %c0_i32, %arg1 : i32, i32, i32
  }
}

</mosaic_0001>

<llo_original>
// kernel: _lambda_.3
$region0: #{_lambda_.3}
  #allocation0 [shape = 'u32[]', space=smem, size = 0x4, offset = 0x4, fixed_abs, tag = 'smem constant byte address 0x4 - core index']
  #allocation1 [shape = 'u32[144,128]{1,0:T(1,128)}', space=vmem, size = 0x12000, scoped, tag = 'internal scratch']
  #allocation4 [shape = 's32[]', space=sflag, size = 0x4, offset = 0, fixed_abs, tag = 'sflag constant byte address 0x0 - dummy sync flag']
  %s0 = inlined_call_operand.vmem [shape: f32[2,8,16,16], index: 0, kind: input, shape index: {}]
  %s1 = inlined_call_operand.vmem [shape: bf16[64,16], index: 1, kind: input, shape index: {}]
  %s2 = inlined_call_operand.vmem [shape: bf16[16,64], index: 2, kind: input, shape index: {}]
  %s3 = inlined_call_operand.hbm [shape: f32[2,8,64,64], index: 3, kind: output, shape index: {}]
  %s4 = sld [smem:[#allocation0]]
  $region45: #{_lambda_.3} parent=0
    _
  %s6 = ssub.s32 1, %s4
  %s7 = scalar_select 0, %s6, %s4
  $region1: #{_lambda_.3} parent=0
    #allocation2 [shape = 'u8[262144]{0}', space=vmem, size = 0x40000, scoped, tag = 'output window, operand 0']
    #allocation3 [shape = 's32[2]{0}', space=sflag, size = 0x8, scoped, tag = 'scoped memory for _lambda_.3']
    %8 = vsyncpa [#allocation3], 0
    %s9 = scalar_lea.sflag [#allocation3], 1
    %10 = vsyncpa %s9, 0
    loop: start=0, step=1, limit=6
    $region2: #{_lambda_.3} parent=1 // loop_pre_header
      _
    $region3: #{_lambda_.3} parent=1 // loop_header
      %s12 = sphi 0, %s16
      %p13 = scmp.ge.s32.totalorder %s12, 6
      %s19 = sphi 0, %s31
      %s20 = sphi 0, %s27
      %s21 = sphi 0, %s19
      %s22 = sphi 0, %s20
      %s23 = sphi 0, %s21
      %s24 = sphi 0, %s22
      %s34 = sphi 0, %s36
      %s37 = sphi 0, %s34
      %s38 = sphi 0, %s37
      %s54 = sphi 0, %s38
      %s60 = sphi 0, %s62
      %s63 = sphi 0, %s60
      %s64 = sphi 0, %s63
      %s80 = sphi 0, %s64
      %s84 = sphi 0, %s84
      %s86 = sphi 0, %s84
      %s87 = sphi 0, %s86
      %s101 = sphi 0, %s87
      %s109 = sphi 0, %s111
      %s112 = sphi 0, %s109
      %s113 = sphi 0, %s112
      %s129 = sphi 0, %s113
    $region4: #{_lambda_.3} parent=1 // loop_header_branch
      %15 = sbr.rel (%p13) target = $region8
    $region5: #{_lambda_.3} parent=1 // loop_body
      %s17 = ssub.s32 %s12, 1
      %s18 = ssub.s32 %s12, 2
      %s25 = sadd.s32 1, %s20
      %p26 = scmp.ge.s32.totalorder %s25, 2
      %s27 = scalar_select %p26, 0, %s25
      %s28 = sadd.s32 1, %s19
      %s29 = scalar_select %p26, %s28, %s19
      %p30 = scmp.ge.s32.totalorder %s29, 2
      %s31 = scalar_select %p30, 0, %s29
      %s32 = ssub.s32 %s19, %s31
      %p33 = scmp.eq.s32.totalorder %s32, 0
      %s35 = sadd.s32 %s34, 1
      %s36 = scalar_select %p33, %s34, %s35
      %p39 = pneg %p33
      %p40 = scmp.eq.s32.totalorder %s12, 3
      %p41 = por %p39, %p40
      %p42 = scmp.ne.s32.totalorder %s34, %s37
      %p43 = scmp.eq.s32.totalorder %s12, 0
      %p44 = por %p42, %p43
      %p45 = scmp.ne.s32.totalorder %s34, %s37
      %p46 = scmp.eq.s32.totalorder %s17, 3
      %p47 = por %p45, %p46
      %p48 = scmp.ne.s32.totalorder %s37, %s38
      %p49 = scmp.eq.s32.totalorder %s17, 0
      %p50 = por %p48, %p49
      %p51 = scmp.ne.s32.totalorder %s37, %s38
      %p52 = scmp.eq.s32.totalorder %s18, 3
      %p53 = por %p51, %p52
      %p55 = scmp.ne.s32.totalorder %s38, %s54
      %p56 = scmp.eq.s32.totalorder %s18, 0
      %p57 = por %p55, %p56
      %s58 = ssub.s32 %s20, %s27
      %p59 = scmp.eq.s32.totalorder %s58, 0
      %s61 = sadd.s32 %s60, 1
      %s62 = scalar_select %p59, %s60, %s61
      %p65 = pneg %p59
      %p66 = scmp.eq.s32.totalorder %s12, 3
      %p67 = por %p65, %p66
      %p68 = scmp.ne.s32.totalorder %s60, %s63
      %p69 = scmp.eq.s32.totalorder %s12, 0
      %p70 = por %p68, %p69
      %p71 = scmp.ne.s32.totalorder %s60, %s63
      %p72 = scmp.eq.s32.totalorder %s17, 3
      %p73 = por %p71, %p72
      %p74 = scmp.ne.s32.totalorder %s63, %s64
      %p75 = scmp.eq.s32.totalorder %s17, 0
      %p76 = por %p74, %p75
      %p77 = scmp.ne.s32.totalorder %s63, %s64
      %p78 = scmp.eq.s32.totalorder %s18, 3
      %p79 = por %p77, %p78
      %p81 = scmp.ne.s32.totalorder %s64, %s80
      %p82 = scmp.eq.s32.totalorder %s18, 0
      %p83 = por %p81, %p82
      %s85 = sadd.s32 %s84, 1
      %p88 = scmp.eq.s32.totalorder %s12, 3
      %p89 = scmp.ne.s32.totalorder %s84, %s86
      %p90 = scmp.eq.s32.totalorder %s12, 0
      %p91 = por %p89, %p90
      %p92 = scmp.ne.s32.totalorder %s84, %s86
      %p93 = scmp.eq.s32.totalorder %s17, 3
      %p94 = por %p92, %p93
      %p95 = scmp.ne.s32.totalorder %s86, %s87
      %p96 = scmp.eq.s32.totalorder %s17, 0
      %p97 = por %p95, %p96
      %p98 = scmp.ne.s32.totalorder %s86, %s87
      %p99 = scmp.eq.s32.totalorder %s18, 3
      %p100 = por %p98, %p99
      %p102 = scmp.ne.s32.totalorder %s87, %s101
      %p103 = scmp.eq.s32.totalorder %s18, 0
      %p104 = por %p102, %p103
      %s105 = ssub.s32 %s19, %s31
      %s106 = ssub.s32 %s20, %s27
      %s107 = sor.u32 %s105, %s106
      %p108 = scmp.eq.s32.totalorder %s107, 0
      %s110 = sadd.s32 %s109, 1
      %s111 = scalar_select %p108, %s109, %s110
      %p114 = pneg %p108
      %p115 = scmp.eq.s32.totalorder %s12, 3
      %p116 = por %p114, %p115
      %p117 = scmp.ne.s32.totalorder %s109, %s112
      %p118 = scmp.eq.s32.totalorder %s12, 0
      %p119 = por %p117, %p118
      %p120 = scmp.ne.s32.totalorder %s109, %s112
      %p121 = scmp.eq.s32.totalorder %s17, 3
      %p122 = por %p120, %p121
      %p123 = scmp.ne.s32.totalorder %s112, %s113
      %p124 = scmp.eq.s32.totalorder %s17, 0
      %p125 = por %p123, %p124
      %p126 = scmp.ne.s32.totalorder %s112, %s113
      %p127 = scmp.eq.s32.totalorder %s18, 3
      %p128 = por %p126, %p127
      %p130 = scmp.ne.s32.totalorder %s113, %s129
      %p131 = scmp.eq.s32.totalorder %s18, 0
      %p132 = por %p130, %p131
      %p133 = scmp.le.s32.totalorder 1, %s12
      %p134 = scmp.lt.s32.totalorder %s12, 5
      %p135 = pnand %p133, %p134
      %p136 = pneg %p135
      // Predicated region
      $region9: #{_lambda_.3} parent=5 // pred_check
        _
      $region10: #{_lambda_.3} parent=5 // pred_check_branch
        %138 = sbr.rel (%p135) target = $region12
      $region11: #{_lambda_.3} parent=5 // pred_region
        %s139 = ssub.s32 %s12, 1
        // Predicated region
        $region13: #{_lambda_.3} parent=11 // pred_check
          %p140 = pneg %p97
        $region14: #{_lambda_.3} parent=11 // pred_check_branch
          %142 = sbr.rel (%p140) target = $region16
        $region15: #{_lambda_.3} parent=11 // pred_region
          _
        $region16: #{_lambda_.3} parent=11 // pred_fallthru
          _
      $region12: #{_lambda_.3} parent=5 // pred_fallthru
        _
      %p143 = scmp.lt.s32.totalorder %s12, 4
      // Predicated region
      $region17: #{_lambda_.3} parent=5 // pred_check
        %p144 = pneg %p143
      $region18: #{_lambda_.3} parent=5 // pred_check_branch
        %146 = sbr.rel (%p144) target = $region20
      $region19: #{_lambda_.3} parent=5 // pred_region
        // Predicated region
        $region21: #{_lambda_.3} parent=19 // pred_check
          %p147 = pneg %p44
        $region22: #{_lambda_.3} parent=19 // pred_check_branch
          %149 = sbr.rel (%p147) target = $region24
        $region23: #{_lambda_.3} parent=19 // pred_region
          %p150 = scmp.lt.s32.totalorder %s19, 1
          %s151 = scalar_select %p150, %s19, 1
          %s152 = smul.addr %s151, 16
          %s153 = smul.addr %s152, 8
          %s154 = scalar_lea.vmem %s0, %s153
        $region24: #{_lambda_.3} parent=19 // pred_fallthru
          _
        // Predicated region
        $region25: #{_lambda_.3} parent=19 // pred_check
          %p155 = pneg %p70
        $region26: #{_lambda_.3} parent=19 // pred_check_branch
          %157 = sbr.rel (%p155) target = $region28
        $region27: #{_lambda_.3} parent=19 // pred_region
          %s158 = smul.u32 4, %s20
          %p159 = scmp.lt.s32.totalorder %s158, 7
          %s160 = scalar_select %p159, %s158, 7
          %s161 = smul.addr %s160, 4
          %s162 = scalar_lea.vmem %s1, %s161
          %s163 = smul.u32 4, %s20
        $region28: #{_lambda_.3} parent=19 // pred_fallthru
          _
      $region20: #{_lambda_.3} parent=5 // pred_fallthru
        _
      %p164 = scmp.le.s32.totalorder 1, %s12
      %p165 = scmp.lt.s32.totalorder %s12, 5
      %p166 = pnand %p164, %p165
      %p167 = pneg %p166
      // Predicated region
      $region29: #{_lambda_.3} parent=5 // pred_check
        _
      $region30: #{_lambda_.3} parent=5 // pred_check_branch
        %169 = sbr.rel (%p166) target = $region32
      $region31: #{_lambda_.3} parent=5 // pred_region
        %s170 = ssub.s32 %s12, 1
        %p171 = scmp.lt.s32.totalorder %s21, 1
        %s172 = scalar_select %p171, %s21, 1
        %s173 = smul.addr %s172, 16
        %s174 = smul.addr %s173, 8
        %s175 = scalar_lea.vmem %s0, %s174
        %p176 = pneg %p50
        %p177 = pneg %p47
        %s178 = smul.u32 4, %s22
        %p179 = scmp.lt.s32.totalorder %s178, 7
        %s180 = scalar_select %p179, %s178, 7
        %s181 = smul.addr %s180, 4
        %s182 = scalar_lea.vmem %s1, %s181
        %p183 = pneg %p76
        %p184 = pneg %p73
        %p185 = pneg %p97
        %p186 = pneg %p94
        %p187 = pneg %p125
        %p188 = pneg %p122
        %s189 = sand.u32 %s112, 1
        %s190 = scalar_lea.sflag [#allocation3], %s189
        %s191 = sand.u32 %s112, 1
        %s192 = smul.addr %s191, 256
        %s193 = scalar_lea.vmem [#allocation2], %s192
        %p194 = scmp.lt.s32.totalorder %s21, 1
        %s195 = scalar_select %p194, %s21, 1
        %s196 = smul.addr %s195, 16
        %s197 = smul.addr %s196, 8
        %s198 = scalar_lea.vmem %s0, %s197
        %s199 = smul.u32 4, %s22
        %p200 = scmp.lt.s32.totalorder %s199, 7
        %s201 = scalar_select %p200, %s199, 7
        %s202 = smul.addr %s201, 4
        %s203 = scalar_lea.vmem %s1, %s202
        %s204 = smul.u32 4, %s22
        %s205 = smul.u32 4, %s22
        %v207 = vld [vmem:[%s198] sm:$0xff]
        %v208 = vld [vmem:[%s198 + $0x8] sm:$0xff]
        %v209 = vld [vmem:[%s198 + $0x10] sm:$0xff]
        %v210 = vld [vmem:[%s198 + $0x18] sm:$0xff]
        %v211 = vld [vmem:[%s198 + $0x20] sm:$0xff]
        %v212 = vld [vmem:[%s198 + $0x28] sm:$0xff]
        %v213 = vld [vmem:[%s198 + $0x30] sm:$0xff]
        %v214 = vld [vmem:[%s198 + $0x38] sm:$0xff]
        %v215 = vld [vmem:[%s198 + $0x40] sm:$0xff]
        %v216 = vld [vmem:[%s198 + $0x48] sm:$0xff]
        %v217 = vld [vmem:[%s198 + $0x50] sm:$0xff]
        %v218 = vld [vmem:[%s198 + $0x58] sm:$0xff]
        %v219 = vld [vmem:[%s198 + $0x60] sm:$0xff]
        %v220 = vld [vmem:[%s198 + $0x68] sm:$0xff]
        %v221 = vld [vmem:[%s198 + $0x70] sm:$0xff]
        %v222 = vld [vmem:[%s198 + $0x78] sm:$0xff]
        %v223 = vpack.c.bf16 %v208, %v207
        %v224 = vpack.c.bf16 %v210, %v209
        %v225 = vpack.c.bf16 %v212, %v211
        %v226 = vpack.c.bf16 %v214, %v213
        %v227 = vpack.c.bf16 %v216, %v215
        %v228 = vpack.c.bf16 %v218, %v217
        %v229 = vpack.c.bf16 %v220, %v219
        %v230 = vpack.c.bf16 %v222, %v221
        %v231 = vld [vmem:[%s203] sm:$0xf]
        %v232 = vld [vmem:[%s203 + $0x4] sm:$0xf]
        %v233 = vld [vmem:[%s203 + $0x8] sm:$0xf]
        %v234 = vld [vmem:[%s203 + $0xc] sm:$0xf]
        %v239 = vunpack.c.l.b16 %v231
        %v240 = vunpack.c.l.b16 %v232
        %v241 = vunpack.c.l.b16 %v233
        %v242 = vunpack.c.l.b16 %v234
        %v243 = vpack.c.b16 %v240, %v239
        %v244 = vpack.c.b16 %v242, %v241
        %vm245 = vcmask 130048
        %v247 = vsel %vm245, %v243, 0
        %v250 = vsel %vm245, %v244, 0
        %252 = vmatprep.subr.bf16.mxu0 0
        %253 = vmatpush1.bf16.msra.mxu0 0
        %254 = vmatprep.subr.bf16.mxu0 0
        %255 = vmatpush1.bf16.msra.mxu0 0
        %256 = vmatprep.subr.bf16.mxu0 0
        %257 = vmatpush1.bf16.msra.mxu0 0
        %258 = vmatprep.subr.bf16.mxu0 0
        %259 = vmatpush1.bf16.msra.mxu0 0
        %260 = vmatprep.subr.bf16.mxu0 0
        %261 = vmatpush1.bf16.msra.mxu0 0
        %262 = vmatprep.subr.bf16.mxu0 0
        %263 = vmatpush1.bf16.msra.mxu0 0
        %264 = vmatprep.subr.bf16.mxu0 0
        %265 = vmatpush1.bf16.msra.mxu0 0
        %266 = vmatprep.subr.bf16.mxu0 0
        %267 = vmatpush1.bf16.msra.mxu0 %v223
        %268 = vmatprep.subr.bf16.mxu0 0
        %269 = vmatpush2.bf16.msra.mxu0 0
        %270 = vmatprep.subr.bf16.mxu0 0
        %271 = vmatpush2.bf16.msra.mxu0 0
        %272 = vmatprep.subr.bf16.mxu0 0
        %273 = vmatpush2.bf16.msra.mxu0 0
        %274 = vmatprep.subr.bf16.mxu0 0
        %275 = vmatpush2.bf16.msra.mxu0 0
        %276 = vmatprep.subr.bf16.mxu0 0
        %277 = vmatpush2.bf16.msra.mxu0 0
        %278 = vmatprep.subr.bf16.mxu0 0
        %279 = vmatpush2.bf16.msra.mxu0 0
        %280 = vmatprep.subr.bf16.mxu0 0
        %281 = vmatpush2.bf16.msra.mxu0 0
        %282 = vmatprep.subr.bf16.mxu0 0
        %283 = vmatpush2.bf16.msra.mxu0 0
        %284 = vmatprep.mubr.bf16.mxu0 0
        %285 = vmatmul.mubr.bf16.gmra.mxu0 %v247
        %v286 = vpop.f32.mrf.mxu0
        %v287 = vadd.f32 0.0, %v286
        %v288 = vpop.f32.mrf.mxu0
        %v289 = vpop.f32.mrf.mxu0
        %v290 = vadd.f32 0.0, %v289
        %v291 = vpop.f32.mrf.mxu0
        %292 = vmatprep.mubr.bf16.mxu0 0
        %293 = vmatmul.mubr.bf16.gmra.mxu0 %v250
        %v294 = vpop.f32.mrf.mxu0
        %v295 = vadd.f32 0.0, %v294
        %v296 = vpop.f32.mrf.mxu0
        %v297 = vpop.f32.mrf.mxu0
        %v298 = vadd.f32 0.0, %v297
        %v299 = vpop.f32.mrf.mxu0
        %300 = vdwg.mxu0
        %301 = vmatprep.subr.bf16.mxu0 0
        %302 = vmatpush1.bf16.msra.mxu0 0
        %303 = vmatprep.subr.bf16.mxu0 0
        %304 = vmatpush1.bf16.msra.mxu0 0
        %305 = vmatprep.subr.bf16.mxu0 0
        %306 = vmatpush1.bf16.msra.mxu0 0
        %307 = vmatprep.subr.bf16.mxu0 0
        %308 = vmatpush1.bf16.msra.mxu0 0
        %309 = vmatprep.subr.bf16.mxu0 0
        %310 = vmatpush1.bf16.msra.mxu0 0
        %311 = vmatprep.subr.bf16.mxu0 0
        %312 = vmatpush1.bf16.msra.mxu0 0
        %313 = vmatprep.subr.bf16.mxu0 0
        %314 = vmatpush1.bf16.msra.mxu0 0
        %315 = vmatprep.subr.bf16.mxu0 0
        %316 = vmatpush1.bf16.msra.mxu0 %v224
        %317 = vmatprep.subr.bf16.mxu0 0
        %318 = vmatpush2.bf16.msra.mxu0 0
        %319 = vmatprep.subr.bf16.mxu0 0
        %320 = vmatpush2.bf16.msra.mxu0 0
        %321 = vmatprep.subr.bf16.mxu0 0
        %322 = vmatpush2.bf16.msra.mxu0 0
        %323 = vmatprep.subr.bf16.mxu0 0
        %324 = vmatpush2.bf16.msra.mxu0 0
        %325 = vmatprep.subr.bf16.mxu0 0
        %326 = vmatpush2.bf16.msra.mxu0 0
        %327 = vmatprep.subr.bf16.mxu0 0
        %328 = vmatpush2.bf16.msra.mxu0 0
        %329 = vmatprep.subr.bf16.mxu0 0
        %330 = vmatpush2.bf16.msra.mxu0 0
        %331 = vmatprep.subr.bf16.mxu0 0
        %332 = vmatpush2.bf16.msra.mxu0 0
        %333 = vmatprep.mubr.bf16.mxu0 0
        %334 = vmatmul.mubr.bf16.gmra.mxu0 %v247
        %v335 = vpop.f32.mrf.mxu0
        %v336 = vadd.f32 0.0, %v335
        %v337 = vpop.f32.mrf.mxu0
        %v338 = vpop.f32.mrf.mxu0
        %v339 = vadd.f32 0.0, %v338
        %v340 = vpop.f32.mrf.mxu0
        %341 = vmatprep.mubr.bf16.mxu0 0
        %342 = vmatmul.mubr.bf16.gmra.mxu0 %v250
        %v343 = vpop.f32.mrf.mxu0
        %v344 = vadd.f32 0.0, %v343
        %v345 = vpop.f32.mrf.mxu0
        %v346 = vpop.f32.mrf.mxu0
        %v347 = vadd.f32 0.0, %v346
        %v348 = vpop.f32.mrf.mxu0
        %349 = vdwg.mxu0
        %350 = vmatprep.subr.bf16.mxu0 0
        %351 = vmatpush1.bf16.msra.mxu0 0
        %352 = vmatprep.subr.bf16.mxu0 0
        %353 = vmatpush1.bf16.msra.mxu0 0
        %354 = vmatprep.subr.bf16.mxu0 0
        %355 = vmatpush1.bf16.msra.mxu0 0
        %356 = vmatprep.subr.bf16.mxu0 0
        %357 = vmatpush1.bf16.msra.mxu0 0
        %358 = vmatprep.subr.bf16.mxu0 0
        %359 = vmatpush1.bf16.msra.mxu0 0
        %360 = vmatprep.subr.bf16.mxu0 0
        %361 = vmatpush1.bf16.msra.mxu0 0
        %362 = vmatprep.subr.bf16.mxu0 0
        %363 = vmatpush1.bf16.msra.mxu0 0
        %364 = vmatprep.subr.bf16.mxu0 0
        %365 = vmatpush1.bf16.msra.mxu0 %v225
        %366 = vmatprep.subr.bf16.mxu0 0
        %367 = vmatpush2.bf16.msra.mxu0 0
        %368 = vmatprep.subr.bf16.mxu0 0
        %369 = vmatpush2.bf16.msra.mxu0 0
        %370 = vmatprep.subr.bf16.mxu0 0
        %371 = vmatpush2.bf16.msra.mxu0 0
        %372 = vmatprep.subr.bf16.mxu0 0
        %373 = vmatpush2.bf16.msra.mxu0 0
        %374 = vmatprep.subr.bf16.mxu0 0
        %375 = vmatpush2.bf16.msra.mxu0 0
        %376 = vmatprep.subr.bf16.mxu0 0
        %377 = vmatpush2.bf16.msra.mxu0 0
        %378 = vmatprep.subr.bf16.mxu0 0
        %379 = vmatpush2.bf16.msra.mxu0 0
        %380 = vmatprep.subr.bf16.mxu0 0
        %381 = vmatpush2.bf16.msra.mxu0 0
        %382 = vmatprep.mubr.bf16.mxu0 0
        %383 = vmatmul.mubr.bf16.gmra.mxu0 %v247
        %v384 = vpop.f32.mrf.mxu0
        %v385 = vadd.f32 0.0, %v384
        %v386 = vpop.f32.mrf.mxu0
        %v387 = vpop.f32.mrf.mxu0
        %v388 = vadd.f32 0.0, %v387
        %v389 = vpop.f32.mrf.mxu0
        %390 = vmatprep.mubr.bf16.mxu0 0
        %391 = vmatmul.mubr.bf16.gmra.mxu0 %v250
        %v392 = vpop.f32.mrf.mxu0
        %v393 = vadd.f32 0.0, %v392
        %v394 = vpop.f32.mrf.mxu0
        %v395 = vpop.f32.mrf.mxu0
        %v396 = vadd.f32 0.0, %v395
        %v397 = vpop.f32.mrf.mxu0
        %398 = vdwg.mxu0
        %399 = vmatprep.subr.bf16.mxu0 0
        %400 = vmatpush1.bf16.msra.mxu0 0
        %401 = vmatprep.subr.bf16.mxu0 0
        %402 = vmatpush1.bf16.msra.mxu0 0
        %403 = vmatprep.subr.bf16.mxu0 0
        %404 = vmatpush1.bf16.msra.mxu0 0
        %405 = vmatprep.subr.bf16.mxu0 0
        %406 = vmatpush1.bf16.msra.mxu0 0
        %407 = vmatprep.subr.bf16.mxu0 0
        %408 = vmatpush1.bf16.msra.mxu0 0
        %409 = vmatprep.subr.bf16.mxu0 0
        %410 = vmatpush1.bf16.msra.mxu0 0
        %411 = vmatprep.subr.bf16.mxu0 0
        %412 = vmatpush1.bf16.msra.mxu0 0
        %413 = vmatprep.subr.bf16.mxu0 0
        %414 = vmatpush1.bf16.msra.mxu0 %v226
        %415 = vmatprep.subr.bf16.mxu0 0
        %416 = vmatpush2.bf16.msra.mxu0 0
        %417 = vmatprep.subr.bf16.mxu0 0
        %418 = vmatpush2.bf16.msra.mxu0 0
        %419 = vmatprep.subr.bf16.mxu0 0
        %420 = vmatpush2.bf16.msra.mxu0 0
        %421 = vmatprep.subr.bf16.mxu0 0
        %422 = vmatpush2.bf16.msra.mxu0 0
        %423 = vmatprep.subr.bf16.mxu0 0
        %424 = vmatpush2.bf16.msra.mxu0 0
        %425 = vmatprep.subr.bf16.mxu0 0
        %426 = vmatpush2.bf16.msra.mxu0 0
        %427 = vmatprep.subr.bf16.mxu0 0
        %428 = vmatpush2.bf16.msra.mxu0 0
        %429 = vmatprep.subr.bf16.mxu0 0
        %430 = vmatpush2.bf16.msra.mxu0 0
        %431 = vmatprep.mubr.bf16.mxu0 0
        %432 = vmatmul.mubr.bf16.gmra.mxu0 %v247
        %v433 = vpop.f32.mrf.mxu0
        %v434 = vadd.f32 0.0, %v433
        %v435 = vpop.f32.mrf.mxu0
        %v436 = vpop.f32.mrf.mxu0
        %v437 = vadd.f32 0.0, %v436
        %v438 = vpop.f32.mrf.mxu0
        %439 = vmatprep.mubr.bf16.mxu0 0
        %440 = vmatmul.mubr.bf16.gmra.mxu0 %v250
        %v441 = vpop.f32.mrf.mxu0
        %v442 = vadd.f32 0.0, %v441
        %v443 = vpop.f32.mrf.mxu0
        %v444 = vpop.f32.mrf.mxu0
        %v445 = vadd.f32 0.0, %v444
        %v446 = vpop.f32.mrf.mxu0
        %447 = vdwg.mxu0
        %448 = vmatprep.subr.bf16.mxu0 0
        %449 = vmatpush1.bf16.msra.mxu0 0
        %450 = vmatprep.subr.bf16.mxu0 0
        %451 = vmatpush1.bf16.msra.mxu0 0
        %452 = vmatprep.subr.bf16.mxu0 0
        %453 = vmatpush1.bf16.msra.mxu0 0
        %454 = vmatprep.subr.bf16.mxu0 0
        %455 = vmatpush1.bf16.msra.mxu0 0
        %456 = vmatprep.subr.bf16.mxu0 0
        %457 = vmatpush1.bf16.msra.mxu0 0
        %458 = vmatprep.subr.bf16.mxu0 0
        %459 = vmatpush1.bf16.msra.mxu0 0
        %460 = vmatprep.subr.bf16.mxu0 0
        %461 = vmatpush1.bf16.msra.mxu0 0
        %462 = vmatprep.subr.bf16.mxu0 0
        %463 = vmatpush1.bf16.msra.mxu0 %v227
        %464 = vmatprep.subr.bf16.mxu0 0
        %465 = vmatpush2.bf16.msra.mxu0 0
        %466 = vmatprep.subr.bf16.mxu0 0
        %467 = vmatpush2.bf16.msra.mxu0 0
        %468 = vmatprep.subr.bf16.mxu0 0
        %469 = vmatpush2.bf16.msra.mxu0 0
        %470 = vmatprep.subr.bf16.mxu0 0
        %471 = vmatpush2.bf16.msra.mxu0 0
        %472 = vmatprep.subr.bf16.mxu0 0
        %473 = vmatpush2.bf16.msra.mxu0 0
        %474 = vmatprep.subr.bf16.mxu0 0
        %475 = vmatpush2.bf16.msra.mxu0 0
        %476 = vmatprep.subr.bf16.mxu0 0
        %477 = vmatpush2.bf16.msra.mxu0 0
        %478 = vmatprep.subr.bf16.mxu0 0
        %479 = vmatpush2.bf16.msra.mxu0 0
        %480 = vmatprep.mubr.bf16.mxu0 0
        %481 = vmatmul.mubr.bf16.gmra.mxu0 %v247
        %v482 = vpop.f32.mrf.mxu0
        %v483 = vadd.f32 0.0, %v482
        %v484 = vpop.f32.mrf.mxu0
        %v485 = vpop.f32.mrf.mxu0
        %v486 = vadd.f32 0.0, %v485
        %v487 = vpop.f32.mrf.mxu0
        %488 = vmatprep.mubr.bf16.mxu0 0
        %489 = vmatmul.mubr.bf16.gmra.mxu0 %v250
        %v490 = vpop.f32.mrf.mxu0
        %v491 = vadd.f32 0.0, %v490
        %v492 = vpop.f32.mrf.mxu0
        %v493 = vpop.f32.mrf.mxu0
        %v494 = vadd.f32 0.0, %v493
        %v495 = vpop.f32.mrf.mxu0
        %496 = vdwg.mxu0
        %497 = vmatprep.subr.bf16.mxu0 0
        %498 = vmatpush1.bf16.msra.mxu0 0
        %499 = vmatprep.subr.bf16.mxu0 0
        %500 = vmatpush1.bf16.msra.mxu0 0
        %501 = vmatprep.subr.bf16.mxu0 0
        %502 = vmatpush1.bf16.msra.mxu0 0
        %503 = vmatprep.subr.bf16.mxu0 0
        %504 = vmatpush1.bf16.msra.mxu0 0
        %505 = vmatprep.subr.bf16.mxu0 0
        %506 = vmatpush1.bf16.msra.mxu0 0
        %507 = vmatprep.subr.bf16.mxu0 0
        %508 = vmatpush1.bf16.msra.mxu0 0
        %509 = vmatprep.subr.bf16.mxu0 0
        %510 = vmatpush1.bf16.msra.mxu0 0
        %511 = vmatprep.subr.bf16.mxu0 0
        %512 = vmatpush1.bf16.msra.mxu0 %v228
        %513 = vmatprep.subr.bf16.mxu0 0
        %514 = vmatpush2.bf16.msra.mxu0 0
        %515 = vmatprep.subr.bf16.mxu0 0
        %516 = vmatpush2.bf16.msra.mxu0 0
        %517 = vmatprep.subr.bf16.mxu0 0
        %518 = vmatpush2.bf16.msra.mxu0 0
        %519 = vmatprep.subr.bf16.mxu0 0
        %520 = vmatpush2.bf16.msra.mxu0 0
        %521 = vmatprep.subr.bf16.mxu0 0
        %522 = vmatpush2.bf16.msra.mxu0 0
        %523 = vmatprep.subr.bf16.mxu0 0
        %524 = vmatpush2.bf16.msra.mxu0 0
        %525 = vmatprep.subr.bf16.mxu0 0
        %526 = vmatpush2.bf16.msra.mxu0 0
        %527 = vmatprep.subr.bf16.mxu0 0
        %528 = vmatpush2.bf16.msra.mxu0 0
        %529 = vmatprep.mubr.bf16.mxu0 0
        %530 = vmatmul.mubr.bf16.gmra.mxu0 %v247
        %v531 = vpop.f32.mrf.mxu0
        %v532 = vadd.f32 0.0, %v531
        %v533 = vpop.f32.mrf.mxu0
        %v534 = vpop.f32.mrf.mxu0
        %v535 = vadd.f32 0.0, %v534
        %v536 = vpop.f32.mrf.mxu0
        %537 = vmatprep.mubr.bf16.mxu0 0
        %538 = vmatmul.mubr.bf16.gmra.mxu0 %v250
        %v539 = vpop.f32.mrf.mxu0
        %v540 = vadd.f32 0.0, %v539
        %v541 = vpop.f32.mrf.mxu0
        %v542 = vpop.f32.mrf.mxu0
        %v543 = vadd.f32 0.0, %v542
        %v544 = vpop.f32.mrf.mxu0
        %545 = vdwg.mxu0
        %546 = vmatprep.subr.bf16.mxu0 0
        %547 = vmatpush1.bf16.msra.mxu0 0
        %548 = vmatprep.subr.bf16.mxu0 0
        %549 = vmatpush1.bf16.msra.mxu0 0
        %550 = vmatprep.subr.bf16.mxu0 0
        %551 = vmatpush1.bf16.msra.mxu0 0
        %552 = vmatprep.subr.bf16.mxu0 0
        %553 = vmatpush1.bf16.msra.mxu0 0
        %554 = vmatprep.subr.bf16.mxu0 0
        %555 = vmatpush1.bf16.msra.mxu0 0
        %556 = vmatprep.subr.bf16.mxu0 0
        %557 = vmatpush1.bf16.msra.mxu0 0
        %558 = vmatprep.subr.bf16.mxu0 0
        %559 = vmatpush1.bf16.msra.mxu0 0
        %560 = vmatprep.subr.bf16.mxu0 0
        %561 = vmatpush1.bf16.msra.mxu0 %v229
        %562 = vmatprep.subr.bf16.mxu0 0
        %563 = vmatpush2.bf16.msra.mxu0 0
        %564 = vmatprep.subr.bf16.mxu0 0
        %565 = vmatpush2.bf16.msra.mxu0 0
        %566 = vmatprep.subr.bf16.mxu0 0
        %567 = vmatpush2.bf16.msra.mxu0 0
        %568 = vmatprep.subr.bf16.mxu0 0
        %569 = vmatpush2.bf16.msra.mxu0 0
        %570 = vmatprep.subr.bf16.mxu0 0
        %571 = vmatpush2.bf16.msra.mxu0 0
        %572 = vmatprep.subr.bf16.mxu0 0
        %573 = vmatpush2.bf16.msra.mxu0 0
        %574 = vmatprep.subr.bf16.mxu0 0
        %575 = vmatpush2.bf16.msra.mxu0 0
        %576 = vmatprep.subr.bf16.mxu0 0
        %577 = vmatpush2.bf16.msra.mxu0 0
        %578 = vmatprep.mubr.bf16.mxu0 0
        %579 = vmatmul.mubr.bf16.gmra.mxu0 %v247
        %v580 = vpop.f32.mrf.mxu0
        %v581 = vadd.f32 0.0, %v580
        %v582 = vpop.f32.mrf.mxu0
        %v583 = vpop.f32.mrf.mxu0
        %v584 = vadd.f32 0.0, %v583
        %v585 = vpop.f32.mrf.mxu0
        %586 = vmatprep.mubr.bf16.mxu0 0
        %587 = vmatmul.mubr.bf16.gmra.mxu0 %v250
        %v588 = vpop.f32.mrf.mxu0
        %v589 = vadd.f32 0.0, %v588
        %v590 = vpop.f32.mrf.mxu0
        %v591 = vpop.f32.mrf.mxu0
        %v592 = vadd.f32 0.0, %v591
        %v593 = vpop.f32.mrf.mxu0
        %594 = vdwg.mxu0
        %595 = vmatprep.subr.bf16.mxu0 0
        %596 = vmatpush1.bf16.msra.mxu0 0
        %597 = vmatprep.subr.bf16.mxu0 0
        %598 = vmatpush1.bf16.msra.mxu0 0
        %599 = vmatprep.subr.bf16.mxu0 0
        %600 = vmatpush1.bf16.msra.mxu0 0
        %601 = vmatprep.subr.bf16.mxu0 0
        %602 = vmatpush1.bf16.msra.mxu0 0
        %603 = vmatprep.subr.bf16.mxu0 0
        %604 = vmatpush1.bf16.msra.mxu0 0
        %605 = vmatprep.subr.bf16.mxu0 0
        %606 = vmatpush1.bf16.msra.mxu0 0
        %607 = vmatprep.subr.bf16.mxu0 0
        %608 = vmatpush1.bf16.msra.mxu0 0
        %609 = vmatprep.subr.bf16.mxu0 0
        %610 = vmatpush1.bf16.msra.mxu0 %v230
        %611 = vmatprep.subr.bf16.mxu0 0
        %612 = vmatpush2.bf16.msra.mxu0 0
        %613 = vmatprep.subr.bf16.mxu0 0
        %614 = vmatpush2.bf16.msra.mxu0 0
        %615 = vmatprep.subr.bf16.mxu0 0
        %616 = vmatpush2.bf16.msra.mxu0 0
        %617 = vmatprep.subr.bf16.mxu0 0
        %618 = vmatpush2.bf16.msra.mxu0 0
        %619 = vmatprep.subr.bf16.mxu0 0
        %620 = vmatpush2.bf16.msra.mxu0 0
        %621 = vmatprep.subr.bf16.mxu0 0
        %622 = vmatpush2.bf16.msra.mxu0 0
        %623 = vmatprep.subr.bf16.mxu0 0
        %624 = vmatpush2.bf16.msra.mxu0 0
        %625 = vmatprep.subr.bf16.mxu0 0
        %626 = vmatpush2.bf16.msra.mxu0 0
        %627 = vmatprep.mubr.bf16.mxu0 0
        %628 = vmatmul.mubr.bf16.gmra.mxu0 %v247
        %v629 = vpop.f32.mrf.mxu0
        %v630 = vadd.f32 0.0, %v629
        %v631 = vpop.f32.mrf.mxu0
        %v632 = vpop.f32.mrf.mxu0
        %v633 = vadd.f32 0.0, %v632
        %v634 = vpop.f32.mrf.mxu0
        %635 = vmatprep.mubr.bf16.mxu0 0
        %636 = vmatmul.mubr.bf16.gmra.mxu0 %v250
        %v637 = vpop.f32.mrf.mxu0
        %v638 = vadd.f32 0.0, %v637
        %v639 = vpop.f32.mrf.mxu0
        %v640 = vpop.f32.mrf.mxu0
        %v641 = vadd.f32 0.0, %v640
        %v642 = vpop.f32.mrf.mxu0
        %643 = vdwg.mxu0
        %v644 = vpack.c.bf16 %v290, %v287
        %v645 = vpack.c.bf16 %v298, %v295
        %v646 = vpack.c.bf16 %v339, %v336
        %v647 = vpack.c.bf16 %v347, %v344
        %v648 = vpack.c.bf16 %v388, %v385
        %v649 = vpack.c.bf16 %v396, %v393
        %v650 = vpack.c.bf16 %v437, %v434
        %v651 = vpack.c.bf16 %v445, %v442
        %v652 = vpack.c.bf16 %v486, %v483
        %v653 = vpack.c.bf16 %v494, %v491
        %v654 = vpack.c.bf16 %v535, %v532
        %v655 = vpack.c.bf16 %v543, %v540
        %v656 = vpack.c.bf16 %v584, %v581
        %v657 = vpack.c.bf16 %v592, %v589
        %v658 = vpack.c.bf16 %v633, %v630
        %v659 = vpack.c.bf16 %v641, %v638
        %v660 = vld [vmem:[%s2] sm:$0xf]
        %v661 = vld [vmem:[%s2 + $0x4] sm:$0xf]
        %v664 = vunpack.c.l.b16 %v660
        %v665 = vunpack.c.l.b16 %v661
        %v666 = vpack.c.b16 %v665, %v664
        %v669 = vsel %vm245, %v644, 0
        %v672 = vsel %vm245, %v645, 0
        %v675 = vsel %vm245, %v646, 0
        %v678 = vsel %vm245, %v647, 0
        %v681 = vsel %vm245, %v648, 0
        %v684 = vsel %vm245, %v649, 0
        %v687 = vsel %vm245, %v650, 0
        %v690 = vsel %vm245, %v651, 0
        %v693 = vsel %vm245, %v652, 0
        %v696 = vsel %vm245, %v653, 0
        %v699 = vsel %vm245, %v654, 0
        %v702 = vsel %vm245, %v655, 0
        %v705 = vsel %vm245, %v656, 0
        %v708 = vsel %vm245, %v657, 0
        %v711 = vsel %vm245, %v658, 0
        %v714 = vsel %vm245, %v659, 0
        %716 = vmatprep.subr.bf16.mxu0 0
        %717 = vmatpush1.bf16.msra.mxu0 0
        %718 = vmatprep.subr.bf16.mxu0 0
        %719 = vmatpush1.bf16.msra.mxu0 0
        %720 = vmatprep.subr.bf16.mxu0 0
        %721 = vmatpush1.bf16.msra.mxu0 0
        %722 = vmatprep.subr.bf16.mxu0 0
        %723 = vmatpush1.bf16.msra.mxu0 0
        %724 = vmatprep.subr.bf16.mxu0 0
        %725 = vmatpush1.bf16.msra.mxu0 0
        %726 = vmatprep.subr.bf16.mxu0 0
        %727 = vmatpush1.bf16.msra.mxu0 0
        %728 = vmatprep.subr.bf16.mxu0 0
        %729 = vmatpush1.bf16.msra.mxu0 0
        %730 = vmatprep.subr.bf16.mxu0 0
        %731 = vmatpush1.bf16.msra.mxu0 %v666
        %732 = vmatprep.subr.bf16.mxu0 0
        %733 = vmatpush2.bf16.msra.mxu0 0
        %734 = vmatprep.subr.bf16.mxu0 0
        %735 = vmatpush2.bf16.msra.mxu0 0
        %736 = vmatprep.subr.bf16.mxu0 0
        %737 = vmatpush2.bf16.msra.mxu0 0
        %738 = vmatprep.subr.bf16.mxu0 0
        %739 = vmatpush2.bf16.msra.mxu0 0
        %740 = vmatprep.subr.bf16.mxu0 0
        %741 = vmatpush2.bf16.msra.mxu0 0
        %742 = vmatprep.subr.bf16.mxu0 0
        %743 = vmatpush2.bf16.msra.mxu0 0
        %744 = vmatprep.subr.bf16.mxu0 0
        %745 = vmatpush2.bf16.msra.mxu0 0
        %746 = vmatprep.subr.bf16.mxu0 0
        %747 = vmatpush2.bf16.msra.mxu0 0
        %748 = vmatprep.mubr.bf16.mxu0 0
        %749 = vmatmul.mubr.bf16.gmra.mxu0 %v669
        %v750 = vpop.f32.mrf.mxu0
        %v751 = vadd.f32 0.0, %v750
        %v752 = vpop.f32.mrf.mxu0
        %v753 = vpop.f32.mrf.mxu0
        %v754 = vadd.f32 0.0, %v753
        %v755 = vpop.f32.mrf.mxu0
        %756 = vmatprep.mubr.bf16.mxu0 0
        %757 = vmatmul.mubr.bf16.gmra.mxu0 %v672
        %v758 = vpop.f32.mrf.mxu0
        %v759 = vadd.f32 0.0, %v758
        %v760 = vpop.f32.mrf.mxu0
        %v761 = vpop.f32.mrf.mxu0
        %v762 = vadd.f32 0.0, %v761
        %v763 = vpop.f32.mrf.mxu0
        %764 = vmatprep.mubr.bf16.mxu0 0
        %765 = vmatmul.mubr.bf16.gmra.mxu0 %v675
        %v766 = vpop.f32.mrf.mxu0
        %v767 = vadd.f32 0.0, %v766
        %v768 = vpop.f32.mrf.mxu0
        %v769 = vpop.f32.mrf.mxu0
        %v770 = vadd.f32 0.0, %v769
        %v771 = vpop.f32.mrf.mxu0
        %772 = vmatprep.mubr.bf16.mxu0 0
        %773 = vmatmul.mubr.bf16.gmra.mxu0 %v678
        %v774 = vpop.f32.mrf.mxu0
        %v775 = vadd.f32 0.0, %v774
        %v776 = vpop.f32.mrf.mxu0
        %v777 = vpop.f32.mrf.mxu0
        %v778 = vadd.f32 0.0, %v777
        %v779 = vpop.f32.mrf.mxu0
        %780 = vmatprep.mubr.bf16.mxu0 0
        %781 = vmatmul.mubr.bf16.gmra.mxu0 %v681
        %v782 = vpop.f32.mrf.mxu0
        %v783 = vadd.f32 0.0, %v782
        %v784 = vpop.f32.mrf.mxu0
        %v785 = vpop.f32.mrf.mxu0
        %v786 = vadd.f32 0.0, %v785
        %v787 = vpop.f32.mrf.mxu0
        %788 = vmatprep.mubr.bf16.mxu0 0
        %789 = vmatmul.mubr.bf16.gmra.mxu0 %v684
        %v790 = vpop.f32.mrf.mxu0
        %v791 = vadd.f32 0.0, %v790
        %v792 = vpop.f32.mrf.mxu0
        %v793 = vpop.f32.mrf.mxu0
        %v794 = vadd.f32 0.0, %v793
        %v795 = vpop.f32.mrf.mxu0
        %796 = vmatprep.mubr.bf16.mxu0 0
        %797 = vmatmul.mubr.bf16.gmra.mxu0 %v687
        %v798 = vpop.f32.mrf.mxu0
        %v799 = vadd.f32 0.0, %v798
        %v800 = vpop.f32.mrf.mxu0
        %v801 = vpop.f32.mrf.mxu0
        %v802 = vadd.f32 0.0, %v801
        %v803 = vpop.f32.mrf.mxu0
        %804 = vmatprep.mubr.bf16.mxu0 0
        %805 = vmatmul.mubr.bf16.gmra.mxu0 %v690
        %v806 = vpop.f32.mrf.mxu0
        %v807 = vadd.f32 0.0, %v806
        %v808 = vpop.f32.mrf.mxu0
        %v809 = vpop.f32.mrf.mxu0
        %v810 = vadd.f32 0.0, %v809
        %v811 = vpop.f32.mrf.mxu0
        %812 = vmatprep.mubr.bf16.mxu0 0
        %813 = vmatmul.mubr.bf16.gmra.mxu0 %v693
        %v814 = vpop.f32.mrf.mxu0
        %v815 = vadd.f32 0.0, %v814
        %v816 = vpop.f32.mrf.mxu0
        %v817 = vpop.f32.mrf.mxu0
        %v818 = vadd.f32 0.0, %v817
        %v819 = vpop.f32.mrf.mxu0
        %820 = vmatprep.mubr.bf16.mxu0 0
        %821 = vmatmul.mubr.bf16.gmra.mxu0 %v696
        %v822 = vpop.f32.mrf.mxu0
        %v823 = vadd.f32 0.0, %v822
        %v824 = vpop.f32.mrf.mxu0
        %v825 = vpop.f32.mrf.mxu0
        %v826 = vadd.f32 0.0, %v825
        %v827 = vpop.f32.mrf.mxu0
        %828 = vmatprep.mubr.bf16.mxu0 0
        %829 = vmatmul.mubr.bf16.gmra.mxu0 %v699
        %v830 = vpop.f32.mrf.mxu0
        %v831 = vadd.f32 0.0, %v830
        %v832 = vpop.f32.mrf.mxu0
        %v833 = vpop.f32.mrf.mxu0
        %v834 = vadd.f32 0.0, %v833
        %v835 = vpop.f32.mrf.mxu0
        %836 = vmatprep.mubr.bf16.mxu0 0
        %837 = vmatmul.mubr.bf16.gmra.mxu0 %v702
        %v838 = vpop.f32.mrf.mxu0
        %v839 = vadd.f32 0.0, %v838
        %v840 = vpop.f32.mrf.mxu0
        %v841 = vpop.f32.mrf.mxu0
        %v842 = vadd.f32 0.0, %v841
        %v843 = vpop.f32.mrf.mxu0
        %844 = vmatprep.mubr.bf16.mxu0 0
        %845 = vmatmul.mubr.bf16.gmra.mxu0 %v705
        %v846 = vpop.f32.mrf.mxu0
        %v847 = vadd.f32 0.0, %v846
        %v848 = vpop.f32.mrf.mxu0
        %v849 = vpop.f32.mrf.mxu0
        %v850 = vadd.f32 0.0, %v849
        %v851 = vpop.f32.mrf.mxu0
        %852 = vmatprep.mubr.bf16.mxu0 0
        %853 = vmatmul.mubr.bf16.gmra.mxu0 %v708
        %v854 = vpop.f32.mrf.mxu0
        %v855 = vadd.f32 0.0, %v854
        %v856 = vpop.f32.mrf.mxu0
        %v857 = vpop.f32.mrf.mxu0
        %v858 = vadd.f32 0.0, %v857
        %v859 = vpop.f32.mrf.mxu0
        %860 = vmatprep.mubr.bf16.mxu0 0
        %861 = vmatmul.mubr.bf16.gmra.mxu0 %v711
        %v862 = vpop.f32.mrf.mxu0
        %v863 = vadd.f32 0.0, %v862
        %v864 = vpop.f32.mrf.mxu0
        %v865 = vpop.f32.mrf.mxu0
        %v866 = vadd.f32 0.0, %v865
        %v867 = vpop.f32.mrf.mxu0
        %868 = vmatprep.mubr.bf16.mxu0 0
        %869 = vmatmul.mubr.bf16.gmra.mxu0 %v714
        %v870 = vpop.f32.mrf.mxu0
        %v871 = vadd.f32 0.0, %v870
        %v872 = vpop.f32.mrf.mxu0
        %v873 = vpop.f32.mrf.mxu0
        %v874 = vadd.f32 0.0, %v873
        %v875 = vpop.f32.mrf.mxu0
        %876 = vdwg.mxu0
        %vm877 = vcmask 523264
        %878 = vst.msk [vmem:[%s193] sm:$0xff] %vm877, %v751
        %879 = vst.msk [vmem:[%s193 + $0x8] sm:$0xff] %vm877, %v754
        %880 = vst.msk [vmem:[%s193 + $0x10] sm:$0xff] %vm877, %v759
        %881 = vst.msk [vmem:[%s193 + $0x18] sm:$0xff] %vm877, %v762
        %882 = vst.msk [vmem:[%s193 + $0x20] sm:$0xff] %vm877, %v767
        %883 = vst.msk [vmem:[%s193 + $0x28] sm:$0xff] %vm877, %v770
        %884 = vst.msk [vmem:[%s193 + $0x30] sm:$0xff] %vm877, %v775
        %885 = vst.msk [vmem:[%s193 + $0x38] sm:$0xff] %vm877, %v778
        %886 = vst.msk [vmem:[%s193 + $0x40] sm:$0xff] %vm877, %v783
        %887 = vst.msk [vmem:[%s193 + $0x48] sm:$0xff] %vm877, %v786
        %888 = vst.msk [vmem:[%s193 + $0x50] sm:$0xff] %vm877, %v791
        %889 = vst.msk [vmem:[%s193 + $0x58] sm:$0xff] %vm877, %v794
        %890 = vst.msk [vmem:[%s193 + $0x60] sm:$0xff] %vm877, %v799
        %891 = vst.msk [vmem:[%s193 + $0x68] sm:$0xff] %vm877, %v802
        %892 = vst.msk [vmem:[%s193 + $0x70] sm:$0xff] %vm877, %v807
        %893 = vst.msk [vmem:[%s193 + $0x78] sm:$0xff] %vm877, %v810
        %894 = vst.msk [vmem:[%s193 + $0x80] sm:$0xff] %vm877, %v815
        %895 = vst.msk [vmem:[%s193 + $0x88] sm:$0xff] %vm877, %v818
        %896 = vst.msk [vmem:[%s193 + $0x90] sm:$0xff] %vm877, %v823
        %897 = vst.msk [vmem:[%s193 + $0x98] sm:$0xff] %vm877, %v826
        %898 = vst.msk [vmem:[%s193 + $0xa0] sm:$0xff] %vm877, %v831
        %899 = vst.msk [vmem:[%s193 + $0xa8] sm:$0xff] %vm877, %v834
        %900 = vst.msk [vmem:[%s193 + $0xb0] sm:$0xff] %vm877, %v839
        %901 = vst.msk [vmem:[%s193 + $0xb8] sm:$0xff] %vm877, %v842
        %902 = vst.msk [vmem:[%s193 + $0xc0] sm:$0xff] %vm877, %v847
        %903 = vst.msk [vmem:[%s193 + $0xc8] sm:$0xff] %vm877, %v850
        %904 = vst.msk [vmem:[%s193 + $0xd0] sm:$0xff] %vm877, %v855
        %905 = vst.msk [vmem:[%s193 + $0xd8] sm:$0xff] %vm877, %v858
        %906 = vst.msk [vmem:[%s193 + $0xe0] sm:$0xff] %vm877, %v863
        %907 = vst.msk [vmem:[%s193 + $0xe8] sm:$0xff] %vm877, %v866
        %908 = vst.msk [vmem:[%s193 + $0xf0] sm:$0xff] %vm877, %v871
        %909 = vst.msk [vmem:[%s193 + $0xf8] sm:$0xff] %vm877, %v874
        %s910 = sand.u32 %s112, 1
        %s911 = scalar_lea.sflag [#allocation3], %s910
        %s912 = sand.u32 %s112, 1
        %s913 = smul.addr %s912, 256
        %s914 = scalar_lea.vmem [#allocation2], %s913
        // Predicated region
        $region33: #{_lambda_.3} parent=31 // pred_check
          %p915 = pneg %p122
        $region34: #{_lambda_.3} parent=31 // pred_check_branch
          %917 = sbr.rel (%p915) target = $region36
        $region35: #{_lambda_.3} parent=31 // pred_region
          #allocation5 [shape = 'u32[6]{0}', space=smem, size = 0x18, scoped, tag = 'DMA stride descriptor']
          %s918 = smul.u32 4, %s22
          %s920 = ssub.s32 4096, 4096
          %921 = vsyncadd %s911, %s920
          %s922 = smul.addr %s21, 64
          %s923 = sadd.s32 %s918, %s922
          %s924 = smul.addr %s923, 128
          %s925 = scalar_lea.hbm %s3, %s924
          %s927 = sshll.u32 1, 14
          %s928 = sxor.u32 4294967295, %s927
          %s931 = sshll.u32 7, 18
          %s932 = sxor.u32 4294967295, %s931
          %s933 = sand.u32 0, %s932
          %s935 = sor.u32 %s933, 0
          %s936 = sshll.u32 %s914, 4
          %s937 = int_to_ptr.vmem [resolvable:$true] %s936
          %943 = sst [smem:[#allocation5]] 512
          %s944 = scalar_lea.smem [#allocation5], 1
          %945 = sst [smem:[%s944]] 1024
          %s946 = scalar_lea.smem [#allocation5], 2
          %947 = sst [smem:[%s946]] 4
          %s948 = scalar_lea.smem [#allocation5], 3
          %949 = sst [smem:[%s948]] 128
          %s950 = scalar_lea.smem [#allocation5], 4
          %951 = sst [smem:[%s950]] 128
          %s952 = scalar_lea.smem [#allocation5], 5
          %953 = sst [smem:[%s952]] 8
          %955 = dma.general %s937, 4096, %s925, %s911, 131072, [#allocation5], %s935, 0
        $region36: #{_lambda_.3} parent=31 // pred_fallthru
          _
      $region32: #{_lambda_.3} parent=5 // pred_fallthru
        _
      %p956 = scmp.le.s32.totalorder 2, %s12
      // Predicated region
      $region37: #{_lambda_.3} parent=5 // pred_check
        %p957 = pneg %p956
      $region38: #{_lambda_.3} parent=5 // pred_check_branch
        %959 = sbr.rel (%p957) target = $region40
      $region39: #{_lambda_.3} parent=5 // pred_region
        %s960 = ssub.s32 %s12, 2
        // Predicated region
        $region41: #{_lambda_.3} parent=39 // pred_check
          %p961 = pneg %p128
        $region42: #{_lambda_.3} parent=39 // pred_check_branch
          %963 = sbr.rel (%p961) target = $region44
        $region43: #{_lambda_.3} parent=39 // pred_region
          %s964 = sand.u32 %s113, 1
          %s965 = scalar_lea.sflag [#allocation3], %s964
          %s966 = sand.u32 %s113, 1
          %s967 = smul.addr %s966, 256
          %s968 = scalar_lea.vmem [#allocation2], %s967
          %969 = dma.done %s965, 4096
        $region44: #{_lambda_.3} parent=39 // pred_fallthru
          _
      $region40: #{_lambda_.3} parent=5 // pred_fallthru
        _
    $region6: #{_lambda_.3} parent=1 // loop_footer
      %s16 = sadd.s32 1, %s12
    $region7: #{_lambda_.3} parent=1 // loop_footer_branch
      %11 = sbr.rel target = $region3
    $region8: #{_lambda_.3} parent=1 // loop_exit
      _
    %970 = vsyncpa [#allocation3], 1
    %s971 = scalar_lea.sflag [#allocation3], 1
    %972 = vsyncpa %s971, 1

// kernel: _lambda_.2
$region0: #{_lambda_.2}
  #allocation0 [shape = 'u32[]', space=smem, size = 0x4, offset = 0x4, fixed_abs, tag = 'smem constant byte address 0x4 - core index']
  #allocation1 [shape = 'u32[144,128]{1,0:T(1,128)}', space=vmem, size = 0x12000, scoped, tag = 'internal scratch']
  #allocation2 [shape = 'bf16[12,20,48]{2,1,0:T(8,128)(2,1)}', space=vmem, size = 0x12000, scoped, tag = 'scratch operand']
  #allocation3 [shape = 'bf16[10,18,32]{2,1,0:T(8,128)(2,1)}', space=vmem, size = 0xf000, scoped, tag = 'scratch operand']
  %s0 = inlined_call_operand.vmem [shape: bf16[2,16,16,48], index: 0, kind: input, shape index: {}, may-alias: {0,1,2}]
  %s1 = inlined_call_operand.vmem [shape: bf16[2,16,16,48], index: 1, kind: input, shape index: {}, may-alias: {0,1,2}]
  %s2 = inlined_call_operand.vmem [shape: bf16[2,16,16,48], index: 2, kind: input, shape index: {}, may-alias: {0,1,2}]
  %s3 = inlined_call_operand.vmem [shape: bf16[3,144,32], index: 3, kind: input, shape index: {}]
  %s4 = inlined_call_operand.vmem [shape: f32[1,32], index: 4, kind: input, shape index: {}, may-alias: {4,6}]
  %s5 = inlined_call_operand.vmem [shape: bf16[3,96,32], index: 5, kind: input, shape index: {}]
  %s6 = inlined_call_operand.vmem [shape: f32[1,32], index: 6, kind: input, shape index: {}, may-alias: {4,6}]
  %s7 = inlined_call_operand.vmem [shape: f32[32,8], index: 7, kind: input, shape index: {}]
  %s8 = inlined_call_operand.vmem [shape: f32[1,8], index: 8, kind: input, shape index: {}]
  %s9 = inlined_call_operand.vmem [shape: f32[2,8,256], index: 9, kind: output, shape index: {}]
  %s10 = sld [smem:[#allocation0]]
  $region93: #{_lambda_.2} parent=0
    _
  %s12 = ssub.s32 1, %s10
  %s13 = scalar_select 0, %s12, %s10
  loop: start=0, step=1, limit=6
  $region2: #{_lambda_.2} parent=0 // loop_pre_header
    _
  $region3: #{_lambda_.2} parent=0 // loop_header
    %s15 = sphi 0, %s19
    %p16 = scmp.ge.s32.totalorder %s15, 6
    %s22 = sphi 0, %s34
    %s23 = sphi 0, %s30
    %s24 = sphi 0, %s22
    %s25 = sphi 0, %s23
    %s26 = sphi 0, %s24
    %s27 = sphi 0, %s25
    %s39 = sphi 0, %s41
    %s42 = sphi 0, %s39
    %s43 = sphi 0, %s42
    %s59 = sphi 0, %s43
    %s75 = sphi 0, %s77
    %s78 = sphi 0, %s75
    %s79 = sphi 0, %s78
    %s95 = sphi 0, %s79
    %s111 = sphi 0, %s113
    %s114 = sphi 0, %s111
    %s115 = sphi 0, %s114
    %s131 = sphi 0, %s115
    %s135 = sphi 0, %s135
    %s137 = sphi 0, %s135
    %s138 = sphi 0, %s137
    %s152 = sphi 0, %s138
    %s156 = sphi 0, %s156
    %s158 = sphi 0, %s156
    %s159 = sphi 0, %s158
    %s173 = sphi 0, %s159
    %s177 = sphi 0, %s177
    %s179 = sphi 0, %s177
    %s180 = sphi 0, %s179
    %s194 = sphi 0, %s180
    %s198 = sphi 0, %s198
    %s200 = sphi 0, %s198
    %s201 = sphi 0, %s200
    %s215 = sphi 0, %s201
    %s219 = sphi 0, %s219
    %s221 = sphi 0, %s219
    %s222 = sphi 0, %s221
    %s236 = sphi 0, %s222
    %s240 = sphi 0, %s240
    %s242 = sphi 0, %s240
    %s243 = sphi 0, %s242
    %s257 = sphi 0, %s243
    %s265 = sphi 0, %s267
    %s268 = sphi 0, %s265
    %s269 = sphi 0, %s268
    %s285 = sphi 0, %s269
  $region4: #{_lambda_.2} parent=0 // loop_header_branch
    %18 = sbr.rel (%p16) target = $region8
  $region5: #{_lambda_.2} parent=0 // loop_body
    %s20 = ssub.s32 %s15, 1
    %s21 = ssub.s32 %s15, 2
    %s28 = sadd.s32 1, %s23
    %p29 = scmp.ge.s32.totalorder %s28, 2
    %s30 = scalar_select %p29, 0, %s28
    %s31 = sadd.s32 1, %s22
    %s32 = scalar_select %p29, %s31, %s22
    %p33 = scmp.ge.s32.totalorder %s32, 2
    %s34 = scalar_select %p33, 0, %s32
    %s35 = ssub.s32 %s22, %s34
    %s36 = ssub.s32 %s23, %s30
    %s37 = sor.u32 %s35, %s36
    %p38 = scmp.eq.s32.totalorder %s37, 0
    %s40 = sadd.s32 %s39, 1
    %s41 = scalar_select %p38, %s39, %s40
    %p44 = pneg %p38
    %p45 = scmp.eq.s32.totalorder %s15, 3
    %p46 = por %p44, %p45
    %p47 = scmp.ne.s32.totalorder %s39, %s42
    %p48 = scmp.eq.s32.totalorder %s15, 0
    %p49 = por %p47, %p48
    %p50 = scmp.ne.s32.totalorder %s39, %s42
    %p51 = scmp.eq.s32.totalorder %s20, 3
    %p52 = por %p50, %p51
    %p53 = scmp.ne.s32.totalorder %s42, %s43
    %p54 = scmp.eq.s32.totalorder %s20, 0
    %p55 = por %p53, %p54
    %p56 = scmp.ne.s32.totalorder %s42, %s43
    %p57 = scmp.eq.s32.totalorder %s21, 3
    %p58 = por %p56, %p57
    %p60 = scmp.ne.s32.totalorder %s43, %s59
    %p61 = scmp.eq.s32.totalorder %s21, 0
    %p62 = por %p60, %p61
    %s63 = smul.u32 %s23, 4
    %s64 = ssub.s32 %s63, 1
    %p65 = scmp.gt.s32.totalorder %s64, 0
    %s66 = scalar_select %p65, %s64, 0
    %s67 = smul.u32 %s30, 4
    %s68 = ssub.s32 %s67, 1
    %p69 = scmp.gt.s32.totalorder %s68, 0
    %s70 = scalar_select %p69, %s68, 0
    %s71 = ssub.s32 %s22, %s34
    %s72 = ssub.s32 %s66, %s70
    %s73 = sor.u32 %s71, %s72
    %p74 = scmp.eq.s32.totalorder %s73, 0
    %s76 = sadd.s32 %s75, 1
    %s77 = scalar_select %p74, %s75, %s76
    %p80 = pneg %p74
    %p81 = scmp.eq.s32.totalorder %s15, 3
    %p82 = por %p80, %p81
    %p83 = scmp.ne.s32.totalorder %s75, %s78
    %p84 = scmp.eq.s32.totalorder %s15, 0
    %p85 = por %p83, %p84
    %p86 = scmp.ne.s32.totalorder %s75, %s78
    %p87 = scmp.eq.s32.totalorder %s20, 3
    %p88 = por %p86, %p87
    %p89 = scmp.ne.s32.totalorder %s78, %s79
    %p90 = scmp.eq.s32.totalorder %s20, 0
    %p91 = por %p89, %p90
    %p92 = scmp.ne.s32.totalorder %s78, %s79
    %p93 = scmp.eq.s32.totalorder %s21, 3
    %p94 = por %p92, %p93
    %p96 = scmp.ne.s32.totalorder %s79, %s95
    %p97 = scmp.eq.s32.totalorder %s21, 0
    %p98 = por %p96, %p97
    %s99 = sadd.s32 %s23, 1
    %s100 = smul.u32 %s99, 4
    %p101 = scmp.lt.s32.totalorder %s100, 7
    %s102 = scalar_select %p101, %s100, 7
    %s103 = sadd.s32 %s30, 1
    %s104 = smul.u32 %s103, 4
    %p105 = scmp.lt.s32.totalorder %s104, 7
    %s106 = scalar_select %p105, %s104, 7
    %s107 = ssub.s32 %s22, %s34
    %s108 = ssub.s32 %s102, %s106
    %s109 = sor.u32 %s107, %s108
    %p110 = scmp.eq.s32.totalorder %s109, 0
    %s112 = sadd.s32 %s111, 1
    %s113 = scalar_select %p110, %s111, %s112
    %p116 = pneg %p110
    %p117 = scmp.eq.s32.totalorder %s15, 3
    %p118 = por %p116, %p117
    %p119 = scmp.ne.s32.totalorder %s111, %s114
    %p120 = scmp.eq.s32.totalorder %s15, 0
    %p121 = por %p119, %p120
    %p122 = scmp.ne.s32.totalorder %s111, %s114
    %p123 = scmp.eq.s32.totalorder %s20, 3
    %p124 = por %p122, %p123
    %p125 = scmp.ne.s32.totalorder %s114, %s115
    %p126 = scmp.eq.s32.totalorder %s20, 0
    %p127 = por %p125, %p126
    %p128 = scmp.ne.s32.totalorder %s114, %s115
    %p129 = scmp.eq.s32.totalorder %s21, 3
    %p130 = por %p128, %p129
    %p132 = scmp.ne.s32.totalorder %s115, %s131
    %p133 = scmp.eq.s32.totalorder %s21, 0
    %p134 = por %p132, %p133
    %s136 = sadd.s32 %s135, 1
    %p139 = scmp.eq.s32.totalorder %s15, 3
    %p140 = scmp.ne.s32.totalorder %s135, %s137
    %p141 = scmp.eq.s32.totalorder %s15, 0
    %p142 = por %p140, %p141
    %p143 = scmp.ne.s32.totalorder %s135, %s137
    %p144 = scmp.eq.s32.totalorder %s20, 3
    %p145 = por %p143, %p144
    %p146 = scmp.ne.s32.totalorder %s137, %s138
    %p147 = scmp.eq.s32.totalorder %s20, 0
    %p148 = por %p146, %p147
    %p149 = scmp.ne.s32.totalorder %s137, %s138
    %p150 = scmp.eq.s32.totalorder %s21, 3
    %p151 = por %p149, %p150
    %p153 = scmp.ne.s32.totalorder %s138, %s152
    %p154 = scmp.eq.s32.totalorder %s21, 0
    %p155 = por %p153, %p154
    %s157 = sadd.s32 %s156, 1
    %p160 = scmp.eq.s32.totalorder %s15, 3
    %p161 = scmp.ne.s32.totalorder %s156, %s158
    %p162 = scmp.eq.s32.totalorder %s15, 0
    %p163 = por %p161, %p162
    %p164 = scmp.ne.s32.totalorder %s156, %s158
    %p165 = scmp.eq.s32.totalorder %s20, 3
    %p166 = por %p164, %p165
    %p167 = scmp.ne.s32.totalorder %s158, %s159
    %p168 = scmp.eq.s32.totalorder %s20, 0
    %p169 = por %p167, %p168
    %p170 = scmp.ne.s32.totalorder %s158, %s159
    %p171 = scmp.eq.s32.totalorder %s21, 3
    %p172 = por %p170, %p171
    %p174 = scmp.ne.s32.totalorder %s159, %s173
    %p175 = scmp.eq.s32.totalorder %s21, 0
    %p176 = por %p174, %p175
    %s178 = sadd.s32 %s177, 1
    %p181 = scmp.eq.s32.totalorder %s15, 3
    %p182 = scmp.ne.s32.totalorder %s177, %s179
    %p183 = scmp.eq.s32.totalorder %s15, 0
    %p184 = por %p182, %p183
    %p185 = scmp.ne.s32.totalorder %s177, %s179
    %p186 = scmp.eq.s32.totalorder %s20, 3
    %p187 = por %p185, %p186
    %p188 = scmp.ne.s32.totalorder %s179, %s180
    %p189 = scmp.eq.s32.totalorder %s20, 0
    %p190 = por %p188, %p189
    %p191 = scmp.ne.s32.totalorder %s179, %s180
    %p192 = scmp.eq.s32.totalorder %s21, 3
    %p193 = por %p191, %p192
    %p195 = scmp.ne.s32.totalorder %s180, %s194
    %p196 = scmp.eq.s32.totalorder %s21, 0
    %p197 = por %p195, %p196
    %s199 = sadd.s32 %s198, 1
    %p202 = scmp.eq.s32.totalorder %s15, 3
    %p203 = scmp.ne.s32.totalorder %s198, %s200
    %p204 = scmp.eq.s32.totalorder %s15, 0
    %p205 = por %p203, %p204
    %p206 = scmp.ne.s32.totalorder %s198, %s200
    %p207 = scmp.eq.s32.totalorder %s20, 3
    %p208 = por %p206, %p207
    %p209 = scmp.ne.s32.totalorder %s200, %s201
    %p210 = scmp.eq.s32.totalorder %s20, 0
    %p211 = por %p209, %p210
    %p212 = scmp.ne.s32.totalorder %s200, %s201
    %p213 = scmp.eq.s32.totalorder %s21, 3
    %p214 = por %p212, %p213
    %p216 = scmp.ne.s32.totalorder %s201, %s215
    %p217 = scmp.eq.s32.totalorder %s21, 0
    %p218 = por %p216, %p217
    %s220 = sadd.s32 %s219, 1
    %p223 = scmp.eq.s32.totalorder %s15, 3
    %p224 = scmp.ne.s32.totalorder %s219, %s221
    %p225 = scmp.eq.s32.totalorder %s15, 0
    %p226 = por %p224, %p225
    %p227 = scmp.ne.s32.totalorder %s219, %s221
    %p228 = scmp.eq.s32.totalorder %s20, 3
    %p229 = por %p227, %p228
    %p230 = scmp.ne.s32.totalorder %s221, %s222
    %p231 = scmp.eq.s32.totalorder %s20, 0
    %p232 = por %p230, %p231
    %p233 = scmp.ne.s32.totalorder %s221, %s222
    %p234 = scmp.eq.s32.totalorder %s21, 3
    %p235 = por %p233, %p234
    %p237 = scmp.ne.s32.totalorder %s222, %s236
    %p238 = scmp.eq.s32.totalorder %s21, 0
    %p239 = por %p237, %p238
    %s241 = sadd.s32 %s240, 1
    %p244 = scmp.eq.s32.totalorder %s15, 3
    %p245 = scmp.ne.s32.totalorder %s240, %s242
    %p246 = scmp.eq.s32.totalorder %s15, 0
    %p247 = por %p245, %p246
    %p248 = scmp.ne.s32.totalorder %s240, %s242
    %p249 = scmp.eq.s32.totalorder %s20, 3
    %p250 = por %p248, %p249
    %p251 = scmp.ne.s32.totalorder %s242, %s243
    %p252 = scmp.eq.s32.totalorder %s20, 0
    %p253 = por %p251, %p252
    %p254 = scmp.ne.s32.totalorder %s242, %s243
    %p255 = scmp.eq.s32.totalorder %s21, 3
    %p256 = por %p254, %p255
    %p258 = scmp.ne.s32.totalorder %s243, %s257
    %p259 = scmp.eq.s32.totalorder %s21, 0
    %p260 = por %p258, %p259
    %s261 = ssub.s32 %s22, %s34
    %s262 = ssub.s32 %s23, %s30
    %s263 = sor.u32 %s261, %s262
    %p264 = scmp.eq.s32.totalorder %s263, 0
    %s266 = sadd.s32 %s265, 1
    %s267 = scalar_select %p264, %s265, %s266
    %p270 = pneg %p264
    %p271 = scmp.eq.s32.totalorder %s15, 3
    %p272 = por %p270, %p271
    %p273 = scmp.ne.s32.totalorder %s265, %s268
    %p274 = scmp.eq.s32.totalorder %s15, 0
    %p275 = por %p273, %p274
    %p276 = scmp.ne.s32.totalorder %s265, %s268
    %p277 = scmp.eq.s32.totalorder %s20, 3
    %p278 = por %p276, %p277
    %p279 = scmp.ne.s32.totalorder %s268, %s269
    %p280 = scmp.eq.s32.totalorder %s20, 0
    %p281 = por %p279, %p280
    %p282 = scmp.ne.s32.totalorder %s268, %s269
    %p283 = scmp.eq.s32.totalorder %s21, 3
    %p284 = por %p282, %p283
    %p286 = scmp.ne.s32.totalorder %s269, %s285
    %p287 = scmp.eq.s32.totalorder %s21, 0
    %p288 = por %p286, %p287
    %p289 = scmp.le.s32.totalorder 1, %s15
    %p290 = scmp.lt.s32.totalorder %s15, 5
    %p291 = pnand %p289, %p290
    %p292 = pneg %p291
    // Predicated region
    $region9: #{_lambda_.2} parent=5 // pred_check
      _
    $region10: #{_lambda_.2} parent=5 // pred_check_branch
      %294 = sbr.rel (%p291) target = $region12
    $region11: #{_lambda_.2} parent=5 // pred_region
      %s295 = ssub.s32 %s15, 1
      // Predicated region
      $region13: #{_lambda_.2} parent=11 // pred_check
        %p296 = pneg %p148
      $region14: #{_lambda_.2} parent=11 // pred_check_branch
        %298 = sbr.rel (%p296) target = $region16
      $region15: #{_lambda_.2} parent=11 // pred_region
        _
      $region16: #{_lambda_.2} parent=11 // pred_fallthru
        _
      // Predicated region
      $region17: #{_lambda_.2} parent=11 // pred_check
        %p299 = pneg %p169
      $region18: #{_lambda_.2} parent=11 // pred_check_branch
        %301 = sbr.rel (%p299) target = $region20
      $region19: #{_lambda_.2} parent=11 // pred_region
        _
      $region20: #{_lambda_.2} parent=11 // pred_fallthru
        _
      // Predicated region
      $region21: #{_lambda_.2} parent=11 // pred_check
        %p302 = pneg %p190
      $region22: #{_lambda_.2} parent=11 // pred_check_branch
        %304 = sbr.rel (%p302) target = $region24
      $region23: #{_lambda_.2} parent=11 // pred_region
        _
      $region24: #{_lambda_.2} parent=11 // pred_fallthru
        _
      // Predicated region
      $region25: #{_lambda_.2} parent=11 // pred_check
        %p305 = pneg %p211
      $region26: #{_lambda_.2} parent=11 // pred_check_branch
        %307 = sbr.rel (%p305) target = $region28
      $region27: #{_lambda_.2} parent=11 // pred_region
        _
      $region28: #{_lambda_.2} parent=11 // pred_fallthru
        _
      // Predicated region
      $region29: #{_lambda_.2} parent=11 // pred_check
        %p308 = pneg %p232
      $region30: #{_lambda_.2} parent=11 // pred_check_branch
        %310 = sbr.rel (%p308) target = $region32
      $region31: #{_lambda_.2} parent=11 // pred_region
        _
      $region32: #{_lambda_.2} parent=11 // pred_fallthru
        _
      // Predicated region
      $region33: #{_lambda_.2} parent=11 // pred_check
        %p311 = pneg %p253
      $region34: #{_lambda_.2} parent=11 // pred_check_branch
        %313 = sbr.rel (%p311) target = $region36
      $region35: #{_lambda_.2} parent=11 // pred_region
        _
      $region36: #{_lambda_.2} parent=11 // pred_fallthru
        _
    $region12: #{_lambda_.2} parent=5 // pred_fallthru
      _
    %p314 = scmp.lt.s32.totalorder %s15, 4
    // Predicated region
    $region37: #{_lambda_.2} parent=5 // pred_check
      %p315 = pneg %p314
    $region38: #{_lambda_.2} parent=5 // pred_check_branch
      %317 = sbr.rel (%p315) target = $region40
    $region39: #{_lambda_.2} parent=5 // pred_region
      // Predicated region
      $region41: #{_lambda_.2} parent=39 // pred_check
        %p318 = pneg %p49
      $region42: #{_lambda_.2} parent=39 // pred_check_branch
        %320 = sbr.rel (%p318) target = $region44
      $region43: #{_lambda_.2} parent=39 // pred_region
        %s321 = smul.u32 8, %s23
        %p322 = scmp.lt.s32.totalorder %s22, 1
        %s323 = scalar_select %p322, %s22, 1
        %p324 = scmp.lt.s32.totalorder %s321, 15
        %s325 = scalar_select %p324, %s321, 15
        %s326 = smul.addr %s325, 2
        %s327 = smul.addr %s323, 32
        %s328 = sadd.s32 %s326, %s327
        %s329 = smul.addr %s328, 4
        %s330 = scalar_lea.vmem %s0, %s329
        %s331 = smul.u32 8, %s23
      $region44: #{_lambda_.2} parent=39 // pred_fallthru
        _
      // Predicated region
      $region45: #{_lambda_.2} parent=39 // pred_check
        %p332 = pneg %p85
      $region46: #{_lambda_.2} parent=39 // pred_check_branch
        %334 = sbr.rel (%p332) target = $region48
      $region47: #{_lambda_.2} parent=39 // pred_region
        %s335 = smul.u32 %s23, 4
        %s336 = ssub.s32 %s335, 1
        %p337 = scmp.gt.s32.totalorder %s336, 0
        %s338 = scalar_select %p337, %s336, 0
        %s339 = smul.u32 2, %s338
        %p340 = scmp.lt.s32.totalorder %s22, 1
        %s341 = scalar_select %p340, %s22, 1
        %p342 = scmp.lt.s32.totalorder %s339, 15
        %s343 = scalar_select %p342, %s339, 15
        %s344 = smul.addr %s343, 2
        %s345 = smul.addr %s341, 32
        %s346 = sadd.s32 %s344, %s345
        %s347 = smul.addr %s346, 4
        %s348 = scalar_lea.vmem %s1, %s347
        %s349 = smul.u32 %s23, 4
        %s350 = ssub.s32 %s349, 1
        %p351 = scmp.gt.s32.totalorder %s350, 0
        %s352 = scalar_select %p351, %s350, 0
        %s353 = smul.u32 2, %s352
      $region48: #{_lambda_.2} parent=39 // pred_fallthru
        _
      // Predicated region
      $region49: #{_lambda_.2} parent=39 // pred_check
        %p354 = pneg %p121
      $region50: #{_lambda_.2} parent=39 // pred_check_branch
        %356 = sbr.rel (%p354) target = $region52
      $region51: #{_lambda_.2} parent=39 // pred_region
        %s357 = sadd.s32 %s23, 1
        %s358 = smul.u32 %s357, 4
        %p359 = scmp.lt.s32.totalorder %s358, 7
        %s360 = scalar_select %p359, %s358, 7
        %s361 = smul.u32 2, %s360
        %p362 = scmp.lt.s32.totalorder %s22, 1
        %s363 = scalar_select %p362, %s22, 1
        %p364 = scmp.lt.s32.totalorder %s361, 15
        %s365 = scalar_select %p364, %s361, 15
        %s366 = smul.addr %s365, 2
        %s367 = smul.addr %s363, 32
        %s368 = sadd.s32 %s366, %s367
        %s369 = smul.addr %s368, 4
        %s370 = scalar_lea.vmem %s2, %s369
        %s371 = sadd.s32 %s23, 1
        %s372 = smul.u32 %s371, 4
        %p373 = scmp.lt.s32.totalorder %s372, 7
        %s374 = scalar_select %p373, %s372, 7
        %s375 = smul.u32 2, %s374
      $region52: #{_lambda_.2} parent=39 // pred_fallthru
        _
    $region40: #{_lambda_.2} parent=5 // pred_fallthru
      _
    %p376 = scmp.le.s32.totalorder 1, %s15
    %p377 = scmp.lt.s32.totalorder %s15, 5
    %p378 = pnand %p376, %p377
    %p379 = pneg %p378
    // Predicated region
    $region53: #{_lambda_.2} parent=5 // pred_check
      _
    $region54: #{_lambda_.2} parent=5 // pred_check_branch
      %381 = sbr.rel (%p378) target = $region56
    $region55: #{_lambda_.2} parent=5 // pred_region
      %s382 = ssub.s32 %s15, 1
      %s383 = smul.u32 8, %s25
      %p384 = scmp.lt.s32.totalorder %s24, 1
      %s385 = scalar_select %p384, %s24, 1
      %p386 = scmp.lt.s32.totalorder %s383, 15
      %s387 = scalar_select %p386, %s383, 15
      %s388 = smul.addr %s387, 2
      %s389 = smul.addr %s385, 32
      %s390 = sadd.s32 %s388, %s389
      %s391 = smul.addr %s390, 4
      %s392 = scalar_lea.vmem %s0, %s391
      %p393 = pneg %p55
      %p394 = pneg %p52
      %s395 = smul.u32 %s25, 4
      %s396 = ssub.s32 %s395, 1
      %p397 = scmp.gt.s32.totalorder %s396, 0
      %s398 = scalar_select %p397, %s396, 0
      %s399 = smul.u32 2, %s398
      %p400 = scmp.lt.s32.totalorder %s24, 1
      %s401 = scalar_select %p400, %s24, 1
      %p402 = scmp.lt.s32.totalorder %s399, 15
      %s403 = scalar_select %p402, %s399, 15
      %s404 = smul.addr %s403, 2
      %s405 = smul.addr %s401, 32
      %s406 = sadd.s32 %s404, %s405
      %s407 = smul.addr %s406, 4
      %s408 = scalar_lea.vmem %s1, %s407
      %p409 = pneg %p91
      %p410 = pneg %p88
      %s411 = sadd.s32 %s25, 1
      %s412 = smul.u32 %s411, 4
      %p413 = scmp.lt.s32.totalorder %s412, 7
      %s414 = scalar_select %p413, %s412, 7
      %s415 = smul.u32 2, %s414
      %p416 = scmp.lt.s32.totalorder %s24, 1
      %s417 = scalar_select %p416, %s24, 1
      %p418 = scmp.lt.s32.totalorder %s415, 15
      %s419 = scalar_select %p418, %s415, 15
      %s420 = smul.addr %s419, 2
      %s421 = smul.addr %s417, 32
      %s422 = sadd.s32 %s420, %s421
      %s423 = smul.addr %s422, 4
      %s424 = scalar_lea.vmem %s2, %s423
      %p425 = pneg %p127
      %p426 = pneg %p124
      %p427 = pneg %p148
      %p428 = pneg %p145
      %p429 = pneg %p169
      %p430 = pneg %p166
      %p431 = pneg %p190
      %p432 = pneg %p187
      %p433 = pneg %p211
      %p434 = pneg %p208
      %p435 = pneg %p232
      %p436 = pneg %p229
      %p437 = pneg %p253
      %p438 = pneg %p250
      %p439 = pneg %p281
      %p440 = pneg %p278
      %p441 = scmp.lt.s32.totalorder %s24, 1
      %s442 = scalar_select %p441, %s24, 1
      %p443 = scmp.lt.s32.totalorder %s25, 1
      %s444 = scalar_select %p443, %s25, 1
      %s445 = smul.addr %s442, 2
      %s446 = sadd.s32 %s444, %s445
      %s447 = smul.addr %s446, 8
      %s448 = scalar_lea.vmem %s9, %s447
      %s449 = smul.u32 8, %s25
      %p450 = scmp.lt.s32.totalorder %s24, 1
      %s451 = scalar_select %p450, %s24, 1
      %p452 = scmp.lt.s32.totalorder %s449, 15
      %s453 = scalar_select %p452, %s449, 15
      %s454 = smul.addr %s453, 2
      %s455 = smul.addr %s451, 32
      %s456 = sadd.s32 %s454, %s455
      %s457 = smul.addr %s456, 4
      %s458 = scalar_lea.vmem %s0, %s457
      %s459 = smul.u32 8, %s25
      %s460 = smul.u32 %s25, 4
      %s461 = ssub.s32 %s460, 1
      %p462 = scmp.gt.s32.totalorder %s461, 0
      %s463 = scalar_select %p462, %s461, 0
      %s464 = smul.u32 2, %s463
      %p465 = scmp.lt.s32.totalorder %s24, 1
      %s466 = scalar_select %p465, %s24, 1
      %p467 = scmp.lt.s32.totalorder %s464, 15
      %s468 = scalar_select %p467, %s464, 15
      %s469 = smul.addr %s468, 2
      %s470 = smul.addr %s466, 32
      %s471 = sadd.s32 %s469, %s470
      %s472 = smul.addr %s471, 4
      %s473 = scalar_lea.vmem %s1, %s472
      %s474 = smul.u32 %s25, 4
      %s475 = ssub.s32 %s474, 1
      %p476 = scmp.gt.s32.totalorder %s475, 0
      %s477 = scalar_select %p476, %s475, 0
      %s478 = smul.u32 2, %s477
      %s479 = sadd.s32 %s25, 1
      %s480 = smul.u32 %s479, 4
      %p481 = scmp.lt.s32.totalorder %s480, 7
      %s482 = scalar_select %p481, %s480, 7
      %s483 = smul.u32 2, %s482
      %p484 = scmp.lt.s32.totalorder %s24, 1
      %s485 = scalar_select %p484, %s24, 1
      %p486 = scmp.lt.s32.totalorder %s483, 15
      %s487 = scalar_select %p486, %s483, 15
      %s488 = smul.addr %s487, 2
      %s489 = smul.addr %s485, 32
      %s490 = sadd.s32 %s488, %s489
      %s491 = smul.addr %s490, 4
      %s492 = scalar_lea.vmem %s2, %s491
      %s493 = sadd.s32 %s25, 1
      %s494 = smul.u32 %s493, 4
      %p495 = scmp.lt.s32.totalorder %s494, 7
      %s496 = scalar_select %p495, %s494, 7
      %s497 = smul.u32 2, %s496
      %p498 = scmp.lt.s32.totalorder %s24, 1
      %s499 = scalar_select %p498, %s24, 1
      %p500 = scmp.lt.s32.totalorder %s25, 1
      %s501 = scalar_select %p500, %s25, 1
      %s502 = smul.addr %s499, 2
      %s503 = sadd.s32 %s501, %s502
      %s504 = smul.addr %s503, 8
      %s505 = scalar_lea.vmem %s9, %s504
      %vm507 = vcmask 385024
      %508 = vst.msk [vmem:[#allocation2] sm:$0x1] %vm507, 0
      %509 = vst.msk [vmem:[#allocation2 + $0xc] sm:$0x1] %vm507, 0
      %510 = vst.msk [vmem:[#allocation2 + $0x18] sm:$0x1] %vm507, 0
      %511 = vst.msk [vmem:[#allocation2 + $0x24] sm:$0x1] %vm507, 0
      %512 = vst.msk [vmem:[#allocation2 + $0x30] sm:$0x1] %vm507, 0
      %513 = vst.msk [vmem:[#allocation2 + $0x3c] sm:$0x1] %vm507, 0
      %514 = vst.msk [vmem:[#allocation2 + $0x48] sm:$0x1] %vm507, 0
      %515 = vst.msk [vmem:[#allocation2 + $0x54] sm:$0x1] %vm507, 0
      %516 = vst.msk [vmem:[#allocation2 + $0x60] sm:$0x1] %vm507, 0
      %517 = vst.msk [vmem:[#allocation2 + $0x6c] sm:$0x1] %vm507, 0
      %518 = vst.msk [vmem:[#allocation2 + $0x78] sm:$0x1] %vm507, 0
      %519 = vst.msk [vmem:[#allocation2 + $0x84] sm:$0x1] %vm507, 0
      %vm520 = vcmask 386049
      %521 = vst.msk [vmem:[#allocation2 + $0x8] sm:$0x2] %vm520, 0
      %522 = vst.msk [vmem:[#allocation2 + $0x14] sm:$0x2] %vm520, 0
      %523 = vst.msk [vmem:[#allocation2 + $0x20] sm:$0x2] %vm520, 0
      %524 = vst.msk [vmem:[#allocation2 + $0x2c] sm:$0x2] %vm520, 0
      %525 = vst.msk [vmem:[#allocation2 + $0x38] sm:$0x2] %vm520, 0
      %526 = vst.msk [vmem:[#allocation2 + $0x44] sm:$0x2] %vm520, 0
      %527 = vst.msk [vmem:[#allocation2 + $0x50] sm:$0x2] %vm520, 0
      %528 = vst.msk [vmem:[#allocation2 + $0x5c] sm:$0x2] %vm520, 0
      %529 = vst.msk [vmem:[#allocation2 + $0x68] sm:$0x2] %vm520, 0
      %530 = vst.msk [vmem:[#allocation2 + $0x74] sm:$0x2] %vm520, 0
      %531 = vst.msk [vmem:[#allocation2 + $0x80] sm:$0x2] %vm520, 0
      %532 = vst.msk [vmem:[#allocation2 + $0x8c] sm:$0x2] %vm520, 0
      %v533 = vld [vmem:[%s458] sm:$0xf]
      %v534 = vld [vmem:[%s458 + $0x4] sm:$0xf]
      %v535 = vld [vmem:[%s458 + $0x8] sm:$0xf]
      %v536 = vld [vmem:[%s458 + $0xc] sm:$0xf]
      %v537 = vld [vmem:[%s458 + $0x10] sm:$0xf]
      %v538 = vld [vmem:[%s458 + $0x14] sm:$0xf]
      %v539 = vld [vmem:[%s458 + $0x18] sm:$0xf]
      %v540 = vld [vmem:[%s458 + $0x1c] sm:$0xf]
      %v541 = vld [vmem:[%s458 + $0x20] sm:$0xf]
      %v542 = vld [vmem:[%s458 + $0x24] sm:$0xf]
      %v543 = vld [vmem:[%s458 + $0x28] sm:$0xf]
      %v544 = vld [vmem:[%s458 + $0x2c] sm:$0xf]
      %v545 = vld [vmem:[%s458 + $0x30] sm:$0xf]
      %v546 = vld [vmem:[%s458 + $0x34] sm:$0xf]
      %v547 = vld [vmem:[%s458 + $0x38] sm:$0xf]
      %v548 = vld [vmem:[%s458 + $0x3c] sm:$0xf]
      %vm565 = vcmask 1040384
      %vm566 = vcmask 1044484
      %vm567 = vmor %vm565, %vm566
      %v568 = vrot.slane %v533, 7
      %v569 = vrot.slane %v568, 4
      %v570 = vrot.slane %v534, 7
      %v571 = vsel %vm567, %v569, %v570
      %v572 = vrot.slane %v570, 4
      %v573 = vrot.slane %v535, 7
      %v574 = vrot.slane %v573, 4
      %v575 = vrot.slane %v536, 7
      %v576 = vsel %vm567, %v574, %v575
      %v577 = vrot.slane %v575, 4
      %v578 = vrot.slane %v537, 7
      %v579 = vrot.slane %v578, 4
      %v580 = vrot.slane %v538, 7
      %v581 = vsel %vm567, %v579, %v580
      %v582 = vrot.slane %v580, 4
      %v583 = vrot.slane %v539, 7
      %v584 = vrot.slane %v583, 4
      %v585 = vrot.slane %v540, 7
      %v586 = vsel %vm567, %v584, %v585
      %v587 = vrot.slane %v585, 4
      %v588 = vrot.slane %v541, 7
      %v589 = vrot.slane %v588, 4
      %v590 = vrot.slane %v542, 7
      %v591 = vsel %vm567, %v589, %v590
      %v592 = vrot.slane %v590, 4
      %v593 = vrot.slane %v543, 7
      %v594 = vrot.slane %v593, 4
      %v595 = vrot.slane %v544, 7
      %v596 = vsel %vm567, %v594, %v595
      %v597 = vrot.slane %v595, 4
      %v598 = vrot.slane %v545, 7
      %v599 = vrot.slane %v598, 4
      %v600 = vrot.slane %v546, 7
      %v601 = vsel %vm567, %v599, %v600
      %v602 = vrot.slane %v600, 4
      %v603 = vrot.slane %v547, 7
      %v604 = vrot.slane %v603, 4
      %v605 = vrot.slane %v548, 7
      %v606 = vsel %vm567, %v604, %v605
      %v607 = vrot.slane %v605, 4
      %s632 = scalar_lea.vmem [#allocation2], 24
      %vm633 = vcmask 388097
      %634 = vst.msk [vmem:[%s632] sm:$0xe] %vm633, %v568
      %vm635 = vcmask 388096
      %636 = vst.msk [vmem:[%s632 + $0x4] sm:$0xf] %vm635, %v571
      %637 = vst.msk [vmem:[%s632 + $0x8] sm:$0x1] %vm507, %v572
      %638 = vst.msk [vmem:[%s632 + $0xc] sm:$0xe] %vm633, %v573
      %639 = vst.msk [vmem:[%s632 + $0x10] sm:$0xf] %vm635, %v576
      %640 = vst.msk [vmem:[%s632 + $0x14] sm:$0x1] %vm507, %v577
      %641 = vst.msk [vmem:[%s632 + $0x18] sm:$0xe] %vm633, %v578
      %642 = vst.msk [vmem:[%s632 + $0x1c] sm:$0xf] %vm635, %v581
      %643 = vst.msk [vmem:[%s632 + $0x20] sm:$0x1] %vm507, %v582
      %644 = vst.msk [vmem:[%s632 + $0x24] sm:$0xe] %vm633, %v583
      %645 = vst.msk [vmem:[%s632 + $0x28] sm:$0xf] %vm635, %v586
      %646 = vst.msk [vmem:[%s632 + $0x2c] sm:$0x1] %vm507, %v587
      %647 = vst.msk [vmem:[%s632 + $0x30] sm:$0xe] %vm633, %v588
      %648 = vst.msk [vmem:[%s632 + $0x34] sm:$0xf] %vm635, %v591
      %649 = vst.msk [vmem:[%s632 + $0x38] sm:$0x1] %vm507, %v592
      %650 = vst.msk [vmem:[%s632 + $0x3c] sm:$0xe] %vm633, %v593
      %651 = vst.msk [vmem:[%s632 + $0x40] sm:$0xf] %vm635, %v596
      %652 = vst.msk [vmem:[%s632 + $0x44] sm:$0x1] %vm507, %v597
      %653 = vst.msk [vmem:[%s632 + $0x48] sm:$0xe] %vm633, %v598
      %654 = vst.msk [vmem:[%s632 + $0x4c] sm:$0xf] %vm635, %v601
      %655 = vst.msk [vmem:[%s632 + $0x50] sm:$0x1] %vm507, %v602
      %656 = vst.msk [vmem:[%s632 + $0x54] sm:$0xe] %vm633, %v603
      %657 = vst.msk [vmem:[%s632 + $0x58] sm:$0xf] %vm635, %v606
      %658 = vst.msk [vmem:[%s632 + $0x5c] sm:$0x1] %vm507, %v607
      %p659 = scmp.gt.s32.totalorder %s25, 0
      // Predicated region
      $region57: #{_lambda_.2} parent=55 // pred_check
        %p660 = pneg %p659
      $region58: #{_lambda_.2} parent=55 // pred_check_branch
        %662 = sbr.rel (%p660) target = $region60
      $region59: #{_lambda_.2} parent=55 // pred_region
        %v663 = vld [vmem:[%s473] sm:$0xf]
        %v664 = vld [vmem:[%s473 + $0x4] sm:$0xf]
        %v665 = vld [vmem:[%s473 + $0x8] sm:$0xf]
        %v666 = vld [vmem:[%s473 + $0xc] sm:$0xf]
        %v671 = vrot.slane %v663, 7
        %v672 = vrot.slane %v671, 4
        %v673 = vrot.slane %v664, 7
        %v674 = vsel %vm567, %v672, %v673
        %v675 = vrot.slane %v673, 4
        %v676 = vrot.slane %v665, 7
        %v677 = vrot.slane %v676, 4
        %v678 = vrot.slane %v666, 7
        %v679 = vsel %vm567, %v677, %v678
        %v680 = vrot.slane %v678, 4
        %687 = vst.msk [vmem:[#allocation2] sm:$0xe] %vm633, %v671
        %688 = vst.msk [vmem:[#allocation2 + $0x4] sm:$0xf] %vm635, %v674
        %689 = vst.msk [vmem:[#allocation2 + $0x8] sm:$0x1] %vm507, %v675
        %690 = vst.msk [vmem:[#allocation2 + $0xc] sm:$0xe] %vm633, %v676
        %691 = vst.msk [vmem:[#allocation2 + $0x10] sm:$0xf] %vm635, %v679
        %692 = vst.msk [vmem:[#allocation2 + $0x14] sm:$0x1] %vm507, %v680
      $region60: #{_lambda_.2} parent=55 // pred_fallthru
        _
      %p693 = scmp.eq.s32.totalorder %s25, 0
      // Predicated region
      $region61: #{_lambda_.2} parent=55 // pred_check
        %p694 = pneg %p693
      $region62: #{_lambda_.2} parent=55 // pred_check_branch
        %696 = sbr.rel (%p694) target = $region64
      $region63: #{_lambda_.2} parent=55 // pred_region
        %697 = vst.msk [vmem:[#allocation2] sm:$0xe] %vm633, 0
        %698 = vst.msk [vmem:[#allocation2 + $0x4] sm:$0xf] %vm635, 0
        %699 = vst.msk [vmem:[#allocation2 + $0x8] sm:$0x1] %vm507, 0
        %700 = vst.msk [vmem:[#allocation2 + $0xc] sm:$0xe] %vm633, 0
        %701 = vst.msk [vmem:[#allocation2 + $0x10] sm:$0xf] %vm635, 0
        %702 = vst.msk [vmem:[#allocation2 + $0x14] sm:$0x1] %vm507, 0
      $region64: #{_lambda_.2} parent=55 // pred_fallthru
        _
      %p703 = scmp.lt.s32.totalorder %s25, 1
      // Predicated region
      $region65: #{_lambda_.2} parent=55 // pred_check
        %p704 = pneg %p703
      $region66: #{_lambda_.2} parent=55 // pred_check_branch
        %706 = sbr.rel (%p704) target = $region68
      $region67: #{_lambda_.2} parent=55 // pred_region
        %v707 = vld [vmem:[%s492] sm:$0xf]
        %v708 = vld [vmem:[%s492 + $0x4] sm:$0xf]
        %v709 = vld [vmem:[%s492 + $0x8] sm:$0xf]
        %v710 = vld [vmem:[%s492 + $0xc] sm:$0xf]
        %v715 = vrot.slane %v707, 7
        %v716 = vrot.slane %v715, 4
        %v717 = vrot.slane %v708, 7
        %v718 = vsel %vm567, %v716, %v717
        %v719 = vrot.slane %v717, 4
        %v720 = vrot.slane %v709, 7
        %v721 = vrot.slane %v720, 4
        %v722 = vrot.slane %v710, 7
        %v723 = vsel %vm567, %v721, %v722
        %v724 = vrot.slane %v722, 4
        %s731 = scalar_lea.vmem [#allocation2], 120
        %732 = vst.msk [vmem:[%s731] sm:$0xe] %vm633, %v715
        %733 = vst.msk [vmem:[%s731 + $0x4] sm:$0xf] %vm635, %v718
        %734 = vst.msk [vmem:[%s731 + $0x8] sm:$0x1] %vm507, %v719
        %735 = vst.msk [vmem:[%s731 + $0xc] sm:$0xe] %vm633, %v720
        %736 = vst.msk [vmem:[%s731 + $0x10] sm:$0xf] %vm635, %v723
        %737 = vst.msk [vmem:[%s731 + $0x14] sm:$0x1] %vm507, %v724
      $region68: #{_lambda_.2} parent=55 // pred_fallthru
        _
      %p738 = scmp.eq.s32.totalorder %s25, 1
      // Predicated region
      $region69: #{_lambda_.2} parent=55 // pred_check
        %p739 = pneg %p738
      $region70: #{_lambda_.2} parent=55 // pred_check_branch
        %741 = sbr.rel (%p739) target = $region72
      $region71: #{_lambda_.2} parent=55 // pred_region
        %s742 = scalar_lea.vmem [#allocation2], 120
        %743 = vst.msk [vmem:[%s742] sm:$0xe] %vm633, 0
        %744 = vst.msk [vmem:[%s742 + $0x4] sm:$0xf] %vm635, 0
        %745 = vst.msk [vmem:[%s742 + $0x8] sm:$0x1] %vm507, 0
        %746 = vst.msk [vmem:[%s742 + $0xc] sm:$0xe] %vm633, 0
        %747 = vst.msk [vmem:[%s742 + $0x10] sm:$0xf] %vm635, 0
        %748 = vst.msk [vmem:[%s742 + $0x14] sm:$0x1] %vm507, 0
      $region72: #{_lambda_.2} parent=55 // pred_fallthru
        _
      %v749 = vld [vmem:[#allocation2] sm:$0xf]
      %v750 = vld [vmem:[#allocation2 + $0x4] sm:$0xf]
      %v751 = vld [vmem:[#allocation2 + $0x8] sm:$0x1]
      %v752 = vld [vmem:[#allocation2 + $0xc] sm:$0xf]
      %v753 = vld [vmem:[#allocation2 + $0x10] sm:$0xf]
      %v754 = vld [vmem:[#allocation2 + $0x14] sm:$0x1]
      %v755 = vld [vmem:[#allocation2 + $0x18] sm:$0xf]
      %v756 = vld [vmem:[#allocation2 + $0x1c] sm:$0xf]
      %v757 = vld [vmem:[#allocation2 + $0x20] sm:$0x1]
      %v758 = vld [vmem:[#allocation2 + $0x24] sm:$0xf]
      %v759 = vld [vmem:[#allocation2 + $0x28] sm:$0xf]
      %v760 = vld [vmem:[#allocation2 + $0x2c] sm:$0x1]
      %v761 = vld [vmem:[#allocation2 + $0x30] sm:$0xf]
      %v762 = vld [vmem:[#allocation2 + $0x34] sm:$0xf]
      %v763 = vld [vmem:[#allocation2 + $0x38] sm:$0x1]
      %v764 = vld [vmem:[#allocation2 + $0x3c] sm:$0xf]
      %v765 = vld [vmem:[#allocation2 + $0x40] sm:$0xf]
      %v766 = vld [vmem:[#allocation2 + $0x44] sm:$0x1]
      %v767 = vld [vmem:[#allocation2 + $0x48] sm:$0xf]
      %v768 = vld [vmem:[#allocation2 + $0x4c] sm:$0xf]
      %v769 = vld [vmem:[#allocation2 + $0x50] sm:$0x1]
      %v770 = vld [vmem:[#allocation2 + $0x54] sm:$0xf]
      %v771 = vld [vmem:[#allocation2 + $0x58] sm:$0xf]
      %v772 = vld [vmem:[#allocation2 + $0x5c] sm:$0x1]
      %v773 = vld [vmem:[#allocation2 + $0x60] sm:$0xf]
      %v774 = vld [vmem:[#allocation2 + $0x64] sm:$0xf]
      %v775 = vld [vmem:[#allocation2 + $0x68] sm:$0x1]
      %v776 = vld [vmem:[#allocation2 + $0x6c] sm:$0xf]
      %v777 = vld [vmem:[#allocation2 + $0x70] sm:$0xf]
      %v778 = vld [vmem:[#allocation2 + $0x74] sm:$0x1]
      %v779 = vld [vmem:[#allocation2 + $0x8] sm:$0x3]
      %v780 = vld [vmem:[#allocation2 + $0x14] sm:$0x3]
      %v781 = vld [vmem:[#allocation2 + $0x20] sm:$0x3]
      %v782 = vld [vmem:[#allocation2 + $0x2c] sm:$0x3]
      %v783 = vld [vmem:[#allocation2 + $0x38] sm:$0x3]
      %v784 = vld [vmem:[#allocation2 + $0x44] sm:$0x3]
      %v785 = vld [vmem:[#allocation2 + $0x50] sm:$0x3]
      %v786 = vld [vmem:[#allocation2 + $0x5c] sm:$0x3]
      %v787 = vld [vmem:[#allocation2 + $0x68] sm:$0x3]
      %v788 = vld [vmem:[#allocation2 + $0x74] sm:$0x3]
      %v789 = vld [vmem:[#allocation2] sm:$0xe]
      %v790 = vld [vmem:[#allocation2 + $0xc] sm:$0xe]
      %v791 = vld [vmem:[#allocation2 + $0x18] sm:$0xe]
      %v792 = vld [vmem:[#allocation2 + $0x24] sm:$0xe]
      %v793 = vld [vmem:[#allocation2 + $0x30] sm:$0xe]
      %v794 = vld [vmem:[#allocation2 + $0x3c] sm:$0xe]
      %v795 = vld [vmem:[#allocation2 + $0x48] sm:$0xe]
      %v796 = vld [vmem:[#allocation2 + $0x54] sm:$0xe]
      %v797 = vld [vmem:[#allocation2 + $0x60] sm:$0xe]
      %v798 = vld [vmem:[#allocation2 + $0x6c] sm:$0xe]
      %v829 = vunpack.c.l.b16 %v749
      %v830 = vunpack.c.l.b16 %v750
      %v831 = vunpack.c.l.b16 %v751
      %v832 = vunpack.c.l.b16 %v752
      %v833 = vunpack.c.l.b16 %v753
      %v834 = vunpack.c.l.b16 %v754
      %v835 = vunpack.c.l.b16 %v755
      %v836 = vunpack.c.l.b16 %v756
      %v837 = vunpack.c.l.b16 %v757
      %v838 = vunpack.c.l.b16 %v758
      %v839 = vunpack.c.l.b16 %v759
      %v840 = vunpack.c.l.b16 %v760
      %v841 = vunpack.c.l.b16 %v761
      %v842 = vunpack.c.l.b16 %v762
      %v843 = vunpack.c.l.b16 %v763
      %v844 = vunpack.c.l.b16 %v764
      %v845 = vunpack.c.l.b16 %v765
      %v846 = vunpack.c.l.b16 %v766
      %v847 = vunpack.c.l.b16 %v767
      %v848 = vunpack.c.l.b16 %v768
      %v849 = vunpack.c.l.b16 %v769
      %v850 = vunpack.c.l.b16 %v770
      %v851 = vunpack.c.l.b16 %v771
      %v852 = vunpack.c.l.b16 %v772
      %v853 = vunpack.c.l.b16 %v773
      %v854 = vunpack.c.l.b16 %v774
      %v855 = vunpack.c.l.b16 %v775
      %v856 = vunpack.c.l.b16 %v776
      %v857 = vunpack.c.l.b16 %v777
      %v858 = vunpack.c.l.b16 %v778
      %v859 = vpack.c.b16 %v830, %v829
      %v860 = vpack.c.b16 %v831, %v831
      %v861 = vpack.c.b16 %v833, %v832
      %v862 = vpack.c.b16 %v834, %v834
      %v863 = vpack.c.b16 %v836, %v835
      %v864 = vpack.c.b16 %v837, %v837
      %v865 = vpack.c.b16 %v839, %v838
      %v866 = vpack.c.b16 %v840, %v840
      %v867 = vpack.c.b16 %v842, %v841
      %v868 = vpack.c.b16 %v843, %v843
      %v869 = vpack.c.b16 %v845, %v844
      %v870 = vpack.c.b16 %v846, %v846
      %v871 = vpack.c.b16 %v848, %v847
      %v872 = vpack.c.b16 %v849, %v849
      %v873 = vpack.c.b16 %v851, %v850
      %v874 = vpack.c.b16 %v852, %v852
      %v875 = vpack.c.b16 %v854, %v853
      %v876 = vpack.c.b16 %v855, %v855
      %v877 = vpack.c.b16 %v857, %v856
      %v878 = vpack.c.b16 %v858, %v858
      %v889 = vunpack.c.l.b16 %v779
      %v890 = vunpack.c.l.b16 %v780
      %v891 = vunpack.c.l.b16 %v781
      %v892 = vunpack.c.l.b16 %v782
      %v893 = vunpack.c.l.b16 %v783
      %v894 = vunpack.c.l.b16 %v784
      %v895 = vunpack.c.l.b16 %v785
      %v896 = vunpack.c.l.b16 %v786
      %v897 = vunpack.c.l.b16 %v787
      %v898 = vunpack.c.l.b16 %v788
      %v899 = vpack.c.b16 %v889, %v889
      %v900 = vpack.c.b16 %v890, %v890
      %v901 = vpack.c.b16 %v891, %v891
      %v902 = vpack.c.b16 %v892, %v892
      %v903 = vpack.c.b16 %v893, %v893
      %v904 = vpack.c.b16 %v894, %v894
      %v905 = vpack.c.b16 %v895, %v895
      %v906 = vpack.c.b16 %v896, %v896
      %v907 = vpack.c.b16 %v897, %v897
      %v908 = vpack.c.b16 %v898, %v898
      %vm909 = vsmask.f32 7424
      %v911 = vshrl.u32 %v859, 16
      %v913 = vshll.u32 %v859, 16
      %v915 = vrot.slane %v913, 1
      %v916 = vor.u32 %v911, %v915
      %v918 = vshll.u32 %v899, 16
      %v920 = vrot.slane %v918, 1
      %v921 = vsel %vm909, %v916, %v920
      %v922 = vshrl.u32 %v899, 16
      %v924 = vor.u32 %v922, %v920
      %v926 = vshrl.u32 %v861, 16
      %v928 = vshll.u32 %v861, 16
      %v930 = vrot.slane %v928, 1
      %v931 = vor.u32 %v926, %v930
      %v933 = vshll.u32 %v900, 16
      %v935 = vrot.slane %v933, 1
      %v936 = vsel %vm909, %v931, %v935
      %v937 = vshrl.u32 %v900, 16
      %v939 = vor.u32 %v937, %v935
      %v941 = vshrl.u32 %v863, 16
      %v943 = vshll.u32 %v863, 16
      %v945 = vrot.slane %v943, 1
      %v946 = vor.u32 %v941, %v945
      %v948 = vshll.u32 %v901, 16
      %v950 = vrot.slane %v948, 1
      %v951 = vsel %vm909, %v946, %v950
      %v952 = vshrl.u32 %v901, 16
      %v954 = vor.u32 %v952, %v950
      %v956 = vshrl.u32 %v865, 16
      %v958 = vshll.u32 %v865, 16
      %v960 = vrot.slane %v958, 1
      %v961 = vor.u32 %v956, %v960
      %v963 = vshll.u32 %v902, 16
      %v965 = vrot.slane %v963, 1
      %v966 = vsel %vm909, %v961, %v965
      %v967 = vshrl.u32 %v902, 16
      %v969 = vor.u32 %v967, %v965
      %v971 = vshrl.u32 %v867, 16
      %v973 = vshll.u32 %v867, 16
      %v975 = vrot.slane %v973, 1
      %v976 = vor.u32 %v971, %v975
      %v978 = vshll.u32 %v903, 16
      %v980 = vrot.slane %v978, 1
      %v981 = vsel %vm909, %v976, %v980
      %v982 = vshrl.u32 %v903, 16
      %v984 = vor.u32 %v982, %v980
      %v986 = vshrl.u32 %v869, 16
      %v988 = vshll.u32 %v869, 16
      %v990 = vrot.slane %v988, 1
      %v991 = vor.u32 %v986, %v990
      %v993 = vshll.u32 %v904, 16
      %v995 = vrot.slane %v993, 1
      %v996 = vsel %vm909, %v991, %v995
      %v997 = vshrl.u32 %v904, 16
      %v999 = vor.u32 %v997, %v995
      %v1001 = vshrl.u32 %v871, 16
      %v1003 = vshll.u32 %v871, 16
      %v1005 = vrot.slane %v1003, 1
      %v1006 = vor.u32 %v1001, %v1005
      %v1008 = vshll.u32 %v905, 16
      %v1010 = vrot.slane %v1008, 1
      %v1011 = vsel %vm909, %v1006, %v1010
      %v1012 = vshrl.u32 %v905, 16
      %v1014 = vor.u32 %v1012, %v1010
      %v1016 = vshrl.u32 %v873, 16
      %v1018 = vshll.u32 %v873, 16
      %v1020 = vrot.slane %v1018, 1
      %v1021 = vor.u32 %v1016, %v1020
      %v1023 = vshll.u32 %v906, 16
      %v1025 = vrot.slane %v1023, 1
      %v1026 = vsel %vm909, %v1021, %v1025
      %v1027 = vshrl.u32 %v906, 16
      %v1029 = vor.u32 %v1027, %v1025
      %v1031 = vshrl.u32 %v875, 16
      %v1033 = vshll.u32 %v875, 16
      %v1035 = vrot.slane %v1033, 1
      %v1036 = vor.u32 %v1031, %v1035
      %v1038 = vshll.u32 %v907, 16
      %v1040 = vrot.slane %v1038, 1
      %v1041 = vsel %vm909, %v1036, %v1040
      %v1042 = vshrl.u32 %v907, 16
      %v1044 = vor.u32 %v1042, %v1040
      %v1046 = vshrl.u32 %v877, 16
      %v1048 = vshll.u32 %v877, 16
      %v1050 = vrot.slane %v1048, 1
      %v1051 = vor.u32 %v1046, %v1050
      %v1053 = vshll.u32 %v908, 16
      %v1055 = vrot.slane %v1053, 1
      %v1056 = vsel %vm909, %v1051, %v1055
      %v1057 = vshrl.u32 %v908, 16
      %v1059 = vor.u32 %v1057, %v1055
      %1060 = vrot.lane.b32.xlu0 %v921, 48
      %v1061 = vpop.permute.xlu0 %1060
      %1062 = vrot.lane.b32.xlu0 %v924, 48
      %v1063 = vpop.permute.xlu0 %1062
      %1064 = vrot.lane.b32.xlu0 %v936, 48
      %v1065 = vpop.permute.xlu0 %1064
      %1066 = vrot.lane.b32.xlu0 %v939, 48
      %v1067 = vpop.permute.xlu0 %1066
      %1068 = vrot.lane.b32.xlu0 %v951, 48
      %v1069 = vpop.permute.xlu0 %1068
      %1070 = vrot.lane.b32.xlu0 %v954, 48
      %v1071 = vpop.permute.xlu0 %1070
      %1072 = vrot.lane.b32.xlu0 %v966, 48
      %v1073 = vpop.permute.xlu0 %1072
      %1074 = vrot.lane.b32.xlu0 %v969, 48
      %v1075 = vpop.permute.xlu0 %1074
      %1076 = vrot.lane.b32.xlu0 %v981, 48
      %v1077 = vpop.permute.xlu0 %1076
      %1078 = vrot.lane.b32.xlu0 %v984, 48
      %v1079 = vpop.permute.xlu0 %1078
      %1080 = vrot.lane.b32.xlu0 %v996, 48
      %v1081 = vpop.permute.xlu0 %1080
      %1082 = vrot.lane.b32.xlu0 %v999, 48
      %v1083 = vpop.permute.xlu0 %1082
      %1084 = vrot.lane.b32.xlu0 %v1011, 48
      %v1085 = vpop.permute.xlu0 %1084
      %1086 = vrot.lane.b32.xlu0 %v1014, 48
      %v1087 = vpop.permute.xlu0 %1086
      %1088 = vrot.lane.b32.xlu0 %v1026, 48
      %v1089 = vpop.permute.xlu0 %1088
      %1090 = vrot.lane.b32.xlu0 %v1029, 48
      %v1091 = vpop.permute.xlu0 %1090
      %1092 = vrot.lane.b32.xlu0 %v1041, 48
      %v1093 = vpop.permute.xlu0 %1092
      %1094 = vrot.lane.b32.xlu0 %v1044, 48
      %v1095 = vpop.permute.xlu0 %1094
      %1096 = vrot.lane.b32.xlu0 %v1056, 48
      %v1097 = vpop.permute.xlu0 %1096
      %1098 = vrot.lane.b32.xlu0 %v1059, 48
      %v1099 = vpop.permute.xlu0 %1098
      %v1110 = vunpack.c.l.b16 %v789
      %v1111 = vunpack.c.l.b16 %v790
      %v1112 = vunpack.c.l.b16 %v791
      %v1113 = vunpack.c.l.b16 %v792
      %v1114 = vunpack.c.l.b16 %v793
      %v1115 = vunpack.c.l.b16 %v794
      %v1116 = vunpack.c.l.b16 %v795
      %v1117 = vunpack.c.l.b16 %v796
      %v1118 = vunpack.c.l.b16 %v797
      %v1119 = vunpack.c.l.b16 %v798
      %v1120 = vpack.c.b16 %v830, %v1110
      %v1121 = vpack.c.b16 %v833, %v1111
      %v1122 = vpack.c.b16 %v836, %v1112
      %v1123 = vpack.c.b16 %v839, %v1113
      %v1124 = vpack.c.b16 %v842, %v1114
      %v1125 = vpack.c.b16 %v845, %v1115
      %v1126 = vpack.c.b16 %v848, %v1116
      %v1127 = vpack.c.b16 %v851, %v1117
      %v1128 = vpack.c.b16 %v854, %v1118
      %v1129 = vpack.c.b16 %v857, %v1119
      %vm1130 = vcmask 1046528
      %v1131 = vrot.slane %v1120, 1
      %v1132 = vrot.slane %v899, 1
      %v1133 = vsel %vm1130, %v1131, %v1132
      %v1134 = vrot.slane %v1121, 1
      %v1135 = vrot.slane %v900, 1
      %v1136 = vsel %vm1130, %v1134, %v1135
      %v1137 = vrot.slane %v1122, 1
      %v1138 = vrot.slane %v901, 1
      %v1139 = vsel %vm1130, %v1137, %v1138
      %v1140 = vrot.slane %v1123, 1
      %v1141 = vrot.slane %v902, 1
      %v1142 = vsel %vm1130, %v1140, %v1141
      %v1143 = vrot.slane %v1124, 1
      %v1144 = vrot.slane %v903, 1
      %v1145 = vsel %vm1130, %v1143, %v1144
      %v1146 = vrot.slane %v1125, 1
      %v1147 = vrot.slane %v904, 1
      %v1148 = vsel %vm1130, %v1146, %v1147
      %v1149 = vrot.slane %v1126, 1
      %v1150 = vrot.slane %v905, 1
      %v1151 = vsel %vm1130, %v1149, %v1150
      %v1152 = vrot.slane %v1127, 1
      %v1153 = vrot.slane %v906, 1
      %v1154 = vsel %vm1130, %v1152, %v1153
      %v1155 = vrot.slane %v1128, 1
      %v1156 = vrot.slane %v907, 1
      %v1157 = vsel %vm1130, %v1155, %v1156
      %v1158 = vrot.slane %v1129, 1
      %v1159 = vrot.slane %v908, 1
      %v1160 = vsel %vm1130, %v1158, %v1159
      %1161 = vrot.lane.b32.xlu0 %v1133, 96
      %v1162 = vpop.permute.xlu0 %1161
      %1163 = vrot.lane.b32.xlu0 %v1132, 96
      %v1164 = vpop.permute.xlu0 %1163
      %1165 = vrot.lane.b32.xlu0 %v1136, 96
      %v1166 = vpop.permute.xlu0 %1165
      %1167 = vrot.lane.b32.xlu0 %v1135, 96
      %v1168 = vpop.permute.xlu0 %1167
      %1169 = vrot.lane.b32.xlu0 %v1139, 96
      %v1170 = vpop.permute.xlu0 %1169
      %1171 = vrot.lane.b32.xlu0 %v1138, 96
      %v1172 = vpop.permute.xlu0 %1171
      %1173 = vrot.lane.b32.xlu0 %v1142, 96
      %v1174 = vpop.permute.xlu0 %1173
      %1175 = vrot.lane.b32.xlu0 %v1141, 96
      %v1176 = vpop.permute.xlu0 %1175
      %1177 = vrot.lane.b32.xlu0 %v1145, 96
      %v1178 = vpop.permute.xlu0 %1177
      %1179 = vrot.lane.b32.xlu0 %v1144, 96
      %v1180 = vpop.permute.xlu0 %1179
      %1181 = vrot.lane.b32.xlu0 %v1148, 96
      %v1182 = vpop.permute.xlu0 %1181
      %1183 = vrot.lane.b32.xlu0 %v1147, 96
      %v1184 = vpop.permute.xlu0 %1183
      %1185 = vrot.lane.b32.xlu0 %v1151, 96
      %v1186 = vpop.permute.xlu0 %1185
      %1187 = vrot.lane.b32.xlu0 %v1150, 96
      %v1188 = vpop.permute.xlu0 %1187
      %1189 = vrot.lane.b32.xlu0 %v1154, 96
      %v1190 = vpop.permute.xlu0 %1189
      %1191 = vrot.lane.b32.xlu0 %v1153, 96
      %v1192 = vpop.permute.xlu0 %1191
      %1193 = vrot.lane.b32.xlu0 %v1157, 96
      %v1194 = vpop.permute.xlu0 %1193
      %1195 = vrot.lane.b32.xlu0 %v1156, 96
      %v1196 = vpop.permute.xlu0 %1195
      %1197 = vrot.lane.b32.xlu0 %v1160, 96
      %v1198 = vpop.permute.xlu0 %1197
      %1199 = vrot.lane.b32.xlu0 %v1159, 96
      %v1200 = vpop.permute.xlu0 %1199
      %vm1201 = vcmask 392192
      %v1203 = vsel %vm1201, %v859, %v1061
      %v1206 = vsel %vm1201, %v860, %v1063
      %v1208 = vsel %vm1201, %v861, %v1065
      %v1211 = vsel %vm1201, %v862, %v1067
      %v1213 = vsel %vm1201, %v863, %v1069
      %v1216 = vsel %vm1201, %v864, %v1071
      %v1218 = vsel %vm1201, %v865, %v1073
      %v1221 = vsel %vm1201, %v866, %v1075
      %v1223 = vsel %vm1201, %v867, %v1077
      %v1226 = vsel %vm1201, %v868, %v1079
      %v1228 = vsel %vm1201, %v869, %v1081
      %v1231 = vsel %vm1201, %v870, %v1083
      %v1233 = vsel %vm1201, %v871, %v1085
      %v1236 = vsel %vm1201, %v872, %v1087
      %v1238 = vsel %vm1201, %v873, %v1089
      %v1241 = vsel %vm1201, %v874, %v1091
      %v1243 = vsel %vm1201, %v875, %v1093
      %v1246 = vsel %vm1201, %v876, %v1095
      %v1248 = vsel %vm1201, %v877, %v1097
      %v1251 = vsel %vm1201, %v878, %v1099
      %vm1252 = vcmask 785408
      %v1254 = vsel %vm1252, %v1203, %v1162
      %v1256 = vsel %vm1252, %v1206, %v1164
      %v1258 = vsel %vm1252, %v1208, %v1166
      %v1260 = vsel %vm1252, %v1211, %v1168
      %v1262 = vsel %vm1252, %v1213, %v1170
      %v1264 = vsel %vm1252, %v1216, %v1172
      %v1266 = vsel %vm1252, %v1218, %v1174
      %v1268 = vsel %vm1252, %v1221, %v1176
      %v1270 = vsel %vm1252, %v1223, %v1178
      %v1272 = vsel %vm1252, %v1226, %v1180
      %v1274 = vsel %vm1252, %v1228, %v1182
      %v1276 = vsel %vm1252, %v1231, %v1184
      %v1278 = vsel %vm1252, %v1233, %v1186
      %v1280 = vsel %vm1252, %v1236, %v1188
      %v1282 = vsel %vm1252, %v1238, %v1190
      %v1284 = vsel %vm1252, %v1241, %v1192
      %v1286 = vsel %vm1252, %v1243, %v1194
      %v1288 = vsel %vm1252, %v1246, %v1196
      %v1290 = vsel %vm1252, %v1248, %v1198
      %v1292 = vsel %vm1252, %v1251, %v1200
      %v1313 = vcombine.low %v1254, %v1162
      %v1314 = vcombine.high %v1254, %v1162
      %v1316 = vunpack.c.l.s4 1966171168
      %v1317 = vunpack.c.0.s8 %v1316
      %v1318 = vlaneseq
      %v1319 = vshrl.u32 %v1318, 7
      %v1320 = vsub.s32 %v1317, %v1319
      %v1321 = vrot.slane %v1313, %v1320
      %v1323 = vunpack.c.l.s4 1966171168
      %v1324 = vunpack.c.0.s8 %v1323
      %v1325 = vlaneseq
      %v1326 = vshrl.u32 %v1325, 7
      %v1327 = vsub.s32 %v1324, %v1326
      %v1328 = vrot.slane %v1314, %v1327
      %v1329 = vcombine.high %v1321, %v1321
      %v1330 = vcombine.high %v1328, %v1328
      %v1332 = vunpack.c.l.s4 1966171168
      %v1333 = vunpack.c.0.s8 %v1332
      %v1334 = vlaneseq
      %v1335 = vshrl.u32 %v1334, 7
      %v1336 = vsub.s32 %v1333, %v1335
      %v1337 = vrot.slane %v1321, %v1336
      %v1339 = vunpack.c.l.s4 1966171168
      %v1340 = vunpack.c.0.s8 %v1339
      %v1341 = vlaneseq
      %v1342 = vshrl.u32 %v1341, 7
      %v1343 = vsub.s32 %v1340, %v1342
      %v1344 = vrot.slane %v1328, %v1343
      %v1346 = vunpack.c.l.s4 1966171168
      %v1347 = vunpack.c.0.s8 %v1346
      %v1348 = vlaneseq
      %v1349 = vshrl.u32 %v1348, 7
      %v1350 = vsub.s32 %v1347, %v1349
      %v1351 = vrot.slane %v1329, %v1350
      %v1353 = vunpack.c.l.s4 1966171168
      %v1354 = vunpack.c.0.s8 %v1353
      %v1355 = vlaneseq
      %v1356 = vshrl.u32 %v1355, 7
      %v1357 = vsub.s32 %v1354, %v1356
      %v1358 = vrot.slane %v1330, %v1357
      %v1359 = vcombine.high %v1337, %v1337
      %v1360 = vcombine.high %v1344, %v1344
      %v1361 = vcombine.high %v1351, %v1351
      %v1362 = vcombine.high %v1358, %v1358
      %v1363 = vcombine.low %v1256, %v1164
      %v1365 = vunpack.c.l.s4 1966171168
      %v1366 = vunpack.c.0.s8 %v1365
      %v1367 = vlaneseq
      %v1368 = vshrl.u32 %v1367, 7
      %v1369 = vsub.s32 %v1366, %v1368
      %v1370 = vrot.slane %v1363, %v1369
      %v1372 = vunpack.c.l.s4 1966171168
      %v1373 = vunpack.c.0.s8 %v1372
      %v1374 = vlaneseq
      %v1375 = vshrl.u32 %v1374, 7
      %v1376 = vsub.s32 %v1373, %v1375
      %v1377 = vrot.slane %v1370, %v1376
      %v1378 = vcombine.low %v1258, %v1166
      %v1379 = vcombine.high %v1258, %v1166
      %v1381 = vunpack.c.l.s4 1966171168
      %v1382 = vunpack.c.0.s8 %v1381
      %v1383 = vlaneseq
      %v1384 = vshrl.u32 %v1383, 7
      %v1385 = vsub.s32 %v1382, %v1384
      %v1386 = vrot.slane %v1378, %v1385
      %v1388 = vunpack.c.l.s4 1966171168
      %v1389 = vunpack.c.0.s8 %v1388
      %v1390 = vlaneseq
      %v1391 = vshrl.u32 %v1390, 7
      %v1392 = vsub.s32 %v1389, %v1391
      %v1393 = vrot.slane %v1379, %v1392
      %v1394 = vcombine.high %v1386, %v1386
      %v1395 = vcombine.high %v1393, %v1393
      %v1397 = vunpack.c.l.s4 1966171168
      %v1398 = vunpack.c.0.s8 %v1397
      %v1399 = vlaneseq
      %v1400 = vshrl.u32 %v1399, 7
      %v1401 = vsub.s32 %v1398, %v1400
      %v1402 = vrot.slane %v1386, %v1401
      %v1404 = vunpack.c.l.s4 1966171168
      %v1405 = vunpack.c.0.s8 %v1404
      %v1406 = vlaneseq
      %v1407 = vshrl.u32 %v1406, 7
      %v1408 = vsub.s32 %v1405, %v1407
      %v1409 = vrot.slane %v1393, %v1408
      %v1411 = vunpack.c.l.s4 1966171168
      %v1412 = vunpack.c.0.s8 %v1411
      %v1413 = vlaneseq
      %v1414 = vshrl.u32 %v1413, 7
      %v1415 = vsub.s32 %v1412, %v1414
      %v1416 = vrot.slane %v1394, %v1415
      %v1418 = vunpack.c.l.s4 1966171168
      %v1419 = vunpack.c.0.s8 %v1418
      %v1420 = vlaneseq
      %v1421 = vshrl.u32 %v1420, 7
      %v1422 = vsub.s32 %v1419, %v1421
      %v1423 = vrot.slane %v1395, %v1422
      %v1424 = vcombine.high %v1402, %v1402
      %v1425 = vcombine.high %v1409, %v1409
      %v1426 = vcombine.high %v1416, %v1416
      %v1427 = vcombine.high %v1423, %v1423
      %v1428 = vcombine.low %v1260, %v1168
      %v1430 = vunpack.c.l.s4 1966171168
      %v1431 = vunpack.c.0.s8 %v1430
      %v1432 = vlaneseq
      %v1433 = vshrl.u32 %v1432, 7
      %v1434 = vsub.s32 %v1431, %v1433
      %v1435 = vrot.slane %v1428, %v1434
      %v1437 = vunpack.c.l.s4 1966171168
      %v1438 = vunpack.c.0.s8 %v1437
      %v1439 = vlaneseq
      %v1440 = vshrl.u32 %v1439, 7
      %v1441 = vsub.s32 %v1438, %v1440
      %v1442 = vrot.slane %v1435, %v1441
      %v1443 = vcombine.low %v1262, %v1170
      %v1444 = vcombine.high %v1262, %v1170
      %v1446 = vunpack.c.l.s4 1966171168
      %v1447 = vunpack.c.0.s8 %v1446
      %v1448 = vlaneseq
      %v1449 = vshrl.u32 %v1448, 7
      %v1450 = vsub.s32 %v1447, %v1449
      %v1451 = vrot.slane %v1443, %v1450
      %v1453 = vunpack.c.l.s4 1966171168
      %v1454 = vunpack.c.0.s8 %v1453
      %v1455 = vlaneseq
      %v1456 = vshrl.u32 %v1455, 7
      %v1457 = vsub.s32 %v1454, %v1456
      %v1458 = vrot.slane %v1444, %v1457
      %v1459 = vcombine.high %v1451, %v1451
      %v1460 = vcombine.high %v1458, %v1458
      %v1462 = vunpack.c.l.s4 1966171168
      %v1463 = vunpack.c.0.s8 %v1462
      %v1464 = vlaneseq
      %v1465 = vshrl.u32 %v1464, 7
      %v1466 = vsub.s32 %v1463, %v1465
      %v1467 = vrot.slane %v1451, %v1466
      %v1469 = vunpack.c.l.s4 1966171168
      %v1470 = vunpack.c.0.s8 %v1469
      %v1471 = vlaneseq
      %v1472 = vshrl.u32 %v1471, 7
      %v1473 = vsub.s32 %v1470, %v1472
      %v1474 = vrot.slane %v1458, %v1473
      %v1476 = vunpack.c.l.s4 1966171168
      %v1477 = vunpack.c.0.s8 %v1476
      %v1478 = vlaneseq
      %v1479 = vshrl.u32 %v1478, 7
      %v1480 = vsub.s32 %v1477, %v1479
      %v1481 = vrot.slane %v1459, %v1480
      %v1483 = vunpack.c.l.s4 1966171168
      %v1484 = vunpack.c.0.s8 %v1483
      %v1485 = vlaneseq
      %v1486 = vshrl.u32 %v1485, 7
      %v1487 = vsub.s32 %v1484, %v1486
      %v1488 = vrot.slane %v1460, %v1487
      %v1489 = vcombine.high %v1467, %v1467
      %v1490 = vcombine.high %v1474, %v1474
      %v1491 = vcombine.high %v1481, %v1481
      %v1492 = vcombine.high %v1488, %v1488
      %v1493 = vcombine.low %v1264, %v1172
      %v1495 = vunpack.c.l.s4 1966171168
      %v1496 = vunpack.c.0.s8 %v1495
      %v1497 = vlaneseq
      %v1498 = vshrl.u32 %v1497, 7
      %v1499 = vsub.s32 %v1496, %v1498
      %v1500 = vrot.slane %v1493, %v1499
      %v1502 = vunpack.c.l.s4 1966171168
      %v1503 = vunpack.c.0.s8 %v1502
      %v1504 = vlaneseq
      %v1505 = vshrl.u32 %v1504, 7
      %v1506 = vsub.s32 %v1503, %v1505
      %v1507 = vrot.slane %v1500, %v1506
      %v1508 = vcombine.low %v1266, %v1174
      %v1509 = vcombine.high %v1266, %v1174
      %v1511 = vunpack.c.l.s4 1966171168
      %v1512 = vunpack.c.0.s8 %v1511
      %v1513 = vlaneseq
      %v1514 = vshrl.u32 %v1513, 7
      %v1515 = vsub.s32 %v1512, %v1514
      %v1516 = vrot.slane %v1508, %v1515
      %v1518 = vunpack.c.l.s4 1966171168
      %v1519 = vunpack.c.0.s8 %v1518
      %v1520 = vlaneseq
      %v1521 = vshrl.u32 %v1520, 7
      %v1522 = vsub.s32 %v1519, %v1521
      %v1523 = vrot.slane %v1509, %v1522
      %v1524 = vcombine.high %v1516, %v1516
      %v1525 = vcombine.high %v1523, %v1523
      %v1527 = vunpack.c.l.s4 1966171168
      %v1528 = vunpack.c.0.s8 %v1527
      %v1529 = vlaneseq
      %v1530 = vshrl.u32 %v1529, 7
      %v1531 = vsub.s32 %v1528, %v1530
      %v1532 = vrot.slane %v1516, %v1531
      %v1534 = vunpack.c.l.s4 1966171168
      %v1535 = vunpack.c.0.s8 %v1534
      %v1536 = vlaneseq
      %v1537 = vshrl.u32 %v1536, 7
      %v1538 = vsub.s32 %v1535, %v1537
      %v1539 = vrot.slane %v1523, %v1538
      %v1541 = vunpack.c.l.s4 1966171168
      %v1542 = vunpack.c.0.s8 %v1541
      %v1543 = vlaneseq
      %v1544 = vshrl.u32 %v1543, 7
      %v1545 = vsub.s32 %v1542, %v1544
      %v1546 = vrot.slane %v1524, %v1545
      %v1548 = vunpack.c.l.s4 1966171168
      %v1549 = vunpack.c.0.s8 %v1548
      %v1550 = vlaneseq
      %v1551 = vshrl.u32 %v1550, 7
      %v1552 = vsub.s32 %v1549, %v1551
      %v1553 = vrot.slane %v1525, %v1552
      %v1554 = vcombine.high %v1532, %v1532
      %v1555 = vcombine.high %v1539, %v1539
      %v1556 = vcombine.high %v1546, %v1546
      %v1557 = vcombine.high %v1553, %v1553
      %v1558 = vcombine.low %v1268, %v1176
      %v1560 = vunpack.c.l.s4 1966171168
      %v1561 = vunpack.c.0.s8 %v1560
      %v1562 = vlaneseq
      %v1563 = vshrl.u32 %v1562, 7
      %v1564 = vsub.s32 %v1561, %v1563
      %v1565 = vrot.slane %v1558, %v1564
      %v1567 = vunpack.c.l.s4 1966171168
      %v1568 = vunpack.c.0.s8 %v1567
      %v1569 = vlaneseq
      %v1570 = vshrl.u32 %v1569, 7
      %v1571 = vsub.s32 %v1568, %v1570
      %v1572 = vrot.slane %v1565, %v1571
      %v1573 = vcombine.low %v1270, %v1178
      %v1574 = vcombine.high %v1270, %v1178
      %v1576 = vunpack.c.l.s4 1966171168
      %v1577 = vunpack.c.0.s8 %v1576
      %v1578 = vlaneseq
      %v1579 = vshrl.u32 %v1578, 7
      %v1580 = vsub.s32 %v1577, %v1579
      %v1581 = vrot.slane %v1573, %v1580
      %v1583 = vunpack.c.l.s4 1966171168
      %v1584 = vunpack.c.0.s8 %v1583
      %v1585 = vlaneseq
      %v1586 = vshrl.u32 %v1585, 7
      %v1587 = vsub.s32 %v1584, %v1586
      %v1588 = vrot.slane %v1574, %v1587
      %v1589 = vcombine.high %v1581, %v1581
      %v1590 = vcombine.high %v1588, %v1588
      %v1592 = vunpack.c.l.s4 1966171168
      %v1593 = vunpack.c.0.s8 %v1592
      %v1594 = vlaneseq
      %v1595 = vshrl.u32 %v1594, 7
      %v1596 = vsub.s32 %v1593, %v1595
      %v1597 = vrot.slane %v1581, %v1596
      %v1599 = vunpack.c.l.s4 1966171168
      %v1600 = vunpack.c.0.s8 %v1599
      %v1601 = vlaneseq
      %v1602 = vshrl.u32 %v1601, 7
      %v1603 = vsub.s32 %v1600, %v1602
      %v1604 = vrot.slane %v1588, %v1603
      %v1606 = vunpack.c.l.s4 1966171168
      %v1607 = vunpack.c.0.s8 %v1606
      %v1608 = vlaneseq
      %v1609 = vshrl.u32 %v1608, 7
      %v1610 = vsub.s32 %v1607, %v1609
      %v1611 = vrot.slane %v1589, %v1610
      %v1613 = vunpack.c.l.s4 1966171168
      %v1614 = vunpack.c.0.s8 %v1613
      %v1615 = vlaneseq
      %v1616 = vshrl.u32 %v1615, 7
      %v1617 = vsub.s32 %v1614, %v1616
      %v1618 = vrot.slane %v1590, %v1617
      %v1619 = vcombine.high %v1597, %v1597
      %v1620 = vcombine.high %v1604, %v1604
      %v1621 = vcombine.high %v1611, %v1611
      %v1622 = vcombine.high %v1618, %v1618
      %v1623 = vcombine.low %v1272, %v1180
      %v1625 = vunpack.c.l.s4 1966171168
      %v1626 = vunpack.c.0.s8 %v1625
      %v1627 = vlaneseq
      %v1628 = vshrl.u32 %v1627, 7
      %v1629 = vsub.s32 %v1626, %v1628
      %v1630 = vrot.slane %v1623, %v1629
      %v1632 = vunpack.c.l.s4 1966171168
      %v1633 = vunpack.c.0.s8 %v1632
      %v1634 = vlaneseq
      %v1635 = vshrl.u32 %v1634, 7
      %v1636 = vsub.s32 %v1633, %v1635
      %v1637 = vrot.slane %v1630, %v1636
      %v1638 = vcombine.low %v1274, %v1182
      %v1639 = vcombine.high %v1274, %v1182
      %v1641 = vunpack.c.l.s4 1966171168
      %v1642 = vunpack.c.0.s8 %v1641
      %v1643 = vlaneseq
      %v1644 = vshrl.u32 %v1643, 7
      %v1645 = vsub.s32 %v1642, %v1644
      %v1646 = vrot.slane %v1638, %v1645
      %v1648 = vunpack.c.l.s4 1966171168
      %v1649 = vunpack.c.0.s8 %v1648
      %v1650 = vlaneseq
      %v1651 = vshrl.u32 %v1650, 7
      %v1652 = vsub.s32 %v1649, %v1651
      %v1653 = vrot.slane %v1639, %v1652
      %v1654 = vcombine.high %v1646, %v1646
      %v1655 = vcombine.high %v1653, %v1653
      %v1657 = vunpack.c.l.s4 1966171168
      %v1658 = vunpack.c.0.s8 %v1657
      %v1659 = vlaneseq
      %v1660 = vshrl.u32 %v1659, 7
      %v1661 = vsub.s32 %v1658, %v1660
      %v1662 = vrot.slane %v1646, %v1661
      %v1664 = vunpack.c.l.s4 1966171168
      %v1665 = vunpack.c.0.s8 %v1664
      %v1666 = vlaneseq
      %v1667 = vshrl.u32 %v1666, 7
      %v1668 = vsub.s32 %v1665, %v1667
      %v1669 = vrot.slane %v1653, %v1668
      %v1671 = vunpack.c.l.s4 1966171168
      %v1672 = vunpack.c.0.s8 %v1671
      %v1673 = vlaneseq
      %v1674 = vshrl.u32 %v1673, 7
      %v1675 = vsub.s32 %v1672, %v1674
      %v1676 = vrot.slane %v1654, %v1675
      %v1678 = vunpack.c.l.s4 1966171168
      %v1679 = vunpack.c.0.s8 %v1678
      %v1680 = vlaneseq
      %v1681 = vshrl.u32 %v1680, 7
      %v1682 = vsub.s32 %v1679, %v1681
      %v1683 = vrot.slane %v1655, %v1682
      %v1684 = vcombine.high %v1662, %v1662
      %v1685 = vcombine.high %v1669, %v1669
      %v1686 = vcombine.high %v1676, %v1676
      %v1687 = vcombine.high %v1683, %v1683
      %v1688 = vcombine.low %v1276, %v1184
      %v1690 = vunpack.c.l.s4 1966171168
      %v1691 = vunpack.c.0.s8 %v1690
      %v1692 = vlaneseq
      %v1693 = vshrl.u32 %v1692, 7
      %v1694 = vsub.s32 %v1691, %v1693
      %v1695 = vrot.slane %v1688, %v1694
      %v1697 = vunpack.c.l.s4 1966171168
      %v1698 = vunpack.c.0.s8 %v1697
      %v1699 = vlaneseq
      %v1700 = vshrl.u32 %v1699, 7
      %v1701 = vsub.s32 %v1698, %v1700
      %v1702 = vrot.slane %v1695, %v1701
      %v1703 = vcombine.low %v1278, %v1186
      %v1704 = vcombine.high %v1278, %v1186
      %v1706 = vunpack.c.l.s4 1966171168
      %v1707 = vunpack.c.0.s8 %v1706
      %v1708 = vlaneseq
      %v1709 = vshrl.u32 %v1708, 7
      %v1710 = vsub.s32 %v1707, %v1709
      %v1711 = vrot.slane %v1703, %v1710
      %v1713 = vunpack.c.l.s4 1966171168
      %v1714 = vunpack.c.0.s8 %v1713
      %v1715 = vlaneseq
      %v1716 = vshrl.u32 %v1715, 7
      %v1717 = vsub.s32 %v1714, %v1716
      %v1718 = vrot.slane %v1704, %v1717
      %v1719 = vcombine.high %v1711, %v1711
      %v1720 = vcombine.high %v1718, %v1718
      %v1722 = vunpack.c.l.s4 1966171168
      %v1723 = vunpack.c.0.s8 %v1722
      %v1724 = vlaneseq
      %v1725 = vshrl.u32 %v1724, 7
      %v1726 = vsub.s32 %v1723, %v1725
      %v1727 = vrot.slane %v1711, %v1726
      %v1729 = vunpack.c.l.s4 1966171168
      %v1730 = vunpack.c.0.s8 %v1729
      %v1731 = vlaneseq
      %v1732 = vshrl.u32 %v1731, 7
      %v1733 = vsub.s32 %v1730, %v1732
      %v1734 = vrot.slane %v1718, %v1733
      %v1736 = vunpack.c.l.s4 1966171168
      %v1737 = vunpack.c.0.s8 %v1736
      %v1738 = vlaneseq
      %v1739 = vshrl.u32 %v1738, 7
      %v1740 = vsub.s32 %v1737, %v1739
      %v1741 = vrot.slane %v1719, %v1740
      %v1743 = vunpack.c.l.s4 1966171168
      %v1744 = vunpack.c.0.s8 %v1743
      %v1745 = vlaneseq
      %v1746 = vshrl.u32 %v1745, 7
      %v1747 = vsub.s32 %v1744, %v1746
      %v1748 = vrot.slane %v1720, %v1747
      %v1749 = vcombine.high %v1727, %v1727
      %v1750 = vcombine.high %v1734, %v1734
      %v1751 = vcombine.high %v1741, %v1741
      %v1752 = vcombine.high %v1748, %v1748
      %v1753 = vcombine.low %v1280, %v1188
      %v1755 = vunpack.c.l.s4 1966171168
      %v1756 = vunpack.c.0.s8 %v1755
      %v1757 = vlaneseq
      %v1758 = vshrl.u32 %v1757, 7
      %v1759 = vsub.s32 %v1756, %v1758
      %v1760 = vrot.slane %v1753, %v1759
      %v1762 = vunpack.c.l.s4 1966171168
      %v1763 = vunpack.c.0.s8 %v1762
      %v1764 = vlaneseq
      %v1765 = vshrl.u32 %v1764, 7
      %v1766 = vsub.s32 %v1763, %v1765
      %v1767 = vrot.slane %v1760, %v1766
      %v1768 = vcombine.low %v1282, %v1190
      %v1769 = vcombine.high %v1282, %v1190
      %v1771 = vunpack.c.l.s4 1966171168
      %v1772 = vunpack.c.0.s8 %v1771
      %v1773 = vlaneseq
      %v1774 = vshrl.u32 %v1773, 7
      %v1775 = vsub.s32 %v1772, %v1774
      %v1776 = vrot.slane %v1768, %v1775
      %v1778 = vunpack.c.l.s4 1966171168
      %v1779 = vunpack.c.0.s8 %v1778
      %v1780 = vlaneseq
      %v1781 = vshrl.u32 %v1780, 7
      %v1782 = vsub.s32 %v1779, %v1781
      %v1783 = vrot.slane %v1769, %v1782
      %v1784 = vcombine.high %v1776, %v1776
      %v1785 = vcombine.high %v1783, %v1783
      %v1787 = vunpack.c.l.s4 1966171168
      %v1788 = vunpack.c.0.s8 %v1787
      %v1789 = vlaneseq
      %v1790 = vshrl.u32 %v1789, 7
      %v1791 = vsub.s32 %v1788, %v1790
      %v1792 = vrot.slane %v1776, %v1791
      %v1794 = vunpack.c.l.s4 1966171168
      %v1795 = vunpack.c.0.s8 %v1794
      %v1796 = vlaneseq
      %v1797 = vshrl.u32 %v1796, 7
      %v1798 = vsub.s32 %v1795, %v1797
      %v1799 = vrot.slane %v1783, %v1798
      %v1801 = vunpack.c.l.s4 1966171168
      %v1802 = vunpack.c.0.s8 %v1801
      %v1803 = vlaneseq
      %v1804 = vshrl.u32 %v1803, 7
      %v1805 = vsub.s32 %v1802, %v1804
      %v1806 = vrot.slane %v1784, %v1805
      %v1808 = vunpack.c.l.s4 1966171168
      %v1809 = vunpack.c.0.s8 %v1808
      %v1810 = vlaneseq
      %v1811 = vshrl.u32 %v1810, 7
      %v1812 = vsub.s32 %v1809, %v1811
      %v1813 = vrot.slane %v1785, %v1812
      %v1814 = vcombine.high %v1792, %v1792
      %v1815 = vcombine.high %v1799, %v1799
      %v1816 = vcombine.high %v1806, %v1806
      %v1817 = vcombine.high %v1813, %v1813
      %v1818 = vcombine.low %v1284, %v1192
      %v1820 = vunpack.c.l.s4 1966171168
      %v1821 = vunpack.c.0.s8 %v1820
      %v1822 = vlaneseq
      %v1823 = vshrl.u32 %v1822, 7
      %v1824 = vsub.s32 %v1821, %v1823
      %v1825 = vrot.slane %v1818, %v1824
      %v1827 = vunpack.c.l.s4 1966171168
      %v1828 = vunpack.c.0.s8 %v1827
      %v1829 = vlaneseq
      %v1830 = vshrl.u32 %v1829, 7
      %v1831 = vsub.s32 %v1828, %v1830
      %v1832 = vrot.slane %v1825, %v1831
      %v1833 = vcombine.low %v1286, %v1194
      %v1834 = vcombine.high %v1286, %v1194
      %v1836 = vunpack.c.l.s4 1966171168
      %v1837 = vunpack.c.0.s8 %v1836
      %v1838 = vlaneseq
      %v1839 = vshrl.u32 %v1838, 7
      %v1840 = vsub.s32 %v1837, %v1839
      %v1841 = vrot.slane %v1833, %v1840
      %v1843 = vunpack.c.l.s4 1966171168
      %v1844 = vunpack.c.0.s8 %v1843
      %v1845 = vlaneseq
      %v1846 = vshrl.u32 %v1845, 7
      %v1847 = vsub.s32 %v1844, %v1846
      %v1848 = vrot.slane %v1834, %v1847
      %v1849 = vcombine.high %v1841, %v1841
      %v1850 = vcombine.high %v1848, %v1848
      %v1852 = vunpack.c.l.s4 1966171168
      %v1853 = vunpack.c.0.s8 %v1852
      %v1854 = vlaneseq
      %v1855 = vshrl.u32 %v1854, 7
      %v1856 = vsub.s32 %v1853, %v1855
      %v1857 = vrot.slane %v1841, %v1856
      %v1859 = vunpack.c.l.s4 1966171168
      %v1860 = vunpack.c.0.s8 %v1859
      %v1861 = vlaneseq
      %v1862 = vshrl.u32 %v1861, 7
      %v1863 = vsub.s32 %v1860, %v1862
      %v1864 = vrot.slane %v1848, %v1863
      %v1866 = vunpack.c.l.s4 1966171168
      %v1867 = vunpack.c.0.s8 %v1866
      %v1868 = vlaneseq
      %v1869 = vshrl.u32 %v1868, 7
      %v1870 = vsub.s32 %v1867, %v1869
      %v1871 = vrot.slane %v1849, %v1870
      %v1873 = vunpack.c.l.s4 1966171168
      %v1874 = vunpack.c.0.s8 %v1873
      %v1875 = vlaneseq
      %v1876 = vshrl.u32 %v1875, 7
      %v1877 = vsub.s32 %v1874, %v1876
      %v1878 = vrot.slane %v1850, %v1877
      %v1879 = vcombine.high %v1857, %v1857
      %v1880 = vcombine.high %v1864, %v1864
      %v1881 = vcombine.high %v1871, %v1871
      %v1882 = vcombine.high %v1878, %v1878
      %v1883 = vcombine.low %v1288, %v1196
      %v1885 = vunpack.c.l.s4 1966171168
      %v1886 = vunpack.c.0.s8 %v1885
      %v1887 = vlaneseq
      %v1888 = vshrl.u32 %v1887, 7
      %v1889 = vsub.s32 %v1886, %v1888
      %v1890 = vrot.slane %v1883, %v1889
      %v1892 = vunpack.c.l.s4 1966171168
      %v1893 = vunpack.c.0.s8 %v1892
      %v1894 = vlaneseq
      %v1895 = vshrl.u32 %v1894, 7
      %v1896 = vsub.s32 %v1893, %v1895
      %v1897 = vrot.slane %v1890, %v1896
      %v1898 = vcombine.low %v1290, %v1198
      %v1899 = vcombine.high %v1290, %v1198
      %v1901 = vunpack.c.l.s4 1966171168
      %v1902 = vunpack.c.0.s8 %v1901
      %v1903 = vlaneseq
      %v1904 = vshrl.u32 %v1903, 7
      %v1905 = vsub.s32 %v1902, %v1904
      %v1906 = vrot.slane %v1898, %v1905
      %v1908 = vunpack.c.l.s4 1966171168
      %v1909 = vunpack.c.0.s8 %v1908
      %v1910 = vlaneseq
      %v1911 = vshrl.u32 %v1910, 7
      %v1912 = vsub.s32 %v1909, %v1911
      %v1913 = vrot.slane %v1899, %v1912
      %v1914 = vcombine.high %v1906, %v1906
      %v1915 = vcombine.high %v1913, %v1913
      %v1917 = vunpack.c.l.s4 1966171168
      %v1918 = vunpack.c.0.s8 %v1917
      %v1919 = vlaneseq
      %v1920 = vshrl.u32 %v1919, 7
      %v1921 = vsub.s32 %v1918, %v1920
      %v1922 = vrot.slane %v1906, %v1921
      %v1924 = vunpack.c.l.s4 1966171168
      %v1925 = vunpack.c.0.s8 %v1924
      %v1926 = vlaneseq
      %v1927 = vshrl.u32 %v1926, 7
      %v1928 = vsub.s32 %v1925, %v1927
      %v1929 = vrot.slane %v1913, %v1928
      %v1931 = vunpack.c.l.s4 1966171168
      %v1932 = vunpack.c.0.s8 %v1931
      %v1933 = vlaneseq
      %v1934 = vshrl.u32 %v1933, 7
      %v1935 = vsub.s32 %v1932, %v1934
      %v1936 = vrot.slane %v1914, %v1935
      %v1938 = vunpack.c.l.s4 1966171168
      %v1939 = vunpack.c.0.s8 %v1938
      %v1940 = vlaneseq
      %v1941 = vshrl.u32 %v1940, 7
      %v1942 = vsub.s32 %v1939, %v1941
      %v1943 = vrot.slane %v1915, %v1942
      %v1944 = vcombine.high %v1922, %v1922
      %v1945 = vcombine.high %v1929, %v1929
      %v1946 = vcombine.high %v1936, %v1936
      %v1947 = vcombine.high %v1943, %v1943
      %v1948 = vcombine.low %v1292, %v1200
      %v1950 = vunpack.c.l.s4 1966171168
      %v1951 = vunpack.c.0.s8 %v1950
      %v1952 = vlaneseq
      %v1953 = vshrl.u32 %v1952, 7
      %v1954 = vsub.s32 %v1951, %v1953
      %v1955 = vrot.slane %v1948, %v1954
      %v1957 = vunpack.c.l.s4 1966171168
      %v1958 = vunpack.c.0.s8 %v1957
      %v1959 = vlaneseq
      %v1960 = vshrl.u32 %v1959, 7
      %v1961 = vsub.s32 %v1958, %v1960
      %v1962 = vrot.slane %v1955, %v1961
      %v1963 = vld [vmem:[%s3] sm:$0xf]
      %v1964 = vld [vmem:[%s3 + $0x4] sm:$0xf]
      %v1965 = vld [vmem:[%s3 + $0x8] sm:$0xf]
      %v1966 = vld [vmem:[%s3 + $0xc] sm:$0xf]
      %v1967 = vld [vmem:[%s3 + $0x10] sm:$0xf]
      %v1968 = vld [vmem:[%s3 + $0x14] sm:$0xf]
      %v1969 = vld [vmem:[%s3 + $0x18] sm:$0xf]
      %v1970 = vld [vmem:[%s3 + $0x1c] sm:$0xf]
      %v1971 = vld [vmem:[%s3 + $0x20] sm:$0xf]
      %v1972 = vld [vmem:[%s3 + $0x24] sm:$0xf]
      %v1973 = vld [vmem:[%s3 + $0x28] sm:$0xf]
      %v1974 = vld [vmem:[%s3 + $0x2c] sm:$0xf]
      %v1975 = vld [vmem:[%s3 + $0x30] sm:$0xf]
      %v1976 = vld [vmem:[%s3 + $0x34] sm:$0xf]
      %v1977 = vld [vmem:[%s3 + $0x38] sm:$0xf]
      %v1978 = vld [vmem:[%s3 + $0x3c] sm:$0xf]
      %v1979 = vld [vmem:[%s3 + $0x40] sm:$0xf]
      %v1980 = vld [vmem:[%s3 + $0x44] sm:$0xf]
      %s1981 = scalar_lea.vmem [#allocation2], 12
      %v1982 = vld [vmem:[%s1981] sm:$0xf]
      %v1983 = vld [vmem:[%s1981 + $0x4] sm:$0xf]
      %v1984 = vld [vmem:[%s1981 + $0x8] sm:$0x1]
      %v1985 = vld [vmem:[%s1981 + $0xc] sm:$0xf]
      %v1986 = vld [vmem:[%s1981 + $0x10] sm:$0xf]
      %v1987 = vld [vmem:[%s1981 + $0x14] sm:$0x1]
      %v1988 = vld [vmem:[%s1981 + $0x18] sm:$0xf]
      %v1989 = vld [vmem:[%s1981 + $0x1c] sm:$0xf]
      %v1990 = vld [vmem:[%s1981 + $0x20] sm:$0x1]
      %v1991 = vld [vmem:[%s1981 + $0x24] sm:$0xf]
      %v1992 = vld [vmem:[%s1981 + $0x28] sm:$0xf]
      %v1993 = vld [vmem:[%s1981 + $0x2c] sm:$0x1]
      %v1994 = vld [vmem:[%s1981 + $0x30] sm:$0xf]
      %v1995 = vld [vmem:[%s1981 + $0x34] sm:$0xf]
      %v1996 = vld [vmem:[%s1981 + $0x38] sm:$0x1]
      %v1997 = vld [vmem:[%s1981 + $0x3c] sm:$0xf]
      %v1998 = vld [vmem:[%s1981 + $0x40] sm:$0xf]
      %v1999 = vld [vmem:[%s1981 + $0x44] sm:$0x1]
      %v2000 = vld [vmem:[%s1981 + $0x48] sm:$0xf]
      %v2001 = vld [vmem:[%s1981 + $0x4c] sm:$0xf]
      %v2002 = vld [vmem:[%s1981 + $0x50] sm:$0x1]
      %v2003 = vld [vmem:[%s1981 + $0x54] sm:$0xf]
      %v2004 = vld [vmem:[%s1981 + $0x58] sm:$0xf]
      %v2005 = vld [vmem:[%s1981 + $0x5c] sm:$0x1]
      %v2006 = vld [vmem:[%s1981 + $0x60] sm:$0xf]
      %v2007 = vld [vmem:[%s1981 + $0x64] sm:$0xf]
      %v2008 = vld [vmem:[%s1981 + $0x68] sm:$0x1]
      %v2009 = vld [vmem:[%s1981 + $0x6c] sm:$0xf]
      %v2010 = vld [vmem:[%s1981 + $0x70] sm:$0xf]
      %v2011 = vld [vmem:[%s1981 + $0x74] sm:$0x1]
      %v2012 = vld [vmem:[%s1981 + $0x8] sm:$0x3]
      %v2013 = vld [vmem:[%s1981 + $0x14] sm:$0x3]
      %v2014 = vld [vmem:[%s1981 + $0x20] sm:$0x3]
      %v2015 = vld [vmem:[%s1981 + $0x2c] sm:$0x3]
      %v2016 = vld [vmem:[%s1981 + $0x38] sm:$0x3]
      %v2017 = vld [vmem:[%s1981 + $0x44] sm:$0x3]
      %v2018 = vld [vmem:[%s1981 + $0x50] sm:$0x3]
      %v2019 = vld [vmem:[%s1981 + $0x5c] sm:$0x3]
      %v2020 = vld [vmem:[%s1981 + $0x68] sm:$0x3]
      %v2021 = vld [vmem:[%s1981 + $0x74] sm:$0x3]
      %v2022 = vld [vmem:[%s1981] sm:$0xe]
      %v2023 = vld [vmem:[%s1981 + $0xc] sm:$0xe]
      %v2024 = vld [vmem:[%s1981 + $0x18] sm:$0xe]
      %v2025 = vld [vmem:[%s1981 + $0x24] sm:$0xe]
      %v2026 = vld [vmem:[%s1981 + $0x30] sm:$0xe]
      %v2027 = vld [vmem:[%s1981 + $0x3c] sm:$0xe]
      %v2028 = vld [vmem:[%s1981 + $0x48] sm:$0xe]
      %v2029 = vld [vmem:[%s1981 + $0x54] sm:$0xe]
      %v2030 = vld [vmem:[%s1981 + $0x60] sm:$0xe]
      %v2031 = vld [vmem:[%s1981 + $0x6c] sm:$0xe]
      %v2062 = vunpack.c.l.b16 %v1982
      %v2063 = vunpack.c.l.b16 %v1983
      %v2064 = vunpack.c.l.b16 %v1984
      %v2065 = vunpack.c.l.b16 %v1985
      %v2066 = vunpack.c.l.b16 %v1986
      %v2067 = vunpack.c.l.b16 %v1987
      %v2068 = vunpack.c.l.b16 %v1988
      %v2069 = vunpack.c.l.b16 %v1989
      %v2070 = vunpack.c.l.b16 %v1990
      %v2071 = vunpack.c.l.b16 %v1991
      %v2072 = vunpack.c.l.b16 %v1992
      %v2073 = vunpack.c.l.b16 %v1993
      %v2074 = vunpack.c.l.b16 %v1994
      %v2075 = vunpack.c.l.b16 %v1995
      %v2076 = vunpack.c.l.b16 %v1996
      %v2077 = vunpack.c.l.b16 %v1997
      %v2078 = vunpack.c.l.b16 %v1998
      %v2079 = vunpack.c.l.b16 %v1999
      %v2080 = vunpack.c.l.b16 %v2000
      %v2081 = vunpack.c.l.b16 %v2001
      %v2082 = vunpack.c.l.b16 %v2002
      %v2083 = vunpack.c.l.b16 %v2003
      %v2084 = vunpack.c.l.b16 %v2004
      %v2085 = vunpack.c.l.b16 %v2005
      %v2086 = vunpack.c.l.b16 %v2006
      %v2087 = vunpack.c.l.b16 %v2007
      %v2088 = vunpack.c.l.b16 %v2008
      %v2089 = vunpack.c.l.b16 %v2009
      %v2090 = vunpack.c.l.b16 %v2010
      %v2091 = vunpack.c.l.b16 %v2011
      %v2092 = vpack.c.b16 %v2063, %v2062
      %v2093 = vpack.c.b16 %v2064, %v2064
      %v2094 = vpack.c.b16 %v2066, %v2065
      %v2095 = vpack.c.b16 %v2067, %v2067
      %v2096 = vpack.c.b16 %v2069, %v2068
      %v2097 = vpack.c.b16 %v2070, %v2070
      %v2098 = vpack.c.b16 %v2072, %v2071
      %v2099 = vpack.c.b16 %v2073, %v2073
      %v2100 = vpack.c.b16 %v2075, %v2074
      %v2101 = vpack.c.b16 %v2076, %v2076
      %v2102 = vpack.c.b16 %v2078, %v2077
      %v2103 = vpack.c.b16 %v2079, %v2079
      %v2104 = vpack.c.b16 %v2081, %v2080
      %v2105 = vpack.c.b16 %v2082, %v2082
      %v2106 = vpack.c.b16 %v2084, %v2083
      %v2107 = vpack.c.b16 %v2085, %v2085
      %v2108 = vpack.c.b16 %v2087, %v2086
      %v2109 = vpack.c.b16 %v2088, %v2088
      %v2110 = vpack.c.b16 %v2090, %v2089
      %v2111 = vpack.c.b16 %v2091, %v2091
      %v2122 = vunpack.c.l.b16 %v2012
      %v2123 = vunpack.c.l.b16 %v2013
      %v2124 = vunpack.c.l.b16 %v2014
      %v2125 = vunpack.c.l.b16 %v2015
      %v2126 = vunpack.c.l.b16 %v2016
      %v2127 = vunpack.c.l.b16 %v2017
      %v2128 = vunpack.c.l.b16 %v2018
      %v2129 = vunpack.c.l.b16 %v2019
      %v2130 = vunpack.c.l.b16 %v2020
      %v2131 = vunpack.c.l.b16 %v2021
      %v2132 = vpack.c.b16 %v2122, %v2122
      %v2133 = vpack.c.b16 %v2123, %v2123
      %v2134 = vpack.c.b16 %v2124, %v2124
      %v2135 = vpack.c.b16 %v2125, %v2125
      %v2136 = vpack.c.b16 %v2126, %v2126
      %v2137 = vpack.c.b16 %v2127, %v2127
      %v2138 = vpack.c.b16 %v2128, %v2128
      %v2139 = vpack.c.b16 %v2129, %v2129
      %v2140 = vpack.c.b16 %v2130, %v2130
      %v2141 = vpack.c.b16 %v2131, %v2131
      %v2143 = vshrl.u32 %v2092, 16
      %v2145 = vshll.u32 %v2092, 16
      %v2147 = vrot.slane %v2145, 1
      %v2148 = vor.u32 %v2143, %v2147
      %v2150 = vshll.u32 %v2132, 16
      %v2152 = vrot.slane %v2150, 1
      %v2153 = vsel %vm909, %v2148, %v2152
      %v2154 = vshrl.u32 %v2132, 16
      %v2156 = vor.u32 %v2154, %v2152
      %v2158 = vshrl.u32 %v2094, 16
      %v2160 = vshll.u32 %v2094, 16
      %v2162 = vrot.slane %v2160, 1
      %v2163 = vor.u32 %v2158, %v2162
      %v2165 = vshll.u32 %v2133, 16
      %v2167 = vrot.slane %v2165, 1
      %v2168 = vsel %vm909, %v2163, %v2167
      %v2169 = vshrl.u32 %v2133, 16
      %v2171 = vor.u32 %v2169, %v2167
      %v2173 = vshrl.u32 %v2096, 16
      %v2175 = vshll.u32 %v2096, 16
      %v2177 = vrot.slane %v2175, 1
      %v2178 = vor.u32 %v2173, %v2177
      %v2180 = vshll.u32 %v2134, 16
      %v2182 = vrot.slane %v2180, 1
      %v2183 = vsel %vm909, %v2178, %v2182
      %v2184 = vshrl.u32 %v2134, 16
      %v2186 = vor.u32 %v2184, %v2182
      %v2188 = vshrl.u32 %v2098, 16
      %v2190 = vshll.u32 %v2098, 16
      %v2192 = vrot.slane %v2190, 1
      %v2193 = vor.u32 %v2188, %v2192
      %v2195 = vshll.u32 %v2135, 16
      %v2197 = vrot.slane %v2195, 1
      %v2198 = vsel %vm909, %v2193, %v2197
      %v2199 = vshrl.u32 %v2135, 16
      %v2201 = vor.u32 %v2199, %v2197
      %v2203 = vshrl.u32 %v2100, 16
      %v2205 = vshll.u32 %v2100, 16
      %v2207 = vrot.slane %v2205, 1
      %v2208 = vor.u32 %v2203, %v2207
      %v2210 = vshll.u32 %v2136, 16
      %v2212 = vrot.slane %v2210, 1
      %v2213 = vsel %vm909, %v2208, %v2212
      %v2214 = vshrl.u32 %v2136, 16
      %v2216 = vor.u32 %v2214, %v2212
      %v2218 = vshrl.u32 %v2102, 16
      %v2220 = vshll.u32 %v2102, 16
      %v2222 = vrot.slane %v2220, 1
      %v2223 = vor.u32 %v2218, %v2222
      %v2225 = vshll.u32 %v2137, 16
      %v2227 = vrot.slane %v2225, 1
      %v2228 = vsel %vm909, %v2223, %v2227
      %v2229 = vshrl.u32 %v2137, 16
      %v2231 = vor.u32 %v2229, %v2227
      %v2233 = vshrl.u32 %v2104, 16
      %v2235 = vshll.u32 %v2104, 16
      %v2237 = vrot.slane %v2235, 1
      %v2238 = vor.u32 %v2233, %v2237
      %v2240 = vshll.u32 %v2138, 16
      %v2242 = vrot.slane %v2240, 1
      %v2243 = vsel %vm909, %v2238, %v2242
      %v2244 = vshrl.u32 %v2138, 16
      %v2246 = vor.u32 %v2244, %v2242
      %v2248 = vshrl.u32 %v2106, 16
      %v2250 = vshll.u32 %v2106, 16
      %v2252 = vrot.slane %v2250, 1
      %v2253 = vor.u32 %v2248, %v2252
      %v2255 = vshll.u32 %v2139, 16
      %v2257 = vrot.slane %v2255, 1
      %v2258 = vsel %vm909, %v2253, %v2257
      %v2259 = vshrl.u32 %v2139, 16
      %v2261 = vor.u32 %v2259, %v2257
      %v2263 = vshrl.u32 %v2108, 16
      %v2265 = vshll.u32 %v2108, 16
      %v2267 = vrot.slane %v2265, 1
      %v2268 = vor.u32 %v2263, %v2267
      %v2270 = vshll.u32 %v2140, 16
      %v2272 = vrot.slane %v2270, 1
      %v2273 = vsel %vm909, %v2268, %v2272
      %v2274 = vshrl.u32 %v2140, 16
      %v2276 = vor.u32 %v2274, %v2272
      %v2278 = vshrl.u32 %v2110, 16
      %v2280 = vshll.u32 %v2110, 16
      %v2282 = vrot.slane %v2280, 1
      %v2283 = vor.u32 %v2278, %v2282
      %v2285 = vshll.u32 %v2141, 16
      %v2287 = vrot.slane %v2285, 1
      %v2288 = vsel %vm909, %v2283, %v2287
      %v2289 = vshrl.u32 %v2141, 16
      %v2291 = vor.u32 %v2289, %v2287
      %2292 = vrot.lane.b32.xlu0 %v2153, 48
      %v2293 = vpop.permute.xlu0 %2292
      %2294 = vrot.lane.b32.xlu0 %v2156, 48
      %v2295 = vpop.permute.xlu0 %2294
      %2296 = vrot.lane.b32.xlu0 %v2168, 48
      %v2297 = vpop.permute.xlu0 %2296
      %2298 = vrot.lane.b32.xlu0 %v2171, 48
      %v2299 = vpop.permute.xlu0 %2298
      %2300 = vrot.lane.b32.xlu0 %v2183, 48
      %v2301 = vpop.permute.xlu0 %2300
      %2302 = vrot.lane.b32.xlu0 %v2186, 48
      %v2303 = vpop.permute.xlu0 %2302
      %2304 = vrot.lane.b32.xlu0 %v2198, 48
      %v2305 = vpop.permute.xlu0 %2304
      %2306 = vrot.lane.b32.xlu0 %v2201, 48
      %v2307 = vpop.permute.xlu0 %2306
      %2308 = vrot.lane.b32.xlu0 %v2213, 48
      %v2309 = vpop.permute.xlu0 %2308
      %2310 = vrot.lane.b32.xlu0 %v2216, 48
      %v2311 = vpop.permute.xlu0 %2310
      %2312 = vrot.lane.b32.xlu0 %v2228, 48
      %v2313 = vpop.permute.xlu0 %2312
      %2314 = vrot.lane.b32.xlu0 %v2231, 48
      %v2315 = vpop.permute.xlu0 %2314
      %2316 = vrot.lane.b32.xlu0 %v2243, 48
      %v2317 = vpop.permute.xlu0 %2316
      %2318 = vrot.lane.b32.xlu0 %v2246, 48
      %v2319 = vpop.permute.xlu0 %2318
      %2320 = vrot.lane.b32.xlu0 %v2258, 48
      %v2321 = vpop.permute.xlu0 %2320
      %2322 = vrot.lane.b32.xlu0 %v2261, 48
      %v2323 = vpop.permute.xlu0 %2322
      %2324 = vrot.lane.b32.xlu0 %v2273, 48
      %v2325 = vpop.permute.xlu0 %2324
      %2326 = vrot.lane.b32.xlu0 %v2276, 48
      %v2327 = vpop.permute.xlu0 %2326
      %2328 = vrot.lane.b32.xlu0 %v2288, 48
      %v2329 = vpop.permute.xlu0 %2328
      %2330 = vrot.lane.b32.xlu0 %v2291, 48
      %v2331 = vpop.permute.xlu0 %2330
      %v2342 = vunpack.c.l.b16 %v2022
      %v2343 = vunpack.c.l.b16 %v2023
      %v2344 = vunpack.c.l.b16 %v2024
      %v2345 = vunpack.c.l.b16 %v2025
      %v2346 = vunpack.c.l.b16 %v2026
      %v2347 = vunpack.c.l.b16 %v2027
      %v2348 = vunpack.c.l.b16 %v2028
      %v2349 = vunpack.c.l.b16 %v2029
      %v2350 = vunpack.c.l.b16 %v2030
      %v2351 = vunpack.c.l.b16 %v2031
      %v2352 = vpack.c.b16 %v2063, %v2342
      %v2353 = vpack.c.b16 %v2066, %v2343
      %v2354 = vpack.c.b16 %v2069, %v2344
      %v2355 = vpack.c.b16 %v2072, %v2345
      %v2356 = vpack.c.b16 %v2075, %v2346
      %v2357 = vpack.c.b16 %v2078, %v2347
      %v2358 = vpack.c.b16 %v2081, %v2348
      %v2359 = vpack.c.b16 %v2084, %v2349
      %v2360 = vpack.c.b16 %v2087, %v2350
      %v2361 = vpack.c.b16 %v2090, %v2351
      %v2362 = vrot.slane %v2352, 1
      %v2363 = vrot.slane %v2132, 1
      %v2364 = vsel %vm1130, %v2362, %v2363
      %v2365 = vrot.slane %v2353, 1
      %v2366 = vrot.slane %v2133, 1
      %v2367 = vsel %vm1130, %v2365, %v2366
      %v2368 = vrot.slane %v2354, 1
      %v2369 = vrot.slane %v2134, 1
      %v2370 = vsel %vm1130, %v2368, %v2369
      %v2371 = vrot.slane %v2355, 1
      %v2372 = vrot.slane %v2135, 1
      %v2373 = vsel %vm1130, %v2371, %v2372
      %v2374 = vrot.slane %v2356, 1
      %v2375 = vrot.slane %v2136, 1
      %v2376 = vsel %vm1130, %v2374, %v2375
      %v2377 = vrot.slane %v2357, 1
      %v2378 = vrot.slane %v2137, 1
      %v2379 = vsel %vm1130, %v2377, %v2378
      %v2380 = vrot.slane %v2358, 1
      %v2381 = vrot.slane %v2138, 1
      %v2382 = vsel %vm1130, %v2380, %v2381
      %v2383 = vrot.slane %v2359, 1
      %v2384 = vrot.slane %v2139, 1
      %v2385 = vsel %vm1130, %v2383, %v2384
      %v2386 = vrot.slane %v2360, 1
      %v2387 = vrot.slane %v2140, 1
      %v2388 = vsel %vm1130, %v2386, %v2387
      %v2389 = vrot.slane %v2361, 1
      %v2390 = vrot.slane %v2141, 1
      %v2391 = vsel %vm1130, %v2389, %v2390
      %2392 = vrot.lane.b32.xlu0 %v2364, 96
      %v2393 = vpop.permute.xlu0 %2392
      %2394 = vrot.lane.b32.xlu0 %v2363, 96
      %v2395 = vpop.permute.xlu0 %2394
      %2396 = vrot.lane.b32.xlu0 %v2367, 96
      %v2397 = vpop.permute.xlu0 %2396
      %2398 = vrot.lane.b32.xlu0 %v2366, 96
      %v2399 = vpop.permute.xlu0 %2398
      %2400 = vrot.lane.b32.xlu0 %v2370, 96
      %v2401 = vpop.permute.xlu0 %2400
      %2402 = vrot.lane.b32.xlu0 %v2369, 96
      %v2403 = vpop.permute.xlu0 %2402
      %2404 = vrot.lane.b32.xlu0 %v2373, 96
      %v2405 = vpop.permute.xlu0 %2404
      %2406 = vrot.lane.b32.xlu0 %v2372, 96
      %v2407 = vpop.permute.xlu0 %2406
      %2408 = vrot.lane.b32.xlu0 %v2376, 96
      %v2409 = vpop.permute.xlu0 %2408
      %2410 = vrot.lane.b32.xlu0 %v2375, 96
      %v2411 = vpop.permute.xlu0 %2410
      %2412 = vrot.lane.b32.xlu0 %v2379, 96
      %v2413 = vpop.permute.xlu0 %2412
      %2414 = vrot.lane.b32.xlu0 %v2378, 96
      %v2415 = vpop.permute.xlu0 %2414
      %2416 = vrot.lane.b32.xlu0 %v2382, 96
      %v2417 = vpop.permute.xlu0 %2416
      %2418 = vrot.lane.b32.xlu0 %v2381, 96
      %v2419 = vpop.permute.xlu0 %2418
      %2420 = vrot.lane.b32.xlu0 %v2385, 96
      %v2421 = vpop.permute.xlu0 %2420
      %2422 = vrot.lane.b32.xlu0 %v2384, 96
      %v2423 = vpop.permute.xlu0 %2422
      %2424 = vrot.lane.b32.xlu0 %v2388, 96
      %v2425 = vpop.permute.xlu0 %2424
      %2426 = vrot.lane.b32.xlu0 %v2387, 96
      %v2427 = vpop.permute.xlu0 %2426
      %2428 = vrot.lane.b32.xlu0 %v2391, 96
      %v2429 = vpop.permute.xlu0 %2428
      %2430 = vrot.lane.b32.xlu0 %v2390, 96
      %v2431 = vpop.permute.xlu0 %2430
      %v2433 = vsel %vm1201, %v2092, %v2293
      %v2436 = vsel %vm1201, %v2093, %v2295
      %v2438 = vsel %vm1201, %v2094, %v2297
      %v2441 = vsel %vm1201, %v2095, %v2299
      %v2443 = vsel %vm1201, %v2096, %v2301
      %v2446 = vsel %vm1201, %v2097, %v2303
      %v2448 = vsel %vm1201, %v2098, %v2305
      %v2451 = vsel %vm1201, %v2099, %v2307
      %v2453 = vsel %vm1201, %v2100, %v2309
      %v2456 = vsel %vm1201, %v2101, %v2311
      %v2458 = vsel %vm1201, %v2102, %v2313
      %v2461 = vsel %vm1201, %v2103, %v2315
      %v2463 = vsel %vm1201, %v2104, %v2317
      %v2466 = vsel %vm1201, %v2105, %v2319
      %v2468 = vsel %vm1201, %v2106, %v2321
      %v2471 = vsel %vm1201, %v2107, %v2323
      %v2473 = vsel %vm1201, %v2108, %v2325
      %v2476 = vsel %vm1201, %v2109, %v2327
      %v2478 = vsel %vm1201, %v2110, %v2329
      %v2481 = vsel %vm1201, %v2111, %v2331
      %v2483 = vsel %vm1252, %v2433, %v2393
      %v2485 = vsel %vm1252, %v2436, %v2395
      %v2487 = vsel %vm1252, %v2438, %v2397
      %v2489 = vsel %vm1252, %v2441, %v2399
      %v2491 = vsel %vm1252, %v2443, %v2401
      %v2493 = vsel %vm1252, %v2446, %v2403
      %v2495 = vsel %vm1252, %v2448, %v2405
      %v2497 = vsel %vm1252, %v2451, %v2407
      %v2499 = vsel %vm1252, %v2453, %v2409
      %v2501 = vsel %vm1252, %v2456, %v2411
      %v2503 = vsel %vm1252, %v2458, %v2413
      %v2505 = vsel %vm1252, %v2461, %v2415
      %v2507 = vsel %vm1252, %v2463, %v2417
      %v2509 = vsel %vm1252, %v2466, %v2419
      %v2511 = vsel %vm1252, %v2468, %v2421
      %v2513 = vsel %vm1252, %v2471, %v2423
      %v2515 = vsel %vm1252, %v2473, %v2425
      %v2517 = vsel %vm1252, %v2476, %v2427
      %v2519 = vsel %vm1252, %v2478, %v2429
      %v2521 = vsel %vm1252, %v2481, %v2431
      %v2542 = vcombine.low %v2483, %v2393
      %v2543 = vcombine.high %v2483, %v2393
      %v2545 = vunpack.c.l.s4 1966171168
      %v2546 = vunpack.c.0.s8 %v2545
      %v2547 = vlaneseq
      %v2548 = vshrl.u32 %v2547, 7
      %v2549 = vsub.s32 %v2546, %v2548
      %v2550 = vrot.slane %v2542, %v2549
      %v2552 = vunpack.c.l.s4 1966171168
      %v2553 = vunpack.c.0.s8 %v2552
      %v2554 = vlaneseq
      %v2555 = vshrl.u32 %v2554, 7
      %v2556 = vsub.s32 %v2553, %v2555
      %v2557 = vrot.slane %v2543, %v2556
      %v2558 = vcombine.high %v2550, %v2550
      %v2559 = vcombine.high %v2557, %v2557
      %v2561 = vunpack.c.l.s4 1966171168
      %v2562 = vunpack.c.0.s8 %v2561
      %v2563 = vlaneseq
      %v2564 = vshrl.u32 %v2563, 7
      %v2565 = vsub.s32 %v2562, %v2564
      %v2566 = vrot.slane %v2550, %v2565
      %v2568 = vunpack.c.l.s4 1966171168
      %v2569 = vunpack.c.0.s8 %v2568
      %v2570 = vlaneseq
      %v2571 = vshrl.u32 %v2570, 7
      %v2572 = vsub.s32 %v2569, %v2571
      %v2573 = vrot.slane %v2557, %v2572
      %v2575 = vunpack.c.l.s4 1966171168
      %v2576 = vunpack.c.0.s8 %v2575
      %v2577 = vlaneseq
      %v2578 = vshrl.u32 %v2577, 7
      %v2579 = vsub.s32 %v2576, %v2578
      %v2580 = vrot.slane %v2558, %v2579
      %v2582 = vunpack.c.l.s4 1966171168
      %v2583 = vunpack.c.0.s8 %v2582
      %v2584 = vlaneseq
      %v2585 = vshrl.u32 %v2584, 7
      %v2586 = vsub.s32 %v2583, %v2585
      %v2587 = vrot.slane %v2559, %v2586
      %v2588 = vcombine.high %v2566, %v2566
      %v2589 = vcombine.high %v2573, %v2573
      %v2590 = vcombine.high %v2580, %v2580
      %v2591 = vcombine.high %v2587, %v2587
      %v2592 = vcombine.low %v2485, %v2395
      %v2594 = vunpack.c.l.s4 1966171168
      %v2595 = vunpack.c.0.s8 %v2594
      %v2596 = vlaneseq
      %v2597 = vshrl.u32 %v2596, 7
      %v2598 = vsub.s32 %v2595, %v2597
      %v2599 = vrot.slane %v2592, %v2598
      %v2601 = vunpack.c.l.s4 1966171168
      %v2602 = vunpack.c.0.s8 %v2601
      %v2603 = vlaneseq
      %v2604 = vshrl.u32 %v2603, 7
      %v2605 = vsub.s32 %v2602, %v2604
      %v2606 = vrot.slane %v2599, %v2605
      %v2607 = vcombine.low %v2487, %v2397
      %v2608 = vcombine.high %v2487, %v2397
      %v2610 = vunpack.c.l.s4 1966171168
      %v2611 = vunpack.c.0.s8 %v2610
      %v2612 = vlaneseq
      %v2613 = vshrl.u32 %v2612, 7
      %v2614 = vsub.s32 %v2611, %v2613
      %v2615 = vrot.slane %v2607, %v2614
      %v2617 = vunpack.c.l.s4 1966171168
      %v2618 = vunpack.c.0.s8 %v2617
      %v2619 = vlaneseq
      %v2620 = vshrl.u32 %v2619, 7
      %v2621 = vsub.s32 %v2618, %v2620
      %v2622 = vrot.slane %v2608, %v2621
      %v2623 = vcombine.high %v2615, %v2615
      %v2624 = vcombine.high %v2622, %v2622
      %v2626 = vunpack.c.l.s4 1966171168
      %v2627 = vunpack.c.0.s8 %v2626
      %v2628 = vlaneseq
      %v2629 = vshrl.u32 %v2628, 7
      %v2630 = vsub.s32 %v2627, %v2629
      %v2631 = vrot.slane %v2615, %v2630
      %v2633 = vunpack.c.l.s4 1966171168
      %v2634 = vunpack.c.0.s8 %v2633
      %v2635 = vlaneseq
      %v2636 = vshrl.u32 %v2635, 7
      %v2637 = vsub.s32 %v2634, %v2636
      %v2638 = vrot.slane %v2622, %v2637
      %v2640 = vunpack.c.l.s4 1966171168
      %v2641 = vunpack.c.0.s8 %v2640
      %v2642 = vlaneseq
      %v2643 = vshrl.u32 %v2642, 7
      %v2644 = vsub.s32 %v2641, %v2643
      %v2645 = vrot.slane %v2623, %v2644
      %v2647 = vunpack.c.l.s4 1966171168
      %v2648 = vunpack.c.0.s8 %v2647
      %v2649 = vlaneseq
      %v2650 = vshrl.u32 %v2649, 7
      %v2651 = vsub.s32 %v2648, %v2650
      %v2652 = vrot.slane %v2624, %v2651
      %v2653 = vcombine.high %v2631, %v2631
      %v2654 = vcombine.high %v2638, %v2638
      %v2655 = vcombine.high %v2645, %v2645
      %v2656 = vcombine.high %v2652, %v2652
      %v2657 = vcombine.low %v2489, %v2399
      %v2659 = vunpack.c.l.s4 1966171168
      %v2660 = vunpack.c.0.s8 %v2659
      %v2661 = vlaneseq
      %v2662 = vshrl.u32 %v2661, 7
      %v2663 = vsub.s32 %v2660, %v2662
      %v2664 = vrot.slane %v2657, %v2663
      %v2666 = vunpack.c.l.s4 1966171168
      %v2667 = vunpack.c.0.s8 %v2666
      %v2668 = vlaneseq
      %v2669 = vshrl.u32 %v2668, 7
      %v2670 = vsub.s32 %v2667, %v2669
      %v2671 = vrot.slane %v2664, %v2670
      %v2672 = vcombine.low %v2491, %v2401
      %v2673 = vcombine.high %v2491, %v2401
      %v2675 = vunpack.c.l.s4 1966171168
      %v2676 = vunpack.c.0.s8 %v2675
      %v2677 = vlaneseq
      %v2678 = vshrl.u32 %v2677, 7
      %v2679 = vsub.s32 %v2676, %v2678
      %v2680 = vrot.slane %v2672, %v2679
      %v2682 = vunpack.c.l.s4 1966171168
      %v2683 = vunpack.c.0.s8 %v2682
      %v2684 = vlaneseq
      %v2685 = vshrl.u32 %v2684, 7
      %v2686 = vsub.s32 %v2683, %v2685
      %v2687 = vrot.slane %v2673, %v2686
      %v2688 = vcombine.high %v2680, %v2680
      %v2689 = vcombine.high %v2687, %v2687
      %v2691 = vunpack.c.l.s4 1966171168
      %v2692 = vunpack.c.0.s8 %v2691
      %v2693 = vlaneseq
      %v2694 = vshrl.u32 %v2693, 7
      %v2695 = vsub.s32 %v2692, %v2694
      %v2696 = vrot.slane %v2680, %v2695
      %v2698 = vunpack.c.l.s4 1966171168
      %v2699 = vunpack.c.0.s8 %v2698
      %v2700 = vlaneseq
      %v2701 = vshrl.u32 %v2700, 7
      %v2702 = vsub.s32 %v2699, %v2701
      %v2703 = vrot.slane %v2687, %v2702
      %v2705 = vunpack.c.l.s4 1966171168
      %v2706 = vunpack.c.0.s8 %v2705
      %v2707 = vlaneseq
      %v2708 = vshrl.u32 %v2707, 7
      %v2709 = vsub.s32 %v2706, %v2708
      %v2710 = vrot.slane %v2688, %v2709
      %v2712 = vunpack.c.l.s4 1966171168
      %v2713 = vunpack.c.0.s8 %v2712
      %v2714 = vlaneseq
      %v2715 = vshrl.u32 %v2714, 7
      %v2716 = vsub.s32 %v2713, %v2715
      %v2717 = vrot.slane %v2689, %v2716
      %v2718 = vcombine.high %v2696, %v2696
      %v2719 = vcombine.high %v2703, %v2703
      %v2720 = vcombine.high %v2710, %v2710
      %v2721 = vcombine.high %v2717, %v2717
      %v2722 = vcombine.low %v2493, %v2403
      %v2724 = vunpack.c.l.s4 1966171168
      %v2725 = vunpack.c.0.s8 %v2724
      %v2726 = vlaneseq
      %v2727 = vshrl.u32 %v2726, 7
      %v2728 = vsub.s32 %v2725, %v2727
      %v2729 = vrot.slane %v2722, %v2728
      %v2731 = vunpack.c.l.s4 1966171168
      %v2732 = vunpack.c.0.s8 %v2731
      %v2733 = vlaneseq
      %v2734 = vshrl.u32 %v2733, 7
      %v2735 = vsub.s32 %v2732, %v2734
      %v2736 = vrot.slane %v2729, %v2735
      %v2737 = vcombine.low %v2495, %v2405
      %v2738 = vcombine.high %v2495, %v2405
      %v2740 = vunpack.c.l.s4 1966171168
      %v2741 = vunpack.c.0.s8 %v2740
      %v2742 = vlaneseq
      %v2743 = vshrl.u32 %v2742, 7
      %v2744 = vsub.s32 %v2741, %v2743
      %v2745 = vrot.slane %v2737, %v2744
      %v2747 = vunpack.c.l.s4 1966171168
      %v2748 = vunpack.c.0.s8 %v2747
      %v2749 = vlaneseq
      %v2750 = vshrl.u32 %v2749, 7
      %v2751 = vsub.s32 %v2748, %v2750
      %v2752 = vrot.slane %v2738, %v2751
      %v2753 = vcombine.high %v2745, %v2745
      %v2754 = vcombine.high %v2752, %v2752
      %v2756 = vunpack.c.l.s4 1966171168
      %v2757 = vunpack.c.0.s8 %v2756
      %v2758 = vlaneseq
      %v2759 = vshrl.u32 %v2758, 7
      %v2760 = vsub.s32 %v2757, %v2759
      %v2761 = vrot.slane %v2745, %v2760
      %v2763 = vunpack.c.l.s4 1966171168
      %v2764 = vunpack.c.0.s8 %v2763
      %v2765 = vlaneseq
      %v2766 = vshrl.u32 %v2765, 7
      %v2767 = vsub.s32 %v2764, %v2766
      %v2768 = vrot.slane %v2752, %v2767
      %v2770 = vunpack.c.l.s4 1966171168
      %v2771 = vunpack.c.0.s8 %v2770
      %v2772 = vlaneseq
      %v2773 = vshrl.u32 %v2772, 7
      %v2774 = vsub.s32 %v2771, %v2773
      %v2775 = vrot.slane %v2753, %v2774
      %v2777 = vunpack.c.l.s4 1966171168
      %v2778 = vunpack.c.0.s8 %v2777
      %v2779 = vlaneseq
      %v2780 = vshrl.u32 %v2779, 7
      %v2781 = vsub.s32 %v2778, %v2780
      %v2782 = vrot.slane %v2754, %v2781
      %v2783 = vcombine.high %v2761, %v2761
      %v2784 = vcombine.high %v2768, %v2768
      %v2785 = vcombine.high %v2775, %v2775
      %v2786 = vcombine.high %v2782, %v2782
      %v2787 = vcombine.low %v2497, %v2407
      %v2789 = vunpack.c.l.s4 1966171168
      %v2790 = vunpack.c.0.s8 %v2789
      %v2791 = vlaneseq
      %v2792 = vshrl.u32 %v2791, 7
      %v2793 = vsub.s32 %v2790, %v2792
      %v2794 = vrot.slane %v2787, %v2793
      %v2796 = vunpack.c.l.s4 1966171168
      %v2797 = vunpack.c.0.s8 %v2796
      %v2798 = vlaneseq
      %v2799 = vshrl.u32 %v2798, 7
      %v2800 = vsub.s32 %v2797, %v2799
      %v2801 = vrot.slane %v2794, %v2800
      %v2802 = vcombine.low %v2499, %v2409
      %v2803 = vcombine.high %v2499, %v2409
      %v2805 = vunpack.c.l.s4 1966171168
      %v2806 = vunpack.c.0.s8 %v2805
      %v2807 = vlaneseq
      %v2808 = vshrl.u32 %v2807, 7
      %v2809 = vsub.s32 %v2806, %v2808
      %v2810 = vrot.slane %v2802, %v2809
      %v2812 = vunpack.c.l.s4 1966171168
      %v2813 = vunpack.c.0.s8 %v2812
      %v2814 = vlaneseq
      %v2815 = vshrl.u32 %v2814, 7
      %v2816 = vsub.s32 %v2813, %v2815
      %v2817 = vrot.slane %v2803, %v2816
      %v2818 = vcombine.high %v2810, %v2810
      %v2819 = vcombine.high %v2817, %v2817
      %v2821 = vunpack.c.l.s4 1966171168
      %v2822 = vunpack.c.0.s8 %v2821
      %v2823 = vlaneseq
      %v2824 = vshrl.u32 %v2823, 7
      %v2825 = vsub.s32 %v2822, %v2824
      %v2826 = vrot.slane %v2810, %v2825
      %v2828 = vunpack.c.l.s4 1966171168
      %v2829 = vunpack.c.0.s8 %v2828
      %v2830 = vlaneseq
      %v2831 = vshrl.u32 %v2830, 7
      %v2832 = vsub.s32 %v2829, %v2831
      %v2833 = vrot.slane %v2817, %v2832
      %v2835 = vunpack.c.l.s4 1966171168
      %v2836 = vunpack.c.0.s8 %v2835
      %v2837 = vlaneseq
      %v2838 = vshrl.u32 %v2837, 7
      %v2839 = vsub.s32 %v2836, %v2838
      %v2840 = vrot.slane %v2818, %v2839
      %v2842 = vunpack.c.l.s4 1966171168
      %v2843 = vunpack.c.0.s8 %v2842
      %v2844 = vlaneseq
      %v2845 = vshrl.u32 %v2844, 7
      %v2846 = vsub.s32 %v2843, %v2845
      %v2847 = vrot.slane %v2819, %v2846
      %v2848 = vcombine.high %v2826, %v2826
      %v2849 = vcombine.high %v2833, %v2833
      %v2850 = vcombine.high %v2840, %v2840
      %v2851 = vcombine.high %v2847, %v2847
      %v2852 = vcombine.low %v2501, %v2411
      %v2854 = vunpack.c.l.s4 1966171168
      %v2855 = vunpack.c.0.s8 %v2854
      %v2856 = vlaneseq
      %v2857 = vshrl.u32 %v2856, 7
      %v2858 = vsub.s32 %v2855, %v2857
      %v2859 = vrot.slane %v2852, %v2858
      %v2861 = vunpack.c.l.s4 1966171168
      %v2862 = vunpack.c.0.s8 %v2861
      %v2863 = vlaneseq
      %v2864 = vshrl.u32 %v2863, 7
      %v2865 = vsub.s32 %v2862, %v2864
      %v2866 = vrot.slane %v2859, %v2865
      %v2867 = vcombine.low %v2503, %v2413
      %v2868 = vcombine.high %v2503, %v2413
      %v2870 = vunpack.c.l.s4 1966171168
      %v2871 = vunpack.c.0.s8 %v2870
      %v2872 = vlaneseq
      %v2873 = vshrl.u32 %v2872, 7
      %v2874 = vsub.s32 %v2871, %v2873
      %v2875 = vrot.slane %v2867, %v2874
      %v2877 = vunpack.c.l.s4 1966171168
      %v2878 = vunpack.c.0.s8 %v2877
      %v2879 = vlaneseq
      %v2880 = vshrl.u32 %v2879, 7
      %v2881 = vsub.s32 %v2878, %v2880
      %v2882 = vrot.slane %v2868, %v2881
      %v2883 = vcombine.high %v2875, %v2875
      %v2884 = vcombine.high %v2882, %v2882
      %v2886 = vunpack.c.l.s4 1966171168
      %v2887 = vunpack.c.0.s8 %v2886
      %v2888 = vlaneseq
      %v2889 = vshrl.u32 %v2888, 7
      %v2890 = vsub.s32 %v2887, %v2889
      %v2891 = vrot.slane %v2875, %v2890
      %v2893 = vunpack.c.l.s4 1966171168
      %v2894 = vunpack.c.0.s8 %v2893
      %v2895 = vlaneseq
      %v2896 = vshrl.u32 %v2895, 7
      %v2897 = vsub.s32 %v2894, %v2896
      %v2898 = vrot.slane %v2882, %v2897
      %v2900 = vunpack.c.l.s4 1966171168
      %v2901 = vunpack.c.0.s8 %v2900
      %v2902 = vlaneseq
      %v2903 = vshrl.u32 %v2902, 7
      %v2904 = vsub.s32 %v2901, %v2903
      %v2905 = vrot.slane %v2883, %v2904
      %v2907 = vunpack.c.l.s4 1966171168
      %v2908 = vunpack.c.0.s8 %v2907
      %v2909 = vlaneseq
      %v2910 = vshrl.u32 %v2909, 7
      %v2911 = vsub.s32 %v2908, %v2910
      %v2912 = vrot.slane %v2884, %v2911
      %v2913 = vcombine.high %v2891, %v2891
      %v2914 = vcombine.high %v2898, %v2898
      %v2915 = vcombine.high %v2905, %v2905
      %v2916 = vcombine.high %v2912, %v2912
      %v2917 = vcombine.low %v2505, %v2415
      %v2919 = vunpack.c.l.s4 1966171168
      %v2920 = vunpack.c.0.s8 %v2919
      %v2921 = vlaneseq
      %v2922 = vshrl.u32 %v2921, 7
      %v2923 = vsub.s32 %v2920, %v2922
      %v2924 = vrot.slane %v2917, %v2923
      %v2926 = vunpack.c.l.s4 1966171168
      %v2927 = vunpack.c.0.s8 %v2926
      %v2928 = vlaneseq
      %v2929 = vshrl.u32 %v2928, 7
      %v2930 = vsub.s32 %v2927, %v2929
      %v2931 = vrot.slane %v2924, %v2930
      %v2932 = vcombine.low %v2507, %v2417
      %v2933 = vcombine.high %v2507, %v2417
      %v2935 = vunpack.c.l.s4 1966171168
      %v2936 = vunpack.c.0.s8 %v2935
      %v2937 = vlaneseq
      %v2938 = vshrl.u32 %v2937, 7
      %v2939 = vsub.s32 %v2936, %v2938
      %v2940 = vrot.slane %v2932, %v2939
      %v2942 = vunpack.c.l.s4 1966171168
      %v2943 = vunpack.c.0.s8 %v2942
      %v2944 = vlaneseq
      %v2945 = vshrl.u32 %v2944, 7
      %v2946 = vsub.s32 %v2943, %v2945
      %v2947 = vrot.slane %v2933, %v2946
      %v2948 = vcombine.high %v2940, %v2940
      %v2949 = vcombine.high %v2947, %v2947
      %v2951 = vunpack.c.l.s4 1966171168
      %v2952 = vunpack.c.0.s8 %v2951
      %v2953 = vlaneseq
      %v2954 = vshrl.u32 %v2953, 7
      %v2955 = vsub.s32 %v2952, %v2954
      %v2956 = vrot.slane %v2940, %v2955
      %v2958 = vunpack.c.l.s4 1966171168
      %v2959 = vunpack.c.0.s8 %v2958
      %v2960 = vlaneseq
      %v2961 = vshrl.u32 %v2960, 7
      %v2962 = vsub.s32 %v2959, %v2961
      %v2963 = vrot.slane %v2947, %v2962
      %v2965 = vunpack.c.l.s4 1966171168
      %v2966 = vunpack.c.0.s8 %v2965
      %v2967 = vlaneseq
      %v2968 = vshrl.u32 %v2967, 7
      %v2969 = vsub.s32 %v2966, %v2968
      %v2970 = vrot.slane %v2948, %v2969
      %v2972 = vunpack.c.l.s4 1966171168
      %v2973 = vunpack.c.0.s8 %v2972
      %v2974 = vlaneseq
      %v2975 = vshrl.u32 %v2974, 7
      %v2976 = vsub.s32 %v2973, %v2975
      %v2977 = vrot.slane %v2949, %v2976
      %v2978 = vcombine.high %v2956, %v2956
      %v2979 = vcombine.high %v2963, %v2963
      %v2980 = vcombine.high %v2970, %v2970
      %v2981 = vcombine.high %v2977, %v2977
      %v2982 = vcombine.low %v2509, %v2419
      %v2984 = vunpack.c.l.s4 1966171168
      %v2985 = vunpack.c.0.s8 %v2984
      %v2986 = vlaneseq
      %v2987 = vshrl.u32 %v2986, 7
      %v2988 = vsub.s32 %v2985, %v2987
      %v2989 = vrot.slane %v2982, %v2988
      %v2991 = vunpack.c.l.s4 1966171168
      %v2992 = vunpack.c.0.s8 %v2991
      %v2993 = vlaneseq
      %v2994 = vshrl.u32 %v2993, 7
      %v2995 = vsub.s32 %v2992, %v2994
      %v2996 = vrot.slane %v2989, %v2995
      %v2997 = vcombine.low %v2511, %v2421
      %v2998 = vcombine.high %v2511, %v2421
      %v3000 = vunpack.c.l.s4 1966171168
      %v3001 = vunpack.c.0.s8 %v3000
      %v3002 = vlaneseq
      %v3003 = vshrl.u32 %v3002, 7
      %v3004 = vsub.s32 %v3001, %v3003
      %v3005 = vrot.slane %v2997, %v3004
      %v3007 = vunpack.c.l.s4 1966171168
      %v3008 = vunpack.c.0.s8 %v3007
      %v3009 = vlaneseq
      %v3010 = vshrl.u32 %v3009, 7
      %v3011 = vsub.s32 %v3008, %v3010
      %v3012 = vrot.slane %v2998, %v3011
      %v3013 = vcombine.high %v3005, %v3005
      %v3014 = vcombine.high %v3012, %v3012
      %v3016 = vunpack.c.l.s4 1966171168
      %v3017 = vunpack.c.0.s8 %v3016
      %v3018 = vlaneseq
      %v3019 = vshrl.u32 %v3018, 7
      %v3020 = vsub.s32 %v3017, %v3019
      %v3021 = vrot.slane %v3005, %v3020
      %v3023 = vunpack.c.l.s4 1966171168
      %v3024 = vunpack.c.0.s8 %v3023
      %v3025 = vlaneseq
      %v3026 = vshrl.u32 %v3025, 7
      %v3027 = vsub.s32 %v3024, %v3026
      %v3028 = vrot.slane %v3012, %v3027
      %v3030 = vunpack.c.l.s4 1966171168
      %v3031 = vunpack.c.0.s8 %v3030
      %v3032 = vlaneseq
      %v3033 = vshrl.u32 %v3032, 7
      %v3034 = vsub.s32 %v3031, %v3033
      %v3035 = vrot.slane %v3013, %v3034
      %v3037 = vunpack.c.l.s4 1966171168
      %v3038 = vunpack.c.0.s8 %v3037
      %v3039 = vlaneseq
      %v3040 = vshrl.u32 %v3039, 7
      %v3041 = vsub.s32 %v3038, %v3040
      %v3042 = vrot.slane %v3014, %v3041
      %v3043 = vcombine.high %v3021, %v3021
      %v3044 = vcombine.high %v3028, %v3028
      %v3045 = vcombine.high %v3035, %v3035
      %v3046 = vcombine.high %v3042, %v3042
      %v3047 = vcombine.low %v2513, %v2423
      %v3049 = vunpack.c.l.s4 1966171168
      %v3050 = vunpack.c.0.s8 %v3049
      %v3051 = vlaneseq
      %v3052 = vshrl.u32 %v3051, 7
      %v3053 = vsub.s32 %v3050, %v3052
      %v3054 = vrot.slane %v3047, %v3053
      %v3056 = vunpack.c.l.s4 1966171168
      %v3057 = vunpack.c.0.s8 %v3056
      %v3058 = vlaneseq
      %v3059 = vshrl.u32 %v3058, 7
      %v3060 = vsub.s32 %v3057, %v3059
      %v3061 = vrot.slane %v3054, %v3060
      %v3062 = vcombine.low %v2515, %v2425
      %v3063 = vcombine.high %v2515, %v2425
      %v3065 = vunpack.c.l.s4 1966171168
      %v3066 = vunpack.c.0.s8 %v3065
      %v3067 = vlaneseq
      %v3068 = vshrl.u32 %v3067, 7
      %v3069 = vsub.s32 %v3066, %v3068
      %v3070 = vrot.slane %v3062, %v3069
      %v3072 = vunpack.c.l.s4 1966171168
      %v3073 = vunpack.c.0.s8 %v3072
      %v3074 = vlaneseq
      %v3075 = vshrl.u32 %v3074, 7
      %v3076 = vsub.s32 %v3073, %v3075
      %v3077 = vrot.slane %v3063, %v3076
      %v3078 = vcombine.high %v3070, %v3070
      %v3079 = vcombine.high %v3077, %v3077
      %v3081 = vunpack.c.l.s4 1966171168
      %v3082 = vunpack.c.0.s8 %v3081
      %v3083 = vlaneseq
      %v3084 = vshrl.u32 %v3083, 7
      %v3085 = vsub.s32 %v3082, %v3084
      %v3086 = vrot.slane %v3070, %v3085
      %v3088 = vunpack.c.l.s4 1966171168
      %v3089 = vunpack.c.0.s8 %v3088
      %v3090 = vlaneseq
      %v3091 = vshrl.u32 %v3090, 7
      %v3092 = vsub.s32 %v3089, %v3091
      %v3093 = vrot.slane %v3077, %v3092
      %v3095 = vunpack.c.l.s4 1966171168
      %v3096 = vunpack.c.0.s8 %v3095
      %v3097 = vlaneseq
      %v3098 = vshrl.u32 %v3097, 7
      %v3099 = vsub.s32 %v3096, %v3098
      %v3100 = vrot.slane %v3078, %v3099
      %v3102 = vunpack.c.l.s4 1966171168
      %v3103 = vunpack.c.0.s8 %v3102
      %v3104 = vlaneseq
      %v3105 = vshrl.u32 %v3104, 7
      %v3106 = vsub.s32 %v3103, %v3105
      %v3107 = vrot.slane %v3079, %v3106
      %v3108 = vcombine.high %v3086, %v3086
      %v3109 = vcombine.high %v3093, %v3093
      %v3110 = vcombine.high %v3100, %v3100
      %v3111 = vcombine.high %v3107, %v3107
      %v3112 = vcombine.low %v2517, %v2427
      %v3114 = vunpack.c.l.s4 1966171168
      %v3115 = vunpack.c.0.s8 %v3114
      %v3116 = vlaneseq
      %v3117 = vshrl.u32 %v3116, 7
      %v3118 = vsub.s32 %v3115, %v3117
      %v3119 = vrot.slane %v3112, %v3118
      %v3121 = vunpack.c.l.s4 1966171168
      %v3122 = vunpack.c.0.s8 %v3121
      %v3123 = vlaneseq
      %v3124 = vshrl.u32 %v3123, 7
      %v3125 = vsub.s32 %v3122, %v3124
      %v3126 = vrot.slane %v3119, %v3125
      %v3127 = vcombine.low %v2519, %v2429
      %v3128 = vcombine.high %v2519, %v2429
      %v3130 = vunpack.c.l.s4 1966171168
      %v3131 = vunpack.c.0.s8 %v3130
      %v3132 = vlaneseq
      %v3133 = vshrl.u32 %v3132, 7
      %v3134 = vsub.s32 %v3131, %v3133
      %v3135 = vrot.slane %v3127, %v3134
      %v3137 = vunpack.c.l.s4 1966171168
      %v3138 = vunpack.c.0.s8 %v3137
      %v3139 = vlaneseq
      %v3140 = vshrl.u32 %v3139, 7
      %v3141 = vsub.s32 %v3138, %v3140
      %v3142 = vrot.slane %v3128, %v3141
      %v3143 = vcombine.high %v3135, %v3135
      %v3144 = vcombine.high %v3142, %v3142
      %v3146 = vunpack.c.l.s4 1966171168
      %v3147 = vunpack.c.0.s8 %v3146
      %v3148 = vlaneseq
      %v3149 = vshrl.u32 %v3148, 7
      %v3150 = vsub.s32 %v3147, %v3149
      %v3151 = vrot.slane %v3135, %v3150
      %v3153 = vunpack.c.l.s4 1966171168
      %v3154 = vunpack.c.0.s8 %v3153
      %v3155 = vlaneseq
      %v3156 = vshrl.u32 %v3155, 7
      %v3157 = vsub.s32 %v3154, %v3156
      %v3158 = vrot.slane %v3142, %v3157
      %v3160 = vunpack.c.l.s4 1966171168
      %v3161 = vunpack.c.0.s8 %v3160
      %v3162 = vlaneseq
      %v3163 = vshrl.u32 %v3162, 7
      %v3164 = vsub.s32 %v3161, %v3163
      %v3165 = vrot.slane %v3143, %v3164
      %v3167 = vunpack.c.l.s4 1966171168
      %v3168 = vunpack.c.0.s8 %v3167
      %v3169 = vlaneseq
      %v3170 = vshrl.u32 %v3169, 7
      %v3171 = vsub.s32 %v3168, %v3170
      %v3172 = vrot.slane %v3144, %v3171
      %v3173 = vcombine.high %v3151, %v3151
      %v3174 = vcombine.high %v3158, %v3158
      %v3175 = vcombine.high %v3165, %v3165
      %v3176 = vcombine.high %v3172, %v3172
      %v3177 = vcombine.low %v2521, %v2431
      %v3179 = vunpack.c.l.s4 1966171168
      %v3180 = vunpack.c.0.s8 %v3179
      %v3181 = vlaneseq
      %v3182 = vshrl.u32 %v3181, 7
      %v3183 = vsub.s32 %v3180, %v3182
      %v3184 = vrot.slane %v3177, %v3183
      %v3186 = vunpack.c.l.s4 1966171168
      %v3187 = vunpack.c.0.s8 %v3186
      %v3188 = vlaneseq
      %v3189 = vshrl.u32 %v3188, 7
      %v3190 = vsub.s32 %v3187, %v3189
      %v3191 = vrot.slane %v3184, %v3190
      %s3192 = scalar_lea.vmem %s3, 72
      %v3193 = vld [vmem:[%s3192] sm:$0xf]
      %v3194 = vld [vmem:[%s3192 + $0x4] sm:$0xf]
      %v3195 = vld [vmem:[%s3192 + $0x8] sm:$0xf]
      %v3196 = vld [vmem:[%s3192 + $0xc] sm:$0xf]
      %v3197 = vld [vmem:[%s3192 + $0x10] sm:$0xf]
      %v3198 = vld [vmem:[%s3192 + $0x14] sm:$0xf]
      %v3199 = vld [vmem:[%s3192 + $0x18] sm:$0xf]
      %v3200 = vld [vmem:[%s3192 + $0x1c] sm:$0xf]
      %v3201 = vld [vmem:[%s3192 + $0x20] sm:$0xf]
      %v3202 = vld [vmem:[%s3192 + $0x24] sm:$0xf]
      %v3203 = vld [vmem:[%s3192 + $0x28] sm:$0xf]
      %v3204 = vld [vmem:[%s3192 + $0x2c] sm:$0xf]
      %v3205 = vld [vmem:[%s3192 + $0x30] sm:$0xf]
      %v3206 = vld [vmem:[%s3192 + $0x34] sm:$0xf]
      %v3207 = vld [vmem:[%s3192 + $0x38] sm:$0xf]
      %v3208 = vld [vmem:[%s3192 + $0x3c] sm:$0xf]
      %v3209 = vld [vmem:[%s3192 + $0x40] sm:$0xf]
      %v3210 = vld [vmem:[%s3192 + $0x44] sm:$0xf]
      %v3211 = vcombine.low %v2566, %v2580
      %v3212 = vcombine.low %v2588, %v2590
      %v3213 = vcombine.low %v2573, %v2587
      %v3214 = vcombine.low %v2589, %v2591
      %v3216 = vunpack.c.l.s4 1966171168
      %v3217 = vunpack.c.0.s8 %v3216
      %v3218 = vlaneseq
      %v3219 = vshrl.u32 %v3218, 7
      %v3220 = vsub.s32 %v3217, %v3219
      %v3221 = vrot.slane %v3211, %v3220
      %v3223 = vunpack.c.l.s4 1966171168
      %v3224 = vunpack.c.0.s8 %v3223
      %v3225 = vlaneseq
      %v3226 = vshrl.u32 %v3225, 7
      %v3227 = vsub.s32 %v3224, %v3226
      %v3228 = vrot.slane %v3212, %v3227
      %v3230 = vunpack.c.l.s4 1966171168
      %v3231 = vunpack.c.0.s8 %v3230
      %v3232 = vlaneseq
      %v3233 = vshrl.u32 %v3232, 7
      %v3234 = vsub.s32 %v3231, %v3233
      %v3235 = vrot.slane %v3213, %v3234
      %v3237 = vunpack.c.l.s4 1966171168
      %v3238 = vunpack.c.0.s8 %v3237
      %v3239 = vlaneseq
      %v3240 = vshrl.u32 %v3239, 7
      %v3241 = vsub.s32 %v3238, %v3240
      %v3242 = vrot.slane %v3214, %v3241
      %v3243 = vcombine.low %v3221, %v3228
      %v3244 = vcombine.high %v3221, %v3228
      %v3245 = vcombine.low %v3235, %v3242
      %v3246 = vcombine.high %v3235, %v3242
      %v3248 = vunpack.c.l.s4 1966171168
      %v3249 = vunpack.c.0.s8 %v3248
      %v3250 = vlaneseq
      %v3251 = vshrl.u32 %v3250, 7
      %v3252 = vsub.s32 %v3249, %v3251
      %v3253 = vrot.slane %v3243, %v3252
      %v3255 = vunpack.c.l.s4 1966171168
      %v3256 = vunpack.c.0.s8 %v3255
      %v3257 = vlaneseq
      %v3258 = vshrl.u32 %v3257, 7
      %v3259 = vsub.s32 %v3256, %v3258
      %v3260 = vrot.slane %v3244, %v3259
      %v3262 = vunpack.c.l.s4 1966171168
      %v3263 = vunpack.c.0.s8 %v3262
      %v3264 = vlaneseq
      %v3265 = vshrl.u32 %v3264, 7
      %v3266 = vsub.s32 %v3263, %v3265
      %v3267 = vrot.slane %v3245, %v3266
      %v3269 = vunpack.c.l.s4 1966171168
      %v3270 = vunpack.c.0.s8 %v3269
      %v3271 = vlaneseq
      %v3272 = vshrl.u32 %v3271, 7
      %v3273 = vsub.s32 %v3270, %v3272
      %v3274 = vrot.slane %v3246, %v3273
      %v3275 = vcombine.low %v3253, %v3267
      %v3276 = vcombine.low %v3260, %v3274
      %v3277 = vcombine.low %v2606, %v2631
      %v3278 = vcombine.low %v2645, %v2653
      %v3279 = vcombine.low %v2655, %v2638
      %v3280 = vcombine.low %v2652, %v2654
      %v3282 = vunpack.c.l.s4 1966171168
      %v3283 = vunpack.c.0.s8 %v3282
      %v3284 = vlaneseq
      %v3285 = vshrl.u32 %v3284, 7
      %v3286 = vsub.s32 %v3283, %v3285
      %v3287 = vrot.slane %v3277, %v3286
      %v3289 = vunpack.c.l.s4 1966171168
      %v3290 = vunpack.c.0.s8 %v3289
      %v3291 = vlaneseq
      %v3292 = vshrl.u32 %v3291, 7
      %v3293 = vsub.s32 %v3290, %v3292
      %v3294 = vrot.slane %v3278, %v3293
      %v3296 = vunpack.c.l.s4 1966171168
      %v3297 = vunpack.c.0.s8 %v3296
      %v3298 = vlaneseq
      %v3299 = vshrl.u32 %v3298, 7
      %v3300 = vsub.s32 %v3297, %v3299
      %v3301 = vrot.slane %v3279, %v3300
      %v3303 = vunpack.c.l.s4 1966171168
      %v3304 = vunpack.c.0.s8 %v3303
      %v3305 = vlaneseq
      %v3306 = vshrl.u32 %v3305, 7
      %v3307 = vsub.s32 %v3304, %v3306
      %v3308 = vrot.slane %v3280, %v3307
      %v3309 = vcombine.low %v3287, %v3294
      %v3310 = vcombine.high %v3287, %v3294
      %v3311 = vcombine.low %v3301, %v3308
      %v3312 = vcombine.high %v3301, %v3308
      %v3314 = vunpack.c.l.s4 1966171168
      %v3315 = vunpack.c.0.s8 %v3314
      %v3316 = vlaneseq
      %v3317 = vshrl.u32 %v3316, 7
      %v3318 = vsub.s32 %v3315, %v3317
      %v3319 = vrot.slane %v3309, %v3318
      %v3321 = vunpack.c.l.s4 1966171168
      %v3322 = vunpack.c.0.s8 %v3321
      %v3323 = vlaneseq
      %v3324 = vshrl.u32 %v3323, 7
      %v3325 = vsub.s32 %v3322, %v3324
      %v3326 = vrot.slane %v3310, %v3325
      %v3328 = vunpack.c.l.s4 1966171168
      %v3329 = vunpack.c.0.s8 %v3328
      %v3330 = vlaneseq
      %v3331 = vshrl.u32 %v3330, 7
      %v3332 = vsub.s32 %v3329, %v3331
      %v3333 = vrot.slane %v3311, %v3332
      %v3335 = vunpack.c.l.s4 1966171168
      %v3336 = vunpack.c.0.s8 %v3335
      %v3337 = vlaneseq
      %v3338 = vshrl.u32 %v3337, 7
      %v3339 = vsub.s32 %v3336, %v3338
      %v3340 = vrot.slane %v3312, %v3339
      %v3341 = vcombine.low %v3319, %v3333
      %v3342 = vcombine.low %v3326, %v3340
      %v3343 = vcombine.low %v2656, %v2671
      %v3344 = vcombine.low %v2696, %v2710
      %v3345 = vcombine.low %v2718, %v2720
      %v3346 = vcombine.low %v2703, %v2717
      %v3348 = vunpack.c.l.s4 1966171168
      %v3349 = vunpack.c.0.s8 %v3348
      %v3350 = vlaneseq
      %v3351 = vshrl.u32 %v3350, 7
      %v3352 = vsub.s32 %v3349, %v3351
      %v3353 = vrot.slane %v3343, %v3352
      %v3355 = vunpack.c.l.s4 1966171168
      %v3356 = vunpack.c.0.s8 %v3355
      %v3357 = vlaneseq
      %v3358 = vshrl.u32 %v3357, 7
      %v3359 = vsub.s32 %v3356, %v3358
      %v3360 = vrot.slane %v3344, %v3359
      %v3362 = vunpack.c.l.s4 1966171168
      %v3363 = vunpack.c.0.s8 %v3362
      %v3364 = vlaneseq
      %v3365 = vshrl.u32 %v3364, 7
      %v3366 = vsub.s32 %v3363, %v3365
      %v3367 = vrot.slane %v3345, %v3366
      %v3369 = vunpack.c.l.s4 1966171168
      %v3370 = vunpack.c.0.s8 %v3369
      %v3371 = vlaneseq
      %v3372 = vshrl.u32 %v3371, 7
      %v3373 = vsub.s32 %v3370, %v3372
      %v3374 = vrot.slane %v3346, %v3373
      %v3375 = vcombine.low %v3353, %v3360
      %v3376 = vcombine.high %v3353, %v3360
      %v3377 = vcombine.low %v3367, %v3374
      %v3378 = vcombine.high %v3367, %v3374
      %v3380 = vunpack.c.l.s4 1966171168
      %v3381 = vunpack.c.0.s8 %v3380
      %v3382 = vlaneseq
      %v3383 = vshrl.u32 %v3382, 7
      %v3384 = vsub.s32 %v3381, %v3383
      %v3385 = vrot.slane %v3375, %v3384
      %v3387 = vunpack.c.l.s4 1966171168
      %v3388 = vunpack.c.0.s8 %v3387
      %v3389 = vlaneseq
      %v3390 = vshrl.u32 %v3389, 7
      %v3391 = vsub.s32 %v3388, %v3390
      %v3392 = vrot.slane %v3376, %v3391
      %v3394 = vunpack.c.l.s4 1966171168
      %v3395 = vunpack.c.0.s8 %v3394
      %v3396 = vlaneseq
      %v3397 = vshrl.u32 %v3396, 7
      %v3398 = vsub.s32 %v3395, %v3397
      %v3399 = vrot.slane %v3377, %v3398
      %v3401 = vunpack.c.l.s4 1966171168
      %v3402 = vunpack.c.0.s8 %v3401
      %v3403 = vlaneseq
      %v3404 = vshrl.u32 %v3403, 7
      %v3405 = vsub.s32 %v3402, %v3404
      %v3406 = vrot.slane %v3378, %v3405
      %v3407 = vcombine.low %v3385, %v3399
      %v3408 = vcombine.low %v3392, %v3406
      %v3409 = vcombine.low %v2719, %v2721
      %v3410 = vcombine.low %v2736, %v2761
      %v3411 = vcombine.low %v2775, %v2783
      %v3412 = vcombine.low %v2785, %v2768
      %v3414 = vunpack.c.l.s4 1966171168
      %v3415 = vunpack.c.0.s8 %v3414
      %v3416 = vlaneseq
      %v3417 = vshrl.u32 %v3416, 7
      %v3418 = vsub.s32 %v3415, %v3417
      %v3419 = vrot.slane %v3409, %v3418
      %v3421 = vunpack.c.l.s4 1966171168
      %v3422 = vunpack.c.0.s8 %v3421
      %v3423 = vlaneseq
      %v3424 = vshrl.u32 %v3423, 7
      %v3425 = vsub.s32 %v3422, %v3424
      %v3426 = vrot.slane %v3410, %v3425
      %v3428 = vunpack.c.l.s4 1966171168
      %v3429 = vunpack.c.0.s8 %v3428
      %v3430 = vlaneseq
      %v3431 = vshrl.u32 %v3430, 7
      %v3432 = vsub.s32 %v3429, %v3431
      %v3433 = vrot.slane %v3411, %v3432
      %v3435 = vunpack.c.l.s4 1966171168
      %v3436 = vunpack.c.0.s8 %v3435
      %v3437 = vlaneseq
      %v3438 = vshrl.u32 %v3437, 7
      %v3439 = vsub.s32 %v3436, %v3438
      %v3440 = vrot.slane %v3412, %v3439
      %v3441 = vcombine.low %v3419, %v3426
      %v3442 = vcombine.high %v3419, %v3426
      %v3443 = vcombine.low %v3433, %v3440
      %v3444 = vcombine.high %v3433, %v3440
      %v3446 = vunpack.c.l.s4 1966171168
      %v3447 = vunpack.c.0.s8 %v3446
      %v3448 = vlaneseq
      %v3449 = vshrl.u32 %v3448, 7
      %v3450 = vsub.s32 %v3447, %v3449
      %v3451 = vrot.slane %v3441, %v3450
      %v3453 = vunpack.c.l.s4 1966171168
      %v3454 = vunpack.c.0.s8 %v3453
      %v3455 = vlaneseq
      %v3456 = vshrl.u32 %v3455, 7
      %v3457 = vsub.s32 %v3454, %v3456
      %v3458 = vrot.slane %v3442, %v3457
      %v3460 = vunpack.c.l.s4 1966171168
      %v3461 = vunpack.c.0.s8 %v3460
      %v3462 = vlaneseq
      %v3463 = vshrl.u32 %v3462, 7
      %v3464 = vsub.s32 %v3461, %v3463
      %v3465 = vrot.slane %v3443, %v3464
      %v3467 = vunpack.c.l.s4 1966171168
      %v3468 = vunpack.c.0.s8 %v3467
      %v3469 = vlaneseq
      %v3470 = vshrl.u32 %v3469, 7
      %v3471 = vsub.s32 %v3468, %v3470
      %v3472 = vrot.slane %v3444, %v3471
      %v3473 = vcombine.low %v3451, %v3465
      %v3474 = vcombine.low %v3458, %v3472
      %v3475 = vcombine.low %v2782, %v2784
      %v3476 = vcombine.low %v2786, %v2801
      %v3477 = vcombine.low %v2826, %v2840
      %v3478 = vcombine.low %v2848, %v2850
      %v3480 = vunpack.c.l.s4 1966171168
      %v3481 = vunpack.c.0.s8 %v3480
      %v3482 = vlaneseq
      %v3483 = vshrl.u32 %v3482, 7
      %v3484 = vsub.s32 %v3481, %v3483
      %v3485 = vrot.slane %v3475, %v3484
      %v3487 = vunpack.c.l.s4 1966171168
      %v3488 = vunpack.c.0.s8 %v3487
      %v3489 = vlaneseq
      %v3490 = vshrl.u32 %v3489, 7
      %v3491 = vsub.s32 %v3488, %v3490
      %v3492 = vrot.slane %v3476, %v3491
      %v3494 = vunpack.c.l.s4 1966171168
      %v3495 = vunpack.c.0.s8 %v3494
      %v3496 = vlaneseq
      %v3497 = vshrl.u32 %v3496, 7
      %v3498 = vsub.s32 %v3495, %v3497
      %v3499 = vrot.slane %v3477, %v3498
      %v3501 = vunpack.c.l.s4 1966171168
      %v3502 = vunpack.c.0.s8 %v3501
      %v3503 = vlaneseq
      %v3504 = vshrl.u32 %v3503, 7
      %v3505 = vsub.s32 %v3502, %v3504
      %v3506 = vrot.slane %v3478, %v3505
      %v3507 = vcombine.low %v3485, %v3492
      %v3508 = vcombine.high %v3485, %v3492
      %v3509 = vcombine.low %v3499, %v3506
      %v3510 = vcombine.high %v3499, %v3506
      %v3512 = vunpack.c.l.s4 1966171168
      %v3513 = vunpack.c.0.s8 %v3512
      %v3514 = vlaneseq
      %v3515 = vshrl.u32 %v3514, 7
      %v3516 = vsub.s32 %v3513, %v3515
      %v3517 = vrot.slane %v3507, %v3516
      %v3519 = vunpack.c.l.s4 1966171168
      %v3520 = vunpack.c.0.s8 %v3519
      %v3521 = vlaneseq
      %v3522 = vshrl.u32 %v3521, 7
      %v3523 = vsub.s32 %v3520, %v3522
      %v3524 = vrot.slane %v3508, %v3523
      %v3526 = vunpack.c.l.s4 1966171168
      %v3527 = vunpack.c.0.s8 %v3526
      %v3528 = vlaneseq
      %v3529 = vshrl.u32 %v3528, 7
      %v3530 = vsub.s32 %v3527, %v3529
      %v3531 = vrot.slane %v3509, %v3530
      %v3533 = vunpack.c.l.s4 1966171168
      %v3534 = vunpack.c.0.s8 %v3533
      %v3535 = vlaneseq
      %v3536 = vshrl.u32 %v3535, 7
      %v3537 = vsub.s32 %v3534, %v3536
      %v3538 = vrot.slane %v3510, %v3537
      %v3539 = vcombine.low %v3517, %v3531
      %v3540 = vcombine.low %v3524, %v3538
      %v3541 = vcombine.low %v2833, %v2847
      %v3542 = vcombine.low %v2849, %v2851
      %v3543 = vcombine.low %v2866, %v2891
      %v3544 = vcombine.low %v2905, %v2913
      %v3546 = vunpack.c.l.s4 1966171168
      %v3547 = vunpack.c.0.s8 %v3546
      %v3548 = vlaneseq
      %v3549 = vshrl.u32 %v3548, 7
      %v3550 = vsub.s32 %v3547, %v3549
      %v3551 = vrot.slane %v3541, %v3550
      %v3553 = vunpack.c.l.s4 1966171168
      %v3554 = vunpack.c.0.s8 %v3553
      %v3555 = vlaneseq
      %v3556 = vshrl.u32 %v3555, 7
      %v3557 = vsub.s32 %v3554, %v3556
      %v3558 = vrot.slane %v3542, %v3557
      %v3560 = vunpack.c.l.s4 1966171168
      %v3561 = vunpack.c.0.s8 %v3560
      %v3562 = vlaneseq
      %v3563 = vshrl.u32 %v3562, 7
      %v3564 = vsub.s32 %v3561, %v3563
      %v3565 = vrot.slane %v3543, %v3564
      %v3567 = vunpack.c.l.s4 1966171168
      %v3568 = vunpack.c.0.s8 %v3567
      %v3569 = vlaneseq
      %v3570 = vshrl.u32 %v3569, 7
      %v3571 = vsub.s32 %v3568, %v3570
      %v3572 = vrot.slane %v3544, %v3571
      %v3573 = vcombine.low %v3551, %v3558
      %v3574 = vcombine.high %v3551, %v3558
      %v3575 = vcombine.low %v3565, %v3572
      %v3576 = vcombine.high %v3565, %v3572
      %v3578 = vunpack.c.l.s4 1966171168
      %v3579 = vunpack.c.0.s8 %v3578
      %v3580 = vlaneseq
      %v3581 = vshrl.u32 %v3580, 7
      %v3582 = vsub.s32 %v3579, %v3581
      %v3583 = vrot.slane %v3573, %v3582
      %v3585 = vunpack.c.l.s4 1966171168
      %v3586 = vunpack.c.0.s8 %v3585
      %v3587 = vlaneseq
      %v3588 = vshrl.u32 %v3587, 7
      %v3589 = vsub.s32 %v3586, %v3588
      %v3590 = vrot.slane %v3574, %v3589
      %v3592 = vunpack.c.l.s4 1966171168
      %v3593 = vunpack.c.0.s8 %v3592
      %v3594 = vlaneseq
      %v3595 = vshrl.u32 %v3594, 7
      %v3596 = vsub.s32 %v3593, %v3595
      %v3597 = vrot.slane %v3575, %v3596
      %v3599 = vunpack.c.l.s4 1966171168
      %v3600 = vunpack.c.0.s8 %v3599
      %v3601 = vlaneseq
      %v3602 = vshrl.u32 %v3601, 7
      %v3603 = vsub.s32 %v3600, %v3602
      %v3604 = vrot.slane %v3576, %v3603
      %v3605 = vcombine.low %v3583, %v3597
      %v3606 = vcombine.low %v3590, %v3604
      %v3607 = vcombine.low %v2915, %v2898
      %v3608 = vcombine.low %v2912, %v2914
      %v3609 = vcombine.low %v2916, %v2931
      %v3610 = vcombine.low %v2956, %v2970
      %v3612 = vunpack.c.l.s4 1966171168
      %v3613 = vunpack.c.0.s8 %v3612
      %v3614 = vlaneseq
      %v3615 = vshrl.u32 %v3614, 7
      %v3616 = vsub.s32 %v3613, %v3615
      %v3617 = vrot.slane %v3607, %v3616
      %v3619 = vunpack.c.l.s4 1966171168
      %v3620 = vunpack.c.0.s8 %v3619
      %v3621 = vlaneseq
      %v3622 = vshrl.u32 %v3621, 7
      %v3623 = vsub.s32 %v3620, %v3622
      %v3624 = vrot.slane %v3608, %v3623
      %v3626 = vunpack.c.l.s4 1966171168
      %v3627 = vunpack.c.0.s8 %v3626
      %v3628 = vlaneseq
      %v3629 = vshrl.u32 %v3628, 7
      %v3630 = vsub.s32 %v3627, %v3629
      %v3631 = vrot.slane %v3609, %v3630
      %v3633 = vunpack.c.l.s4 1966171168
      %v3634 = vunpack.c.0.s8 %v3633
      %v3635 = vlaneseq
      %v3636 = vshrl.u32 %v3635, 7
      %v3637 = vsub.s32 %v3634, %v3636
      %v3638 = vrot.slane %v3610, %v3637
      %v3639 = vcombine.low %v3617, %v3624
      %v3640 = vcombine.high %v3617, %v3624
      %v3641 = vcombine.low %v3631, %v3638
      %v3642 = vcombine.high %v3631, %v3638
      %v3644 = vunpack.c.l.s4 1966171168
      %v3645 = vunpack.c.0.s8 %v3644
      %v3646 = vlaneseq
      %v3647 = vshrl.u32 %v3646, 7
      %v3648 = vsub.s32 %v3645, %v3647
      %v3649 = vrot.slane %v3639, %v3648
      %v3651 = vunpack.c.l.s4 1966171168
      %v3652 = vunpack.c.0.s8 %v3651
      %v3653 = vlaneseq
      %v3654 = vshrl.u32 %v3653, 7
      %v3655 = vsub.s32 %v3652, %v3654
      %v3656 = vrot.slane %v3640, %v3655
      %v3658 = vunpack.c.l.s4 1966171168
      %v3659 = vunpack.c.0.s8 %v3658
      %v3660 = vlaneseq
      %v3661 = vshrl.u32 %v3660, 7
      %v3662 = vsub.s32 %v3659, %v3661
      %v3663 = vrot.slane %v3641, %v3662
      %v3665 = vunpack.c.l.s4 1966171168
      %v3666 = vunpack.c.0.s8 %v3665
      %v3667 = vlaneseq
      %v3668 = vshrl.u32 %v3667, 7
      %v3669 = vsub.s32 %v3666, %v3668
      %v3670 = vrot.slane %v3642, %v3669
      %v3671 = vcombine.low %v3649, %v3663
      %v3672 = vcombine.low %v3656, %v3670
      %v3673 = vcombine.low %v2978, %v2980
      %v3674 = vcombine.low %v2963, %v2977
      %v3675 = vcombine.low %v2979, %v2981
      %v3676 = vcombine.low %v2996, %v3021
      %v3678 = vunpack.c.l.s4 1966171168
      %v3679 = vunpack.c.0.s8 %v3678
      %v3680 = vlaneseq
      %v3681 = vshrl.u32 %v3680, 7
      %v3682 = vsub.s32 %v3679, %v3681
      %v3683 = vrot.slane %v3673, %v3682
      %v3685 = vunpack.c.l.s4 1966171168
      %v3686 = vunpack.c.0.s8 %v3685
      %v3687 = vlaneseq
      %v3688 = vshrl.u32 %v3687, 7
      %v3689 = vsub.s32 %v3686, %v3688
      %v3690 = vrot.slane %v3674, %v3689
      %v3692 = vunpack.c.l.s4 1966171168
      %v3693 = vunpack.c.0.s8 %v3692
      %v3694 = vlaneseq
      %v3695 = vshrl.u32 %v3694, 7
      %v3696 = vsub.s32 %v3693, %v3695
      %v3697 = vrot.slane %v3675, %v3696
      %v3699 = vunpack.c.l.s4 1966171168
      %v3700 = vunpack.c.0.s8 %v3699
      %v3701 = vlaneseq
      %v3702 = vshrl.u32 %v3701, 7
      %v3703 = vsub.s32 %v3700, %v3702
      %v3704 = vrot.slane %v3676, %v3703
      %v3705 = vcombine.low %v3683, %v3690
      %v3706 = vcombine.high %v3683, %v3690
      %v3707 = vcombine.low %v3697, %v3704
      %v3708 = vcombine.high %v3697, %v3704
      %v3710 = vunpack.c.l.s4 1966171168
      %v3711 = vunpack.c.0.s8 %v3710
      %v3712 = vlaneseq
      %v3713 = vshrl.u32 %v3712, 7
      %v3714 = vsub.s32 %v3711, %v3713
      %v3715 = vrot.slane %v3705, %v3714
      %v3717 = vunpack.c.l.s4 1966171168
      %v3718 = vunpack.c.0.s8 %v3717
      %v3719 = vlaneseq
      %v3720 = vshrl.u32 %v3719, 7
      %v3721 = vsub.s32 %v3718, %v3720
      %v3722 = vrot.slane %v3706, %v3721
      %v3724 = vunpack.c.l.s4 1966171168
      %v3725 = vunpack.c.0.s8 %v3724
      %v3726 = vlaneseq
      %v3727 = vshrl.u32 %v3726, 7
      %v3728 = vsub.s32 %v3725, %v3727
      %v3729 = vrot.slane %v3707, %v3728
      %v3731 = vunpack.c.l.s4 1966171168
      %v3732 = vunpack.c.0.s8 %v3731
      %v3733 = vlaneseq
      %v3734 = vshrl.u32 %v3733, 7
      %v3735 = vsub.s32 %v3732, %v3734
      %v3736 = vrot.slane %v3708, %v3735
      %v3737 = vcombine.low %v3715, %v3729
      %v3738 = vcombine.low %v3722, %v3736
      %v3739 = vcombine.low %v3035, %v3043
      %v3740 = vcombine.low %v3045, %v3028
      %v3741 = vcombine.low %v3042, %v3044
      %v3742 = vcombine.low %v3046, %v3061
      %v3744 = vunpack.c.l.s4 1966171168
      %v3745 = vunpack.c.0.s8 %v3744
      %v3746 = vlaneseq
      %v3747 = vshrl.u32 %v3746, 7
      %v3748 = vsub.s32 %v3745, %v3747
      %v3749 = vrot.slane %v3739, %v3748
      %v3751 = vunpack.c.l.s4 1966171168
      %v3752 = vunpack.c.0.s8 %v3751
      %v3753 = vlaneseq
      %v3754 = vshrl.u32 %v3753, 7
      %v3755 = vsub.s32 %v3752, %v3754
      %v3756 = vrot.slane %v3740, %v3755
      %v3758 = vunpack.c.l.s4 1966171168
      %v3759 = vunpack.c.0.s8 %v3758
      %v3760 = vlaneseq
      %v3761 = vshrl.u32 %v3760, 7
      %v3762 = vsub.s32 %v3759, %v3761
      %v3763 = vrot.slane %v3741, %v3762
      %v3765 = vunpack.c.l.s4 1966171168
      %v3766 = vunpack.c.0.s8 %v3765
      %v3767 = vlaneseq
      %v3768 = vshrl.u32 %v3767, 7
      %v3769 = vsub.s32 %v3766, %v3768
      %v3770 = vrot.slane %v3742, %v3769
      %v3771 = vcombine.low %v3749, %v3756
      %v3772 = vcombine.high %v3749, %v3756
      %v3773 = vcombine.low %v3763, %v3770
      %v3774 = vcombine.high %v3763, %v3770
      %v3776 = vunpack.c.l.s4 1966171168
      %v3777 = vunpack.c.0.s8 %v3776
      %v3778 = vlaneseq
      %v3779 = vshrl.u32 %v3778, 7
      %v3780 = vsub.s32 %v3777, %v3779
      %v3781 = vrot.slane %v3771, %v3780
      %v3783 = vunpack.c.l.s4 1966171168
      %v3784 = vunpack.c.0.s8 %v3783
      %v3785 = vlaneseq
      %v3786 = vshrl.u32 %v3785, 7
      %v3787 = vsub.s32 %v3784, %v3786
      %v3788 = vrot.slane %v3772, %v3787
      %v3790 = vunpack.c.l.s4 1966171168
      %v3791 = vunpack.c.0.s8 %v3790
      %v3792 = vlaneseq
      %v3793 = vshrl.u32 %v3792, 7
      %v3794 = vsub.s32 %v3791, %v3793
      %v3795 = vrot.slane %v3773, %v3794
      %v3797 = vunpack.c.l.s4 1966171168
      %v3798 = vunpack.c.0.s8 %v3797
      %v3799 = vlaneseq
      %v3800 = vshrl.u32 %v3799, 7
      %v3801 = vsub.s32 %v3798, %v3800
      %v3802 = vrot.slane %v3774, %v3801
      %v3803 = vcombine.low %v3781, %v3795
      %v3804 = vcombine.low %v3788, %v3802
      %v3805 = vcombine.low %v3086, %v3100
      %v3806 = vcombine.low %v3108, %v3110
      %v3807 = vcombine.low %v3093, %v3107
      %v3808 = vcombine.low %v3109, %v3111
      %v3810 = vunpack.c.l.s4 1966171168
      %v3811 = vunpack.c.0.s8 %v3810
      %v3812 = vlaneseq
      %v3813 = vshrl.u32 %v3812, 7
      %v3814 = vsub.s32 %v3811, %v3813
      %v3815 = vrot.slane %v3805, %v3814
      %v3817 = vunpack.c.l.s4 1966171168
      %v3818 = vunpack.c.0.s8 %v3817
      %v3819 = vlaneseq
      %v3820 = vshrl.u32 %v3819, 7
      %v3821 = vsub.s32 %v3818, %v3820
      %v3822 = vrot.slane %v3806, %v3821
      %v3824 = vunpack.c.l.s4 1966171168
      %v3825 = vunpack.c.0.s8 %v3824
      %v3826 = vlaneseq
      %v3827 = vshrl.u32 %v3826, 7
      %v3828 = vsub.s32 %v3825, %v3827
      %v3829 = vrot.slane %v3807, %v3828
      %v3831 = vunpack.c.l.s4 1966171168
      %v3832 = vunpack.c.0.s8 %v3831
      %v3833 = vlaneseq
      %v3834 = vshrl.u32 %v3833, 7
      %v3835 = vsub.s32 %v3832, %v3834
      %v3836 = vrot.slane %v3808, %v3835
      %v3837 = vcombine.low %v3815, %v3822
      %v3838 = vcombine.high %v3815, %v3822
      %v3839 = vcombine.low %v3829, %v3836
      %v3840 = vcombine.high %v3829, %v3836
      %v3842 = vunpack.c.l.s4 1966171168
      %v3843 = vunpack.c.0.s8 %v3842
      %v3844 = vlaneseq
      %v3845 = vshrl.u32 %v3844, 7
      %v3846 = vsub.s32 %v3843, %v3845
      %v3847 = vrot.slane %v3837, %v3846
      %v3849 = vunpack.c.l.s4 1966171168
      %v3850 = vunpack.c.0.s8 %v3849
      %v3851 = vlaneseq
      %v3852 = vshrl.u32 %v3851, 7
      %v3853 = vsub.s32 %v3850, %v3852
      %v3854 = vrot.slane %v3838, %v3853
      %v3856 = vunpack.c.l.s4 1966171168
      %v3857 = vunpack.c.0.s8 %v3856
      %v3858 = vlaneseq
      %v3859 = vshrl.u32 %v3858, 7
      %v3860 = vsub.s32 %v3857, %v3859
      %v3861 = vrot.slane %v3839, %v3860
      %v3863 = vunpack.c.l.s4 1966171168
      %v3864 = vunpack.c.0.s8 %v3863
      %v3865 = vlaneseq
      %v3866 = vshrl.u32 %v3865, 7
      %v3867 = vsub.s32 %v3864, %v3866
      %v3868 = vrot.slane %v3840, %v3867
      %v3869 = vcombine.low %v3847, %v3861
      %v3870 = vcombine.low %v3854, %v3868
      %v3871 = vcombine.low %v3126, %v3151
      %v3872 = vcombine.low %v3165, %v3173
      %v3873 = vcombine.low %v3175, %v3158
      %v3874 = vcombine.low %v3172, %v3174
      %v3876 = vunpack.c.l.s4 1966171168
      %v3877 = vunpack.c.0.s8 %v3876
      %v3878 = vlaneseq
      %v3879 = vshrl.u32 %v3878, 7
      %v3880 = vsub.s32 %v3877, %v3879
      %v3881 = vrot.slane %v3871, %v3880
      %v3883 = vunpack.c.l.s4 1966171168
      %v3884 = vunpack.c.0.s8 %v3883
      %v3885 = vlaneseq
      %v3886 = vshrl.u32 %v3885, 7
      %v3887 = vsub.s32 %v3884, %v3886
      %v3888 = vrot.slane %v3872, %v3887
      %v3890 = vunpack.c.l.s4 1966171168
      %v3891 = vunpack.c.0.s8 %v3890
      %v3892 = vlaneseq
      %v3893 = vshrl.u32 %v3892, 7
      %v3894 = vsub.s32 %v3891, %v3893
      %v3895 = vrot.slane %v3873, %v3894
      %v3897 = vunpack.c.l.s4 1966171168
      %v3898 = vunpack.c.0.s8 %v3897
      %v3899 = vlaneseq
      %v3900 = vshrl.u32 %v3899, 7
      %v3901 = vsub.s32 %v3898, %v3900
      %v3902 = vrot.slane %v3874, %v3901
      %v3903 = vcombine.low %v3881, %v3888
      %v3904 = vcombine.high %v3881, %v3888
      %v3905 = vcombine.low %v3895, %v3902
      %v3906 = vcombine.high %v3895, %v3902
      %v3908 = vunpack.c.l.s4 1966171168
      %v3909 = vunpack.c.0.s8 %v3908
      %v3910 = vlaneseq
      %v3911 = vshrl.u32 %v3910, 7
      %v3912 = vsub.s32 %v3909, %v3911
      %v3913 = vrot.slane %v3903, %v3912
      %v3915 = vunpack.c.l.s4 1966171168
      %v3916 = vunpack.c.0.s8 %v3915
      %v3917 = vlaneseq
      %v3918 = vshrl.u32 %v3917, 7
      %v3919 = vsub.s32 %v3916, %v3918
      %v3920 = vrot.slane %v3904, %v3919
      %v3922 = vunpack.c.l.s4 1966171168
      %v3923 = vunpack.c.0.s8 %v3922
      %v3924 = vlaneseq
      %v3925 = vshrl.u32 %v3924, 7
      %v3926 = vsub.s32 %v3923, %v3925
      %v3927 = vrot.slane %v3905, %v3926
      %v3929 = vunpack.c.l.s4 1966171168
      %v3930 = vunpack.c.0.s8 %v3929
      %v3931 = vlaneseq
      %v3932 = vshrl.u32 %v3931, 7
      %v3933 = vsub.s32 %v3930, %v3932
      %v3934 = vrot.slane %v3906, %v3933
      %v3935 = vcombine.low %v3913, %v3927
      %v3936 = vcombine.low %v3920, %v3934
      %v3937 = vcombine.low %v3176, %v3191
      %v3939 = vunpack.c.l.s4 1966171168
      %v3940 = vunpack.c.0.s8 %v3939
      %v3941 = vlaneseq
      %v3942 = vshrl.u32 %v3941, 7
      %v3943 = vsub.s32 %v3940, %v3942
      %v3944 = vrot.slane %v3937, %v3943
      %v3945 = vcombine.high %v3944, %v3944
      %v3947 = vunpack.c.l.s4 1966171168
      %v3948 = vunpack.c.0.s8 %v3947
      %v3949 = vlaneseq
      %v3950 = vshrl.u32 %v3949, 7
      %v3951 = vsub.s32 %v3948, %v3950
      %v3952 = vrot.slane %v3944, %v3951
      %v3954 = vunpack.c.l.s4 1966171168
      %v3955 = vunpack.c.0.s8 %v3954
      %v3956 = vlaneseq
      %v3957 = vshrl.u32 %v3956, 7
      %v3958 = vsub.s32 %v3955, %v3957
      %v3959 = vrot.slane %v3945, %v3958
      %v3990 = vunpack.c.l.b16 %v3193
      %v3991 = vunpack.c.l.b16 %v3194
      %v3992 = vunpack.c.l.b16 %v3195
      %v3993 = vunpack.c.l.b16 %v3196
      %v3994 = vunpack.c.l.b16 %v3197
      %v3995 = vunpack.c.l.b16 %v3198
      %v3996 = vunpack.c.l.b16 %v3199
      %v3997 = vunpack.c.l.b16 %v3200
      %v3998 = vunpack.c.l.b16 %v3201
      %v3999 = vunpack.c.l.b16 %v3202
      %v4000 = vunpack.c.l.b16 %v3203
      %v4001 = vunpack.c.l.b16 %v3204
      %v4002 = vunpack.c.l.b16 %v3205
      %v4003 = vunpack.c.l.b16 %v3206
      %v4004 = vunpack.c.l.b16 %v3207
      %v4005 = vunpack.c.l.b16 %v3208
      %v4006 = vunpack.c.l.b16 %v3209
      %v4007 = vunpack.c.l.b16 %v3210
      %v4008 = vpack.c.b16 %v3991, %v3990
      %v4009 = vpack.c.b16 %v3993, %v3992
      %v4010 = vpack.c.b16 %v3995, %v3994
      %v4011 = vpack.c.b16 %v3997, %v3996
      %v4012 = vpack.c.b16 %v3999, %v3998
      %v4013 = vpack.c.b16 %v4001, %v4000
      %v4014 = vpack.c.b16 %v4003, %v4002
      %v4015 = vpack.c.b16 %v4005, %v4004
      %v4016 = vpack.c.b16 %v4007, %v4006
      %vm4026 = vcmask 130048
      %v4028 = vsel %vm4026, %v3276, 0
      %v4031 = vsel %vm4026, %v3342, 0
      %v4034 = vsel %vm4026, %v3408, 0
      %v4037 = vsel %vm4026, %v3474, 0
      %v4040 = vsel %vm4026, %v3540, 0
      %v4043 = vsel %vm4026, %v3606, 0
      %v4046 = vsel %vm4026, %v3672, 0
      %v4049 = vsel %vm4026, %v3738, 0
      %v4052 = vsel %vm4026, %v3804, 0
      %v4055 = vsel %vm4026, %v3870, 0
      %v4058 = vsel %vm4026, %v3936, 0
      %v4061 = vsel %vm4026, %v3959, 0
      %4063 = vmatprep.subr.bf16.mxu0 0
      %4064 = vmatpush1.bf16.msra.mxu0 %v4015
      %4065 = vmatprep.subr.bf16.mxu0 0
      %4066 = vmatpush1.bf16.msra.mxu0 %v4014
      %4067 = vmatprep.subr.bf16.mxu0 0
      %4068 = vmatpush1.bf16.msra.mxu0 %v4013
      %4069 = vmatprep.subr.bf16.mxu0 0
      %4070 = vmatpush1.bf16.msra.mxu0 %v4012
      %4071 = vmatprep.subr.bf16.mxu0 0
      %4072 = vmatpush1.bf16.msra.mxu0 %v4011
      %4073 = vmatprep.subr.bf16.mxu0 0
      %4074 = vmatpush1.bf16.msra.mxu0 %v4010
      %4075 = vmatprep.subr.bf16.mxu0 0
      %4076 = vmatpush1.bf16.msra.mxu0 %v4009
      %4077 = vmatprep.subr.bf16.mxu0 0
      %4078 = vmatpush1.bf16.msra.mxu0 %v4008
      %4079 = vmatprep.subr.bf16.mxu0 0
      %4080 = vmatpush2.bf16.msra.mxu0 0
      %4081 = vmatprep.subr.bf16.mxu0 0
      %4082 = vmatpush2.bf16.msra.mxu0 0
      %4083 = vmatprep.subr.bf16.mxu0 0
      %4084 = vmatpush2.bf16.msra.mxu0 0
      %4085 = vmatprep.subr.bf16.mxu0 0
      %4086 = vmatpush2.bf16.msra.mxu0 0
      %4087 = vmatprep.subr.bf16.mxu0 0
      %4088 = vmatpush2.bf16.msra.mxu0 0
      %4089 = vmatprep.subr.bf16.mxu0 0
      %4090 = vmatpush2.bf16.msra.mxu0 0
      %4091 = vmatprep.subr.bf16.mxu0 0
      %4092 = vmatpush2.bf16.msra.mxu0 0
      %4093 = vmatprep.subr.bf16.mxu0 0
      %4094 = vmatpush2.bf16.msra.mxu0 %v4016
      %4095 = vmatprep.mubr.bf16.mxu0 %v4028
      %4096 = vmatmul.mubr.bf16.gmra.mxu0 %v3275
      %v4097 = vpop.f32.mrf.mxu0
      %v4098 = vadd.f32 0.0, %v4097
      %v4099 = vpop.f32.mrf.mxu0
      %v4100 = vpop.f32.mrf.mxu0
      %v4101 = vadd.f32 0.0, %v4100
      %v4102 = vpop.f32.mrf.mxu0
      %4103 = vmatprep.mubr.bf16.mxu0 %v4031
      %4104 = vmatmul.mubr.bf16.gmra.mxu0 %v3341
      %v4105 = vpop.f32.mrf.mxu0
      %v4106 = vadd.f32 0.0, %v4105
      %v4107 = vpop.f32.mrf.mxu0
      %v4108 = vpop.f32.mrf.mxu0
      %v4109 = vadd.f32 0.0, %v4108
      %v4110 = vpop.f32.mrf.mxu0
      %4111 = vmatprep.mubr.bf16.mxu0 %v4034
      %4112 = vmatmul.mubr.bf16.gmra.mxu0 %v3407
      %v4113 = vpop.f32.mrf.mxu0
      %v4114 = vadd.f32 0.0, %v4113
      %v4115 = vpop.f32.mrf.mxu0
      %v4116 = vpop.f32.mrf.mxu0
      %v4117 = vadd.f32 0.0, %v4116
      %v4118 = vpop.f32.mrf.mxu0
      %4119 = vmatprep.mubr.bf16.mxu0 %v4037
      %4120 = vmatmul.mubr.bf16.gmra.mxu0 %v3473
      %v4121 = vpop.f32.mrf.mxu0
      %v4122 = vadd.f32 0.0, %v4121
      %v4123 = vpop.f32.mrf.mxu0
      %v4124 = vpop.f32.mrf.mxu0
      %v4125 = vadd.f32 0.0, %v4124
      %v4126 = vpop.f32.mrf.mxu0
      %4127 = vmatprep.mubr.bf16.mxu0 %v4040
      %4128 = vmatmul.mubr.bf16.gmra.mxu0 %v3539
      %v4129 = vpop.f32.mrf.mxu0
      %v4130 = vadd.f32 0.0, %v4129
      %v4131 = vpop.f32.mrf.mxu0
      %v4132 = vpop.f32.mrf.mxu0
      %v4133 = vadd.f32 0.0, %v4132
      %v4134 = vpop.f32.mrf.mxu0
      %4135 = vmatprep.mubr.bf16.mxu0 %v4043
      %4136 = vmatmul.mubr.bf16.gmra.mxu0 %v3605
      %v4137 = vpop.f32.mrf.mxu0
      %v4138 = vadd.f32 0.0, %v4137
      %v4139 = vpop.f32.mrf.mxu0
      %v4140 = vpop.f32.mrf.mxu0
      %v4141 = vadd.f32 0.0, %v4140
      %v4142 = vpop.f32.mrf.mxu0
      %4143 = vmatprep.mubr.bf16.mxu0 %v4046
      %4144 = vmatmul.mubr.bf16.gmra.mxu0 %v3671
      %v4145 = vpop.f32.mrf.mxu0
      %v4146 = vadd.f32 0.0, %v4145
      %v4147 = vpop.f32.mrf.mxu0
      %v4148 = vpop.f32.mrf.mxu0
      %v4149 = vadd.f32 0.0, %v4148
      %v4150 = vpop.f32.mrf.mxu0
      %4151 = vmatprep.mubr.bf16.mxu0 %v4049
      %4152 = vmatmul.mubr.bf16.gmra.mxu0 %v3737
      %v4153 = vpop.f32.mrf.mxu0
      %v4154 = vadd.f32 0.0, %v4153
      %v4155 = vpop.f32.mrf.mxu0
      %v4156 = vpop.f32.mrf.mxu0
      %v4157 = vadd.f32 0.0, %v4156
      %v4158 = vpop.f32.mrf.mxu0
      %4159 = vmatprep.mubr.bf16.mxu0 %v4052
      %4160 = vmatmul.mubr.bf16.gmra.mxu0 %v3803
      %v4161 = vpop.f32.mrf.mxu0
      %v4162 = vadd.f32 0.0, %v4161
      %v4163 = vpop.f32.mrf.mxu0
      %v4164 = vpop.f32.mrf.mxu0
      %v4165 = vadd.f32 0.0, %v4164
      %v4166 = vpop.f32.mrf.mxu0
      %4167 = vmatprep.mubr.bf16.mxu0 %v4055
      %4168 = vmatmul.mubr.bf16.gmra.mxu0 %v3869
      %v4169 = vpop.f32.mrf.mxu0
      %v4170 = vadd.f32 0.0, %v4169
      %v4171 = vpop.f32.mrf.mxu0
      %v4172 = vpop.f32.mrf.mxu0
      %v4173 = vadd.f32 0.0, %v4172
      %v4174 = vpop.f32.mrf.mxu0
      %4175 = vmatprep.mubr.bf16.mxu0 %v4058
      %4176 = vmatmul.mubr.bf16.gmra.mxu0 %v3935
      %v4177 = vpop.f32.mrf.mxu0
      %v4178 = vadd.f32 0.0, %v4177
      %v4179 = vpop.f32.mrf.mxu0
      %v4180 = vpop.f32.mrf.mxu0
      %v4181 = vadd.f32 0.0, %v4180
      %v4182 = vpop.f32.mrf.mxu0
      %4183 = vmatprep.mubr.bf16.mxu0 %v4061
      %4184 = vmatmul.mubr.bf16.gmra.mxu0 %v3952
      %v4185 = vpop.f32.mrf.mxu0
      %v4186 = vadd.f32 0.0, %v4185
      %v4187 = vpop.f32.mrf.mxu0
      %v4188 = vpop.f32.mrf.mxu0
      %v4189 = vpop.f32.mrf.mxu0
      %4190 = vdwg.mxu0
      %v4191 = vcombine.low %v1337, %v1351
      %v4192 = vcombine.low %v1359, %v1361
      %v4193 = vcombine.low %v1344, %v1358
      %v4194 = vcombine.low %v1360, %v1362
      %v4196 = vunpack.c.l.s4 1966171168
      %v4197 = vunpack.c.0.s8 %v4196
      %v4198 = vlaneseq
      %v4199 = vshrl.u32 %v4198, 7
      %v4200 = vsub.s32 %v4197, %v4199
      %v4201 = vrot.slane %v4191, %v4200
      %v4203 = vunpack.c.l.s4 1966171168
      %v4204 = vunpack.c.0.s8 %v4203
      %v4205 = vlaneseq
      %v4206 = vshrl.u32 %v4205, 7
      %v4207 = vsub.s32 %v4204, %v4206
      %v4208 = vrot.slane %v4192, %v4207
      %v4210 = vunpack.c.l.s4 1966171168
      %v4211 = vunpack.c.0.s8 %v4210
      %v4212 = vlaneseq
      %v4213 = vshrl.u32 %v4212, 7
      %v4214 = vsub.s32 %v4211, %v4213
      %v4215 = vrot.slane %v4193, %v4214
      %v4217 = vunpack.c.l.s4 1966171168
      %v4218 = vunpack.c.0.s8 %v4217
      %v4219 = vlaneseq
      %v4220 = vshrl.u32 %v4219, 7
      %v4221 = vsub.s32 %v4218, %v4220
      %v4222 = vrot.slane %v4194, %v4221
      %v4223 = vcombine.low %v4201, %v4208
      %v4224 = vcombine.high %v4201, %v4208
      %v4225 = vcombine.low %v4215, %v4222
      %v4226 = vcombine.high %v4215, %v4222
      %v4228 = vunpack.c.l.s4 1966171168
      %v4229 = vunpack.c.0.s8 %v4228
      %v4230 = vlaneseq
      %v4231 = vshrl.u32 %v4230, 7
      %v4232 = vsub.s32 %v4229, %v4231
      %v4233 = vrot.slane %v4223, %v4232
      %v4235 = vunpack.c.l.s4 1966171168
      %v4236 = vunpack.c.0.s8 %v4235
      %v4237 = vlaneseq
      %v4238 = vshrl.u32 %v4237, 7
      %v4239 = vsub.s32 %v4236, %v4238
      %v4240 = vrot.slane %v4224, %v4239
      %v4242 = vunpack.c.l.s4 1966171168
      %v4243 = vunpack.c.0.s8 %v4242
      %v4244 = vlaneseq
      %v4245 = vshrl.u32 %v4244, 7
      %v4246 = vsub.s32 %v4243, %v4245
      %v4247 = vrot.slane %v4225, %v4246
      %v4249 = vunpack.c.l.s4 1966171168
      %v4250 = vunpack.c.0.s8 %v4249
      %v4251 = vlaneseq
      %v4252 = vshrl.u32 %v4251, 7
      %v4253 = vsub.s32 %v4250, %v4252
      %v4254 = vrot.slane %v4226, %v4253
      %v4255 = vcombine.low %v4233, %v4247
      %v4256 = vcombine.low %v4240, %v4254
      %v4257 = vcombine.low %v1377, %v1402
      %v4258 = vcombine.low %v1416, %v1424
      %v4259 = vcombine.low %v1426, %v1409
      %v4260 = vcombine.low %v1423, %v1425
      %v4262 = vunpack.c.l.s4 1966171168
      %v4263 = vunpack.c.0.s8 %v4262
      %v4264 = vlaneseq
      %v4265 = vshrl.u32 %v4264, 7
      %v4266 = vsub.s32 %v4263, %v4265
      %v4267 = vrot.slane %v4257, %v4266
      %v4269 = vunpack.c.l.s4 1966171168
      %v4270 = vunpack.c.0.s8 %v4269
      %v4271 = vlaneseq
      %v4272 = vshrl.u32 %v4271, 7
      %v4273 = vsub.s32 %v4270, %v4272
      %v4274 = vrot.slane %v4258, %v4273
      %v4276 = vunpack.c.l.s4 1966171168
      %v4277 = vunpack.c.0.s8 %v4276
      %v4278 = vlaneseq
      %v4279 = vshrl.u32 %v4278, 7
      %v4280 = vsub.s32 %v4277, %v4279
      %v4281 = vrot.slane %v4259, %v4280
      %v4283 = vunpack.c.l.s4 1966171168
      %v4284 = vunpack.c.0.s8 %v4283
      %v4285 = vlaneseq
      %v4286 = vshrl.u32 %v4285, 7
      %v4287 = vsub.s32 %v4284, %v4286
      %v4288 = vrot.slane %v4260, %v4287
      %v4289 = vcombine.low %v4267, %v4274
      %v4290 = vcombine.high %v4267, %v4274
      %v4291 = vcombine.low %v4281, %v4288
      %v4292 = vcombine.high %v4281, %v4288
      %v4294 = vunpack.c.l.s4 1966171168
      %v4295 = vunpack.c.0.s8 %v4294
      %v4296 = vlaneseq
      %v4297 = vshrl.u32 %v4296, 7
      %v4298 = vsub.s32 %v4295, %v4297
      %v4299 = vrot.slane %v4289, %v4298
      %v4301 = vunpack.c.l.s4 1966171168
      %v4302 = vunpack.c.0.s8 %v4301
      %v4303 = vlaneseq
      %v4304 = vshrl.u32 %v4303, 7
      %v4305 = vsub.s32 %v4302, %v4304
      %v4306 = vrot.slane %v4290, %v4305
      %v4308 = vunpack.c.l.s4 1966171168
      %v4309 = vunpack.c.0.s8 %v4308
      %v4310 = vlaneseq
      %v4311 = vshrl.u32 %v4310, 7
      %v4312 = vsub.s32 %v4309, %v4311
      %v4313 = vrot.slane %v4291, %v4312
      %v4315 = vunpack.c.l.s4 1966171168
      %v4316 = vunpack.c.0.s8 %v4315
      %v4317 = vlaneseq
      %v4318 = vshrl.u32 %v4317, 7
      %v4319 = vsub.s32 %v4316, %v4318
      %v4320 = vrot.slane %v4292, %v4319
      %v4321 = vcombine.low %v4299, %v4313
      %v4322 = vcombine.low %v4306, %v4320
      %v4323 = vcombine.low %v1427, %v1442
      %v4324 = vcombine.low %v1467, %v1481
      %v4325 = vcombine.low %v1489, %v1491
      %v4326 = vcombine.low %v1474, %v1488
      %v4328 = vunpack.c.l.s4 1966171168
      %v4329 = vunpack.c.0.s8 %v4328
      %v4330 = vlaneseq
      %v4331 = vshrl.u32 %v4330, 7
      %v4332 = vsub.s32 %v4329, %v4331
      %v4333 = vrot.slane %v4323, %v4332
      %v4335 = vunpack.c.l.s4 1966171168
      %v4336 = vunpack.c.0.s8 %v4335
      %v4337 = vlaneseq
      %v4338 = vshrl.u32 %v4337, 7
      %v4339 = vsub.s32 %v4336, %v4338
      %v4340 = vrot.slane %v4324, %v4339
      %v4342 = vunpack.c.l.s4 1966171168
      %v4343 = vunpack.c.0.s8 %v4342
      %v4344 = vlaneseq
      %v4345 = vshrl.u32 %v4344, 7
      %v4346 = vsub.s32 %v4343, %v4345
      %v4347 = vrot.slane %v4325, %v4346
      %v4349 = vunpack.c.l.s4 1966171168
      %v4350 = vunpack.c.0.s8 %v4349
      %v4351 = vlaneseq
      %v4352 = vshrl.u32 %v4351, 7
      %v4353 = vsub.s32 %v4350, %v4352
      %v4354 = vrot.slane %v4326, %v4353
      %v4355 = vcombine.low %v4333, %v4340
      %v4356 = vcombine.high %v4333, %v4340
      %v4357 = vcombine.low %v4347, %v4354
      %v4358 = vcombine.high %v4347, %v4354
      %v4360 = vunpack.c.l.s4 1966171168
      %v4361 = vunpack.c.0.s8 %v4360
      %v4362 = vlaneseq
      %v4363 = vshrl.u32 %v4362, 7
      %v4364 = vsub.s32 %v4361, %v4363
      %v4365 = vrot.slane %v4355, %v4364
      %v4367 = vunpack.c.l.s4 1966171168
      %v4368 = vunpack.c.0.s8 %v4367
      %v4369 = vlaneseq
      %v4370 = vshrl.u32 %v4369, 7
      %v4371 = vsub.s32 %v4368, %v4370
      %v4372 = vrot.slane %v4356, %v4371
      %v4374 = vunpack.c.l.s4 1966171168
      %v4375 = vunpack.c.0.s8 %v4374
      %v4376 = vlaneseq
      %v4377 = vshrl.u32 %v4376, 7
      %v4378 = vsub.s32 %v4375, %v4377
      %v4379 = vrot.slane %v4357, %v4378
      %v4381 = vunpack.c.l.s4 1966171168
      %v4382 = vunpack.c.0.s8 %v4381
      %v4383 = vlaneseq
      %v4384 = vshrl.u32 %v4383, 7
      %v4385 = vsub.s32 %v4382, %v4384
      %v4386 = vrot.slane %v4358, %v4385
      %v4387 = vcombine.low %v4365, %v4379
      %v4388 = vcombine.low %v4372, %v4386
      %v4389 = vcombine.low %v1490, %v1492
      %v4390 = vcombine.low %v1507, %v1532
      %v4391 = vcombine.low %v1546, %v1554
      %v4392 = vcombine.low %v1556, %v1539
      %v4394 = vunpack.c.l.s4 1966171168
      %v4395 = vunpack.c.0.s8 %v4394
      %v4396 = vlaneseq
      %v4397 = vshrl.u32 %v4396, 7
      %v4398 = vsub.s32 %v4395, %v4397
      %v4399 = vrot.slane %v4389, %v4398
      %v4401 = vunpack.c.l.s4 1966171168
      %v4402 = vunpack.c.0.s8 %v4401
      %v4403 = vlaneseq
      %v4404 = vshrl.u32 %v4403, 7
      %v4405 = vsub.s32 %v4402, %v4404
      %v4406 = vrot.slane %v4390, %v4405
      %v4408 = vunpack.c.l.s4 1966171168
      %v4409 = vunpack.c.0.s8 %v4408
      %v4410 = vlaneseq
      %v4411 = vshrl.u32 %v4410, 7
      %v4412 = vsub.s32 %v4409, %v4411
      %v4413 = vrot.slane %v4391, %v4412
      %v4415 = vunpack.c.l.s4 1966171168
      %v4416 = vunpack.c.0.s8 %v4415
      %v4417 = vlaneseq
      %v4418 = vshrl.u32 %v4417, 7
      %v4419 = vsub.s32 %v4416, %v4418
      %v4420 = vrot.slane %v4392, %v4419
      %v4421 = vcombine.low %v4399, %v4406
      %v4422 = vcombine.high %v4399, %v4406
      %v4423 = vcombine.low %v4413, %v4420
      %v4424 = vcombine.high %v4413, %v4420
      %v4426 = vunpack.c.l.s4 1966171168
      %v4427 = vunpack.c.0.s8 %v4426
      %v4428 = vlaneseq
      %v4429 = vshrl.u32 %v4428, 7
      %v4430 = vsub.s32 %v4427, %v4429
      %v4431 = vrot.slane %v4421, %v4430
      %v4433 = vunpack.c.l.s4 1966171168
      %v4434 = vunpack.c.0.s8 %v4433
      %v4435 = vlaneseq
      %v4436 = vshrl.u32 %v4435, 7
      %v4437 = vsub.s32 %v4434, %v4436
      %v4438 = vrot.slane %v4422, %v4437
      %v4440 = vunpack.c.l.s4 1966171168
      %v4441 = vunpack.c.0.s8 %v4440
      %v4442 = vlaneseq
      %v4443 = vshrl.u32 %v4442, 7
      %v4444 = vsub.s32 %v4441, %v4443
      %v4445 = vrot.slane %v4423, %v4444
      %v4447 = vunpack.c.l.s4 1966171168
      %v4448 = vunpack.c.0.s8 %v4447
      %v4449 = vlaneseq
      %v4450 = vshrl.u32 %v4449, 7
      %v4451 = vsub.s32 %v4448, %v4450
      %v4452 = vrot.slane %v4424, %v4451
      %v4453 = vcombine.low %v4431, %v4445
      %v4454 = vcombine.low %v4438, %v4452
      %v4455 = vcombine.low %v1553, %v1555
      %v4456 = vcombine.low %v1557, %v1572
      %v4457 = vcombine.low %v1597, %v1611
      %v4458 = vcombine.low %v1619, %v1621
      %v4460 = vunpack.c.l.s4 1966171168
      %v4461 = vunpack.c.0.s8 %v4460
      %v4462 = vlaneseq
      %v4463 = vshrl.u32 %v4462, 7
      %v4464 = vsub.s32 %v4461, %v4463
      %v4465 = vrot.slane %v4455, %v4464
      %v4467 = vunpack.c.l.s4 1966171168
      %v4468 = vunpack.c.0.s8 %v4467
      %v4469 = vlaneseq
      %v4470 = vshrl.u32 %v4469, 7
      %v4471 = vsub.s32 %v4468, %v4470
      %v4472 = vrot.slane %v4456, %v4471
      %v4474 = vunpack.c.l.s4 1966171168
      %v4475 = vunpack.c.0.s8 %v4474
      %v4476 = vlaneseq
      %v4477 = vshrl.u32 %v4476, 7
      %v4478 = vsub.s32 %v4475, %v4477
      %v4479 = vrot.slane %v4457, %v4478
      %v4481 = vunpack.c.l.s4 1966171168
      %v4482 = vunpack.c.0.s8 %v4481
      %v4483 = vlaneseq
      %v4484 = vshrl.u32 %v4483, 7
      %v4485 = vsub.s32 %v4482, %v4484
      %v4486 = vrot.slane %v4458, %v4485
      %v4487 = vcombine.low %v4465, %v4472
      %v4488 = vcombine.high %v4465, %v4472
      %v4489 = vcombine.low %v4479, %v4486
      %v4490 = vcombine.high %v4479, %v4486
      %v4492 = vunpack.c.l.s4 1966171168
      %v4493 = vunpack.c.0.s8 %v4492
      %v4494 = vlaneseq
      %v4495 = vshrl.u32 %v4494, 7
      %v4496 = vsub.s32 %v4493, %v4495
      %v4497 = vrot.slane %v4487, %v4496
      %v4499 = vunpack.c.l.s4 1966171168
      %v4500 = vunpack.c.0.s8 %v4499
      %v4501 = vlaneseq
      %v4502 = vshrl.u32 %v4501, 7
      %v4503 = vsub.s32 %v4500, %v4502
      %v4504 = vrot.slane %v4488, %v4503
      %v4506 = vunpack.c.l.s4 1966171168
      %v4507 = vunpack.c.0.s8 %v4506
      %v4508 = vlaneseq
      %v4509 = vshrl.u32 %v4508, 7
      %v4510 = vsub.s32 %v4507, %v4509
      %v4511 = vrot.slane %v4489, %v4510
      %v4513 = vunpack.c.l.s4 1966171168
      %v4514 = vunpack.c.0.s8 %v4513
      %v4515 = vlaneseq
      %v4516 = vshrl.u32 %v4515, 7
      %v4517 = vsub.s32 %v4514, %v4516
      %v4518 = vrot.slane %v4490, %v4517
      %v4519 = vcombine.low %v4497, %v4511
      %v4520 = vcombine.low %v4504, %v4518
      %v4521 = vcombine.low %v1604, %v1618
      %v4522 = vcombine.low %v1620, %v1622
      %v4523 = vcombine.low %v1637, %v1662
      %v4524 = vcombine.low %v1676, %v1684
      %v4526 = vunpack.c.l.s4 1966171168
      %v4527 = vunpack.c.0.s8 %v4526
      %v4528 = vlaneseq
      %v4529 = vshrl.u32 %v4528, 7
      %v4530 = vsub.s32 %v4527, %v4529
      %v4531 = vrot.slane %v4521, %v4530
      %v4533 = vunpack.c.l.s4 1966171168
      %v4534 = vunpack.c.0.s8 %v4533
      %v4535 = vlaneseq
      %v4536 = vshrl.u32 %v4535, 7
      %v4537 = vsub.s32 %v4534, %v4536
      %v4538 = vrot.slane %v4522, %v4537
      %v4540 = vunpack.c.l.s4 1966171168
      %v4541 = vunpack.c.0.s8 %v4540
      %v4542 = vlaneseq
      %v4543 = vshrl.u32 %v4542, 7
      %v4544 = vsub.s32 %v4541, %v4543
      %v4545 = vrot.slane %v4523, %v4544
      %v4547 = vunpack.c.l.s4 1966171168
      %v4548 = vunpack.c.0.s8 %v4547
      %v4549 = vlaneseq
      %v4550 = vshrl.u32 %v4549, 7
      %v4551 = vsub.s32 %v4548, %v4550
      %v4552 = vrot.slane %v4524, %v4551
      %v4553 = vcombine.low %v4531, %v4538
      %v4554 = vcombine.high %v4531, %v4538
      %v4555 = vcombine.low %v4545, %v4552
      %v4556 = vcombine.high %v4545, %v4552
      %v4558 = vunpack.c.l.s4 1966171168
      %v4559 = vunpack.c.0.s8 %v4558
      %v4560 = vlaneseq
      %v4561 = vshrl.u32 %v4560, 7
      %v4562 = vsub.s32 %v4559, %v4561
      %v4563 = vrot.slane %v4553, %v4562
      %v4565 = vunpack.c.l.s4 1966171168
      %v4566 = vunpack.c.0.s8 %v4565
      %v4567 = vlaneseq
      %v4568 = vshrl.u32 %v4567, 7
      %v4569 = vsub.s32 %v4566, %v4568
      %v4570 = vrot.slane %v4554, %v4569
      %v4572 = vunpack.c.l.s4 1966171168
      %v4573 = vunpack.c.0.s8 %v4572
      %v4574 = vlaneseq
      %v4575 = vshrl.u32 %v4574, 7
      %v4576 = vsub.s32 %v4573, %v4575
      %v4577 = vrot.slane %v4555, %v4576
      %v4579 = vunpack.c.l.s4 1966171168
      %v4580 = vunpack.c.0.s8 %v4579
      %v4581 = vlaneseq
      %v4582 = vshrl.u32 %v4581, 7
      %v4583 = vsub.s32 %v4580, %v4582
      %v4584 = vrot.slane %v4556, %v4583
      %v4585 = vcombine.low %v4563, %v4577
      %v4586 = vcombine.low %v4570, %v4584
      %v4587 = vcombine.low %v1686, %v1669
      %v4588 = vcombine.low %v1683, %v1685
      %v4589 = vcombine.low %v1687, %v1702
      %v4590 = vcombine.low %v1727, %v1741
      %v4592 = vunpack.c.l.s4 1966171168
      %v4593 = vunpack.c.0.s8 %v4592
      %v4594 = vlaneseq
      %v4595 = vshrl.u32 %v4594, 7
      %v4596 = vsub.s32 %v4593, %v4595
      %v4597 = vrot.slane %v4587, %v4596
      %v4599 = vunpack.c.l.s4 1966171168
      %v4600 = vunpack.c.0.s8 %v4599
      %v4601 = vlaneseq
      %v4602 = vshrl.u32 %v4601, 7
      %v4603 = vsub.s32 %v4600, %v4602
      %v4604 = vrot.slane %v4588, %v4603
      %v4606 = vunpack.c.l.s4 1966171168
      %v4607 = vunpack.c.0.s8 %v4606
      %v4608 = vlaneseq
      %v4609 = vshrl.u32 %v4608, 7
      %v4610 = vsub.s32 %v4607, %v4609
      %v4611 = vrot.slane %v4589, %v4610
      %v4613 = vunpack.c.l.s4 1966171168
      %v4614 = vunpack.c.0.s8 %v4613
      %v4615 = vlaneseq
      %v4616 = vshrl.u32 %v4615, 7
      %v4617 = vsub.s32 %v4614, %v4616
      %v4618 = vrot.slane %v4590, %v4617
      %v4619 = vcombine.low %v4597, %v4604
      %v4620 = vcombine.high %v4597, %v4604
      %v4621 = vcombine.low %v4611, %v4618
      %v4622 = vcombine.high %v4611, %v4618
      %v4624 = vunpack.c.l.s4 1966171168
      %v4625 = vunpack.c.0.s8 %v4624
      %v4626 = vlaneseq
      %v4627 = vshrl.u32 %v4626, 7
      %v4628 = vsub.s32 %v4625, %v4627
      %v4629 = vrot.slane %v4619, %v4628
      %v4631 = vunpack.c.l.s4 1966171168
      %v4632 = vunpack.c.0.s8 %v4631
      %v4633 = vlaneseq
      %v4634 = vshrl.u32 %v4633, 7
      %v4635 = vsub.s32 %v4632, %v4634
      %v4636 = vrot.slane %v4620, %v4635
      %v4638 = vunpack.c.l.s4 1966171168
      %v4639 = vunpack.c.0.s8 %v4638
      %v4640 = vlaneseq
      %v4641 = vshrl.u32 %v4640, 7
      %v4642 = vsub.s32 %v4639, %v4641
      %v4643 = vrot.slane %v4621, %v4642
      %v4645 = vunpack.c.l.s4 1966171168
      %v4646 = vunpack.c.0.s8 %v4645
      %v4647 = vlaneseq
      %v4648 = vshrl.u32 %v4647, 7
      %v4649 = vsub.s32 %v4646, %v4648
      %v4650 = vrot.slane %v4622, %v4649
      %v4651 = vcombine.low %v4629, %v4643
      %v4652 = vcombine.low %v4636, %v4650
      %v4653 = vcombine.low %v1749, %v1751
      %v4654 = vcombine.low %v1734, %v1748
      %v4655 = vcombine.low %v1750, %v1752
      %v4656 = vcombine.low %v1767, %v1792
      %v4658 = vunpack.c.l.s4 1966171168
      %v4659 = vunpack.c.0.s8 %v4658
      %v4660 = vlaneseq
      %v4661 = vshrl.u32 %v4660, 7
      %v4662 = vsub.s32 %v4659, %v4661
      %v4663 = vrot.slane %v4653, %v4662
      %v4665 = vunpack.c.l.s4 1966171168
      %v4666 = vunpack.c.0.s8 %v4665
      %v4667 = vlaneseq
      %v4668 = vshrl.u32 %v4667, 7
      %v4669 = vsub.s32 %v4666, %v4668
      %v4670 = vrot.slane %v4654, %v4669
      %v4672 = vunpack.c.l.s4 1966171168
      %v4673 = vunpack.c.0.s8 %v4672
      %v4674 = vlaneseq
      %v4675 = vshrl.u32 %v4674, 7
      %v4676 = vsub.s32 %v4673, %v4675
      %v4677 = vrot.slane %v4655, %v4676
      %v4679 = vunpack.c.l.s4 1966171168
      %v4680 = vunpack.c.0.s8 %v4679
      %v4681 = vlaneseq
      %v4682 = vshrl.u32 %v4681, 7
      %v4683 = vsub.s32 %v4680, %v4682
      %v4684 = vrot.slane %v4656, %v4683
      %v4685 = vcombine.low %v4663, %v4670
      %v4686 = vcombine.high %v4663, %v4670
      %v4687 = vcombine.low %v4677, %v4684
      %v4688 = vcombine.high %v4677, %v4684
      %v4690 = vunpack.c.l.s4 1966171168
      %v4691 = vunpack.c.0.s8 %v4690
      %v4692 = vlaneseq
      %v4693 = vshrl.u32 %v4692, 7
      %v4694 = vsub.s32 %v4691, %v4693
      %v4695 = vrot.slane %v4685, %v4694
      %v4697 = vunpack.c.l.s4 1966171168
      %v4698 = vunpack.c.0.s8 %v4697
      %v4699 = vlaneseq
      %v4700 = vshrl.u32 %v4699, 7
      %v4701 = vsub.s32 %v4698, %v4700
      %v4702 = vrot.slane %v4686, %v4701
      %v4704 = vunpack.c.l.s4 1966171168
      %v4705 = vunpack.c.0.s8 %v4704
      %v4706 = vlaneseq
      %v4707 = vshrl.u32 %v4706, 7
      %v4708 = vsub.s32 %v4705, %v4707
      %v4709 = vrot.slane %v4687, %v4708
      %v4711 = vunpack.c.l.s4 1966171168
      %v4712 = vunpack.c.0.s8 %v4711
      %v4713 = vlaneseq
      %v4714 = vshrl.u32 %v4713, 7
      %v4715 = vsub.s32 %v4712, %v4714
      %v4716 = vrot.slane %v4688, %v4715
      %v4717 = vcombine.low %v4695, %v4709
      %v4718 = vcombine.low %v4702, %v4716
      %v4719 = vcombine.low %v1806, %v1814
      %v4720 = vcombine.low %v1816, %v1799
      %v4721 = vcombine.low %v1813, %v1815
      %v4722 = vcombine.low %v1817, %v1832
      %v4724 = vunpack.c.l.s4 1966171168
      %v4725 = vunpack.c.0.s8 %v4724
      %v4726 = vlaneseq
      %v4727 = vshrl.u32 %v4726, 7
      %v4728 = vsub.s32 %v4725, %v4727
      %v4729 = vrot.slane %v4719, %v4728
      %v4731 = vunpack.c.l.s4 1966171168
      %v4732 = vunpack.c.0.s8 %v4731
      %v4733 = vlaneseq
      %v4734 = vshrl.u32 %v4733, 7
      %v4735 = vsub.s32 %v4732, %v4734
      %v4736 = vrot.slane %v4720, %v4735
      %v4738 = vunpack.c.l.s4 1966171168
      %v4739 = vunpack.c.0.s8 %v4738
      %v4740 = vlaneseq
      %v4741 = vshrl.u32 %v4740, 7
      %v4742 = vsub.s32 %v4739, %v4741
      %v4743 = vrot.slane %v4721, %v4742
      %v4745 = vunpack.c.l.s4 1966171168
      %v4746 = vunpack.c.0.s8 %v4745
      %v4747 = vlaneseq
      %v4748 = vshrl.u32 %v4747, 7
      %v4749 = vsub.s32 %v4746, %v4748
      %v4750 = vrot.slane %v4722, %v4749
      %v4751 = vcombine.low %v4729, %v4736
      %v4752 = vcombine.high %v4729, %v4736
      %v4753 = vcombine.low %v4743, %v4750
      %v4754 = vcombine.high %v4743, %v4750
      %v4756 = vunpack.c.l.s4 1966171168
      %v4757 = vunpack.c.0.s8 %v4756
      %v4758 = vlaneseq
      %v4759 = vshrl.u32 %v4758, 7
      %v4760 = vsub.s32 %v4757, %v4759
      %v4761 = vrot.slane %v4751, %v4760
      %v4763 = vunpack.c.l.s4 1966171168
      %v4764 = vunpack.c.0.s8 %v4763
      %v4765 = vlaneseq
      %v4766 = vshrl.u32 %v4765, 7
      %v4767 = vsub.s32 %v4764, %v4766
      %v4768 = vrot.slane %v4752, %v4767
      %v4770 = vunpack.c.l.s4 1966171168
      %v4771 = vunpack.c.0.s8 %v4770
      %v4772 = vlaneseq
      %v4773 = vshrl.u32 %v4772, 7
      %v4774 = vsub.s32 %v4771, %v4773
      %v4775 = vrot.slane %v4753, %v4774
      %v4777 = vunpack.c.l.s4 1966171168
      %v4778 = vunpack.c.0.s8 %v4777
      %v4779 = vlaneseq
      %v4780 = vshrl.u32 %v4779, 7
      %v4781 = vsub.s32 %v4778, %v4780
      %v4782 = vrot.slane %v4754, %v4781
      %v4783 = vcombine.low %v4761, %v4775
      %v4784 = vcombine.low %v4768, %v4782
      %v4785 = vcombine.low %v1857, %v1871
      %v4786 = vcombine.low %v1879, %v1881
      %v4787 = vcombine.low %v1864, %v1878
      %v4788 = vcombine.low %v1880, %v1882
      %v4790 = vunpack.c.l.s4 1966171168
      %v4791 = vunpack.c.0.s8 %v4790
      %v4792 = vlaneseq
      %v4793 = vshrl.u32 %v4792, 7
      %v4794 = vsub.s32 %v4791, %v4793
      %v4795 = vrot.slane %v4785, %v4794
      %v4797 = vunpack.c.l.s4 1966171168
      %v4798 = vunpack.c.0.s8 %v4797
      %v4799 = vlaneseq
      %v4800 = vshrl.u32 %v4799, 7
      %v4801 = vsub.s32 %v4798, %v4800
      %v4802 = vrot.slane %v4786, %v4801
      %v4804 = vunpack.c.l.s4 1966171168
      %v4805 = vunpack.c.0.s8 %v4804
      %v4806 = vlaneseq
      %v4807 = vshrl.u32 %v4806, 7
      %v4808 = vsub.s32 %v4805, %v4807
      %v4809 = vrot.slane %v4787, %v4808
      %v4811 = vunpack.c.l.s4 1966171168
      %v4812 = vunpack.c.0.s8 %v4811
      %v4813 = vlaneseq
      %v4814 = vshrl.u32 %v4813, 7
      %v4815 = vsub.s32 %v4812, %v4814
      %v4816 = vrot.slane %v4788, %v4815
      %v4817 = vcombine.low %v4795, %v4802
      %v4818 = vcombine.high %v4795, %v4802
      %v4819 = vcombine.low %v4809, %v4816
      %v4820 = vcombine.high %v4809, %v4816
      %v4822 = vunpack.c.l.s4 1966171168
      %v4823 = vunpack.c.0.s8 %v4822
      %v4824 = vlaneseq
      %v4825 = vshrl.u32 %v4824, 7
      %v4826 = vsub.s32 %v4823, %v4825
      %v4827 = vrot.slane %v4817, %v4826
      %v4829 = vunpack.c.l.s4 1966171168
      %v4830 = vunpack.c.0.s8 %v4829
      %v4831 = vlaneseq
      %v4832 = vshrl.u32 %v4831, 7
      %v4833 = vsub.s32 %v4830, %v4832
      %v4834 = vrot.slane %v4818, %v4833
      %v4836 = vunpack.c.l.s4 1966171168
      %v4837 = vunpack.c.0.s8 %v4836
      %v4838 = vlaneseq
      %v4839 = vshrl.u32 %v4838, 7
      %v4840 = vsub.s32 %v4837, %v4839
      %v4841 = vrot.slane %v4819, %v4840
      %v4843 = vunpack.c.l.s4 1966171168
      %v4844 = vunpack.c.0.s8 %v4843
      %v4845 = vlaneseq
      %v4846 = vshrl.u32 %v4845, 7
      %v4847 = vsub.s32 %v4844, %v4846
      %v4848 = vrot.slane %v4820, %v4847
      %v4849 = vcombine.low %v4827, %v4841
      %v4850 = vcombine.low %v4834, %v4848
      %v4851 = vcombine.low %v1897, %v1922
      %v4852 = vcombine.low %v1936, %v1944
      %v4853 = vcombine.low %v1946, %v1929
      %v4854 = vcombine.low %v1943, %v1945
      %v4856 = vunpack.c.l.s4 1966171168
      %v4857 = vunpack.c.0.s8 %v4856
      %v4858 = vlaneseq
      %v4859 = vshrl.u32 %v4858, 7
      %v4860 = vsub.s32 %v4857, %v4859
      %v4861 = vrot.slane %v4851, %v4860
      %v4863 = vunpack.c.l.s4 1966171168
      %v4864 = vunpack.c.0.s8 %v4863
      %v4865 = vlaneseq
      %v4866 = vshrl.u32 %v4865, 7
      %v4867 = vsub.s32 %v4864, %v4866
      %v4868 = vrot.slane %v4852, %v4867
      %v4870 = vunpack.c.l.s4 1966171168
      %v4871 = vunpack.c.0.s8 %v4870
      %v4872 = vlaneseq
      %v4873 = vshrl.u32 %v4872, 7
      %v4874 = vsub.s32 %v4871, %v4873
      %v4875 = vrot.slane %v4853, %v4874
      %v4877 = vunpack.c.l.s4 1966171168
      %v4878 = vunpack.c.0.s8 %v4877
      %v4879 = vlaneseq
      %v4880 = vshrl.u32 %v4879, 7
      %v4881 = vsub.s32 %v4878, %v4880
      %v4882 = vrot.slane %v4854, %v4881
      %v4883 = vcombine.low %v4861, %v4868
      %v4884 = vcombine.high %v4861, %v4868
      %v4885 = vcombine.low %v4875, %v4882
      %v4886 = vcombine.high %v4875, %v4882
      %v4888 = vunpack.c.l.s4 1966171168
      %v4889 = vunpack.c.0.s8 %v4888
      %v4890 = vlaneseq
      %v4891 = vshrl.u32 %v4890, 7
      %v4892 = vsub.s32 %v4889, %v4891
      %v4893 = vrot.slane %v4883, %v4892
      %v4895 = vunpack.c.l.s4 1966171168
      %v4896 = vunpack.c.0.s8 %v4895
      %v4897 = vlaneseq
      %v4898 = vshrl.u32 %v4897, 7
      %v4899 = vsub.s32 %v4896, %v4898
      %v4900 = vrot.slane %v4884, %v4899
      %v4902 = vunpack.c.l.s4 1966171168
      %v4903 = vunpack.c.0.s8 %v4902
      %v4904 = vlaneseq
      %v4905 = vshrl.u32 %v4904, 7
      %v4906 = vsub.s32 %v4903, %v4905
      %v4907 = vrot.slane %v4885, %v4906
      %v4909 = vunpack.c.l.s4 1966171168
      %v4910 = vunpack.c.0.s8 %v4909
      %v4911 = vlaneseq
      %v4912 = vshrl.u32 %v4911, 7
      %v4913 = vsub.s32 %v4910, %v4912
      %v4914 = vrot.slane %v4886, %v4913
      %v4915 = vcombine.low %v4893, %v4907
      %v4916 = vcombine.low %v4900, %v4914
      %v4917 = vcombine.low %v1947, %v1962
      %v4919 = vunpack.c.l.s4 1966171168
      %v4920 = vunpack.c.0.s8 %v4919
      %v4921 = vlaneseq
      %v4922 = vshrl.u32 %v4921, 7
      %v4923 = vsub.s32 %v4920, %v4922
      %v4924 = vrot.slane %v4917, %v4923
      %v4925 = vcombine.high %v4924, %v4924
      %v4927 = vunpack.c.l.s4 1966171168
      %v4928 = vunpack.c.0.s8 %v4927
      %v4929 = vlaneseq
      %v4930 = vshrl.u32 %v4929, 7
      %v4931 = vsub.s32 %v4928, %v4930
      %v4932 = vrot.slane %v4924, %v4931
      %v4934 = vunpack.c.l.s4 1966171168
      %v4935 = vunpack.c.0.s8 %v4934
      %v4936 = vlaneseq
      %v4937 = vshrl.u32 %v4936, 7
      %v4938 = vsub.s32 %v4935, %v4937
      %v4939 = vrot.slane %v4925, %v4938
      %v4970 = vunpack.c.l.b16 %v1963
      %v4971 = vunpack.c.l.b16 %v1964
      %v4972 = vunpack.c.l.b16 %v1965
      %v4973 = vunpack.c.l.b16 %v1966
      %v4974 = vunpack.c.l.b16 %v1967
      %v4975 = vunpack.c.l.b16 %v1968
      %v4976 = vunpack.c.l.b16 %v1969
      %v4977 = vunpack.c.l.b16 %v1970
      %v4978 = vunpack.c.l.b16 %v1971
      %v4979 = vunpack.c.l.b16 %v1972
      %v4980 = vunpack.c.l.b16 %v1973
      %v4981 = vunpack.c.l.b16 %v1974
      %v4982 = vunpack.c.l.b16 %v1975
      %v4983 = vunpack.c.l.b16 %v1976
      %v4984 = vunpack.c.l.b16 %v1977
      %v4985 = vunpack.c.l.b16 %v1978
      %v4986 = vunpack.c.l.b16 %v1979
      %v4987 = vunpack.c.l.b16 %v1980
      %v4988 = vpack.c.b16 %v4971, %v4970
      %v4989 = vpack.c.b16 %v4973, %v4972
      %v4990 = vpack.c.b16 %v4975, %v4974
      %v4991 = vpack.c.b16 %v4977, %v4976
      %v4992 = vpack.c.b16 %v4979, %v4978
      %v4993 = vpack.c.b16 %v4981, %v4980
      %v4994 = vpack.c.b16 %v4983, %v4982
      %v4995 = vpack.c.b16 %v4985, %v4984
      %v4996 = vpack.c.b16 %v4987, %v4986
      %v5007 = vsel %vm4026, %v4256, 0
      %v5010 = vsel %vm4026, %v4322, 0
      %v5013 = vsel %vm4026, %v4388, 0
      %v5016 = vsel %vm4026, %v4454, 0
      %v5019 = vsel %vm4026, %v4520, 0
      %v5022 = vsel %vm4026, %v4586, 0
      %v5025 = vsel %vm4026, %v4652, 0
      %v5028 = vsel %vm4026, %v4718, 0
      %v5031 = vsel %vm4026, %v4784, 0
      %v5034 = vsel %vm4026, %v4850, 0
      %v5037 = vsel %vm4026, %v4916, 0
      %v5040 = vsel %vm4026, %v4939, 0
      %5042 = vmatprep.subr.bf16.mxu0 0
      %5043 = vmatpush1.bf16.msra.mxu0 %v4995
      %5044 = vmatprep.subr.bf16.mxu0 0
      %5045 = vmatpush1.bf16.msra.mxu0 %v4994
      %5046 = vmatprep.subr.bf16.mxu0 0
      %5047 = vmatpush1.bf16.msra.mxu0 %v4993
      %5048 = vmatprep.subr.bf16.mxu0 0
      %5049 = vmatpush1.bf16.msra.mxu0 %v4992
      %5050 = vmatprep.subr.bf16.mxu0 0
      %5051 = vmatpush1.bf16.msra.mxu0 %v4991
      %5052 = vmatprep.subr.bf16.mxu0 0
      %5053 = vmatpush1.bf16.msra.mxu0 %v4990
      %5054 = vmatprep.subr.bf16.mxu0 0
      %5055 = vmatpush1.bf16.msra.mxu0 %v4989
      %5056 = vmatprep.subr.bf16.mxu0 0
      %5057 = vmatpush1.bf16.msra.mxu0 %v4988
      %5058 = vmatprep.subr.bf16.mxu0 0
      %5059 = vmatpush2.bf16.msra.mxu0 0
      %5060 = vmatprep.subr.bf16.mxu0 0
      %5061 = vmatpush2.bf16.msra.mxu0 0
      %5062 = vmatprep.subr.bf16.mxu0 0
      %5063 = vmatpush2.bf16.msra.mxu0 0
      %5064 = vmatprep.subr.bf16.mxu0 0
      %5065 = vmatpush2.bf16.msra.mxu0 0
      %5066 = vmatprep.subr.bf16.mxu0 0
      %5067 = vmatpush2.bf16.msra.mxu0 0
      %5068 = vmatprep.subr.bf16.mxu0 0
      %5069 = vmatpush2.bf16.msra.mxu0 0
      %5070 = vmatprep.subr.bf16.mxu0 0
      %5071 = vmatpush2.bf16.msra.mxu0 0
      %5072 = vmatprep.subr.bf16.mxu0 0
      %5073 = vmatpush2.bf16.msra.mxu0 %v4996
      %5074 = vmatprep.mubr.bf16.mxu0 %v5007
      %5075 = vmatmul.mubr.bf16.gmra.mxu0 %v4255
      %v5076 = vpop.f32.mrf.mxu0
      %v5077 = vadd.f32 %v4098, %v5076
      %v5078 = vpop.f32.mrf.mxu0
      %v5079 = vpop.f32.mrf.mxu0
      %v5080 = vadd.f32 %v4101, %v5079
      %v5081 = vpop.f32.mrf.mxu0
      %5082 = vmatprep.mubr.bf16.mxu0 %v5010
      %5083 = vmatmul.mubr.bf16.gmra.mxu0 %v4321
      %v5084 = vpop.f32.mrf.mxu0
      %v5085 = vadd.f32 %v4106, %v5084
      %v5086 = vpop.f32.mrf.mxu0
      %v5087 = vpop.f32.mrf.mxu0
      %v5088 = vadd.f32 %v4109, %v5087
      %v5089 = vpop.f32.mrf.mxu0
      %5090 = vmatprep.mubr.bf16.mxu0 %v5013
      %5091 = vmatmul.mubr.bf16.gmra.mxu0 %v4387
      %v5092 = vpop.f32.mrf.mxu0
      %v5093 = vadd.f32 %v4114, %v5092
      %v5094 = vpop.f32.mrf.mxu0
      %v5095 = vpop.f32.mrf.mxu0
      %v5096 = vadd.f32 %v4117, %v5095
      %v5097 = vpop.f32.mrf.mxu0
      %5098 = vmatprep.mubr.bf16.mxu0 %v5016
      %5099 = vmatmul.mubr.bf16.gmra.mxu0 %v4453
      %v5100 = vpop.f32.mrf.mxu0
      %v5101 = vadd.f32 %v4122, %v5100
      %v5102 = vpop.f32.mrf.mxu0
      %v5103 = vpop.f32.mrf.mxu0
      %v5104 = vadd.f32 %v4125, %v5103
      %v5105 = vpop.f32.mrf.mxu0
      %5106 = vmatprep.mubr.bf16.mxu0 %v5019
      %5107 = vmatmul.mubr.bf16.gmra.mxu0 %v4519
      %v5108 = vpop.f32.mrf.mxu0
      %v5109 = vadd.f32 %v4130, %v5108
      %v5110 = vpop.f32.mrf.mxu0
      %v5111 = vpop.f32.mrf.mxu0
      %v5112 = vadd.f32 %v4133, %v5111
      %v5113 = vpop.f32.mrf.mxu0
      %5114 = vmatprep.mubr.bf16.mxu0 %v5022
      %5115 = vmatmul.mubr.bf16.gmra.mxu0 %v4585
      %v5116 = vpop.f32.mrf.mxu0
      %v5117 = vadd.f32 %v4138, %v5116
      %v5118 = vpop.f32.mrf.mxu0
      %v5119 = vpop.f32.mrf.mxu0
      %v5120 = vadd.f32 %v4141, %v5119
      %v5121 = vpop.f32.mrf.mxu0
      %5122 = vmatprep.mubr.bf16.mxu0 %v5025
      %5123 = vmatmul.mubr.bf16.gmra.mxu0 %v4651
      %v5124 = vpop.f32.mrf.mxu0
      %v5125 = vadd.f32 %v4146, %v5124
      %v5126 = vpop.f32.mrf.mxu0
      %v5127 = vpop.f32.mrf.mxu0
      %v5128 = vadd.f32 %v4149, %v5127
      %v5129 = vpop.f32.mrf.mxu0
      %5130 = vmatprep.mubr.bf16.mxu0 %v5028
      %5131 = vmatmul.mubr.bf16.gmra.mxu0 %v4717
      %v5132 = vpop.f32.mrf.mxu0
      %v5133 = vadd.f32 %v4154, %v5132
      %v5134 = vpop.f32.mrf.mxu0
      %v5135 = vpop.f32.mrf.mxu0
      %v5136 = vadd.f32 %v4157, %v5135
      %v5137 = vpop.f32.mrf.mxu0
      %5138 = vmatprep.mubr.bf16.mxu0 %v5031
      %5139 = vmatmul.mubr.bf16.gmra.mxu0 %v4783
      %v5140 = vpop.f32.mrf.mxu0
      %v5141 = vadd.f32 %v4162, %v5140
      %v5142 = vpop.f32.mrf.mxu0
      %v5143 = vpop.f32.mrf.mxu0
      %v5144 = vadd.f32 %v4165, %v5143
      %v5145 = vpop.f32.mrf.mxu0
      %5146 = vmatprep.mubr.bf16.mxu0 %v5034
      %5147 = vmatmul.mubr.bf16.gmra.mxu0 %v4849
      %v5148 = vpop.f32.mrf.mxu0
      %v5149 = vadd.f32 %v4170, %v5148
      %v5150 = vpop.f32.mrf.mxu0
      %v5151 = vpop.f32.mrf.mxu0
      %v5152 = vadd.f32 %v4173, %v5151
      %v5153 = vpop.f32.mrf.mxu0
      %5154 = vmatprep.mubr.bf16.mxu0 %v5037
      %5155 = vmatmul.mubr.bf16.gmra.mxu0 %v4915
      %v5156 = vpop.f32.mrf.mxu0
      %v5157 = vadd.f32 %v4178, %v5156
      %v5158 = vpop.f32.mrf.mxu0
      %v5159 = vpop.f32.mrf.mxu0
      %v5160 = vadd.f32 %v4181, %v5159
      %v5161 = vpop.f32.mrf.mxu0
      %5162 = vmatprep.mubr.bf16.mxu0 %v5040
      %5163 = vmatmul.mubr.bf16.gmra.mxu0 %v4932
      %v5164 = vpop.f32.mrf.mxu0
      %v5165 = vadd.f32 %v4186, %v5164
      %v5166 = vpop.f32.mrf.mxu0
      %v5167 = vpop.f32.mrf.mxu0
      %v5168 = vpop.f32.mrf.mxu0
      %5169 = vdwg.mxu0
      %v5170 = vld [vmem:[%s632] sm:$0xf]
      %v5171 = vld [vmem:[%s632 + $0x4] sm:$0xf]
      %v5172 = vld [vmem:[%s632 + $0x8] sm:$0x1]
      %v5173 = vld [vmem:[%s632 + $0xc] sm:$0xf]
      %v5174 = vld [vmem:[%s632 + $0x10] sm:$0xf]
      %v5175 = vld [vmem:[%s632 + $0x14] sm:$0x1]
      %v5176 = vld [vmem:[%s632 + $0x18] sm:$0xf]
      %v5177 = vld [vmem:[%s632 + $0x1c] sm:$0xf]
      %v5178 = vld [vmem:[%s632 + $0x20] sm:$0x1]
      %v5179 = vld [vmem:[%s632 + $0x24] sm:$0xf]
      %v5180 = vld [vmem:[%s632 + $0x28] sm:$0xf]
      %v5181 = vld [vmem:[%s632 + $0x2c] sm:$0x1]
      %v5182 = vld [vmem:[%s632 + $0x30] sm:$0xf]
      %v5183 = vld [vmem:[%s632 + $0x34] sm:$0xf]
      %v5184 = vld [vmem:[%s632 + $0x38] sm:$0x1]
      %v5185 = vld [vmem:[%s632 + $0x3c] sm:$0xf]
      %v5186 = vld [vmem:[%s632 + $0x40] sm:$0xf]
      %v5187 = vld [vmem:[%s632 + $0x44] sm:$0x1]
      %v5188 = vld [vmem:[%s632 + $0x48] sm:$0xf]
      %v5189 = vld [vmem:[%s632 + $0x4c] sm:$0xf]
      %v5190 = vld [vmem:[%s632 + $0x50] sm:$0x1]
      %v5191 = vld [vmem:[%s632 + $0x54] sm:$0xf]
      %v5192 = vld [vmem:[%s632 + $0x58] sm:$0xf]
      %v5193 = vld [vmem:[%s632 + $0x5c] sm:$0x1]
      %v5194 = vld [vmem:[%s632 + $0x60] sm:$0xf]
      %v5195 = vld [vmem:[%s632 + $0x64] sm:$0xf]
      %v5196 = vld [vmem:[%s632 + $0x68] sm:$0x1]
      %v5197 = vld [vmem:[%s632 + $0x6c] sm:$0xf]
      %v5198 = vld [vmem:[%s632 + $0x70] sm:$0xf]
      %v5199 = vld [vmem:[%s632 + $0x74] sm:$0x1]
      %v5200 = vld [vmem:[%s632 + $0x8] sm:$0x3]
      %v5201 = vld [vmem:[%s632 + $0x14] sm:$0x3]
      %v5202 = vld [vmem:[%s632 + $0x20] sm:$0x3]
      %v5203 = vld [vmem:[%s632 + $0x2c] sm:$0x3]
      %v5204 = vld [vmem:[%s632 + $0x38] sm:$0x3]
      %v5205 = vld [vmem:[%s632 + $0x44] sm:$0x3]
      %v5206 = vld [vmem:[%s632 + $0x50] sm:$0x3]
      %v5207 = vld [vmem:[%s632 + $0x5c] sm:$0x3]
      %v5208 = vld [vmem:[%s632 + $0x68] sm:$0x3]
      %v5209 = vld [vmem:[%s632 + $0x74] sm:$0x3]
      %v5210 = vld [vmem:[%s632] sm:$0xe]
      %v5211 = vld [vmem:[%s632 + $0xc] sm:$0xe]
      %v5212 = vld [vmem:[%s632 + $0x18] sm:$0xe]
      %v5213 = vld [vmem:[%s632 + $0x24] sm:$0xe]
      %v5214 = vld [vmem:[%s632 + $0x30] sm:$0xe]
      %v5215 = vld [vmem:[%s632 + $0x3c] sm:$0xe]
      %v5216 = vld [vmem:[%s632 + $0x48] sm:$0xe]
      %v5217 = vld [vmem:[%s632 + $0x54] sm:$0xe]
      %v5218 = vld [vmem:[%s632 + $0x60] sm:$0xe]
      %v5219 = vld [vmem:[%s632 + $0x6c] sm:$0xe]
      %v5250 = vunpack.c.l.b16 %v5170
      %v5251 = vunpack.c.l.b16 %v5171
      %v5252 = vunpack.c.l.b16 %v5172
      %v5253 = vunpack.c.l.b16 %v5173
      %v5254 = vunpack.c.l.b16 %v5174
      %v5255 = vunpack.c.l.b16 %v5175
      %v5256 = vunpack.c.l.b16 %v5176
      %v5257 = vunpack.c.l.b16 %v5177
      %v5258 = vunpack.c.l.b16 %v5178
      %v5259 = vunpack.c.l.b16 %v5179
      %v5260 = vunpack.c.l.b16 %v5180
      %v5261 = vunpack.c.l.b16 %v5181
      %v5262 = vunpack.c.l.b16 %v5182
      %v5263 = vunpack.c.l.b16 %v5183
      %v5264 = vunpack.c.l.b16 %v5184
      %v5265 = vunpack.c.l.b16 %v5185
      %v5266 = vunpack.c.l.b16 %v5186
      %v5267 = vunpack.c.l.b16 %v5187
      %v5268 = vunpack.c.l.b16 %v5188
      %v5269 = vunpack.c.l.b16 %v5189
      %v5270 = vunpack.c.l.b16 %v5190
      %v5271 = vunpack.c.l.b16 %v5191
      %v5272 = vunpack.c.l.b16 %v5192
      %v5273 = vunpack.c.l.b16 %v5193
      %v5274 = vunpack.c.l.b16 %v5194
      %v5275 = vunpack.c.l.b16 %v5195
      %v5276 = vunpack.c.l.b16 %v5196
      %v5277 = vunpack.c.l.b16 %v5197
      %v5278 = vunpack.c.l.b16 %v5198
      %v5279 = vunpack.c.l.b16 %v5199
      %v5280 = vpack.c.b16 %v5251, %v5250
      %v5281 = vpack.c.b16 %v5252, %v5252
      %v5282 = vpack.c.b16 %v5254, %v5253
      %v5283 = vpack.c.b16 %v5255, %v5255
      %v5284 = vpack.c.b16 %v5257, %v5256
      %v5285 = vpack.c.b16 %v5258, %v5258
      %v5286 = vpack.c.b16 %v5260, %v5259
      %v5287 = vpack.c.b16 %v5261, %v5261
      %v5288 = vpack.c.b16 %v5263, %v5262
      %v5289 = vpack.c.b16 %v5264, %v5264
      %v5290 = vpack.c.b16 %v5266, %v5265
      %v5291 = vpack.c.b16 %v5267, %v5267
      %v5292 = vpack.c.b16 %v5269, %v5268
      %v5293 = vpack.c.b16 %v5270, %v5270
      %v5294 = vpack.c.b16 %v5272, %v5271
      %v5295 = vpack.c.b16 %v5273, %v5273
      %v5296 = vpack.c.b16 %v5275, %v5274
      %v5297 = vpack.c.b16 %v5276, %v5276
      %v5298 = vpack.c.b16 %v5278, %v5277
      %v5299 = vpack.c.b16 %v5279, %v5279
      %v5310 = vunpack.c.l.b16 %v5200
      %v5311 = vunpack.c.l.b16 %v5201
      %v5312 = vunpack.c.l.b16 %v5202
      %v5313 = vunpack.c.l.b16 %v5203
      %v5314 = vunpack.c.l.b16 %v5204
      %v5315 = vunpack.c.l.b16 %v5205
      %v5316 = vunpack.c.l.b16 %v5206
      %v5317 = vunpack.c.l.b16 %v5207
      %v5318 = vunpack.c.l.b16 %v5208
      %v5319 = vunpack.c.l.b16 %v5209
      %v5320 = vpack.c.b16 %v5310, %v5310
      %v5321 = vpack.c.b16 %v5311, %v5311
      %v5322 = vpack.c.b16 %v5312, %v5312
      %v5323 = vpack.c.b16 %v5313, %v5313
      %v5324 = vpack.c.b16 %v5314, %v5314
      %v5325 = vpack.c.b16 %v5315, %v5315
      %v5326 = vpack.c.b16 %v5316, %v5316
      %v5327 = vpack.c.b16 %v5317, %v5317
      %v5328 = vpack.c.b16 %v5318, %v5318
      %v5329 = vpack.c.b16 %v5319, %v5319
      %v5331 = vshrl.u32 %v5280, 16
      %v5333 = vshll.u32 %v5280, 16
      %v5335 = vrot.slane %v5333, 1
      %v5336 = vor.u32 %v5331, %v5335
      %v5338 = vshll.u32 %v5320, 16
      %v5340 = vrot.slane %v5338, 1
      %v5341 = vsel %vm909, %v5336, %v5340
      %v5342 = vshrl.u32 %v5320, 16
      %v5344 = vor.u32 %v5342, %v5340
      %v5346 = vshrl.u32 %v5282, 16
      %v5348 = vshll.u32 %v5282, 16
      %v5350 = vrot.slane %v5348, 1
      %v5351 = vor.u32 %v5346, %v5350
      %v5353 = vshll.u32 %v5321, 16
      %v5355 = vrot.slane %v5353, 1
      %v5356 = vsel %vm909, %v5351, %v5355
      %v5357 = vshrl.u32 %v5321, 16
      %v5359 = vor.u32 %v5357, %v5355
      %v5361 = vshrl.u32 %v5284, 16
      %v5363 = vshll.u32 %v5284, 16
      %v5365 = vrot.slane %v5363, 1
      %v5366 = vor.u32 %v5361, %v5365
      %v5368 = vshll.u32 %v5322, 16
      %v5370 = vrot.slane %v5368, 1
      %v5371 = vsel %vm909, %v5366, %v5370
      %v5372 = vshrl.u32 %v5322, 16
      %v5374 = vor.u32 %v5372, %v5370
      %v5376 = vshrl.u32 %v5286, 16
      %v5378 = vshll.u32 %v5286, 16
      %v5380 = vrot.slane %v5378, 1
      %v5381 = vor.u32 %v5376, %v5380
      %v5383 = vshll.u32 %v5323, 16
      %v5385 = vrot.slane %v5383, 1
      %v5386 = vsel %vm909, %v5381, %v5385
      %v5387 = vshrl.u32 %v5323, 16
      %v5389 = vor.u32 %v5387, %v5385
      %v5391 = vshrl.u32 %v5288, 16
      %v5393 = vshll.u32 %v5288, 16
      %v5395 = vrot.slane %v5393, 1
      %v5396 = vor.u32 %v5391, %v5395
      %v5398 = vshll.u32 %v5324, 16
      %v5400 = vrot.slane %v5398, 1
      %v5401 = vsel %vm909, %v5396, %v5400
      %v5402 = vshrl.u32 %v5324, 16
      %v5404 = vor.u32 %v5402, %v5400
      %v5406 = vshrl.u32 %v5290, 16
      %v5408 = vshll.u32 %v5290, 16
      %v5410 = vrot.slane %v5408, 1
      %v5411 = vor.u32 %v5406, %v5410
      %v5413 = vshll.u32 %v5325, 16
      %v5415 = vrot.slane %v5413, 1
      %v5416 = vsel %vm909, %v5411, %v5415
      %v5417 = vshrl.u32 %v5325, 16
      %v5419 = vor.u32 %v5417, %v5415
      %v5421 = vshrl.u32 %v5292, 16
      %v5423 = vshll.u32 %v5292, 16
      %v5425 = vrot.slane %v5423, 1
      %v5426 = vor.u32 %v5421, %v5425
      %v5428 = vshll.u32 %v5326, 16
      %v5430 = vrot.slane %v5428, 1
      %v5431 = vsel %vm909, %v5426, %v5430
      %v5432 = vshrl.u32 %v5326, 16
      %v5434 = vor.u32 %v5432, %v5430
      %v5436 = vshrl.u32 %v5294, 16
      %v5438 = vshll.u32 %v5294, 16
      %v5440 = vrot.slane %v5438, 1
      %v5441 = vor.u32 %v5436, %v5440
      %v5443 = vshll.u32 %v5327, 16
      %v5445 = vrot.slane %v5443, 1
      %v5446 = vsel %vm909, %v5441, %v5445
      %v5447 = vshrl.u32 %v5327, 16
      %v5449 = vor.u32 %v5447, %v5445
      %v5451 = vshrl.u32 %v5296, 16
      %v5453 = vshll.u32 %v5296, 16
      %v5455 = vrot.slane %v5453, 1
      %v5456 = vor.u32 %v5451, %v5455
      %v5458 = vshll.u32 %v5328, 16
      %v5460 = vrot.slane %v5458, 1
      %v5461 = vsel %vm909, %v5456, %v5460
      %v5462 = vshrl.u32 %v5328, 16
      %v5464 = vor.u32 %v5462, %v5460
      %v5466 = vshrl.u32 %v5298, 16
      %v5468 = vshll.u32 %v5298, 16
      %v5470 = vrot.slane %v5468, 1
      %v5471 = vor.u32 %v5466, %v5470
      %v5473 = vshll.u32 %v5329, 16
      %v5475 = vrot.slane %v5473, 1
      %v5476 = vsel %vm909, %v5471, %v5475
      %v5477 = vshrl.u32 %v5329, 16
      %v5479 = vor.u32 %v5477, %v5475
      %5480 = vrot.lane.b32.xlu0 %v5341, 48
      %v5481 = vpop.permute.xlu0 %5480
      %5482 = vrot.lane.b32.xlu0 %v5344, 48
      %v5483 = vpop.permute.xlu0 %5482
      %5484 = vrot.lane.b32.xlu0 %v5356, 48
      %v5485 = vpop.permute.xlu0 %5484
      %5486 = vrot.lane.b32.xlu0 %v5359, 48
      %v5487 = vpop.permute.xlu0 %5486
      %5488 = vrot.lane.b32.xlu0 %v5371, 48
      %v5489 = vpop.permute.xlu0 %5488
      %5490 = vrot.lane.b32.xlu0 %v5374, 48
      %v5491 = vpop.permute.xlu0 %5490
      %5492 = vrot.lane.b32.xlu0 %v5386, 48
      %v5493 = vpop.permute.xlu0 %5492
      %5494 = vrot.lane.b32.xlu0 %v5389, 48
      %v5495 = vpop.permute.xlu0 %5494
      %5496 = vrot.lane.b32.xlu0 %v5401, 48
      %v5497 = vpop.permute.xlu0 %5496
      %5498 = vrot.lane.b32.xlu0 %v5404, 48
      %v5499 = vpop.permute.xlu0 %5498
      %5500 = vrot.lane.b32.xlu0 %v5416, 48
      %v5501 = vpop.permute.xlu0 %5500
      %5502 = vrot.lane.b32.xlu0 %v5419, 48
      %v5503 = vpop.permute.xlu0 %5502
      %5504 = vrot.lane.b32.xlu0 %v5431, 48
      %v5505 = vpop.permute.xlu0 %5504
      %5506 = vrot.lane.b32.xlu0 %v5434, 48
      %v5507 = vpop.permute.xlu0 %5506
      %5508 = vrot.lane.b32.xlu0 %v5446, 48
      %v5509 = vpop.permute.xlu0 %5508
      %5510 = vrot.lane.b32.xlu0 %v5449, 48
      %v5511 = vpop.permute.xlu0 %5510
      %5512 = vrot.lane.b32.xlu0 %v5461, 48
      %v5513 = vpop.permute.xlu0 %5512
      %5514 = vrot.lane.b32.xlu0 %v5464, 48
      %v5515 = vpop.permute.xlu0 %5514
      %5516 = vrot.lane.b32.xlu0 %v5476, 48
      %v5517 = vpop.permute.xlu0 %5516
      %5518 = vrot.lane.b32.xlu0 %v5479, 48
      %v5519 = vpop.permute.xlu0 %5518
      %v5530 = vunpack.c.l.b16 %v5210
      %v5531 = vunpack.c.l.b16 %v5211
      %v5532 = vunpack.c.l.b16 %v5212
      %v5533 = vunpack.c.l.b16 %v5213
      %v5534 = vunpack.c.l.b16 %v5214
      %v5535 = vunpack.c.l.b16 %v5215
      %v5536 = vunpack.c.l.b16 %v5216
      %v5537 = vunpack.c.l.b16 %v5217
      %v5538 = vunpack.c.l.b16 %v5218
      %v5539 = vunpack.c.l.b16 %v5219
      %v5540 = vpack.c.b16 %v5251, %v5530
      %v5541 = vpack.c.b16 %v5254, %v5531
      %v5542 = vpack.c.b16 %v5257, %v5532
      %v5543 = vpack.c.b16 %v5260, %v5533
      %v5544 = vpack.c.b16 %v5263, %v5534
      %v5545 = vpack.c.b16 %v5266, %v5535
      %v5546 = vpack.c.b16 %v5269, %v5536
      %v5547 = vpack.c.b16 %v5272, %v5537
      %v5548 = vpack.c.b16 %v5275, %v5538
      %v5549 = vpack.c.b16 %v5278, %v5539
      %v5550 = vrot.slane %v5540, 1
      %v5551 = vrot.slane %v5320, 1
      %v5552 = vsel %vm1130, %v5550, %v5551
      %v5553 = vrot.slane %v5541, 1
      %v5554 = vrot.slane %v5321, 1
      %v5555 = vsel %vm1130, %v5553, %v5554
      %v5556 = vrot.slane %v5542, 1
      %v5557 = vrot.slane %v5322, 1
      %v5558 = vsel %vm1130, %v5556, %v5557
      %v5559 = vrot.slane %v5543, 1
      %v5560 = vrot.slane %v5323, 1
      %v5561 = vsel %vm1130, %v5559, %v5560
      %v5562 = vrot.slane %v5544, 1
      %v5563 = vrot.slane %v5324, 1
      %v5564 = vsel %vm1130, %v5562, %v5563
      %v5565 = vrot.slane %v5545, 1
      %v5566 = vrot.slane %v5325, 1
      %v5567 = vsel %vm1130, %v5565, %v5566
      %v5568 = vrot.slane %v5546, 1
      %v5569 = vrot.slane %v5326, 1
      %v5570 = vsel %vm1130, %v5568, %v5569
      %v5571 = vrot.slane %v5547, 1
      %v5572 = vrot.slane %v5327, 1
      %v5573 = vsel %vm1130, %v5571, %v5572
      %v5574 = vrot.slane %v5548, 1
      %v5575 = vrot.slane %v5328, 1
      %v5576 = vsel %vm1130, %v5574, %v5575
      %v5577 = vrot.slane %v5549, 1
      %v5578 = vrot.slane %v5329, 1
      %v5579 = vsel %vm1130, %v5577, %v5578
      %5580 = vrot.lane.b32.xlu0 %v5552, 96
      %v5581 = vpop.permute.xlu0 %5580
      %5582 = vrot.lane.b32.xlu0 %v5551, 96
      %v5583 = vpop.permute.xlu0 %5582
      %5584 = vrot.lane.b32.xlu0 %v5555, 96
      %v5585 = vpop.permute.xlu0 %5584
      %5586 = vrot.lane.b32.xlu0 %v5554, 96
      %v5587 = vpop.permute.xlu0 %5586
      %5588 = vrot.lane.b32.xlu0 %v5558, 96
      %v5589 = vpop.permute.xlu0 %5588
      %5590 = vrot.lane.b32.xlu0 %v5557, 96
      %v5591 = vpop.permute.xlu0 %5590
      %5592 = vrot.lane.b32.xlu0 %v5561, 96
      %v5593 = vpop.permute.xlu0 %5592
      %5594 = vrot.lane.b32.xlu0 %v5560, 96
      %v5595 = vpop.permute.xlu0 %5594
      %5596 = vrot.lane.b32.xlu0 %v5564, 96
      %v5597 = vpop.permute.xlu0 %5596
      %5598 = vrot.lane.b32.xlu0 %v5563, 96
      %v5599 = vpop.permute.xlu0 %5598
      %5600 = vrot.lane.b32.xlu0 %v5567, 96
      %v5601 = vpop.permute.xlu0 %5600
      %5602 = vrot.lane.b32.xlu0 %v5566, 96
      %v5603 = vpop.permute.xlu0 %5602
      %5604 = vrot.lane.b32.xlu0 %v5570, 96
      %v5605 = vpop.permute.xlu0 %5604
      %5606 = vrot.lane.b32.xlu0 %v5569, 96
      %v5607 = vpop.permute.xlu0 %5606
      %5608 = vrot.lane.b32.xlu0 %v5573, 96
      %v5609 = vpop.permute.xlu0 %5608
      %5610 = vrot.lane.b32.xlu0 %v5572, 96
      %v5611 = vpop.permute.xlu0 %5610
      %5612 = vrot.lane.b32.xlu0 %v5576, 96
      %v5613 = vpop.permute.xlu0 %5612
      %5614 = vrot.lane.b32.xlu0 %v5575, 96
      %v5615 = vpop.permute.xlu0 %5614
      %5616 = vrot.lane.b32.xlu0 %v5579, 96
      %v5617 = vpop.permute.xlu0 %5616
      %5618 = vrot.lane.b32.xlu0 %v5578, 96
      %v5619 = vpop.permute.xlu0 %5618
      %v5621 = vsel %vm1201, %v5280, %v5481
      %v5624 = vsel %vm1201, %v5281, %v5483
      %v5626 = vsel %vm1201, %v5282, %v5485
      %v5629 = vsel %vm1201, %v5283, %v5487
      %v5631 = vsel %vm1201, %v5284, %v5489
      %v5634 = vsel %vm1201, %v5285, %v5491
      %v5636 = vsel %vm1201, %v5286, %v5493
      %v5639 = vsel %vm1201, %v5287, %v5495
      %v5641 = vsel %vm1201, %v5288, %v5497
      %v5644 = vsel %vm1201, %v5289, %v5499
      %v5646 = vsel %vm1201, %v5290, %v5501
      %v5649 = vsel %vm1201, %v5291, %v5503
      %v5651 = vsel %vm1201, %v5292, %v5505
      %v5654 = vsel %vm1201, %v5293, %v5507
      %v5656 = vsel %vm1201, %v5294, %v5509
      %v5659 = vsel %vm1201, %v5295, %v5511
      %v5661 = vsel %vm1201, %v5296, %v5513
      %v5664 = vsel %vm1201, %v5297, %v5515
      %v5666 = vsel %vm1201, %v5298, %v5517
      %v5669 = vsel %vm1201, %v5299, %v5519
      %v5671 = vsel %vm1252, %v5621, %v5581
      %v5673 = vsel %vm1252, %v5624, %v5583
      %v5675 = vsel %vm1252, %v5626, %v5585
      %v5677 = vsel %vm1252, %v5629, %v5587
      %v5679 = vsel %vm1252, %v5631, %v5589
      %v5681 = vsel %vm1252, %v5634, %v5591
      %v5683 = vsel %vm1252, %v5636, %v5593
      %v5685 = vsel %vm1252, %v5639, %v5595
      %v5687 = vsel %vm1252, %v5641, %v5597
      %v5689 = vsel %vm1252, %v5644, %v5599
      %v5691 = vsel %vm1252, %v5646, %v5601
      %v5693 = vsel %vm1252, %v5649, %v5603
      %v5695 = vsel %vm1252, %v5651, %v5605
      %v5697 = vsel %vm1252, %v5654, %v5607
      %v5699 = vsel %vm1252, %v5656, %v5609
      %v5701 = vsel %vm1252, %v5659, %v5611
      %v5703 = vsel %vm1252, %v5661, %v5613
      %v5705 = vsel %vm1252, %v5664, %v5615
      %v5707 = vsel %vm1252, %v5666, %v5617
      %v5709 = vsel %vm1252, %v5669, %v5619
      %v5730 = vcombine.low %v5671, %v5581
      %v5731 = vcombine.high %v5671, %v5581
      %v5733 = vunpack.c.l.s4 1966171168
      %v5734 = vunpack.c.0.s8 %v5733
      %v5735 = vlaneseq
      %v5736 = vshrl.u32 %v5735, 7
      %v5737 = vsub.s32 %v5734, %v5736
      %v5738 = vrot.slane %v5730, %v5737
      %v5740 = vunpack.c.l.s4 1966171168
      %v5741 = vunpack.c.0.s8 %v5740
      %v5742 = vlaneseq
      %v5743 = vshrl.u32 %v5742, 7
      %v5744 = vsub.s32 %v5741, %v5743
      %v5745 = vrot.slane %v5731, %v5744
      %v5746 = vcombine.high %v5738, %v5738
      %v5747 = vcombine.high %v5745, %v5745
      %v5749 = vunpack.c.l.s4 1966171168
      %v5750 = vunpack.c.0.s8 %v5749
      %v5751 = vlaneseq
      %v5752 = vshrl.u32 %v5751, 7
      %v5753 = vsub.s32 %v5750, %v5752
      %v5754 = vrot.slane %v5738, %v5753
      %v5756 = vunpack.c.l.s4 1966171168
      %v5757 = vunpack.c.0.s8 %v5756
      %v5758 = vlaneseq
      %v5759 = vshrl.u32 %v5758, 7
      %v5760 = vsub.s32 %v5757, %v5759
      %v5761 = vrot.slane %v5745, %v5760
      %v5763 = vunpack.c.l.s4 1966171168
      %v5764 = vunpack.c.0.s8 %v5763
      %v5765 = vlaneseq
      %v5766 = vshrl.u32 %v5765, 7
      %v5767 = vsub.s32 %v5764, %v5766
      %v5768 = vrot.slane %v5746, %v5767
      %v5770 = vunpack.c.l.s4 1966171168
      %v5771 = vunpack.c.0.s8 %v5770
      %v5772 = vlaneseq
      %v5773 = vshrl.u32 %v5772, 7
      %v5774 = vsub.s32 %v5771, %v5773
      %v5775 = vrot.slane %v5747, %v5774
      %v5776 = vcombine.high %v5754, %v5754
      %v5777 = vcombine.high %v5761, %v5761
      %v5778 = vcombine.high %v5768, %v5768
      %v5779 = vcombine.high %v5775, %v5775
      %v5780 = vcombine.low %v5673, %v5583
      %v5782 = vunpack.c.l.s4 1966171168
      %v5783 = vunpack.c.0.s8 %v5782
      %v5784 = vlaneseq
      %v5785 = vshrl.u32 %v5784, 7
      %v5786 = vsub.s32 %v5783, %v5785
      %v5787 = vrot.slane %v5780, %v5786
      %v5789 = vunpack.c.l.s4 1966171168
      %v5790 = vunpack.c.0.s8 %v5789
      %v5791 = vlaneseq
      %v5792 = vshrl.u32 %v5791, 7
      %v5793 = vsub.s32 %v5790, %v5792
      %v5794 = vrot.slane %v5787, %v5793
      %v5795 = vcombine.low %v5675, %v5585
      %v5796 = vcombine.high %v5675, %v5585
      %v5798 = vunpack.c.l.s4 1966171168
      %v5799 = vunpack.c.0.s8 %v5798
      %v5800 = vlaneseq
      %v5801 = vshrl.u32 %v5800, 7
      %v5802 = vsub.s32 %v5799, %v5801
      %v5803 = vrot.slane %v5795, %v5802
      %v5805 = vunpack.c.l.s4 1966171168
      %v5806 = vunpack.c.0.s8 %v5805
      %v5807 = vlaneseq
      %v5808 = vshrl.u32 %v5807, 7
      %v5809 = vsub.s32 %v5806, %v5808
      %v5810 = vrot.slane %v5796, %v5809
      %v5811 = vcombine.high %v5803, %v5803
      %v5812 = vcombine.high %v5810, %v5810
      %v5814 = vunpack.c.l.s4 1966171168
      %v5815 = vunpack.c.0.s8 %v5814
      %v5816 = vlaneseq
      %v5817 = vshrl.u32 %v5816, 7
      %v5818 = vsub.s32 %v5815, %v5817
      %v5819 = vrot.slane %v5803, %v5818
      %v5821 = vunpack.c.l.s4 1966171168
      %v5822 = vunpack.c.0.s8 %v5821
      %v5823 = vlaneseq
      %v5824 = vshrl.u32 %v5823, 7
      %v5825 = vsub.s32 %v5822, %v5824
      %v5826 = vrot.slane %v5810, %v5825
      %v5828 = vunpack.c.l.s4 1966171168
      %v5829 = vunpack.c.0.s8 %v5828
      %v5830 = vlaneseq
      %v5831 = vshrl.u32 %v5830, 7
      %v5832 = vsub.s32 %v5829, %v5831
      %v5833 = vrot.slane %v5811, %v5832
      %v5835 = vunpack.c.l.s4 1966171168
      %v5836 = vunpack.c.0.s8 %v5835
      %v5837 = vlaneseq
      %v5838 = vshrl.u32 %v5837, 7
      %v5839 = vsub.s32 %v5836, %v5838
      %v5840 = vrot.slane %v5812, %v5839
      %v5841 = vcombine.high %v5819, %v5819
      %v5842 = vcombine.high %v5826, %v5826
      %v5843 = vcombine.high %v5833, %v5833
      %v5844 = vcombine.high %v5840, %v5840
      %v5845 = vcombine.low %v5677, %v5587
      %v5847 = vunpack.c.l.s4 1966171168
      %v5848 = vunpack.c.0.s8 %v5847
      %v5849 = vlaneseq
      %v5850 = vshrl.u32 %v5849, 7
      %v5851 = vsub.s32 %v5848, %v5850
      %v5852 = vrot.slane %v5845, %v5851
      %v5854 = vunpack.c.l.s4 1966171168
      %v5855 = vunpack.c.0.s8 %v5854
      %v5856 = vlaneseq
      %v5857 = vshrl.u32 %v5856, 7
      %v5858 = vsub.s32 %v5855, %v5857
      %v5859 = vrot.slane %v5852, %v5858
      %v5860 = vcombine.low %v5679, %v5589
      %v5861 = vcombine.high %v5679, %v5589
      %v5863 = vunpack.c.l.s4 1966171168
      %v5864 = vunpack.c.0.s8 %v5863
      %v5865 = vlaneseq
      %v5866 = vshrl.u32 %v5865, 7
      %v5867 = vsub.s32 %v5864, %v5866
      %v5868 = vrot.slane %v5860, %v5867
      %v5870 = vunpack.c.l.s4 1966171168
      %v5871 = vunpack.c.0.s8 %v5870
      %v5872 = vlaneseq
      %v5873 = vshrl.u32 %v5872, 7
      %v5874 = vsub.s32 %v5871, %v5873
      %v5875 = vrot.slane %v5861, %v5874
      %v5876 = vcombine.high %v5868, %v5868
      %v5877 = vcombine.high %v5875, %v5875
      %v5879 = vunpack.c.l.s4 1966171168
      %v5880 = vunpack.c.0.s8 %v5879
      %v5881 = vlaneseq
      %v5882 = vshrl.u32 %v5881, 7
      %v5883 = vsub.s32 %v5880, %v5882
      %v5884 = vrot.slane %v5868, %v5883
      %v5886 = vunpack.c.l.s4 1966171168
      %v5887 = vunpack.c.0.s8 %v5886
      %v5888 = vlaneseq
      %v5889 = vshrl.u32 %v5888, 7
      %v5890 = vsub.s32 %v5887, %v5889
      %v5891 = vrot.slane %v5875, %v5890
      %v5893 = vunpack.c.l.s4 1966171168
      %v5894 = vunpack.c.0.s8 %v5893
      %v5895 = vlaneseq
      %v5896 = vshrl.u32 %v5895, 7
      %v5897 = vsub.s32 %v5894, %v5896
      %v5898 = vrot.slane %v5876, %v5897
      %v5900 = vunpack.c.l.s4 1966171168
      %v5901 = vunpack.c.0.s8 %v5900
      %v5902 = vlaneseq
      %v5903 = vshrl.u32 %v5902, 7
      %v5904 = vsub.s32 %v5901, %v5903
      %v5905 = vrot.slane %v5877, %v5904
      %v5906 = vcombine.high %v5884, %v5884
      %v5907 = vcombine.high %v5891, %v5891
      %v5908 = vcombine.high %v5898, %v5898
      %v5909 = vcombine.high %v5905, %v5905
      %v5910 = vcombine.low %v5681, %v5591
      %v5912 = vunpack.c.l.s4 1966171168
      %v5913 = vunpack.c.0.s8 %v5912
      %v5914 = vlaneseq
      %v5915 = vshrl.u32 %v5914, 7
      %v5916 = vsub.s32 %v5913, %v5915
      %v5917 = vrot.slane %v5910, %v5916
      %v5919 = vunpack.c.l.s4 1966171168
      %v5920 = vunpack.c.0.s8 %v5919
      %v5921 = vlaneseq
      %v5922 = vshrl.u32 %v5921, 7
      %v5923 = vsub.s32 %v5920, %v5922
      %v5924 = vrot.slane %v5917, %v5923
      %v5925 = vcombine.low %v5683, %v5593
      %v5926 = vcombine.high %v5683, %v5593
      %v5928 = vunpack.c.l.s4 1966171168
      %v5929 = vunpack.c.0.s8 %v5928
      %v5930 = vlaneseq
      %v5931 = vshrl.u32 %v5930, 7
      %v5932 = vsub.s32 %v5929, %v5931
      %v5933 = vrot.slane %v5925, %v5932
      %v5935 = vunpack.c.l.s4 1966171168
      %v5936 = vunpack.c.0.s8 %v5935
      %v5937 = vlaneseq
      %v5938 = vshrl.u32 %v5937, 7
      %v5939 = vsub.s32 %v5936, %v5938
      %v5940 = vrot.slane %v5926, %v5939
      %v5941 = vcombine.high %v5933, %v5933
      %v5942 = vcombine.high %v5940, %v5940
      %v5944 = vunpack.c.l.s4 1966171168
      %v5945 = vunpack.c.0.s8 %v5944
      %v5946 = vlaneseq
      %v5947 = vshrl.u32 %v5946, 7
      %v5948 = vsub.s32 %v5945, %v5947
      %v5949 = vrot.slane %v5933, %v5948
      %v5951 = vunpack.c.l.s4 1966171168
      %v5952 = vunpack.c.0.s8 %v5951
      %v5953 = vlaneseq
      %v5954 = vshrl.u32 %v5953, 7
      %v5955 = vsub.s32 %v5952, %v5954
      %v5956 = vrot.slane %v5940, %v5955
      %v5958 = vunpack.c.l.s4 1966171168
      %v5959 = vunpack.c.0.s8 %v5958
      %v5960 = vlaneseq
      %v5961 = vshrl.u32 %v5960, 7
      %v5962 = vsub.s32 %v5959, %v5961
      %v5963 = vrot.slane %v5941, %v5962
      %v5965 = vunpack.c.l.s4 1966171168
      %v5966 = vunpack.c.0.s8 %v5965
      %v5967 = vlaneseq
      %v5968 = vshrl.u32 %v5967, 7
      %v5969 = vsub.s32 %v5966, %v5968
      %v5970 = vrot.slane %v5942, %v5969
      %v5971 = vcombine.high %v5949, %v5949
      %v5972 = vcombine.high %v5956, %v5956
      %v5973 = vcombine.high %v5963, %v5963
      %v5974 = vcombine.high %v5970, %v5970
      %v5975 = vcombine.low %v5685, %v5595
      %v5977 = vunpack.c.l.s4 1966171168
      %v5978 = vunpack.c.0.s8 %v5977
      %v5979 = vlaneseq
      %v5980 = vshrl.u32 %v5979, 7
      %v5981 = vsub.s32 %v5978, %v5980
      %v5982 = vrot.slane %v5975, %v5981
      %v5984 = vunpack.c.l.s4 1966171168
      %v5985 = vunpack.c.0.s8 %v5984
      %v5986 = vlaneseq
      %v5987 = vshrl.u32 %v5986, 7
      %v5988 = vsub.s32 %v5985, %v5987
      %v5989 = vrot.slane %v5982, %v5988
      %v5990 = vcombine.low %v5687, %v5597
      %v5991 = vcombine.high %v5687, %v5597
      %v5993 = vunpack.c.l.s4 1966171168
      %v5994 = vunpack.c.0.s8 %v5993
      %v5995 = vlaneseq
      %v5996 = vshrl.u32 %v5995, 7
      %v5997 = vsub.s32 %v5994, %v5996
      %v5998 = vrot.slane %v5990, %v5997
      %v6000 = vunpack.c.l.s4 1966171168
      %v6001 = vunpack.c.0.s8 %v6000
      %v6002 = vlaneseq
      %v6003 = vshrl.u32 %v6002, 7
      %v6004 = vsub.s32 %v6001, %v6003
      %v6005 = vrot.slane %v5991, %v6004
      %v6006 = vcombine.high %v5998, %v5998
      %v6007 = vcombine.high %v6005, %v6005
      %v6009 = vunpack.c.l.s4 1966171168
      %v6010 = vunpack.c.0.s8 %v6009
      %v6011 = vlaneseq
      %v6012 = vshrl.u32 %v6011, 7
      %v6013 = vsub.s32 %v6010, %v6012
      %v6014 = vrot.slane %v5998, %v6013
      %v6016 = vunpack.c.l.s4 1966171168
      %v6017 = vunpack.c.0.s8 %v6016
      %v6018 = vlaneseq
      %v6019 = vshrl.u32 %v6018, 7
      %v6020 = vsub.s32 %v6017, %v6019
      %v6021 = vrot.slane %v6005, %v6020
      %v6023 = vunpack.c.l.s4 1966171168
      %v6024 = vunpack.c.0.s8 %v6023
      %v6025 = vlaneseq
      %v6026 = vshrl.u32 %v6025, 7
      %v6027 = vsub.s32 %v6024, %v6026
      %v6028 = vrot.slane %v6006, %v6027
      %v6030 = vunpack.c.l.s4 1966171168
      %v6031 = vunpack.c.0.s8 %v6030
      %v6032 = vlaneseq
      %v6033 = vshrl.u32 %v6032, 7
      %v6034 = vsub.s32 %v6031, %v6033
      %v6035 = vrot.slane %v6007, %v6034
      %v6036 = vcombine.high %v6014, %v6014
      %v6037 = vcombine.high %v6021, %v6021
      %v6038 = vcombine.high %v6028, %v6028
      %v6039 = vcombine.high %v6035, %v6035
      %v6040 = vcombine.low %v5689, %v5599
      %v6042 = vunpack.c.l.s4 1966171168
      %v6043 = vunpack.c.0.s8 %v6042
      %v6044 = vlaneseq
      %v6045 = vshrl.u32 %v6044, 7
      %v6046 = vsub.s32 %v6043, %v6045
      %v6047 = vrot.slane %v6040, %v6046
      %v6049 = vunpack.c.l.s4 1966171168
      %v6050 = vunpack.c.0.s8 %v6049
      %v6051 = vlaneseq
      %v6052 = vshrl.u32 %v6051, 7
      %v6053 = vsub.s32 %v6050, %v6052
      %v6054 = vrot.slane %v6047, %v6053
      %v6055 = vcombine.low %v5691, %v5601
      %v6056 = vcombine.high %v5691, %v5601
      %v6058 = vunpack.c.l.s4 1966171168
      %v6059 = vunpack.c.0.s8 %v6058
      %v6060 = vlaneseq
      %v6061 = vshrl.u32 %v6060, 7
      %v6062 = vsub.s32 %v6059, %v6061
      %v6063 = vrot.slane %v6055, %v6062
      %v6065 = vunpack.c.l.s4 1966171168
      %v6066 = vunpack.c.0.s8 %v6065
      %v6067 = vlaneseq
      %v6068 = vshrl.u32 %v6067, 7
      %v6069 = vsub.s32 %v6066, %v6068
      %v6070 = vrot.slane %v6056, %v6069
      %v6071 = vcombine.high %v6063, %v6063
      %v6072 = vcombine.high %v6070, %v6070
      %v6074 = vunpack.c.l.s4 1966171168
      %v6075 = vunpack.c.0.s8 %v6074
      %v6076 = vlaneseq
      %v6077 = vshrl.u32 %v6076, 7
      %v6078 = vsub.s32 %v6075, %v6077
      %v6079 = vrot.slane %v6063, %v6078
      %v6081 = vunpack.c.l.s4 1966171168
      %v6082 = vunpack.c.0.s8 %v6081
      %v6083 = vlaneseq
      %v6084 = vshrl.u32 %v6083, 7
      %v6085 = vsub.s32 %v6082, %v6084
      %v6086 = vrot.slane %v6070, %v6085
      %v6088 = vunpack.c.l.s4 1966171168
      %v6089 = vunpack.c.0.s8 %v6088
      %v6090 = vlaneseq
      %v6091 = vshrl.u32 %v6090, 7
      %v6092 = vsub.s32 %v6089, %v6091
      %v6093 = vrot.slane %v6071, %v6092
      %v6095 = vunpack.c.l.s4 1966171168
      %v6096 = vunpack.c.0.s8 %v6095
      %v6097 = vlaneseq
      %v6098 = vshrl.u32 %v6097, 7
      %v6099 = vsub.s32 %v6096, %v6098
      %v6100 = vrot.slane %v6072, %v6099
      %v6101 = vcombine.high %v6079, %v6079
      %v6102 = vcombine.high %v6086, %v6086
      %v6103 = vcombine.high %v6093, %v6093
      %v6104 = vcombine.high %v6100, %v6100
      %v6105 = vcombine.low %v5693, %v5603
      %v6107 = vunpack.c.l.s4 1966171168
      %v6108 = vunpack.c.0.s8 %v6107
      %v6109 = vlaneseq
      %v6110 = vshrl.u32 %v6109, 7
      %v6111 = vsub.s32 %v6108, %v6110
      %v6112 = vrot.slane %v6105, %v6111
      %v6114 = vunpack.c.l.s4 1966171168
      %v6115 = vunpack.c.0.s8 %v6114
      %v6116 = vlaneseq
      %v6117 = vshrl.u32 %v6116, 7
      %v6118 = vsub.s32 %v6115, %v6117
      %v6119 = vrot.slane %v6112, %v6118
      %v6120 = vcombine.low %v5695, %v5605
      %v6121 = vcombine.high %v5695, %v5605
      %v6123 = vunpack.c.l.s4 1966171168
      %v6124 = vunpack.c.0.s8 %v6123
      %v6125 = vlaneseq
      %v6126 = vshrl.u32 %v6125, 7
      %v6127 = vsub.s32 %v6124, %v6126
      %v6128 = vrot.slane %v6120, %v6127
      %v6130 = vunpack.c.l.s4 1966171168
      %v6131 = vunpack.c.0.s8 %v6130
      %v6132 = vlaneseq
      %v6133 = vshrl.u32 %v6132, 7
      %v6134 = vsub.s32 %v6131, %v6133
      %v6135 = vrot.slane %v6121, %v6134
      %v6136 = vcombine.high %v6128, %v6128
      %v6137 = vcombine.high %v6135, %v6135
      %v6139 = vunpack.c.l.s4 1966171168
      %v6140 = vunpack.c.0.s8 %v6139
      %v6141 = vlaneseq
      %v6142 = vshrl.u32 %v6141, 7
      %v6143 = vsub.s32 %v6140, %v6142
      %v6144 = vrot.slane %v6128, %v6143
      %v6146 = vunpack.c.l.s4 1966171168
      %v6147 = vunpack.c.0.s8 %v6146
      %v6148 = vlaneseq
      %v6149 = vshrl.u32 %v6148, 7
      %v6150 = vsub.s32 %v6147, %v6149
      %v6151 = vrot.slane %v6135, %v6150
      %v6153 = vunpack.c.l.s4 1966171168
      %v6154 = vunpack.c.0.s8 %v6153
      %v6155 = vlaneseq
      %v6156 = vshrl.u32 %v6155, 7
      %v6157 = vsub.s32 %v6154, %v6156
      %v6158 = vrot.slane %v6136, %v6157
      %v6160 = vunpack.c.l.s4 1966171168
      %v6161 = vunpack.c.0.s8 %v6160
      %v6162 = vlaneseq
      %v6163 = vshrl.u32 %v6162, 7
      %v6164 = vsub.s32 %v6161, %v6163
      %v6165 = vrot.slane %v6137, %v6164
      %v6166 = vcombine.high %v6144, %v6144
      %v6167 = vcombine.high %v6151, %v6151
      %v6168 = vcombine.high %v6158, %v6158
      %v6169 = vcombine.high %v6165, %v6165
      %v6170 = vcombine.low %v5697, %v5607
      %v6172 = vunpack.c.l.s4 1966171168
      %v6173 = vunpack.c.0.s8 %v6172
      %v6174 = vlaneseq
      %v6175 = vshrl.u32 %v6174, 7
      %v6176 = vsub.s32 %v6173, %v6175
      %v6177 = vrot.slane %v6170, %v6176
      %v6179 = vunpack.c.l.s4 1966171168
      %v6180 = vunpack.c.0.s8 %v6179
      %v6181 = vlaneseq
      %v6182 = vshrl.u32 %v6181, 7
      %v6183 = vsub.s32 %v6180, %v6182
      %v6184 = vrot.slane %v6177, %v6183
      %v6185 = vcombine.low %v5699, %v5609
      %v6186 = vcombine.high %v5699, %v5609
      %v6188 = vunpack.c.l.s4 1966171168
      %v6189 = vunpack.c.0.s8 %v6188
      %v6190 = vlaneseq
      %v6191 = vshrl.u32 %v6190, 7
      %v6192 = vsub.s32 %v6189, %v6191
      %v6193 = vrot.slane %v6185, %v6192
      %v6195 = vunpack.c.l.s4 1966171168
      %v6196 = vunpack.c.0.s8 %v6195
      %v6197 = vlaneseq
      %v6198 = vshrl.u32 %v6197, 7
      %v6199 = vsub.s32 %v6196, %v6198
      %v6200 = vrot.slane %v6186, %v6199
      %v6201 = vcombine.high %v6193, %v6193
      %v6202 = vcombine.high %v6200, %v6200
      %v6204 = vunpack.c.l.s4 1966171168
      %v6205 = vunpack.c.0.s8 %v6204
      %v6206 = vlaneseq
      %v6207 = vshrl.u32 %v6206, 7
      %v6208 = vsub.s32 %v6205, %v6207
      %v6209 = vrot.slane %v6193, %v6208
      %v6211 = vunpack.c.l.s4 1966171168
      %v6212 = vunpack.c.0.s8 %v6211
      %v6213 = vlaneseq
      %v6214 = vshrl.u32 %v6213, 7
      %v6215 = vsub.s32 %v6212, %v6214
      %v6216 = vrot.slane %v6200, %v6215
      %v6218 = vunpack.c.l.s4 1966171168
      %v6219 = vunpack.c.0.s8 %v6218
      %v6220 = vlaneseq
      %v6221 = vshrl.u32 %v6220, 7
      %v6222 = vsub.s32 %v6219, %v6221
      %v6223 = vrot.slane %v6201, %v6222
      %v6225 = vunpack.c.l.s4 1966171168
      %v6226 = vunpack.c.0.s8 %v6225
      %v6227 = vlaneseq
      %v6228 = vshrl.u32 %v6227, 7
      %v6229 = vsub.s32 %v6226, %v6228
      %v6230 = vrot.slane %v6202, %v6229
      %v6231 = vcombine.high %v6209, %v6209
      %v6232 = vcombine.high %v6216, %v6216
      %v6233 = vcombine.high %v6223, %v6223
      %v6234 = vcombine.high %v6230, %v6230
      %v6235 = vcombine.low %v5701, %v5611
      %v6237 = vunpack.c.l.s4 1966171168
      %v6238 = vunpack.c.0.s8 %v6237
      %v6239 = vlaneseq
      %v6240 = vshrl.u32 %v6239, 7
      %v6241 = vsub.s32 %v6238, %v6240
      %v6242 = vrot.slane %v6235, %v6241
      %v6244 = vunpack.c.l.s4 1966171168
      %v6245 = vunpack.c.0.s8 %v6244
      %v6246 = vlaneseq
      %v6247 = vshrl.u32 %v6246, 7
      %v6248 = vsub.s32 %v6245, %v6247
      %v6249 = vrot.slane %v6242, %v6248
      %v6250 = vcombine.low %v5703, %v5613
      %v6251 = vcombine.high %v5703, %v5613
      %v6253 = vunpack.c.l.s4 1966171168
      %v6254 = vunpack.c.0.s8 %v6253
      %v6255 = vlaneseq
      %v6256 = vshrl.u32 %v6255, 7
      %v6257 = vsub.s32 %v6254, %v6256
      %v6258 = vrot.slane %v6250, %v6257
      %v6260 = vunpack.c.l.s4 1966171168
      %v6261 = vunpack.c.0.s8 %v6260
      %v6262 = vlaneseq
      %v6263 = vshrl.u32 %v6262, 7
      %v6264 = vsub.s32 %v6261, %v6263
      %v6265 = vrot.slane %v6251, %v6264
      %v6266 = vcombine.high %v6258, %v6258
      %v6267 = vcombine.high %v6265, %v6265
      %v6269 = vunpack.c.l.s4 1966171168
      %v6270 = vunpack.c.0.s8 %v6269
      %v6271 = vlaneseq
      %v6272 = vshrl.u32 %v6271, 7
      %v6273 = vsub.s32 %v6270, %v6272
      %v6274 = vrot.slane %v6258, %v6273
      %v6276 = vunpack.c.l.s4 1966171168
      %v6277 = vunpack.c.0.s8 %v6276
      %v6278 = vlaneseq
      %v6279 = vshrl.u32 %v6278, 7
      %v6280 = vsub.s32 %v6277, %v6279
      %v6281 = vrot.slane %v6265, %v6280
      %v6283 = vunpack.c.l.s4 1966171168
      %v6284 = vunpack.c.0.s8 %v6283
      %v6285 = vlaneseq
      %v6286 = vshrl.u32 %v6285, 7
      %v6287 = vsub.s32 %v6284, %v6286
      %v6288 = vrot.slane %v6266, %v6287
      %v6290 = vunpack.c.l.s4 1966171168
      %v6291 = vunpack.c.0.s8 %v6290
      %v6292 = vlaneseq
      %v6293 = vshrl.u32 %v6292, 7
      %v6294 = vsub.s32 %v6291, %v6293
      %v6295 = vrot.slane %v6267, %v6294
      %v6296 = vcombine.high %v6274, %v6274
      %v6297 = vcombine.high %v6281, %v6281
      %v6298 = vcombine.high %v6288, %v6288
      %v6299 = vcombine.high %v6295, %v6295
      %v6300 = vcombine.low %v5705, %v5615
      %v6302 = vunpack.c.l.s4 1966171168
      %v6303 = vunpack.c.0.s8 %v6302
      %v6304 = vlaneseq
      %v6305 = vshrl.u32 %v6304, 7
      %v6306 = vsub.s32 %v6303, %v6305
      %v6307 = vrot.slane %v6300, %v6306
      %v6309 = vunpack.c.l.s4 1966171168
      %v6310 = vunpack.c.0.s8 %v6309
      %v6311 = vlaneseq
      %v6312 = vshrl.u32 %v6311, 7
      %v6313 = vsub.s32 %v6310, %v6312
      %v6314 = vrot.slane %v6307, %v6313
      %v6315 = vcombine.low %v5707, %v5617
      %v6316 = vcombine.high %v5707, %v5617
      %v6318 = vunpack.c.l.s4 1966171168
      %v6319 = vunpack.c.0.s8 %v6318
      %v6320 = vlaneseq
      %v6321 = vshrl.u32 %v6320, 7
      %v6322 = vsub.s32 %v6319, %v6321
      %v6323 = vrot.slane %v6315, %v6322
      %v6325 = vunpack.c.l.s4 1966171168
      %v6326 = vunpack.c.0.s8 %v6325
      %v6327 = vlaneseq
      %v6328 = vshrl.u32 %v6327, 7
      %v6329 = vsub.s32 %v6326, %v6328
      %v6330 = vrot.slane %v6316, %v6329
      %v6331 = vcombine.high %v6323, %v6323
      %v6332 = vcombine.high %v6330, %v6330
      %v6334 = vunpack.c.l.s4 1966171168
      %v6335 = vunpack.c.0.s8 %v6334
      %v6336 = vlaneseq
      %v6337 = vshrl.u32 %v6336, 7
      %v6338 = vsub.s32 %v6335, %v6337
      %v6339 = vrot.slane %v6323, %v6338
      %v6341 = vunpack.c.l.s4 1966171168
      %v6342 = vunpack.c.0.s8 %v6341
      %v6343 = vlaneseq
      %v6344 = vshrl.u32 %v6343, 7
      %v6345 = vsub.s32 %v6342, %v6344
      %v6346 = vrot.slane %v6330, %v6345
      %v6348 = vunpack.c.l.s4 1966171168
      %v6349 = vunpack.c.0.s8 %v6348
      %v6350 = vlaneseq
      %v6351 = vshrl.u32 %v6350, 7
      %v6352 = vsub.s32 %v6349, %v6351
      %v6353 = vrot.slane %v6331, %v6352
      %v6355 = vunpack.c.l.s4 1966171168
      %v6356 = vunpack.c.0.s8 %v6355
      %v6357 = vlaneseq
      %v6358 = vshrl.u32 %v6357, 7
      %v6359 = vsub.s32 %v6356, %v6358
      %v6360 = vrot.slane %v6332, %v6359
      %v6361 = vcombine.high %v6339, %v6339
      %v6362 = vcombine.high %v6346, %v6346
      %v6363 = vcombine.high %v6353, %v6353
      %v6364 = vcombine.high %v6360, %v6360
      %v6365 = vcombine.low %v5709, %v5619
      %v6367 = vunpack.c.l.s4 1966171168
      %v6368 = vunpack.c.0.s8 %v6367
      %v6369 = vlaneseq
      %v6370 = vshrl.u32 %v6369, 7
      %v6371 = vsub.s32 %v6368, %v6370
      %v6372 = vrot.slane %v6365, %v6371
      %v6374 = vunpack.c.l.s4 1966171168
      %v6375 = vunpack.c.0.s8 %v6374
      %v6376 = vlaneseq
      %v6377 = vshrl.u32 %v6376, 7
      %v6378 = vsub.s32 %v6375, %v6377
      %v6379 = vrot.slane %v6372, %v6378
      %s6380 = scalar_lea.vmem %s3, 144
      %v6381 = vld [vmem:[%s6380] sm:$0xf]
      %v6382 = vld [vmem:[%s6380 + $0x4] sm:$0xf]
      %v6383 = vld [vmem:[%s6380 + $0x8] sm:$0xf]
      %v6384 = vld [vmem:[%s6380 + $0xc] sm:$0xf]
      %v6385 = vld [vmem:[%s6380 + $0x10] sm:$0xf]
      %v6386 = vld [vmem:[%s6380 + $0x14] sm:$0xf]
      %v6387 = vld [vmem:[%s6380 + $0x18] sm:$0xf]
      %v6388 = vld [vmem:[%s6380 + $0x1c] sm:$0xf]
      %v6389 = vld [vmem:[%s6380 + $0x20] sm:$0xf]
      %v6390 = vld [vmem:[%s6380 + $0x24] sm:$0xf]
      %v6391 = vld [vmem:[%s6380 + $0x28] sm:$0xf]
      %v6392 = vld [vmem:[%s6380 + $0x2c] sm:$0xf]
      %v6393 = vld [vmem:[%s6380 + $0x30] sm:$0xf]
      %v6394 = vld [vmem:[%s6380 + $0x34] sm:$0xf]
      %v6395 = vld [vmem:[%s6380 + $0x38] sm:$0xf]
      %v6396 = vld [vmem:[%s6380 + $0x3c] sm:$0xf]
      %v6397 = vld [vmem:[%s6380 + $0x40] sm:$0xf]
      %v6398 = vld [vmem:[%s6380 + $0x44] sm:$0xf]
      %v6399 = vcombine.low %v5754, %v5768
      %v6400 = vcombine.low %v5776, %v5778
      %v6401 = vcombine.low %v5761, %v5775
      %v6402 = vcombine.low %v5777, %v5779
      %v6404 = vunpack.c.l.s4 1966171168
      %v6405 = vunpack.c.0.s8 %v6404
      %v6406 = vlaneseq
      %v6407 = vshrl.u32 %v6406, 7
      %v6408 = vsub.s32 %v6405, %v6407
      %v6409 = vrot.slane %v6399, %v6408
      %v6411 = vunpack.c.l.s4 1966171168
      %v6412 = vunpack.c.0.s8 %v6411
      %v6413 = vlaneseq
      %v6414 = vshrl.u32 %v6413, 7
      %v6415 = vsub.s32 %v6412, %v6414
      %v6416 = vrot.slane %v6400, %v6415
      %v6418 = vunpack.c.l.s4 1966171168
      %v6419 = vunpack.c.0.s8 %v6418
      %v6420 = vlaneseq
      %v6421 = vshrl.u32 %v6420, 7
      %v6422 = vsub.s32 %v6419, %v6421
      %v6423 = vrot.slane %v6401, %v6422
      %v6425 = vunpack.c.l.s4 1966171168
      %v6426 = vunpack.c.0.s8 %v6425
      %v6427 = vlaneseq
      %v6428 = vshrl.u32 %v6427, 7
      %v6429 = vsub.s32 %v6426, %v6428
      %v6430 = vrot.slane %v6402, %v6429
      %v6431 = vcombine.low %v6409, %v6416
      %v6432 = vcombine.high %v6409, %v6416
      %v6433 = vcombine.low %v6423, %v6430
      %v6434 = vcombine.high %v6423, %v6430
      %v6436 = vunpack.c.l.s4 1966171168
      %v6437 = vunpack.c.0.s8 %v6436
      %v6438 = vlaneseq
      %v6439 = vshrl.u32 %v6438, 7
      %v6440 = vsub.s32 %v6437, %v6439
      %v6441 = vrot.slane %v6431, %v6440
      %v6443 = vunpack.c.l.s4 1966171168
      %v6444 = vunpack.c.0.s8 %v6443
      %v6445 = vlaneseq
      %v6446 = vshrl.u32 %v6445, 7
      %v6447 = vsub.s32 %v6444, %v6446
      %v6448 = vrot.slane %v6432, %v6447
      %v6450 = vunpack.c.l.s4 1966171168
      %v6451 = vunpack.c.0.s8 %v6450
      %v6452 = vlaneseq
      %v6453 = vshrl.u32 %v6452, 7
      %v6454 = vsub.s32 %v6451, %v6453
      %v6455 = vrot.slane %v6433, %v6454
      %v6457 = vunpack.c.l.s4 1966171168
      %v6458 = vunpack.c.0.s8 %v6457
      %v6459 = vlaneseq
      %v6460 = vshrl.u32 %v6459, 7
      %v6461 = vsub.s32 %v6458, %v6460
      %v6462 = vrot.slane %v6434, %v6461
      %v6463 = vcombine.low %v6441, %v6455
      %v6464 = vcombine.low %v6448, %v6462
      %v6465 = vcombine.low %v5794, %v5819
      %v6466 = vcombine.low %v5833, %v5841
      %v6467 = vcombine.low %v5843, %v5826
      %v6468 = vcombine.low %v5840, %v5842
      %v6470 = vunpack.c.l.s4 1966171168
      %v6471 = vunpack.c.0.s8 %v6470
      %v6472 = vlaneseq
      %v6473 = vshrl.u32 %v6472, 7
      %v6474 = vsub.s32 %v6471, %v6473
      %v6475 = vrot.slane %v6465, %v6474
      %v6477 = vunpack.c.l.s4 1966171168
      %v6478 = vunpack.c.0.s8 %v6477
      %v6479 = vlaneseq
      %v6480 = vshrl.u32 %v6479, 7
      %v6481 = vsub.s32 %v6478, %v6480
      %v6482 = vrot.slane %v6466, %v6481
      %v6484 = vunpack.c.l.s4 1966171168
      %v6485 = vunpack.c.0.s8 %v6484
      %v6486 = vlaneseq
      %v6487 = vshrl.u32 %v6486, 7
      %v6488 = vsub.s32 %v6485, %v6487
      %v6489 = vrot.slane %v6467, %v6488
      %v6491 = vunpack.c.l.s4 1966171168
      %v6492 = vunpack.c.0.s8 %v6491
      %v6493 = vlaneseq
      %v6494 = vshrl.u32 %v6493, 7
      %v6495 = vsub.s32 %v6492, %v6494
      %v6496 = vrot.slane %v6468, %v6495
      %v6497 = vcombine.low %v6475, %v6482
      %v6498 = vcombine.high %v6475, %v6482
      %v6499 = vcombine.low %v6489, %v6496
      %v6500 = vcombine.high %v6489, %v6496
      %v6502 = vunpack.c.l.s4 1966171168
      %v6503 = vunpack.c.0.s8 %v6502
      %v6504 = vlaneseq
      %v6505 = vshrl.u32 %v6504, 7
      %v6506 = vsub.s32 %v6503, %v6505
      %v6507 = vrot.slane %v6497, %v6506
      %v6509 = vunpack.c.l.s4 1966171168
      %v6510 = vunpack.c.0.s8 %v6509
      %v6511 = vlaneseq
      %v6512 = vshrl.u32 %v6511, 7
      %v6513 = vsub.s32 %v6510, %v6512
      %v6514 = vrot.slane %v6498, %v6513
      %v6516 = vunpack.c.l.s4 1966171168
      %v6517 = vunpack.c.0.s8 %v6516
      %v6518 = vlaneseq
      %v6519 = vshrl.u32 %v6518, 7
      %v6520 = vsub.s32 %v6517, %v6519
      %v6521 = vrot.slane %v6499, %v6520
      %v6523 = vunpack.c.l.s4 1966171168
      %v6524 = vunpack.c.0.s8 %v6523
      %v6525 = vlaneseq
      %v6526 = vshrl.u32 %v6525, 7
      %v6527 = vsub.s32 %v6524, %v6526
      %v6528 = vrot.slane %v6500, %v6527
      %v6529 = vcombine.low %v6507, %v6521
      %v6530 = vcombine.low %v6514, %v6528
      %v6531 = vcombine.low %v5844, %v5859
      %v6532 = vcombine.low %v5884, %v5898
      %v6533 = vcombine.low %v5906, %v5908
      %v6534 = vcombine.low %v5891, %v5905
      %v6536 = vunpack.c.l.s4 1966171168
      %v6537 = vunpack.c.0.s8 %v6536
      %v6538 = vlaneseq
      %v6539 = vshrl.u32 %v6538, 7
      %v6540 = vsub.s32 %v6537, %v6539
      %v6541 = vrot.slane %v6531, %v6540
      %v6543 = vunpack.c.l.s4 1966171168
      %v6544 = vunpack.c.0.s8 %v6543
      %v6545 = vlaneseq
      %v6546 = vshrl.u32 %v6545, 7
      %v6547 = vsub.s32 %v6544, %v6546
      %v6548 = vrot.slane %v6532, %v6547
      %v6550 = vunpack.c.l.s4 1966171168
      %v6551 = vunpack.c.0.s8 %v6550
      %v6552 = vlaneseq
      %v6553 = vshrl.u32 %v6552, 7
      %v6554 = vsub.s32 %v6551, %v6553
      %v6555 = vrot.slane %v6533, %v6554
      %v6557 = vunpack.c.l.s4 1966171168
      %v6558 = vunpack.c.0.s8 %v6557
      %v6559 = vlaneseq
      %v6560 = vshrl.u32 %v6559, 7
      %v6561 = vsub.s32 %v6558, %v6560
      %v6562 = vrot.slane %v6534, %v6561
      %v6563 = vcombine.low %v6541, %v6548
      %v6564 = vcombine.high %v6541, %v6548
      %v6565 = vcombine.low %v6555, %v6562
      %v6566 = vcombine.high %v6555, %v6562
      %v6568 = vunpack.c.l.s4 1966171168
      %v6569 = vunpack.c.0.s8 %v6568
      %v6570 = vlaneseq
      %v6571 = vshrl.u32 %v6570, 7
      %v6572 = vsub.s32 %v6569, %v6571
      %v6573 = vrot.slane %v6563, %v6572
      %v6575 = vunpack.c.l.s4 1966171168
      %v6576 = vunpack.c.0.s8 %v6575
      %v6577 = vlaneseq
      %v6578 = vshrl.u32 %v6577, 7
      %v6579 = vsub.s32 %v6576, %v6578
      %v6580 = vrot.slane %v6564, %v6579
      %v6582 = vunpack.c.l.s4 1966171168
      %v6583 = vunpack.c.0.s8 %v6582
      %v6584 = vlaneseq
      %v6585 = vshrl.u32 %v6584, 7
      %v6586 = vsub.s32 %v6583, %v6585
      %v6587 = vrot.slane %v6565, %v6586
      %v6589 = vunpack.c.l.s4 1966171168
      %v6590 = vunpack.c.0.s8 %v6589
      %v6591 = vlaneseq
      %v6592 = vshrl.u32 %v6591, 7
      %v6593 = vsub.s32 %v6590, %v6592
      %v6594 = vrot.slane %v6566, %v6593
      %v6595 = vcombine.low %v6573, %v6587
      %v6596 = vcombine.low %v6580, %v6594
      %v6597 = vcombine.low %v5907, %v5909
      %v6598 = vcombine.low %v5924, %v5949
      %v6599 = vcombine.low %v5963, %v5971
      %v6600 = vcombine.low %v5973, %v5956
      %v6602 = vunpack.c.l.s4 1966171168
      %v6603 = vunpack.c.0.s8 %v6602
      %v6604 = vlaneseq
      %v6605 = vshrl.u32 %v6604, 7
      %v6606 = vsub.s32 %v6603, %v6605
      %v6607 = vrot.slane %v6597, %v6606
      %v6609 = vunpack.c.l.s4 1966171168
      %v6610 = vunpack.c.0.s8 %v6609
      %v6611 = vlaneseq
      %v6612 = vshrl.u32 %v6611, 7
      %v6613 = vsub.s32 %v6610, %v6612
      %v6614 = vrot.slane %v6598, %v6613
      %v6616 = vunpack.c.l.s4 1966171168
      %v6617 = vunpack.c.0.s8 %v6616
      %v6618 = vlaneseq
      %v6619 = vshrl.u32 %v6618, 7
      %v6620 = vsub.s32 %v6617, %v6619
      %v6621 = vrot.slane %v6599, %v6620
      %v6623 = vunpack.c.l.s4 1966171168
      %v6624 = vunpack.c.0.s8 %v6623
      %v6625 = vlaneseq
      %v6626 = vshrl.u32 %v6625, 7
      %v6627 = vsub.s32 %v6624, %v6626
      %v6628 = vrot.slane %v6600, %v6627
      %v6629 = vcombine.low %v6607, %v6614
      %v6630 = vcombine.high %v6607, %v6614
      %v6631 = vcombine.low %v6621, %v6628
      %v6632 = vcombine.high %v6621, %v6628
      %v6634 = vunpack.c.l.s4 1966171168
      %v6635 = vunpack.c.0.s8 %v6634
      %v6636 = vlaneseq
      %v6637 = vshrl.u32 %v6636, 7
      %v6638 = vsub.s32 %v6635, %v6637
      %v6639 = vrot.slane %v6629, %v6638
      %v6641 = vunpack.c.l.s4 1966171168
      %v6642 = vunpack.c.0.s8 %v6641
      %v6643 = vlaneseq
      %v6644 = vshrl.u32 %v6643, 7
      %v6645 = vsub.s32 %v6642, %v6644
      %v6646 = vrot.slane %v6630, %v6645
      %v6648 = vunpack.c.l.s4 1966171168
      %v6649 = vunpack.c.0.s8 %v6648
      %v6650 = vlaneseq
      %v6651 = vshrl.u32 %v6650, 7
      %v6652 = vsub.s32 %v6649, %v6651
      %v6653 = vrot.slane %v6631, %v6652
      %v6655 = vunpack.c.l.s4 1966171168
      %v6656 = vunpack.c.0.s8 %v6655
      %v6657 = vlaneseq
      %v6658 = vshrl.u32 %v6657, 7
      %v6659 = vsub.s32 %v6656, %v6658
      %v6660 = vrot.slane %v6632, %v6659
      %v6661 = vcombine.low %v6639, %v6653
      %v6662 = vcombine.low %v6646, %v6660
      %v6663 = vcombine.low %v5970, %v5972
      %v6664 = vcombine.low %v5974, %v5989
      %v6665 = vcombine.low %v6014, %v6028
      %v6666 = vcombine.low %v6036, %v6038
      %v6668 = vunpack.c.l.s4 1966171168
      %v6669 = vunpack.c.0.s8 %v6668
      %v6670 = vlaneseq
      %v6671 = vshrl.u32 %v6670, 7
      %v6672 = vsub.s32 %v6669, %v6671
      %v6673 = vrot.slane %v6663, %v6672
      %v6675 = vunpack.c.l.s4 1966171168
      %v6676 = vunpack.c.0.s8 %v6675
      %v6677 = vlaneseq
      %v6678 = vshrl.u32 %v6677, 7
      %v6679 = vsub.s32 %v6676, %v6678
      %v6680 = vrot.slane %v6664, %v6679
      %v6682 = vunpack.c.l.s4 1966171168
      %v6683 = vunpack.c.0.s8 %v6682
      %v6684 = vlaneseq
      %v6685 = vshrl.u32 %v6684, 7
      %v6686 = vsub.s32 %v6683, %v6685
      %v6687 = vrot.slane %v6665, %v6686
      %v6689 = vunpack.c.l.s4 1966171168
      %v6690 = vunpack.c.0.s8 %v6689
      %v6691 = vlaneseq
      %v6692 = vshrl.u32 %v6691, 7
      %v6693 = vsub.s32 %v6690, %v6692
      %v6694 = vrot.slane %v6666, %v6693
      %v6695 = vcombine.low %v6673, %v6680
      %v6696 = vcombine.high %v6673, %v6680
      %v6697 = vcombine.low %v6687, %v6694
      %v6698 = vcombine.high %v6687, %v6694
      %v6700 = vunpack.c.l.s4 1966171168
      %v6701 = vunpack.c.0.s8 %v6700
      %v6702 = vlaneseq
      %v6703 = vshrl.u32 %v6702, 7
      %v6704 = vsub.s32 %v6701, %v6703
      %v6705 = vrot.slane %v6695, %v6704
      %v6707 = vunpack.c.l.s4 1966171168
      %v6708 = vunpack.c.0.s8 %v6707
      %v6709 = vlaneseq
      %v6710 = vshrl.u32 %v6709, 7
      %v6711 = vsub.s32 %v6708, %v6710
      %v6712 = vrot.slane %v6696, %v6711
      %v6714 = vunpack.c.l.s4 1966171168
      %v6715 = vunpack.c.0.s8 %v6714
      %v6716 = vlaneseq
      %v6717 = vshrl.u32 %v6716, 7
      %v6718 = vsub.s32 %v6715, %v6717
      %v6719 = vrot.slane %v6697, %v6718
      %v6721 = vunpack.c.l.s4 1966171168
      %v6722 = vunpack.c.0.s8 %v6721
      %v6723 = vlaneseq
      %v6724 = vshrl.u32 %v6723, 7
      %v6725 = vsub.s32 %v6722, %v6724
      %v6726 = vrot.slane %v6698, %v6725
      %v6727 = vcombine.low %v6705, %v6719
      %v6728 = vcombine.low %v6712, %v6726
      %v6729 = vcombine.low %v6021, %v6035
      %v6730 = vcombine.low %v6037, %v6039
      %v6731 = vcombine.low %v6054, %v6079
      %v6732 = vcombine.low %v6093, %v6101
      %v6734 = vunpack.c.l.s4 1966171168
      %v6735 = vunpack.c.0.s8 %v6734
      %v6736 = vlaneseq
      %v6737 = vshrl.u32 %v6736, 7
      %v6738 = vsub.s32 %v6735, %v6737
      %v6739 = vrot.slane %v6729, %v6738
      %v6741 = vunpack.c.l.s4 1966171168
      %v6742 = vunpack.c.0.s8 %v6741
      %v6743 = vlaneseq
      %v6744 = vshrl.u32 %v6743, 7
      %v6745 = vsub.s32 %v6742, %v6744
      %v6746 = vrot.slane %v6730, %v6745
      %v6748 = vunpack.c.l.s4 1966171168
      %v6749 = vunpack.c.0.s8 %v6748
      %v6750 = vlaneseq
      %v6751 = vshrl.u32 %v6750, 7
      %v6752 = vsub.s32 %v6749, %v6751
      %v6753 = vrot.slane %v6731, %v6752
      %v6755 = vunpack.c.l.s4 1966171168
      %v6756 = vunpack.c.0.s8 %v6755
      %v6757 = vlaneseq
      %v6758 = vshrl.u32 %v6757, 7
      %v6759 = vsub.s32 %v6756, %v6758
      %v6760 = vrot.slane %v6732, %v6759
      %v6761 = vcombine.low %v6739, %v6746
      %v6762 = vcombine.high %v6739, %v6746
      %v6763 = vcombine.low %v6753, %v6760
      %v6764 = vcombine.high %v6753, %v6760
      %v6766 = vunpack.c.l.s4 1966171168
      %v6767 = vunpack.c.0.s8 %v6766
      %v6768 = vlaneseq
      %v6769 = vshrl.u32 %v6768, 7
      %v6770 = vsub.s32 %v6767, %v6769
      %v6771 = vrot.slane %v6761, %v6770
      %v6773 = vunpack.c.l.s4 1966171168
      %v6774 = vunpack.c.0.s8 %v6773
      %v6775 = vlaneseq
      %v6776 = vshrl.u32 %v6775, 7
      %v6777 = vsub.s32 %v6774, %v6776
      %v6778 = vrot.slane %v6762, %v6777
      %v6780 = vunpack.c.l.s4 1966171168
      %v6781 = vunpack.c.0.s8 %v6780
      %v6782 = vlaneseq
      %v6783 = vshrl.u32 %v6782, 7
      %v6784 = vsub.s32 %v6781, %v6783
      %v6785 = vrot.slane %v6763, %v6784
      %v6787 = vunpack.c.l.s4 1966171168
      %v6788 = vunpack.c.0.s8 %v6787
      %v6789 = vlaneseq
      %v6790 = vshrl.u32 %v6789, 7
      %v6791 = vsub.s32 %v6788, %v6790
      %v6792 = vrot.slane %v6764, %v6791
      %v6793 = vcombine.low %v6771, %v6785
      %v6794 = vcombine.low %v6778, %v6792
      %v6795 = vcombine.low %v6103, %v6086
      %v6796 = vcombine.low %v6100, %v6102
      %v6797 = vcombine.low %v6104, %v6119
      %v6798 = vcombine.low %v6144, %v6158
      %v6800 = vunpack.c.l.s4 1966171168
      %v6801 = vunpack.c.0.s8 %v6800
      %v6802 = vlaneseq
      %v6803 = vshrl.u32 %v6802, 7
      %v6804 = vsub.s32 %v6801, %v6803
      %v6805 = vrot.slane %v6795, %v6804
      %v6807 = vunpack.c.l.s4 1966171168
      %v6808 = vunpack.c.0.s8 %v6807
      %v6809 = vlaneseq
      %v6810 = vshrl.u32 %v6809, 7
      %v6811 = vsub.s32 %v6808, %v6810
      %v6812 = vrot.slane %v6796, %v6811
      %v6814 = vunpack.c.l.s4 1966171168
      %v6815 = vunpack.c.0.s8 %v6814
      %v6816 = vlaneseq
      %v6817 = vshrl.u32 %v6816, 7
      %v6818 = vsub.s32 %v6815, %v6817
      %v6819 = vrot.slane %v6797, %v6818
      %v6821 = vunpack.c.l.s4 1966171168
      %v6822 = vunpack.c.0.s8 %v6821
      %v6823 = vlaneseq
      %v6824 = vshrl.u32 %v6823, 7
      %v6825 = vsub.s32 %v6822, %v6824
      %v6826 = vrot.slane %v6798, %v6825
      %v6827 = vcombine.low %v6805, %v6812
      %v6828 = vcombine.high %v6805, %v6812
      %v6829 = vcombine.low %v6819, %v6826
      %v6830 = vcombine.high %v6819, %v6826
      %v6832 = vunpack.c.l.s4 1966171168
      %v6833 = vunpack.c.0.s8 %v6832
      %v6834 = vlaneseq
      %v6835 = vshrl.u32 %v6834, 7
      %v6836 = vsub.s32 %v6833, %v6835
      %v6837 = vrot.slane %v6827, %v6836
      %v6839 = vunpack.c.l.s4 1966171168
      %v6840 = vunpack.c.0.s8 %v6839
      %v6841 = vlaneseq
      %v6842 = vshrl.u32 %v6841, 7
      %v6843 = vsub.s32 %v6840, %v6842
      %v6844 = vrot.slane %v6828, %v6843
      %v6846 = vunpack.c.l.s4 1966171168
      %v6847 = vunpack.c.0.s8 %v6846
      %v6848 = vlaneseq
      %v6849 = vshrl.u32 %v6848, 7
      %v6850 = vsub.s32 %v6847, %v6849
      %v6851 = vrot.slane %v6829, %v6850
      %v6853 = vunpack.c.l.s4 1966171168
      %v6854 = vunpack.c.0.s8 %v6853
      %v6855 = vlaneseq
      %v6856 = vshrl.u32 %v6855, 7
      %v6857 = vsub.s32 %v6854, %v6856
      %v6858 = vrot.slane %v6830, %v6857
      %v6859 = vcombine.low %v6837, %v6851
      %v6860 = vcombine.low %v6844, %v6858
      %v6861 = vcombine.low %v6166, %v6168
      %v6862 = vcombine.low %v6151, %v6165
      %v6863 = vcombine.low %v6167, %v6169
      %v6864 = vcombine.low %v6184, %v6209
      %v6866 = vunpack.c.l.s4 1966171168
      %v6867 = vunpack.c.0.s8 %v6866
      %v6868 = vlaneseq
      %v6869 = vshrl.u32 %v6868, 7
      %v6870 = vsub.s32 %v6867, %v6869
      %v6871 = vrot.slane %v6861, %v6870
      %v6873 = vunpack.c.l.s4 1966171168
      %v6874 = vunpack.c.0.s8 %v6873
      %v6875 = vlaneseq
      %v6876 = vshrl.u32 %v6875, 7
      %v6877 = vsub.s32 %v6874, %v6876
      %v6878 = vrot.slane %v6862, %v6877
      %v6880 = vunpack.c.l.s4 1966171168
      %v6881 = vunpack.c.0.s8 %v6880
      %v6882 = vlaneseq
      %v6883 = vshrl.u32 %v6882, 7
      %v6884 = vsub.s32 %v6881, %v6883
      %v6885 = vrot.slane %v6863, %v6884
      %v6887 = vunpack.c.l.s4 1966171168
      %v6888 = vunpack.c.0.s8 %v6887
      %v6889 = vlaneseq
      %v6890 = vshrl.u32 %v6889, 7
      %v6891 = vsub.s32 %v6888, %v6890
      %v6892 = vrot.slane %v6864, %v6891
      %v6893 = vcombine.low %v6871, %v6878
      %v6894 = vcombine.high %v6871, %v6878
      %v6895 = vcombine.low %v6885, %v6892
      %v6896 = vcombine.high %v6885, %v6892
      %v6898 = vunpack.c.l.s4 1966171168
      %v6899 = vunpack.c.0.s8 %v6898
      %v6900 = vlaneseq
      %v6901 = vshrl.u32 %v6900, 7
      %v6902 = vsub.s32 %v6899, %v6901
      %v6903 = vrot.slane %v6893, %v6902
      %v6905 = vunpack.c.l.s4 1966171168
      %v6906 = vunpack.c.0.s8 %v6905
      %v6907 = vlaneseq
      %v6908 = vshrl.u32 %v6907, 7
      %v6909 = vsub.s32 %v6906, %v6908
      %v6910 = vrot.slane %v6894, %v6909
      %v6912 = vunpack.c.l.s4 1966171168
      %v6913 = vunpack.c.0.s8 %v6912
      %v6914 = vlaneseq
      %v6915 = vshrl.u32 %v6914, 7
      %v6916 = vsub.s32 %v6913, %v6915
      %v6917 = vrot.slane %v6895, %v6916
      %v6919 = vunpack.c.l.s4 1966171168
      %v6920 = vunpack.c.0.s8 %v6919
      %v6921 = vlaneseq
      %v6922 = vshrl.u32 %v6921, 7
      %v6923 = vsub.s32 %v6920, %v6922
      %v6924 = vrot.slane %v6896, %v6923
      %v6925 = vcombine.low %v6903, %v6917
      %v6926 = vcombine.low %v6910, %v6924
      %v6927 = vcombine.low %v6223, %v6231
      %v6928 = vcombine.low %v6233, %v6216
      %v6929 = vcombine.low %v6230, %v6232
      %v6930 = vcombine.low %v6234, %v6249
      %v6932 = vunpack.c.l.s4 1966171168
      %v6933 = vunpack.c.0.s8 %v6932
      %v6934 = vlaneseq
      %v6935 = vshrl.u32 %v6934, 7
      %v6936 = vsub.s32 %v6933, %v6935
      %v6937 = vrot.slane %v6927, %v6936
      %v6939 = vunpack.c.l.s4 1966171168
      %v6940 = vunpack.c.0.s8 %v6939
      %v6941 = vlaneseq
      %v6942 = vshrl.u32 %v6941, 7
      %v6943 = vsub.s32 %v6940, %v6942
      %v6944 = vrot.slane %v6928, %v6943
      %v6946 = vunpack.c.l.s4 1966171168
      %v6947 = vunpack.c.0.s8 %v6946
      %v6948 = vlaneseq
      %v6949 = vshrl.u32 %v6948, 7
      %v6950 = vsub.s32 %v6947, %v6949
      %v6951 = vrot.slane %v6929, %v6950
      %v6953 = vunpack.c.l.s4 1966171168
      %v6954 = vunpack.c.0.s8 %v6953
      %v6955 = vlaneseq
      %v6956 = vshrl.u32 %v6955, 7
      %v6957 = vsub.s32 %v6954, %v6956
      %v6958 = vrot.slane %v6930, %v6957
      %v6959 = vcombine.low %v6937, %v6944
      %v6960 = vcombine.high %v6937, %v6944
      %v6961 = vcombine.low %v6951, %v6958
      %v6962 = vcombine.high %v6951, %v6958
      %v6964 = vunpack.c.l.s4 1966171168
      %v6965 = vunpack.c.0.s8 %v6964
      %v6966 = vlaneseq
      %v6967 = vshrl.u32 %v6966, 7
      %v6968 = vsub.s32 %v6965, %v6967
      %v6969 = vrot.slane %v6959, %v6968
      %v6971 = vunpack.c.l.s4 1966171168
      %v6972 = vunpack.c.0.s8 %v6971
      %v6973 = vlaneseq
      %v6974 = vshrl.u32 %v6973, 7
      %v6975 = vsub.s32 %v6972, %v6974
      %v6976 = vrot.slane %v6960, %v6975
      %v6978 = vunpack.c.l.s4 1966171168
      %v6979 = vunpack.c.0.s8 %v6978
      %v6980 = vlaneseq
      %v6981 = vshrl.u32 %v6980, 7
      %v6982 = vsub.s32 %v6979, %v6981
      %v6983 = vrot.slane %v6961, %v6982
      %v6985 = vunpack.c.l.s4 1966171168
      %v6986 = vunpack.c.0.s8 %v6985
      %v6987 = vlaneseq
      %v6988 = vshrl.u32 %v6987, 7
      %v6989 = vsub.s32 %v6986, %v6988
      %v6990 = vrot.slane %v6962, %v6989
      %v6991 = vcombine.low %v6969, %v6983
      %v6992 = vcombine.low %v6976, %v6990
      %v6993 = vcombine.low %v6274, %v6288
      %v6994 = vcombine.low %v6296, %v6298
      %v6995 = vcombine.low %v6281, %v6295
      %v6996 = vcombine.low %v6297, %v6299
      %v6998 = vunpack.c.l.s4 1966171168
      %v6999 = vunpack.c.0.s8 %v6998
      %v7000 = vlaneseq
      %v7001 = vshrl.u32 %v7000, 7
      %v7002 = vsub.s32 %v6999, %v7001
      %v7003 = vrot.slane %v6993, %v7002
      %v7005 = vunpack.c.l.s4 1966171168
      %v7006 = vunpack.c.0.s8 %v7005
      %v7007 = vlaneseq
      %v7008 = vshrl.u32 %v7007, 7
      %v7009 = vsub.s32 %v7006, %v7008
      %v7010 = vrot.slane %v6994, %v7009
      %v7012 = vunpack.c.l.s4 1966171168
      %v7013 = vunpack.c.0.s8 %v7012
      %v7014 = vlaneseq
      %v7015 = vshrl.u32 %v7014, 7
      %v7016 = vsub.s32 %v7013, %v7015
      %v7017 = vrot.slane %v6995, %v7016
      %v7019 = vunpack.c.l.s4 1966171168
      %v7020 = vunpack.c.0.s8 %v7019
      %v7021 = vlaneseq
      %v7022 = vshrl.u32 %v7021, 7
      %v7023 = vsub.s32 %v7020, %v7022
      %v7024 = vrot.slane %v6996, %v7023
      %v7025 = vcombine.low %v7003, %v7010
      %v7026 = vcombine.high %v7003, %v7010
      %v7027 = vcombine.low %v7017, %v7024
      %v7028 = vcombine.high %v7017, %v7024
      %v7030 = vunpack.c.l.s4 1966171168
      %v7031 = vunpack.c.0.s8 %v7030
      %v7032 = vlaneseq
      %v7033 = vshrl.u32 %v7032, 7
      %v7034 = vsub.s32 %v7031, %v7033
      %v7035 = vrot.slane %v7025, %v7034
      %v7037 = vunpack.c.l.s4 1966171168
      %v7038 = vunpack.c.0.s8 %v7037
      %v7039 = vlaneseq
      %v7040 = vshrl.u32 %v7039, 7
      %v7041 = vsub.s32 %v7038, %v7040
      %v7042 = vrot.slane %v7026, %v7041
      %v7044 = vunpack.c.l.s4 1966171168
      %v7045 = vunpack.c.0.s8 %v7044
      %v7046 = vlaneseq
      %v7047 = vshrl.u32 %v7046, 7
      %v7048 = vsub.s32 %v7045, %v7047
      %v7049 = vrot.slane %v7027, %v7048
      %v7051 = vunpack.c.l.s4 1966171168
      %v7052 = vunpack.c.0.s8 %v7051
      %v7053 = vlaneseq
      %v7054 = vshrl.u32 %v7053, 7
      %v7055 = vsub.s32 %v7052, %v7054
      %v7056 = vrot.slane %v7028, %v7055
      %v7057 = vcombine.low %v7035, %v7049
      %v7058 = vcombine.low %v7042, %v7056
      %v7059 = vcombine.low %v6314, %v6339
      %v7060 = vcombine.low %v6353, %v6361
      %v7061 = vcombine.low %v6363, %v6346
      %v7062 = vcombine.low %v6360, %v6362
      %v7064 = vunpack.c.l.s4 1966171168
      %v7065 = vunpack.c.0.s8 %v7064
      %v7066 = vlaneseq
      %v7067 = vshrl.u32 %v7066, 7
      %v7068 = vsub.s32 %v7065, %v7067
      %v7069 = vrot.slane %v7059, %v7068
      %v7071 = vunpack.c.l.s4 1966171168
      %v7072 = vunpack.c.0.s8 %v7071
      %v7073 = vlaneseq
      %v7074 = vshrl.u32 %v7073, 7
      %v7075 = vsub.s32 %v7072, %v7074
      %v7076 = vrot.slane %v7060, %v7075
      %v7078 = vunpack.c.l.s4 1966171168
      %v7079 = vunpack.c.0.s8 %v7078
      %v7080 = vlaneseq
      %v7081 = vshrl.u32 %v7080, 7
      %v7082 = vsub.s32 %v7079, %v7081
      %v7083 = vrot.slane %v7061, %v7082
      %v7085 = vunpack.c.l.s4 1966171168
      %v7086 = vunpack.c.0.s8 %v7085
      %v7087 = vlaneseq
      %v7088 = vshrl.u32 %v7087, 7
      %v7089 = vsub.s32 %v7086, %v7088
      %v7090 = vrot.slane %v7062, %v7089
      %v7091 = vcombine.low %v7069, %v7076
      %v7092 = vcombine.high %v7069, %v7076
      %v7093 = vcombine.low %v7083, %v7090
      %v7094 = vcombine.high %v7083, %v7090
      %v7096 = vunpack.c.l.s4 1966171168
      %v7097 = vunpack.c.0.s8 %v7096
      %v7098 = vlaneseq
      %v7099 = vshrl.u32 %v7098, 7
      %v7100 = vsub.s32 %v7097, %v7099
      %v7101 = vrot.slane %v7091, %v7100
      %v7103 = vunpack.c.l.s4 1966171168
      %v7104 = vunpack.c.0.s8 %v7103
      %v7105 = vlaneseq
      %v7106 = vshrl.u32 %v7105, 7
      %v7107 = vsub.s32 %v7104, %v7106
      %v7108 = vrot.slane %v7092, %v7107
      %v7110 = vunpack.c.l.s4 1966171168
      %v7111 = vunpack.c.0.s8 %v7110
      %v7112 = vlaneseq
      %v7113 = vshrl.u32 %v7112, 7
      %v7114 = vsub.s32 %v7111, %v7113
      %v7115 = vrot.slane %v7093, %v7114
      %v7117 = vunpack.c.l.s4 1966171168
      %v7118 = vunpack.c.0.s8 %v7117
      %v7119 = vlaneseq
      %v7120 = vshrl.u32 %v7119, 7
      %v7121 = vsub.s32 %v7118, %v7120
      %v7122 = vrot.slane %v7094, %v7121
      %v7123 = vcombine.low %v7101, %v7115
      %v7124 = vcombine.low %v7108, %v7122
      %v7125 = vcombine.low %v6364, %v6379
      %v7127 = vunpack.c.l.s4 1966171168
      %v7128 = vunpack.c.0.s8 %v7127
      %v7129 = vlaneseq
      %v7130 = vshrl.u32 %v7129, 7
      %v7131 = vsub.s32 %v7128, %v7130
      %v7132 = vrot.slane %v7125, %v7131
      %v7133 = vcombine.high %v7132, %v7132
      %v7135 = vunpack.c.l.s4 1966171168
      %v7136 = vunpack.c.0.s8 %v7135
      %v7137 = vlaneseq
      %v7138 = vshrl.u32 %v7137, 7
      %v7139 = vsub.s32 %v7136, %v7138
      %v7140 = vrot.slane %v7132, %v7139
      %v7142 = vunpack.c.l.s4 1966171168
      %v7143 = vunpack.c.0.s8 %v7142
      %v7144 = vlaneseq
      %v7145 = vshrl.u32 %v7144, 7
      %v7146 = vsub.s32 %v7143, %v7145
      %v7147 = vrot.slane %v7133, %v7146
      %v7178 = vunpack.c.l.b16 %v6381
      %v7179 = vunpack.c.l.b16 %v6382
      %v7180 = vunpack.c.l.b16 %v6383
      %v7181 = vunpack.c.l.b16 %v6384
      %v7182 = vunpack.c.l.b16 %v6385
      %v7183 = vunpack.c.l.b16 %v6386
      %v7184 = vunpack.c.l.b16 %v6387
      %v7185 = vunpack.c.l.b16 %v6388
      %v7186 = vunpack.c.l.b16 %v6389
      %v7187 = vunpack.c.l.b16 %v6390
      %v7188 = vunpack.c.l.b16 %v6391
      %v7189 = vunpack.c.l.b16 %v6392
      %v7190 = vunpack.c.l.b16 %v6393
      %v7191 = vunpack.c.l.b16 %v6394
      %v7192 = vunpack.c.l.b16 %v6395
      %v7193 = vunpack.c.l.b16 %v6396
      %v7194 = vunpack.c.l.b16 %v6397
      %v7195 = vunpack.c.l.b16 %v6398
      %v7196 = vpack.c.b16 %v7179, %v7178
      %v7197 = vpack.c.b16 %v7181, %v7180
      %v7198 = vpack.c.b16 %v7183, %v7182
      %v7199 = vpack.c.b16 %v7185, %v7184
      %v7200 = vpack.c.b16 %v7187, %v7186
      %v7201 = vpack.c.b16 %v7189, %v7188
      %v7202 = vpack.c.b16 %v7191, %v7190
      %v7203 = vpack.c.b16 %v7193, %v7192
      %v7204 = vpack.c.b16 %v7195, %v7194
      %v7215 = vsel %vm4026, %v6464, 0
      %v7218 = vsel %vm4026, %v6530, 0
      %v7221 = vsel %vm4026, %v6596, 0
      %v7224 = vsel %vm4026, %v6662, 0
      %v7227 = vsel %vm4026, %v6728, 0
      %v7230 = vsel %vm4026, %v6794, 0
      %v7233 = vsel %vm4026, %v6860, 0
      %v7236 = vsel %vm4026, %v6926, 0
      %v7239 = vsel %vm4026, %v6992, 0
      %v7242 = vsel %vm4026, %v7058, 0
      %v7245 = vsel %vm4026, %v7124, 0
      %v7248 = vsel %vm4026, %v7147, 0
      %7250 = vmatprep.subr.bf16.mxu0 0
      %7251 = vmatpush1.bf16.msra.mxu0 %v7203
      %7252 = vmatprep.subr.bf16.mxu0 0
      %7253 = vmatpush1.bf16.msra.mxu0 %v7202
      %7254 = vmatprep.subr.bf16.mxu0 0
      %7255 = vmatpush1.bf16.msra.mxu0 %v7201
      %7256 = vmatprep.subr.bf16.mxu0 0
      %7257 = vmatpush1.bf16.msra.mxu0 %v7200
      %7258 = vmatprep.subr.bf16.mxu0 0
      %7259 = vmatpush1.bf16.msra.mxu0 %v7199
      %7260 = vmatprep.subr.bf16.mxu0 0
      %7261 = vmatpush1.bf16.msra.mxu0 %v7198
      %7262 = vmatprep.subr.bf16.mxu0 0
      %7263 = vmatpush1.bf16.msra.mxu0 %v7197
      %7264 = vmatprep.subr.bf16.mxu0 0
      %7265 = vmatpush1.bf16.msra.mxu0 %v7196
      %7266 = vmatprep.subr.bf16.mxu0 0
      %7267 = vmatpush2.bf16.msra.mxu0 0
      %7268 = vmatprep.subr.bf16.mxu0 0
      %7269 = vmatpush2.bf16.msra.mxu0 0
      %7270 = vmatprep.subr.bf16.mxu0 0
      %7271 = vmatpush2.bf16.msra.mxu0 0
      %7272 = vmatprep.subr.bf16.mxu0 0
      %7273 = vmatpush2.bf16.msra.mxu0 0
      %7274 = vmatprep.subr.bf16.mxu0 0
      %7275 = vmatpush2.bf16.msra.mxu0 0
      %7276 = vmatprep.subr.bf16.mxu0 0
      %7277 = vmatpush2.bf16.msra.mxu0 0
      %7278 = vmatprep.subr.bf16.mxu0 0
      %7279 = vmatpush2.bf16.msra.mxu0 0
      %7280 = vmatprep.subr.bf16.mxu0 0
      %7281 = vmatpush2.bf16.msra.mxu0 %v7204
      %7282 = vmatprep.mubr.bf16.mxu0 %v7215
      %7283 = vmatmul.mubr.bf16.gmra.mxu0 %v6463
      %v7284 = vpop.f32.mrf.mxu0
      %v7285 = vadd.f32 0.0, %v7284
      %v7286 = vpop.f32.mrf.mxu0
      %v7287 = vpop.f32.mrf.mxu0
      %v7288 = vadd.f32 0.0, %v7287
      %v7289 = vpop.f32.mrf.mxu0
      %7290 = vmatprep.mubr.bf16.mxu0 %v7218
      %7291 = vmatmul.mubr.bf16.gmra.mxu0 %v6529
      %v7292 = vpop.f32.mrf.mxu0
      %v7293 = vadd.f32 0.0, %v7292
      %v7294 = vpop.f32.mrf.mxu0
      %v7295 = vpop.f32.mrf.mxu0
      %v7296 = vadd.f32 0.0, %v7295
      %v7297 = vpop.f32.mrf.mxu0
      %7298 = vmatprep.mubr.bf16.mxu0 %v7221
      %7299 = vmatmul.mubr.bf16.gmra.mxu0 %v6595
      %v7300 = vpop.f32.mrf.mxu0
      %v7301 = vadd.f32 0.0, %v7300
      %v7302 = vpop.f32.mrf.mxu0
      %v7303 = vpop.f32.mrf.mxu0
      %v7304 = vadd.f32 0.0, %v7303
      %v7305 = vpop.f32.mrf.mxu0
      %7306 = vmatprep.mubr.bf16.mxu0 %v7224
      %7307 = vmatmul.mubr.bf16.gmra.mxu0 %v6661
      %v7308 = vpop.f32.mrf.mxu0
      %v7309 = vadd.f32 0.0, %v7308
      %v7310 = vpop.f32.mrf.mxu0
      %v7311 = vpop.f32.mrf.mxu0
      %v7312 = vadd.f32 0.0, %v7311
      %v7313 = vpop.f32.mrf.mxu0
      %7314 = vmatprep.mubr.bf16.mxu0 %v7227
      %7315 = vmatmul.mubr.bf16.gmra.mxu0 %v6727
      %v7316 = vpop.f32.mrf.mxu0
      %v7317 = vadd.f32 0.0, %v7316
      %v7318 = vpop.f32.mrf.mxu0
      %v7319 = vpop.f32.mrf.mxu0
      %v7320 = vadd.f32 0.0, %v7319
      %v7321 = vpop.f32.mrf.mxu0
      %7322 = vmatprep.mubr.bf16.mxu0 %v7230
      %7323 = vmatmul.mubr.bf16.gmra.mxu0 %v6793
      %v7324 = vpop.f32.mrf.mxu0
      %v7325 = vadd.f32 0.0, %v7324
      %v7326 = vpop.f32.mrf.mxu0
      %v7327 = vpop.f32.mrf.mxu0
      %v7328 = vadd.f32 0.0, %v7327
      %v7329 = vpop.f32.mrf.mxu0
      %7330 = vmatprep.mubr.bf16.mxu0 %v7233
      %7331 = vmatmul.mubr.bf16.gmra.mxu0 %v6859
      %v7332 = vpop.f32.mrf.mxu0
      %v7333 = vadd.f32 0.0, %v7332
      %v7334 = vpop.f32.mrf.mxu0
      %v7335 = vpop.f32.mrf.mxu0
      %v7336 = vadd.f32 0.0, %v7335
      %v7337 = vpop.f32.mrf.mxu0
      %7338 = vmatprep.mubr.bf16.mxu0 %v7236
      %7339 = vmatmul.mubr.bf16.gmra.mxu0 %v6925
      %v7340 = vpop.f32.mrf.mxu0
      %v7341 = vadd.f32 0.0, %v7340
      %v7342 = vpop.f32.mrf.mxu0
      %v7343 = vpop.f32.mrf.mxu0
      %v7344 = vadd.f32 0.0, %v7343
      %v7345 = vpop.f32.mrf.mxu0
      %7346 = vmatprep.mubr.bf16.mxu0 %v7239
      %7347 = vmatmul.mubr.bf16.gmra.mxu0 %v6991
      %v7348 = vpop.f32.mrf.mxu0
      %v7349 = vadd.f32 0.0, %v7348
      %v7350 = vpop.f32.mrf.mxu0
      %v7351 = vpop.f32.mrf.mxu0
      %v7352 = vadd.f32 0.0, %v7351
      %v7353 = vpop.f32.mrf.mxu0
      %7354 = vmatprep.mubr.bf16.mxu0 %v7242
      %7355 = vmatmul.mubr.bf16.gmra.mxu0 %v7057
      %v7356 = vpop.f32.mrf.mxu0
      %v7357 = vadd.f32 0.0, %v7356
      %v7358 = vpop.f32.mrf.mxu0
      %v7359 = vpop.f32.mrf.mxu0
      %v7360 = vadd.f32 0.0, %v7359
      %v7361 = vpop.f32.mrf.mxu0
      %7362 = vmatprep.mubr.bf16.mxu0 %v7245
      %7363 = vmatmul.mubr.bf16.gmra.mxu0 %v7123
      %v7364 = vpop.f32.mrf.mxu0
      %v7365 = vadd.f32 0.0, %v7364
      %v7366 = vpop.f32.mrf.mxu0
      %v7367 = vpop.f32.mrf.mxu0
      %v7368 = vadd.f32 0.0, %v7367
      %v7369 = vpop.f32.mrf.mxu0
      %7370 = vmatprep.mubr.bf16.mxu0 %v7248
      %7371 = vmatmul.mubr.bf16.gmra.mxu0 %v7140
      %v7372 = vpop.f32.mrf.mxu0
      %v7373 = vadd.f32 0.0, %v7372
      %v7374 = vpop.f32.mrf.mxu0
      %v7375 = vpop.f32.mrf.mxu0
      %v7376 = vpop.f32.mrf.mxu0
      %7377 = vdwg.mxu0
      %v7378 = vadd.f32 %v5077, %v7285
      %v7379 = vadd.f32 %v5080, %v7288
      %v7380 = vadd.f32 %v5085, %v7293
      %v7381 = vadd.f32 %v5088, %v7296
      %v7382 = vadd.f32 %v5093, %v7301
      %v7383 = vadd.f32 %v5096, %v7304
      %v7384 = vadd.f32 %v5101, %v7309
      %v7385 = vadd.f32 %v5104, %v7312
      %v7386 = vadd.f32 %v5109, %v7317
      %v7387 = vadd.f32 %v5112, %v7320
      %v7388 = vadd.f32 %v5117, %v7325
      %v7389 = vadd.f32 %v5120, %v7328
      %v7390 = vadd.f32 %v5125, %v7333
      %v7391 = vadd.f32 %v5128, %v7336
      %v7392 = vadd.f32 %v5133, %v7341
      %v7393 = vadd.f32 %v5136, %v7344
      %v7394 = vadd.f32 %v5141, %v7349
      %v7395 = vadd.f32 %v5144, %v7352
      %v7396 = vadd.f32 %v5149, %v7357
      %v7397 = vadd.f32 %v5152, %v7360
      %v7398 = vadd.f32 %v5157, %v7365
      %v7399 = vadd.f32 %v5160, %v7368
      %v7400 = vadd.f32 %v5165, %v7373
      %v7401 = vld [vmem:[%s4] sm:$0x1]
      %v7403 = vlaneseq
      %v7404 = vshrl.u32 %v7403, 7
      %v7405 = vsub.s32 0, %v7404
      %v7406 = vrot.slane %v7401, %v7405
      %v7408 = vadd.f32 %v7378, %v7406
      %v7409 = vadd.f32 %v7379, %v7406
      %v7410 = vadd.f32 %v7380, %v7406
      %v7411 = vadd.f32 %v7381, %v7406
      %v7412 = vadd.f32 %v7382, %v7406
      %v7413 = vadd.f32 %v7383, %v7406
      %v7414 = vadd.f32 %v7384, %v7406
      %v7415 = vadd.f32 %v7385, %v7406
      %v7416 = vadd.f32 %v7386, %v7406
      %v7417 = vadd.f32 %v7387, %v7406
      %v7418 = vadd.f32 %v7388, %v7406
      %v7419 = vadd.f32 %v7389, %v7406
      %v7420 = vadd.f32 %v7390, %v7406
      %v7421 = vadd.f32 %v7391, %v7406
      %v7422 = vadd.f32 %v7392, %v7406
      %v7423 = vadd.f32 %v7393, %v7406
      %v7424 = vadd.f32 %v7394, %v7406
      %v7425 = vadd.f32 %v7395, %v7406
      %v7426 = vadd.f32 %v7396, %v7406
      %v7427 = vadd.f32 %v7397, %v7406
      %v7428 = vadd.f32 %v7398, %v7406
      %v7429 = vadd.f32 %v7399, %v7406
      %v7430 = vadd.f32 %v7400, %v7406
      %v7431 = vmax.f32 %v7408, 0.0
      %v7432 = vmax.f32 %v7409, 0.0
      %v7433 = vmax.f32 %v7410, 0.0
      %v7434 = vmax.f32 %v7411, 0.0
      %v7435 = vmax.f32 %v7412, 0.0
      %v7436 = vmax.f32 %v7413, 0.0
      %v7437 = vmax.f32 %v7414, 0.0
      %v7438 = vmax.f32 %v7415, 0.0
      %v7439 = vmax.f32 %v7416, 0.0
      %v7440 = vmax.f32 %v7417, 0.0
      %v7441 = vmax.f32 %v7418, 0.0
      %v7442 = vmax.f32 %v7419, 0.0
      %v7443 = vmax.f32 %v7420, 0.0
      %v7444 = vmax.f32 %v7421, 0.0
      %v7445 = vmax.f32 %v7422, 0.0
      %v7446 = vmax.f32 %v7423, 0.0
      %v7447 = vmax.f32 %v7424, 0.0
      %v7448 = vmax.f32 %v7425, 0.0
      %v7449 = vmax.f32 %v7426, 0.0
      %v7450 = vmax.f32 %v7427, 0.0
      %v7451 = vmax.f32 %v7428, 0.0
      %v7452 = vmax.f32 %v7429, 0.0
      %v7453 = vmax.f32 %v7430, 0.0
      %v7454 = vpack.c.bf16 %v7432, %v7431
      %v7455 = vpack.c.bf16 %v7434, %v7433
      %v7456 = vpack.c.bf16 %v7436, %v7435
      %v7457 = vpack.c.bf16 %v7438, %v7437
      %v7458 = vpack.c.bf16 %v7440, %v7439
      %v7459 = vpack.c.bf16 %v7442, %v7441
      %v7460 = vpack.c.bf16 %v7444, %v7443
      %v7461 = vpack.c.bf16 %v7446, %v7445
      %v7462 = vpack.c.bf16 %v7448, %v7447
      %v7463 = vpack.c.bf16 %v7450, %v7449
      %v7464 = vpack.c.bf16 %v7452, %v7451
      %v7465 = vpack.c.bf16 %v7453, %v7453
      %v7478 = vcombine.high %v7454, %v7454
      %v7480 = vunpack.c.l.s4 1966171168
      %v7481 = vunpack.c.0.s8 %v7480
      %v7482 = vlaneseq
      %v7483 = vshrl.u32 %v7482, 7
      %v7484 = vsub.s32 %v7481, %v7483
      %v7485 = vrot.slane %v7454, %v7484
      %v7487 = vunpack.c.l.s4 1966171168
      %v7488 = vunpack.c.0.s8 %v7487
      %v7489 = vlaneseq
      %v7490 = vshrl.u32 %v7489, 7
      %v7491 = vsub.s32 %v7488, %v7490
      %v7492 = vrot.slane %v7478, %v7491
      %v7493 = vcombine.high %v7485, %v7485
      %v7494 = vcombine.high %v7492, %v7492
      %v7496 = vunpack.c.l.s4 1966171168
      %v7497 = vunpack.c.0.s8 %v7496
      %v7498 = vlaneseq
      %v7499 = vshrl.u32 %v7498, 7
      %v7500 = vsub.s32 %v7497, %v7499
      %v7501 = vrot.slane %v7485, %v7500
      %v7503 = vunpack.c.l.s4 1966171168
      %v7504 = vunpack.c.0.s8 %v7503
      %v7505 = vlaneseq
      %v7506 = vshrl.u32 %v7505, 7
      %v7507 = vsub.s32 %v7504, %v7506
      %v7508 = vrot.slane %v7492, %v7507
      %v7510 = vunpack.c.l.s4 1966171168
      %v7511 = vunpack.c.0.s8 %v7510
      %v7512 = vlaneseq
      %v7513 = vshrl.u32 %v7512, 7
      %v7514 = vsub.s32 %v7511, %v7513
      %v7515 = vrot.slane %v7493, %v7514
      %v7517 = vunpack.c.l.s4 1966171168
      %v7518 = vunpack.c.0.s8 %v7517
      %v7519 = vlaneseq
      %v7520 = vshrl.u32 %v7519, 7
      %v7521 = vsub.s32 %v7518, %v7520
      %v7522 = vrot.slane %v7494, %v7521
      %v7523 = vcombine.high %v7501, %v7501
      %v7524 = vcombine.high %v7508, %v7508
      %v7525 = vcombine.high %v7515, %v7515
      %v7526 = vcombine.high %v7522, %v7522
      %v7527 = vcombine.high %v7455, %v7455
      %v7529 = vunpack.c.l.s4 1966171168
      %v7530 = vunpack.c.0.s8 %v7529
      %v7531 = vlaneseq
      %v7532 = vshrl.u32 %v7531, 7
      %v7533 = vsub.s32 %v7530, %v7532
      %v7534 = vrot.slane %v7455, %v7533
      %v7536 = vunpack.c.l.s4 1966171168
      %v7537 = vunpack.c.0.s8 %v7536
      %v7538 = vlaneseq
      %v7539 = vshrl.u32 %v7538, 7
      %v7540 = vsub.s32 %v7537, %v7539
      %v7541 = vrot.slane %v7527, %v7540
      %v7542 = vcombine.high %v7534, %v7534
      %v7543 = vcombine.high %v7541, %v7541
      %v7545 = vunpack.c.l.s4 1966171168
      %v7546 = vunpack.c.0.s8 %v7545
      %v7547 = vlaneseq
      %v7548 = vshrl.u32 %v7547, 7
      %v7549 = vsub.s32 %v7546, %v7548
      %v7550 = vrot.slane %v7534, %v7549
      %v7552 = vunpack.c.l.s4 1966171168
      %v7553 = vunpack.c.0.s8 %v7552
      %v7554 = vlaneseq
      %v7555 = vshrl.u32 %v7554, 7
      %v7556 = vsub.s32 %v7553, %v7555
      %v7557 = vrot.slane %v7541, %v7556
      %v7559 = vunpack.c.l.s4 1966171168
      %v7560 = vunpack.c.0.s8 %v7559
      %v7561 = vlaneseq
      %v7562 = vshrl.u32 %v7561, 7
      %v7563 = vsub.s32 %v7560, %v7562
      %v7564 = vrot.slane %v7542, %v7563
      %v7566 = vunpack.c.l.s4 1966171168
      %v7567 = vunpack.c.0.s8 %v7566
      %v7568 = vlaneseq
      %v7569 = vshrl.u32 %v7568, 7
      %v7570 = vsub.s32 %v7567, %v7569
      %v7571 = vrot.slane %v7543, %v7570
      %v7572 = vcombine.high %v7550, %v7550
      %v7573 = vcombine.high %v7557, %v7557
      %v7574 = vcombine.high %v7564, %v7564
      %v7575 = vcombine.high %v7571, %v7571
      %v7576 = vcombine.high %v7456, %v7456
      %v7578 = vunpack.c.l.s4 1966171168
      %v7579 = vunpack.c.0.s8 %v7578
      %v7580 = vlaneseq
      %v7581 = vshrl.u32 %v7580, 7
      %v7582 = vsub.s32 %v7579, %v7581
      %v7583 = vrot.slane %v7456, %v7582
      %v7585 = vunpack.c.l.s4 1966171168
      %v7586 = vunpack.c.0.s8 %v7585
      %v7587 = vlaneseq
      %v7588 = vshrl.u32 %v7587, 7
      %v7589 = vsub.s32 %v7586, %v7588
      %v7590 = vrot.slane %v7576, %v7589
      %v7591 = vcombine.high %v7583, %v7583
      %v7592 = vcombine.high %v7590, %v7590
      %v7594 = vunpack.c.l.s4 1966171168
      %v7595 = vunpack.c.0.s8 %v7594
      %v7596 = vlaneseq
      %v7597 = vshrl.u32 %v7596, 7
      %v7598 = vsub.s32 %v7595, %v7597
      %v7599 = vrot.slane %v7583, %v7598
      %v7601 = vunpack.c.l.s4 1966171168
      %v7602 = vunpack.c.0.s8 %v7601
      %v7603 = vlaneseq
      %v7604 = vshrl.u32 %v7603, 7
      %v7605 = vsub.s32 %v7602, %v7604
      %v7606 = vrot.slane %v7590, %v7605
      %v7608 = vunpack.c.l.s4 1966171168
      %v7609 = vunpack.c.0.s8 %v7608
      %v7610 = vlaneseq
      %v7611 = vshrl.u32 %v7610, 7
      %v7612 = vsub.s32 %v7609, %v7611
      %v7613 = vrot.slane %v7591, %v7612
      %v7615 = vunpack.c.l.s4 1966171168
      %v7616 = vunpack.c.0.s8 %v7615
      %v7617 = vlaneseq
      %v7618 = vshrl.u32 %v7617, 7
      %v7619 = vsub.s32 %v7616, %v7618
      %v7620 = vrot.slane %v7592, %v7619
      %v7621 = vcombine.high %v7599, %v7599
      %v7622 = vcombine.high %v7606, %v7606
      %v7623 = vcombine.high %v7613, %v7613
      %v7624 = vcombine.high %v7620, %v7620
      %v7625 = vcombine.high %v7457, %v7457
      %v7627 = vunpack.c.l.s4 1966171168
      %v7628 = vunpack.c.0.s8 %v7627
      %v7629 = vlaneseq
      %v7630 = vshrl.u32 %v7629, 7
      %v7631 = vsub.s32 %v7628, %v7630
      %v7632 = vrot.slane %v7457, %v7631
      %v7634 = vunpack.c.l.s4 1966171168
      %v7635 = vunpack.c.0.s8 %v7634
      %v7636 = vlaneseq
      %v7637 = vshrl.u32 %v7636, 7
      %v7638 = vsub.s32 %v7635, %v7637
      %v7639 = vrot.slane %v7625, %v7638
      %v7640 = vcombine.high %v7632, %v7632
      %v7641 = vcombine.high %v7639, %v7639
      %v7643 = vunpack.c.l.s4 1966171168
      %v7644 = vunpack.c.0.s8 %v7643
      %v7645 = vlaneseq
      %v7646 = vshrl.u32 %v7645, 7
      %v7647 = vsub.s32 %v7644, %v7646
      %v7648 = vrot.slane %v7632, %v7647
      %v7650 = vunpack.c.l.s4 1966171168
      %v7651 = vunpack.c.0.s8 %v7650
      %v7652 = vlaneseq
      %v7653 = vshrl.u32 %v7652, 7
      %v7654 = vsub.s32 %v7651, %v7653
      %v7655 = vrot.slane %v7639, %v7654
      %v7657 = vunpack.c.l.s4 1966171168
      %v7658 = vunpack.c.0.s8 %v7657
      %v7659 = vlaneseq
      %v7660 = vshrl.u32 %v7659, 7
      %v7661 = vsub.s32 %v7658, %v7660
      %v7662 = vrot.slane %v7640, %v7661
      %v7664 = vunpack.c.l.s4 1966171168
      %v7665 = vunpack.c.0.s8 %v7664
      %v7666 = vlaneseq
      %v7667 = vshrl.u32 %v7666, 7
      %v7668 = vsub.s32 %v7665, %v7667
      %v7669 = vrot.slane %v7641, %v7668
      %v7670 = vcombine.high %v7648, %v7648
      %v7671 = vcombine.high %v7655, %v7655
      %v7672 = vcombine.high %v7662, %v7662
      %v7673 = vcombine.high %v7669, %v7669
      %v7674 = vcombine.high %v7458, %v7458
      %v7676 = vunpack.c.l.s4 1966171168
      %v7677 = vunpack.c.0.s8 %v7676
      %v7678 = vlaneseq
      %v7679 = vshrl.u32 %v7678, 7
      %v7680 = vsub.s32 %v7677, %v7679
      %v7681 = vrot.slane %v7458, %v7680
      %v7683 = vunpack.c.l.s4 1966171168
      %v7684 = vunpack.c.0.s8 %v7683
      %v7685 = vlaneseq
      %v7686 = vshrl.u32 %v7685, 7
      %v7687 = vsub.s32 %v7684, %v7686
      %v7688 = vrot.slane %v7674, %v7687
      %v7689 = vcombine.high %v7681, %v7681
      %v7690 = vcombine.high %v7688, %v7688
      %v7692 = vunpack.c.l.s4 1966171168
      %v7693 = vunpack.c.0.s8 %v7692
      %v7694 = vlaneseq
      %v7695 = vshrl.u32 %v7694, 7
      %v7696 = vsub.s32 %v7693, %v7695
      %v7697 = vrot.slane %v7681, %v7696
      %v7699 = vunpack.c.l.s4 1966171168
      %v7700 = vunpack.c.0.s8 %v7699
      %v7701 = vlaneseq
      %v7702 = vshrl.u32 %v7701, 7
      %v7703 = vsub.s32 %v7700, %v7702
      %v7704 = vrot.slane %v7688, %v7703
      %v7706 = vunpack.c.l.s4 1966171168
      %v7707 = vunpack.c.0.s8 %v7706
      %v7708 = vlaneseq
      %v7709 = vshrl.u32 %v7708, 7
      %v7710 = vsub.s32 %v7707, %v7709
      %v7711 = vrot.slane %v7689, %v7710
      %v7713 = vunpack.c.l.s4 1966171168
      %v7714 = vunpack.c.0.s8 %v7713
      %v7715 = vlaneseq
      %v7716 = vshrl.u32 %v7715, 7
      %v7717 = vsub.s32 %v7714, %v7716
      %v7718 = vrot.slane %v7690, %v7717
      %v7719 = vcombine.high %v7697, %v7697
      %v7720 = vcombine.high %v7704, %v7704
      %v7721 = vcombine.high %v7711, %v7711
      %v7722 = vcombine.high %v7718, %v7718
      %v7723 = vcombine.high %v7459, %v7459
      %v7725 = vunpack.c.l.s4 1966171168
      %v7726 = vunpack.c.0.s8 %v7725
      %v7727 = vlaneseq
      %v7728 = vshrl.u32 %v7727, 7
      %v7729 = vsub.s32 %v7726, %v7728
      %v7730 = vrot.slane %v7459, %v7729
      %v7732 = vunpack.c.l.s4 1966171168
      %v7733 = vunpack.c.0.s8 %v7732
      %v7734 = vlaneseq
      %v7735 = vshrl.u32 %v7734, 7
      %v7736 = vsub.s32 %v7733, %v7735
      %v7737 = vrot.slane %v7723, %v7736
      %v7738 = vcombine.high %v7730, %v7730
      %v7739 = vcombine.high %v7737, %v7737
      %v7741 = vunpack.c.l.s4 1966171168
      %v7742 = vunpack.c.0.s8 %v7741
      %v7743 = vlaneseq
      %v7744 = vshrl.u32 %v7743, 7
      %v7745 = vsub.s32 %v7742, %v7744
      %v7746 = vrot.slane %v7730, %v7745
      %v7748 = vunpack.c.l.s4 1966171168
      %v7749 = vunpack.c.0.s8 %v7748
      %v7750 = vlaneseq
      %v7751 = vshrl.u32 %v7750, 7
      %v7752 = vsub.s32 %v7749, %v7751
      %v7753 = vrot.slane %v7737, %v7752
      %v7755 = vunpack.c.l.s4 1966171168
      %v7756 = vunpack.c.0.s8 %v7755
      %v7757 = vlaneseq
      %v7758 = vshrl.u32 %v7757, 7
      %v7759 = vsub.s32 %v7756, %v7758
      %v7760 = vrot.slane %v7738, %v7759
      %v7762 = vunpack.c.l.s4 1966171168
      %v7763 = vunpack.c.0.s8 %v7762
      %v7764 = vlaneseq
      %v7765 = vshrl.u32 %v7764, 7
      %v7766 = vsub.s32 %v7763, %v7765
      %v7767 = vrot.slane %v7739, %v7766
      %v7768 = vcombine.high %v7746, %v7746
      %v7769 = vcombine.high %v7753, %v7753
      %v7770 = vcombine.high %v7760, %v7760
      %v7771 = vcombine.high %v7767, %v7767
      %v7772 = vcombine.high %v7460, %v7460
      %v7774 = vunpack.c.l.s4 1966171168
      %v7775 = vunpack.c.0.s8 %v7774
      %v7776 = vlaneseq
      %v7777 = vshrl.u32 %v7776, 7
      %v7778 = vsub.s32 %v7775, %v7777
      %v7779 = vrot.slane %v7460, %v7778
      %v7781 = vunpack.c.l.s4 1966171168
      %v7782 = vunpack.c.0.s8 %v7781
      %v7783 = vlaneseq
      %v7784 = vshrl.u32 %v7783, 7
      %v7785 = vsub.s32 %v7782, %v7784
      %v7786 = vrot.slane %v7772, %v7785
      %v7787 = vcombine.high %v7779, %v7779
      %v7788 = vcombine.high %v7786, %v7786
      %v7790 = vunpack.c.l.s4 1966171168
      %v7791 = vunpack.c.0.s8 %v7790
      %v7792 = vlaneseq
      %v7793 = vshrl.u32 %v7792, 7
      %v7794 = vsub.s32 %v7791, %v7793
      %v7795 = vrot.slane %v7779, %v7794
      %v7797 = vunpack.c.l.s4 1966171168
      %v7798 = vunpack.c.0.s8 %v7797
      %v7799 = vlaneseq
      %v7800 = vshrl.u32 %v7799, 7
      %v7801 = vsub.s32 %v7798, %v7800
      %v7802 = vrot.slane %v7786, %v7801
      %v7804 = vunpack.c.l.s4 1966171168
      %v7805 = vunpack.c.0.s8 %v7804
      %v7806 = vlaneseq
      %v7807 = vshrl.u32 %v7806, 7
      %v7808 = vsub.s32 %v7805, %v7807
      %v7809 = vrot.slane %v7787, %v7808
      %v7811 = vunpack.c.l.s4 1966171168
      %v7812 = vunpack.c.0.s8 %v7811
      %v7813 = vlaneseq
      %v7814 = vshrl.u32 %v7813, 7
      %v7815 = vsub.s32 %v7812, %v7814
      %v7816 = vrot.slane %v7788, %v7815
      %v7817 = vcombine.high %v7795, %v7795
      %v7818 = vcombine.high %v7802, %v7802
      %v7819 = vcombine.high %v7809, %v7809
      %v7820 = vcombine.high %v7816, %v7816
      %v7821 = vcombine.high %v7461, %v7461
      %v7823 = vunpack.c.l.s4 1966171168
      %v7824 = vunpack.c.0.s8 %v7823
      %v7825 = vlaneseq
      %v7826 = vshrl.u32 %v7825, 7
      %v7827 = vsub.s32 %v7824, %v7826
      %v7828 = vrot.slane %v7461, %v7827
      %v7830 = vunpack.c.l.s4 1966171168
      %v7831 = vunpack.c.0.s8 %v7830
      %v7832 = vlaneseq
      %v7833 = vshrl.u32 %v7832, 7
      %v7834 = vsub.s32 %v7831, %v7833
      %v7835 = vrot.slane %v7821, %v7834
      %v7836 = vcombine.high %v7828, %v7828
      %v7837 = vcombine.high %v7835, %v7835
      %v7839 = vunpack.c.l.s4 1966171168
      %v7840 = vunpack.c.0.s8 %v7839
      %v7841 = vlaneseq
      %v7842 = vshrl.u32 %v7841, 7
      %v7843 = vsub.s32 %v7840, %v7842
      %v7844 = vrot.slane %v7828, %v7843
      %v7846 = vunpack.c.l.s4 1966171168
      %v7847 = vunpack.c.0.s8 %v7846
      %v7848 = vlaneseq
      %v7849 = vshrl.u32 %v7848, 7
      %v7850 = vsub.s32 %v7847, %v7849
      %v7851 = vrot.slane %v7835, %v7850
      %v7853 = vunpack.c.l.s4 1966171168
      %v7854 = vunpack.c.0.s8 %v7853
      %v7855 = vlaneseq
      %v7856 = vshrl.u32 %v7855, 7
      %v7857 = vsub.s32 %v7854, %v7856
      %v7858 = vrot.slane %v7836, %v7857
      %v7860 = vunpack.c.l.s4 1966171168
      %v7861 = vunpack.c.0.s8 %v7860
      %v7862 = vlaneseq
      %v7863 = vshrl.u32 %v7862, 7
      %v7864 = vsub.s32 %v7861, %v7863
      %v7865 = vrot.slane %v7837, %v7864
      %v7866 = vcombine.high %v7844, %v7844
      %v7867 = vcombine.high %v7851, %v7851
      %v7868 = vcombine.high %v7858, %v7858
      %v7869 = vcombine.high %v7865, %v7865
      %v7870 = vcombine.high %v7462, %v7462
      %v7872 = vunpack.c.l.s4 1966171168
      %v7873 = vunpack.c.0.s8 %v7872
      %v7874 = vlaneseq
      %v7875 = vshrl.u32 %v7874, 7
      %v7876 = vsub.s32 %v7873, %v7875
      %v7877 = vrot.slane %v7462, %v7876
      %v7879 = vunpack.c.l.s4 1966171168
      %v7880 = vunpack.c.0.s8 %v7879
      %v7881 = vlaneseq
      %v7882 = vshrl.u32 %v7881, 7
      %v7883 = vsub.s32 %v7880, %v7882
      %v7884 = vrot.slane %v7870, %v7883
      %v7885 = vcombine.high %v7877, %v7877
      %v7886 = vcombine.high %v7884, %v7884
      %v7888 = vunpack.c.l.s4 1966171168
      %v7889 = vunpack.c.0.s8 %v7888
      %v7890 = vlaneseq
      %v7891 = vshrl.u32 %v7890, 7
      %v7892 = vsub.s32 %v7889, %v7891
      %v7893 = vrot.slane %v7877, %v7892
      %v7895 = vunpack.c.l.s4 1966171168
      %v7896 = vunpack.c.0.s8 %v7895
      %v7897 = vlaneseq
      %v7898 = vshrl.u32 %v7897, 7
      %v7899 = vsub.s32 %v7896, %v7898
      %v7900 = vrot.slane %v7884, %v7899
      %v7902 = vunpack.c.l.s4 1966171168
      %v7903 = vunpack.c.0.s8 %v7902
      %v7904 = vlaneseq
      %v7905 = vshrl.u32 %v7904, 7
      %v7906 = vsub.s32 %v7903, %v7905
      %v7907 = vrot.slane %v7885, %v7906
      %v7909 = vunpack.c.l.s4 1966171168
      %v7910 = vunpack.c.0.s8 %v7909
      %v7911 = vlaneseq
      %v7912 = vshrl.u32 %v7911, 7
      %v7913 = vsub.s32 %v7910, %v7912
      %v7914 = vrot.slane %v7886, %v7913
      %v7915 = vcombine.high %v7893, %v7893
      %v7916 = vcombine.high %v7900, %v7900
      %v7917 = vcombine.high %v7907, %v7907
      %v7918 = vcombine.high %v7914, %v7914
      %v7919 = vcombine.high %v7463, %v7463
      %v7921 = vunpack.c.l.s4 1966171168
      %v7922 = vunpack.c.0.s8 %v7921
      %v7923 = vlaneseq
      %v7924 = vshrl.u32 %v7923, 7
      %v7925 = vsub.s32 %v7922, %v7924
      %v7926 = vrot.slane %v7463, %v7925
      %v7928 = vunpack.c.l.s4 1966171168
      %v7929 = vunpack.c.0.s8 %v7928
      %v7930 = vlaneseq
      %v7931 = vshrl.u32 %v7930, 7
      %v7932 = vsub.s32 %v7929, %v7931
      %v7933 = vrot.slane %v7919, %v7932
      %v7934 = vcombine.high %v7926, %v7926
      %v7935 = vcombine.high %v7933, %v7933
      %v7937 = vunpack.c.l.s4 1966171168
      %v7938 = vunpack.c.0.s8 %v7937
      %v7939 = vlaneseq
      %v7940 = vshrl.u32 %v7939, 7
      %v7941 = vsub.s32 %v7938, %v7940
      %v7942 = vrot.slane %v7926, %v7941
      %v7944 = vunpack.c.l.s4 1966171168
      %v7945 = vunpack.c.0.s8 %v7944
      %v7946 = vlaneseq
      %v7947 = vshrl.u32 %v7946, 7
      %v7948 = vsub.s32 %v7945, %v7947
      %v7949 = vrot.slane %v7933, %v7948
      %v7951 = vunpack.c.l.s4 1966171168
      %v7952 = vunpack.c.0.s8 %v7951
      %v7953 = vlaneseq
      %v7954 = vshrl.u32 %v7953, 7
      %v7955 = vsub.s32 %v7952, %v7954
      %v7956 = vrot.slane %v7934, %v7955
      %v7958 = vunpack.c.l.s4 1966171168
      %v7959 = vunpack.c.0.s8 %v7958
      %v7960 = vlaneseq
      %v7961 = vshrl.u32 %v7960, 7
      %v7962 = vsub.s32 %v7959, %v7961
      %v7963 = vrot.slane %v7935, %v7962
      %v7964 = vcombine.high %v7942, %v7942
      %v7965 = vcombine.high %v7949, %v7949
      %v7966 = vcombine.high %v7956, %v7956
      %v7967 = vcombine.high %v7963, %v7963
      %v7968 = vcombine.high %v7464, %v7464
      %v7970 = vunpack.c.l.s4 1966171168
      %v7971 = vunpack.c.0.s8 %v7970
      %v7972 = vlaneseq
      %v7973 = vshrl.u32 %v7972, 7
      %v7974 = vsub.s32 %v7971, %v7973
      %v7975 = vrot.slane %v7464, %v7974
      %v7977 = vunpack.c.l.s4 1966171168
      %v7978 = vunpack.c.0.s8 %v7977
      %v7979 = vlaneseq
      %v7980 = vshrl.u32 %v7979, 7
      %v7981 = vsub.s32 %v7978, %v7980
      %v7982 = vrot.slane %v7968, %v7981
      %v7983 = vcombine.high %v7975, %v7975
      %v7984 = vcombine.high %v7982, %v7982
      %v7986 = vunpack.c.l.s4 1966171168
      %v7987 = vunpack.c.0.s8 %v7986
      %v7988 = vlaneseq
      %v7989 = vshrl.u32 %v7988, 7
      %v7990 = vsub.s32 %v7987, %v7989
      %v7991 = vrot.slane %v7975, %v7990
      %v7993 = vunpack.c.l.s4 1966171168
      %v7994 = vunpack.c.0.s8 %v7993
      %v7995 = vlaneseq
      %v7996 = vshrl.u32 %v7995, 7
      %v7997 = vsub.s32 %v7994, %v7996
      %v7998 = vrot.slane %v7982, %v7997
      %v8000 = vunpack.c.l.s4 1966171168
      %v8001 = vunpack.c.0.s8 %v8000
      %v8002 = vlaneseq
      %v8003 = vshrl.u32 %v8002, 7
      %v8004 = vsub.s32 %v8001, %v8003
      %v8005 = vrot.slane %v7983, %v8004
      %v8007 = vunpack.c.l.s4 1966171168
      %v8008 = vunpack.c.0.s8 %v8007
      %v8009 = vlaneseq
      %v8010 = vshrl.u32 %v8009, 7
      %v8011 = vsub.s32 %v8008, %v8010
      %v8012 = vrot.slane %v7984, %v8011
      %v8013 = vcombine.high %v7991, %v7991
      %v8014 = vcombine.high %v7998, %v7998
      %v8015 = vcombine.high %v8005, %v8005
      %v8016 = vcombine.high %v8012, %v8012
      %v8018 = vunpack.c.l.s4 1966171168
      %v8019 = vunpack.c.0.s8 %v8018
      %v8020 = vlaneseq
      %v8021 = vshrl.u32 %v8020, 7
      %v8022 = vsub.s32 %v8019, %v8021
      %v8023 = vrot.slane %v7465, %v8022
      %v8024 = vcombine.high %v8023, %v8023
      %v8026 = vunpack.c.l.s4 1966171168
      %v8027 = vunpack.c.0.s8 %v8026
      %v8028 = vlaneseq
      %v8029 = vshrl.u32 %v8028, 7
      %v8030 = vsub.s32 %v8027, %v8029
      %v8031 = vrot.slane %v8023, %v8030
      %v8033 = vunpack.c.l.s4 1966171168
      %v8034 = vunpack.c.0.s8 %v8033
      %v8035 = vlaneseq
      %v8036 = vshrl.u32 %v8035, 7
      %v8037 = vsub.s32 %v8034, %v8036
      %v8038 = vrot.slane %v8024, %v8037
      %v8039 = vcombine.low %v7501, %v7523
      %v8040 = vcombine.low %v7515, %v7525
      %v8042 = vunpack.c.l.s4 1935823168
      %v8043 = vunpack.c.0.s8 %v8042
      %v8044 = vlaneseq
      %v8045 = vshrl.u32 %v8044, 7
      %v8046 = vsub.s32 %v8043, %v8045
      %v8047 = vrot.slane %v8039, %v8046
      %v8049 = vunpack.c.l.s4 1935823168
      %v8050 = vunpack.c.0.s8 %v8049
      %v8051 = vlaneseq
      %v8052 = vshrl.u32 %v8051, 7
      %v8053 = vsub.s32 %v8050, %v8052
      %v8054 = vrot.slane %v8040, %v8053
      %v8055 = vcombine.low %v8047, %v8054
      %v8057 = vunpack.c.l.s4 1935823168
      %v8058 = vunpack.c.0.s8 %v8057
      %v8059 = vlaneseq
      %v8060 = vshrl.u32 %v8059, 7
      %v8061 = vsub.s32 %v8058, %v8060
      %v8062 = vrot.slane %v8055, %v8061
      %v8063 = vcombine.low %v7508, %v7524
      %v8064 = vcombine.low %v7522, %v7526
      %v8066 = vunpack.c.l.s4 1935823168
      %v8067 = vunpack.c.0.s8 %v8066
      %v8068 = vlaneseq
      %v8069 = vshrl.u32 %v8068, 7
      %v8070 = vsub.s32 %v8067, %v8069
      %v8071 = vrot.slane %v8063, %v8070
      %v8073 = vunpack.c.l.s4 1935823168
      %v8074 = vunpack.c.0.s8 %v8073
      %v8075 = vlaneseq
      %v8076 = vshrl.u32 %v8075, 7
      %v8077 = vsub.s32 %v8074, %v8076
      %v8078 = vrot.slane %v8064, %v8077
      %v8079 = vcombine.low %v8071, %v8078
      %v8081 = vunpack.c.l.s4 1935823168
      %v8082 = vunpack.c.0.s8 %v8081
      %v8083 = vlaneseq
      %v8084 = vshrl.u32 %v8083, 7
      %v8085 = vsub.s32 %v8082, %v8084
      %v8086 = vrot.slane %v8079, %v8085
      %v8088 = vunpack.c.l.s4 1935823168
      %v8089 = vunpack.c.0.s8 %v8088
      %v8090 = vlaneseq
      %v8091 = vshrl.u32 %v8090, 7
      %v8092 = vsub.s32 %v8089, %v8091
      %v8093 = vrot.slane %v7550, %v8092
      %v8095 = vunpack.c.l.s4 1935823168
      %v8096 = vunpack.c.0.s8 %v8095
      %v8097 = vlaneseq
      %v8098 = vshrl.u32 %v8097, 7
      %v8099 = vsub.s32 %v8096, %v8098
      %v8100 = vrot.slane %v8093, %v8099
      %v8101 = vcombine.low %v7564, %v7574
      %v8102 = vcombine.low %v7572, %v7557
      %v8104 = vunpack.c.l.s4 1935823168
      %v8105 = vunpack.c.0.s8 %v8104
      %v8106 = vlaneseq
      %v8107 = vshrl.u32 %v8106, 7
      %v8108 = vsub.s32 %v8105, %v8107
      %v8109 = vrot.slane %v8101, %v8108
      %v8111 = vunpack.c.l.s4 1935823168
      %v8112 = vunpack.c.0.s8 %v8111
      %v8113 = vlaneseq
      %v8114 = vshrl.u32 %v8113, 7
      %v8115 = vsub.s32 %v8112, %v8114
      %v8116 = vrot.slane %v8102, %v8115
      %v8117 = vcombine.low %v8109, %v8116
      %v8119 = vunpack.c.l.s4 1935823168
      %v8120 = vunpack.c.0.s8 %v8119
      %v8121 = vlaneseq
      %v8122 = vshrl.u32 %v8121, 7
      %v8123 = vsub.s32 %v8120, %v8122
      %v8124 = vrot.slane %v8117, %v8123
      %v8125 = vcombine.low %v7571, %v7575
      %v8126 = vcombine.low %v7573, %v7599
      %v8128 = vunpack.c.l.s4 1935823168
      %v8129 = vunpack.c.0.s8 %v8128
      %v8130 = vlaneseq
      %v8131 = vshrl.u32 %v8130, 7
      %v8132 = vsub.s32 %v8129, %v8131
      %v8133 = vrot.slane %v8125, %v8132
      %v8135 = vunpack.c.l.s4 1935823168
      %v8136 = vunpack.c.0.s8 %v8135
      %v8137 = vlaneseq
      %v8138 = vshrl.u32 %v8137, 7
      %v8139 = vsub.s32 %v8136, %v8138
      %v8140 = vrot.slane %v8126, %v8139
      %v8141 = vcombine.low %v8133, %v8140
      %v8143 = vunpack.c.l.s4 1935823168
      %v8144 = vunpack.c.0.s8 %v8143
      %v8145 = vlaneseq
      %v8146 = vshrl.u32 %v8145, 7
      %v8147 = vsub.s32 %v8144, %v8146
      %v8148 = vrot.slane %v8141, %v8147
      %v8150 = vunpack.c.l.s4 1935823168
      %v8151 = vunpack.c.0.s8 %v8150
      %v8152 = vlaneseq
      %v8153 = vshrl.u32 %v8152, 7
      %v8154 = vsub.s32 %v8151, %v8153
      %v8155 = vrot.slane %v7613, %v8154
      %v8157 = vunpack.c.l.s4 1935823168
      %v8158 = vunpack.c.0.s8 %v8157
      %v8159 = vlaneseq
      %v8160 = vshrl.u32 %v8159, 7
      %v8161 = vsub.s32 %v8158, %v8160
      %v8162 = vrot.slane %v8155, %v8161
      %v8163 = vcombine.low %v7621, %v7606
      %v8164 = vcombine.low %v7623, %v7620
      %v8166 = vunpack.c.l.s4 1935823168
      %v8167 = vunpack.c.0.s8 %v8166
      %v8168 = vlaneseq
      %v8169 = vshrl.u32 %v8168, 7
      %v8170 = vsub.s32 %v8167, %v8169
      %v8171 = vrot.slane %v8163, %v8170
      %v8173 = vunpack.c.l.s4 1935823168
      %v8174 = vunpack.c.0.s8 %v8173
      %v8175 = vlaneseq
      %v8176 = vshrl.u32 %v8175, 7
      %v8177 = vsub.s32 %v8174, %v8176
      %v8178 = vrot.slane %v8164, %v8177
      %v8179 = vcombine.low %v8171, %v8178
      %v8181 = vunpack.c.l.s4 1935823168
      %v8182 = vunpack.c.0.s8 %v8181
      %v8183 = vlaneseq
      %v8184 = vshrl.u32 %v8183, 7
      %v8185 = vsub.s32 %v8182, %v8184
      %v8186 = vrot.slane %v8179, %v8185
      %v8187 = vcombine.low %v7622, %v7648
      %v8188 = vcombine.low %v7624, %v7662
      %v8190 = vunpack.c.l.s4 1935823168
      %v8191 = vunpack.c.0.s8 %v8190
      %v8192 = vlaneseq
      %v8193 = vshrl.u32 %v8192, 7
      %v8194 = vsub.s32 %v8191, %v8193
      %v8195 = vrot.slane %v8187, %v8194
      %v8197 = vunpack.c.l.s4 1935823168
      %v8198 = vunpack.c.0.s8 %v8197
      %v8199 = vlaneseq
      %v8200 = vshrl.u32 %v8199, 7
      %v8201 = vsub.s32 %v8198, %v8200
      %v8202 = vrot.slane %v8188, %v8201
      %v8203 = vcombine.low %v8195, %v8202
      %v8205 = vunpack.c.l.s4 1935823168
      %v8206 = vunpack.c.0.s8 %v8205
      %v8207 = vlaneseq
      %v8208 = vshrl.u32 %v8207, 7
      %v8209 = vsub.s32 %v8206, %v8208
      %v8210 = vrot.slane %v8203, %v8209
      %v8212 = vunpack.c.l.s4 1935823168
      %v8213 = vunpack.c.0.s8 %v8212
      %v8214 = vlaneseq
      %v8215 = vshrl.u32 %v8214, 7
      %v8216 = vsub.s32 %v8213, %v8215
      %v8217 = vrot.slane %v7670, %v8216
      %v8219 = vunpack.c.l.s4 1935823168
      %v8220 = vunpack.c.0.s8 %v8219
      %v8221 = vlaneseq
      %v8222 = vshrl.u32 %v8221, 7
      %v8223 = vsub.s32 %v8220, %v8222
      %v8224 = vrot.slane %v8217, %v8223
      %v8225 = vcombine.low %v7672, %v7669
      %v8226 = vcombine.low %v7655, %v7671
      %v8228 = vunpack.c.l.s4 1935823168
      %v8229 = vunpack.c.0.s8 %v8228
      %v8230 = vlaneseq
      %v8231 = vshrl.u32 %v8230, 7
      %v8232 = vsub.s32 %v8229, %v8231
      %v8233 = vrot.slane %v8225, %v8232
      %v8235 = vunpack.c.l.s4 1935823168
      %v8236 = vunpack.c.0.s8 %v8235
      %v8237 = vlaneseq
      %v8238 = vshrl.u32 %v8237, 7
      %v8239 = vsub.s32 %v8236, %v8238
      %v8240 = vrot.slane %v8226, %v8239
      %v8241 = vcombine.low %v8233, %v8240
      %v8243 = vunpack.c.l.s4 1935823168
      %v8244 = vunpack.c.0.s8 %v8243
      %v8245 = vlaneseq
      %v8246 = vshrl.u32 %v8245, 7
      %v8247 = vsub.s32 %v8244, %v8246
      %v8248 = vrot.slane %v8241, %v8247
      %v8249 = vcombine.low %v7673, %v7711
      %v8250 = vcombine.low %v7697, %v7719
      %v8252 = vunpack.c.l.s4 1935823168
      %v8253 = vunpack.c.0.s8 %v8252
      %v8254 = vlaneseq
      %v8255 = vshrl.u32 %v8254, 7
      %v8256 = vsub.s32 %v8253, %v8255
      %v8257 = vrot.slane %v8249, %v8256
      %v8259 = vunpack.c.l.s4 1935823168
      %v8260 = vunpack.c.0.s8 %v8259
      %v8261 = vlaneseq
      %v8262 = vshrl.u32 %v8261, 7
      %v8263 = vsub.s32 %v8260, %v8262
      %v8264 = vrot.slane %v8250, %v8263
      %v8265 = vcombine.low %v8257, %v8264
      %v8267 = vunpack.c.l.s4 1935823168
      %v8268 = vunpack.c.0.s8 %v8267
      %v8269 = vlaneseq
      %v8270 = vshrl.u32 %v8269, 7
      %v8271 = vsub.s32 %v8268, %v8270
      %v8272 = vrot.slane %v8265, %v8271
      %v8274 = vunpack.c.l.s4 1935823168
      %v8275 = vunpack.c.0.s8 %v8274
      %v8276 = vlaneseq
      %v8277 = vshrl.u32 %v8276, 7
      %v8278 = vsub.s32 %v8275, %v8277
      %v8279 = vrot.slane %v7721, %v8278
      %v8281 = vunpack.c.l.s4 1935823168
      %v8282 = vunpack.c.0.s8 %v8281
      %v8283 = vlaneseq
      %v8284 = vshrl.u32 %v8283, 7
      %v8285 = vsub.s32 %v8282, %v8284
      %v8286 = vrot.slane %v8279, %v8285
      %v8287 = vcombine.low %v7704, %v7720
      %v8288 = vcombine.low %v7718, %v7722
      %v8290 = vunpack.c.l.s4 1935823168
      %v8291 = vunpack.c.0.s8 %v8290
      %v8292 = vlaneseq
      %v8293 = vshrl.u32 %v8292, 7
      %v8294 = vsub.s32 %v8291, %v8293
      %v8295 = vrot.slane %v8287, %v8294
      %v8297 = vunpack.c.l.s4 1935823168
      %v8298 = vunpack.c.0.s8 %v8297
      %v8299 = vlaneseq
      %v8300 = vshrl.u32 %v8299, 7
      %v8301 = vsub.s32 %v8298, %v8300
      %v8302 = vrot.slane %v8288, %v8301
      %v8303 = vcombine.low %v8295, %v8302
      %v8305 = vunpack.c.l.s4 1935823168
      %v8306 = vunpack.c.0.s8 %v8305
      %v8307 = vlaneseq
      %v8308 = vshrl.u32 %v8307, 7
      %v8309 = vsub.s32 %v8306, %v8308
      %v8310 = vrot.slane %v8303, %v8309
      %v8311 = vcombine.low %v7746, %v7768
      %v8312 = vcombine.low %v7760, %v7770
      %v8314 = vunpack.c.l.s4 1935823168
      %v8315 = vunpack.c.0.s8 %v8314
      %v8316 = vlaneseq
      %v8317 = vshrl.u32 %v8316, 7
      %v8318 = vsub.s32 %v8315, %v8317
      %v8319 = vrot.slane %v8311, %v8318
      %v8321 = vunpack.c.l.s4 1935823168
      %v8322 = vunpack.c.0.s8 %v8321
      %v8323 = vlaneseq
      %v8324 = vshrl.u32 %v8323, 7
      %v8325 = vsub.s32 %v8322, %v8324
      %v8326 = vrot.slane %v8312, %v8325
      %v8327 = vcombine.low %v8319, %v8326
      %v8329 = vunpack.c.l.s4 1935823168
      %v8330 = vunpack.c.0.s8 %v8329
      %v8331 = vlaneseq
      %v8332 = vshrl.u32 %v8331, 7
      %v8333 = vsub.s32 %v8330, %v8332
      %v8334 = vrot.slane %v8327, %v8333
      %v8336 = vunpack.c.l.s4 1935823168
      %v8337 = vunpack.c.0.s8 %v8336
      %v8338 = vlaneseq
      %v8339 = vshrl.u32 %v8338, 7
      %v8340 = vsub.s32 %v8337, %v8339
      %v8341 = vrot.slane %v7753, %v8340
      %v8343 = vunpack.c.l.s4 1935823168
      %v8344 = vunpack.c.0.s8 %v8343
      %v8345 = vlaneseq
      %v8346 = vshrl.u32 %v8345, 7
      %v8347 = vsub.s32 %v8344, %v8346
      %v8348 = vrot.slane %v8341, %v8347
      %v8349 = vcombine.low %v7767, %v7771
      %v8350 = vcombine.low %v7769, %v7795
      %v8352 = vunpack.c.l.s4 1935823168
      %v8353 = vunpack.c.0.s8 %v8352
      %v8354 = vlaneseq
      %v8355 = vshrl.u32 %v8354, 7
      %v8356 = vsub.s32 %v8353, %v8355
      %v8357 = vrot.slane %v8349, %v8356
      %v8359 = vunpack.c.l.s4 1935823168
      %v8360 = vunpack.c.0.s8 %v8359
      %v8361 = vlaneseq
      %v8362 = vshrl.u32 %v8361, 7
      %v8363 = vsub.s32 %v8360, %v8362
      %v8364 = vrot.slane %v8350, %v8363
      %v8365 = vcombine.low %v8357, %v8364
      %v8367 = vunpack.c.l.s4 1935823168
      %v8368 = vunpack.c.0.s8 %v8367
      %v8369 = vlaneseq
      %v8370 = vshrl.u32 %v8369, 7
      %v8371 = vsub.s32 %v8368, %v8370
      %v8372 = vrot.slane %v8365, %v8371
      %v8373 = vcombine.low %v7809, %v7819
      %v8374 = vcombine.low %v7817, %v7802
      %v8376 = vunpack.c.l.s4 1935823168
      %v8377 = vunpack.c.0.s8 %v8376
      %v8378 = vlaneseq
      %v8379 = vshrl.u32 %v8378, 7
      %v8380 = vsub.s32 %v8377, %v8379
      %v8381 = vrot.slane %v8373, %v8380
      %v8383 = vunpack.c.l.s4 1935823168
      %v8384 = vunpack.c.0.s8 %v8383
      %v8385 = vlaneseq
      %v8386 = vshrl.u32 %v8385, 7
      %v8387 = vsub.s32 %v8384, %v8386
      %v8388 = vrot.slane %v8374, %v8387
      %v8389 = vcombine.low %v8381, %v8388
      %v8391 = vunpack.c.l.s4 1935823168
      %v8392 = vunpack.c.0.s8 %v8391
      %v8393 = vlaneseq
      %v8394 = vshrl.u32 %v8393, 7
      %v8395 = vsub.s32 %v8392, %v8394
      %v8396 = vrot.slane %v8389, %v8395
      %v8398 = vunpack.c.l.s4 1935823168
      %v8399 = vunpack.c.0.s8 %v8398
      %v8400 = vlaneseq
      %v8401 = vshrl.u32 %v8400, 7
      %v8402 = vsub.s32 %v8399, %v8401
      %v8403 = vrot.slane %v7816, %v8402
      %v8405 = vunpack.c.l.s4 1935823168
      %v8406 = vunpack.c.0.s8 %v8405
      %v8407 = vlaneseq
      %v8408 = vshrl.u32 %v8407, 7
      %v8409 = vsub.s32 %v8406, %v8408
      %v8410 = vrot.slane %v8403, %v8409
      %v8411 = vcombine.low %v7818, %v7844
      %v8412 = vcombine.low %v7820, %v7858
      %v8414 = vunpack.c.l.s4 1935823168
      %v8415 = vunpack.c.0.s8 %v8414
      %v8416 = vlaneseq
      %v8417 = vshrl.u32 %v8416, 7
      %v8418 = vsub.s32 %v8415, %v8417
      %v8419 = vrot.slane %v8411, %v8418
      %v8421 = vunpack.c.l.s4 1935823168
      %v8422 = vunpack.c.0.s8 %v8421
      %v8423 = vlaneseq
      %v8424 = vshrl.u32 %v8423, 7
      %v8425 = vsub.s32 %v8422, %v8424
      %v8426 = vrot.slane %v8412, %v8425
      %v8427 = vcombine.low %v8419, %v8426
      %v8429 = vunpack.c.l.s4 1935823168
      %v8430 = vunpack.c.0.s8 %v8429
      %v8431 = vlaneseq
      %v8432 = vshrl.u32 %v8431, 7
      %v8433 = vsub.s32 %v8430, %v8432
      %v8434 = vrot.slane %v8427, %v8433
      %v8435 = vcombine.low %v7866, %v7851
      %v8436 = vcombine.low %v7868, %v7865
      %v8438 = vunpack.c.l.s4 1935823168
      %v8439 = vunpack.c.0.s8 %v8438
      %v8440 = vlaneseq
      %v8441 = vshrl.u32 %v8440, 7
      %v8442 = vsub.s32 %v8439, %v8441
      %v8443 = vrot.slane %v8435, %v8442
      %v8445 = vunpack.c.l.s4 1935823168
      %v8446 = vunpack.c.0.s8 %v8445
      %v8447 = vlaneseq
      %v8448 = vshrl.u32 %v8447, 7
      %v8449 = vsub.s32 %v8446, %v8448
      %v8450 = vrot.slane %v8436, %v8449
      %v8451 = vcombine.low %v8443, %v8450
      %v8453 = vunpack.c.l.s4 1935823168
      %v8454 = vunpack.c.0.s8 %v8453
      %v8455 = vlaneseq
      %v8456 = vshrl.u32 %v8455, 7
      %v8457 = vsub.s32 %v8454, %v8456
      %v8458 = vrot.slane %v8451, %v8457
      %v8460 = vunpack.c.l.s4 1935823168
      %v8461 = vunpack.c.0.s8 %v8460
      %v8462 = vlaneseq
      %v8463 = vshrl.u32 %v8462, 7
      %v8464 = vsub.s32 %v8461, %v8463
      %v8465 = vrot.slane %v7867, %v8464
      %v8467 = vunpack.c.l.s4 1935823168
      %v8468 = vunpack.c.0.s8 %v8467
      %v8469 = vlaneseq
      %v8470 = vshrl.u32 %v8469, 7
      %v8471 = vsub.s32 %v8468, %v8470
      %v8472 = vrot.slane %v8465, %v8471
      %v8473 = vcombine.low %v7869, %v7907
      %v8474 = vcombine.low %v7893, %v7915
      %v8476 = vunpack.c.l.s4 1935823168
      %v8477 = vunpack.c.0.s8 %v8476
      %v8478 = vlaneseq
      %v8479 = vshrl.u32 %v8478, 7
      %v8480 = vsub.s32 %v8477, %v8479
      %v8481 = vrot.slane %v8473, %v8480
      %v8483 = vunpack.c.l.s4 1935823168
      %v8484 = vunpack.c.0.s8 %v8483
      %v8485 = vlaneseq
      %v8486 = vshrl.u32 %v8485, 7
      %v8487 = vsub.s32 %v8484, %v8486
      %v8488 = vrot.slane %v8474, %v8487
      %v8489 = vcombine.low %v8481, %v8488
      %v8491 = vunpack.c.l.s4 1935823168
      %v8492 = vunpack.c.0.s8 %v8491
      %v8493 = vlaneseq
      %v8494 = vshrl.u32 %v8493, 7
      %v8495 = vsub.s32 %v8492, %v8494
      %v8496 = vrot.slane %v8489, %v8495
      %v8497 = vcombine.low %v7917, %v7914
      %v8498 = vcombine.low %v7900, %v7916
      %v8500 = vunpack.c.l.s4 1935823168
      %v8501 = vunpack.c.0.s8 %v8500
      %v8502 = vlaneseq
      %v8503 = vshrl.u32 %v8502, 7
      %v8504 = vsub.s32 %v8501, %v8503
      %v8505 = vrot.slane %v8497, %v8504
      %v8507 = vunpack.c.l.s4 1935823168
      %v8508 = vunpack.c.0.s8 %v8507
      %v8509 = vlaneseq
      %v8510 = vshrl.u32 %v8509, 7
      %v8511 = vsub.s32 %v8508, %v8510
      %v8512 = vrot.slane %v8498, %v8511
      %v8513 = vcombine.low %v8505, %v8512
      %v8515 = vunpack.c.l.s4 1935823168
      %v8516 = vunpack.c.0.s8 %v8515
      %v8517 = vlaneseq
      %v8518 = vshrl.u32 %v8517, 7
      %v8519 = vsub.s32 %v8516, %v8518
      %v8520 = vrot.slane %v8513, %v8519
      %v8522 = vunpack.c.l.s4 1935823168
      %v8523 = vunpack.c.0.s8 %v8522
      %v8524 = vlaneseq
      %v8525 = vshrl.u32 %v8524, 7
      %v8526 = vsub.s32 %v8523, %v8525
      %v8527 = vrot.slane %v7918, %v8526
      %v8529 = vunpack.c.l.s4 1935823168
      %v8530 = vunpack.c.0.s8 %v8529
      %v8531 = vlaneseq
      %v8532 = vshrl.u32 %v8531, 7
      %v8533 = vsub.s32 %v8530, %v8532
      %v8534 = vrot.slane %v8527, %v8533
      %v8535 = vcombine.low %v7942, %v7964
      %v8536 = vcombine.low %v7956, %v7966
      %v8538 = vunpack.c.l.s4 1935823168
      %v8539 = vunpack.c.0.s8 %v8538
      %v8540 = vlaneseq
      %v8541 = vshrl.u32 %v8540, 7
      %v8542 = vsub.s32 %v8539, %v8541
      %v8543 = vrot.slane %v8535, %v8542
      %v8545 = vunpack.c.l.s4 1935823168
      %v8546 = vunpack.c.0.s8 %v8545
      %v8547 = vlaneseq
      %v8548 = vshrl.u32 %v8547, 7
      %v8549 = vsub.s32 %v8546, %v8548
      %v8550 = vrot.slane %v8536, %v8549
      %v8551 = vcombine.low %v8543, %v8550
      %v8553 = vunpack.c.l.s4 1935823168
      %v8554 = vunpack.c.0.s8 %v8553
      %v8555 = vlaneseq
      %v8556 = vshrl.u32 %v8555, 7
      %v8557 = vsub.s32 %v8554, %v8556
      %v8558 = vrot.slane %v8551, %v8557
      %v8559 = vcombine.low %v7949, %v7965
      %v8560 = vcombine.low %v7963, %v7967
      %v8562 = vunpack.c.l.s4 1935823168
      %v8563 = vunpack.c.0.s8 %v8562
      %v8564 = vlaneseq
      %v8565 = vshrl.u32 %v8564, 7
      %v8566 = vsub.s32 %v8563, %v8565
      %v8567 = vrot.slane %v8559, %v8566
      %v8569 = vunpack.c.l.s4 1935823168
      %v8570 = vunpack.c.0.s8 %v8569
      %v8571 = vlaneseq
      %v8572 = vshrl.u32 %v8571, 7
      %v8573 = vsub.s32 %v8570, %v8572
      %v8574 = vrot.slane %v8560, %v8573
      %v8575 = vcombine.low %v8567, %v8574
      %v8577 = vunpack.c.l.s4 1935823168
      %v8578 = vunpack.c.0.s8 %v8577
      %v8579 = vlaneseq
      %v8580 = vshrl.u32 %v8579, 7
      %v8581 = vsub.s32 %v8578, %v8580
      %v8582 = vrot.slane %v8575, %v8581
      %v8584 = vunpack.c.l.s4 1935823168
      %v8585 = vunpack.c.0.s8 %v8584
      %v8586 = vlaneseq
      %v8587 = vshrl.u32 %v8586, 7
      %v8588 = vsub.s32 %v8585, %v8587
      %v8589 = vrot.slane %v7991, %v8588
      %v8591 = vunpack.c.l.s4 1935823168
      %v8592 = vunpack.c.0.s8 %v8591
      %v8593 = vlaneseq
      %v8594 = vshrl.u32 %v8593, 7
      %v8595 = vsub.s32 %v8592, %v8594
      %v8596 = vrot.slane %v8589, %v8595
      %v8597 = vcombine.low %v8005, %v8015
      %v8598 = vcombine.low %v8013, %v7998
      %v8600 = vunpack.c.l.s4 1935823168
      %v8601 = vunpack.c.0.s8 %v8600
      %v8602 = vlaneseq
      %v8603 = vshrl.u32 %v8602, 7
      %v8604 = vsub.s32 %v8601, %v8603
      %v8605 = vrot.slane %v8597, %v8604
      %v8607 = vunpack.c.l.s4 1935823168
      %v8608 = vunpack.c.0.s8 %v8607
      %v8609 = vlaneseq
      %v8610 = vshrl.u32 %v8609, 7
      %v8611 = vsub.s32 %v8608, %v8610
      %v8612 = vrot.slane %v8598, %v8611
      %v8613 = vcombine.low %v8605, %v8612
      %v8615 = vunpack.c.l.s4 1935823168
      %v8616 = vunpack.c.0.s8 %v8615
      %v8617 = vlaneseq
      %v8618 = vshrl.u32 %v8617, 7
      %v8619 = vsub.s32 %v8616, %v8618
      %v8620 = vrot.slane %v8613, %v8619
      %v8621 = vcombine.low %v8012, %v8016
      %v8622 = vcombine.low %v8014, %v8031
      %v8624 = vunpack.c.l.s4 1935823168
      %v8625 = vunpack.c.0.s8 %v8624
      %v8626 = vlaneseq
      %v8627 = vshrl.u32 %v8626, 7
      %v8628 = vsub.s32 %v8625, %v8627
      %v8629 = vrot.slane %v8621, %v8628
      %v8631 = vunpack.c.l.s4 1935823168
      %v8632 = vunpack.c.0.s8 %v8631
      %v8633 = vlaneseq
      %v8634 = vshrl.u32 %v8633, 7
      %v8635 = vsub.s32 %v8632, %v8634
      %v8636 = vrot.slane %v8622, %v8635
      %v8637 = vcombine.low %v8629, %v8636
      %v8639 = vunpack.c.l.s4 1935823168
      %v8640 = vunpack.c.0.s8 %v8639
      %v8641 = vlaneseq
      %v8642 = vshrl.u32 %v8641, 7
      %v8643 = vsub.s32 %v8640, %v8642
      %v8644 = vrot.slane %v8637, %v8643
      %v8646 = vunpack.c.l.s4 1935823168
      %v8647 = vunpack.c.0.s8 %v8646
      %v8648 = vlaneseq
      %v8649 = vshrl.u32 %v8648, 7
      %v8650 = vsub.s32 %v8647, %v8649
      %v8651 = vrot.slane %v8038, %v8650
      %v8653 = vunpack.c.l.s4 1935823168
      %v8654 = vunpack.c.0.s8 %v8653
      %v8655 = vlaneseq
      %v8656 = vshrl.u32 %v8655, 7
      %v8657 = vsub.s32 %v8654, %v8656
      %v8658 = vrot.slane %v8651, %v8657
      %vm8689 = vcmask 257024
      %8690 = vst.msk [vmem:[#allocation3] sm:$0xf] %vm8689, %v8062
      %8691 = vst.msk [vmem:[#allocation3 + $0x4] sm:$0xf] %vm8689, %v8086
      %vm8692 = vcmask 253952
      %8693 = vst.msk [vmem:[#allocation3 + $0x8] sm:$0x1] %vm8692, %v8100
      %8694 = vst.msk [vmem:[#allocation3 + $0xc] sm:$0xf] %vm8689, %v8124
      %8695 = vst.msk [vmem:[#allocation3 + $0x10] sm:$0xf] %vm8689, %v8148
      %8696 = vst.msk [vmem:[#allocation3 + $0x14] sm:$0x1] %vm8692, %v8162
      %8697 = vst.msk [vmem:[#allocation3 + $0x18] sm:$0xf] %vm8689, %v8186
      %8698 = vst.msk [vmem:[#allocation3 + $0x1c] sm:$0xf] %vm8689, %v8210
      %8699 = vst.msk [vmem:[#allocation3 + $0x20] sm:$0x1] %vm8692, %v8224
      %8700 = vst.msk [vmem:[#allocation3 + $0x24] sm:$0xf] %vm8689, %v8248
      %8701 = vst.msk [vmem:[#allocation3 + $0x28] sm:$0xf] %vm8689, %v8272
      %8702 = vst.msk [vmem:[#allocation3 + $0x2c] sm:$0x1] %vm8692, %v8286
      %8703 = vst.msk [vmem:[#allocation3 + $0x30] sm:$0xf] %vm8689, %v8310
      %8704 = vst.msk [vmem:[#allocation3 + $0x34] sm:$0xf] %vm8689, %v8334
      %8705 = vst.msk [vmem:[#allocation3 + $0x38] sm:$0x1] %vm8692, %v8348
      %8706 = vst.msk [vmem:[#allocation3 + $0x3c] sm:$0xf] %vm8689, %v8372
      %8707 = vst.msk [vmem:[#allocation3 + $0x40] sm:$0xf] %vm8689, %v8396
      %8708 = vst.msk [vmem:[#allocation3 + $0x44] sm:$0x1] %vm8692, %v8410
      %8709 = vst.msk [vmem:[#allocation3 + $0x48] sm:$0xf] %vm8689, %v8434
      %8710 = vst.msk [vmem:[#allocation3 + $0x4c] sm:$0xf] %vm8689, %v8458
      %8711 = vst.msk [vmem:[#allocation3 + $0x50] sm:$0x1] %vm8692, %v8472
      %8712 = vst.msk [vmem:[#allocation3 + $0x54] sm:$0xf] %vm8689, %v8496
      %8713 = vst.msk [vmem:[#allocation3 + $0x58] sm:$0xf] %vm8689, %v8520
      %8714 = vst.msk [vmem:[#allocation3 + $0x5c] sm:$0x1] %vm8692, %v8534
      %8715 = vst.msk [vmem:[#allocation3 + $0x60] sm:$0xf] %vm8689, %v8558
      %8716 = vst.msk [vmem:[#allocation3 + $0x64] sm:$0xf] %vm8689, %v8582
      %8717 = vst.msk [vmem:[#allocation3 + $0x68] sm:$0x1] %vm8692, %v8596
      %8718 = vst.msk [vmem:[#allocation3 + $0x6c] sm:$0xf] %vm8689, %v8620
      %8719 = vst.msk [vmem:[#allocation3 + $0x70] sm:$0xf] %vm8689, %v8644
      %8720 = vst.msk [vmem:[#allocation3 + $0x74] sm:$0x1] %vm8692, %v8658
      %vm8721 = vcmask 253952
      %vm8722 = vsmask.f32 256
      %vm8723 = vmand %vm8721, %vm8722
      %v8724 = vld [vmem:[#allocation3] sm:$0x1]
      %v8725 = vsel %vm8723, 0, %v8724
      %8726 = vst [vmem:[#allocation3] sm:$0x1] %v8725
      %v8727 = vld [vmem:[#allocation3 + $0xc] sm:$0x1]
      %v8728 = vsel %vm8723, 0, %v8727
      %8729 = vst [vmem:[#allocation3 + $0xc] sm:$0x1] %v8728
      %v8730 = vld [vmem:[#allocation3 + $0x18] sm:$0x1]
      %v8731 = vsel %vm8723, 0, %v8730
      %8732 = vst [vmem:[#allocation3 + $0x18] sm:$0x1] %v8731
      %v8733 = vld [vmem:[#allocation3 + $0x24] sm:$0x1]
      %v8734 = vsel %vm8723, 0, %v8733
      %8735 = vst [vmem:[#allocation3 + $0x24] sm:$0x1] %v8734
      %v8736 = vld [vmem:[#allocation3 + $0x30] sm:$0x1]
      %v8737 = vsel %vm8723, 0, %v8736
      %8738 = vst [vmem:[#allocation3 + $0x30] sm:$0x1] %v8737
      %v8739 = vld [vmem:[#allocation3 + $0x3c] sm:$0x1]
      %v8740 = vsel %vm8723, 0, %v8739
      %8741 = vst [vmem:[#allocation3 + $0x3c] sm:$0x1] %v8740
      %v8742 = vld [vmem:[#allocation3 + $0x48] sm:$0x1]
      %v8743 = vsel %vm8723, 0, %v8742
      %8744 = vst [vmem:[#allocation3 + $0x48] sm:$0x1] %v8743
      %v8745 = vld [vmem:[#allocation3 + $0x54] sm:$0x1]
      %v8746 = vsel %vm8723, 0, %v8745
      %8747 = vst [vmem:[#allocation3 + $0x54] sm:$0x1] %v8746
      %v8748 = vld [vmem:[#allocation3 + $0x60] sm:$0x1]
      %v8749 = vsel %vm8723, 0, %v8748
      %8750 = vst [vmem:[#allocation3 + $0x60] sm:$0x1] %v8749
      %v8751 = vld [vmem:[#allocation3 + $0x6c] sm:$0x1]
      %v8752 = vsel %vm8723, 0, %v8751
      %8753 = vst [vmem:[#allocation3 + $0x6c] sm:$0x1] %v8752
      %vm8754 = vsmask.f32 7938
      %vm8755 = vmand %vm8721, %vm8754
      %v8756 = vld [vmem:[#allocation3 + $0x8] sm:$0x1]
      %v8757 = vsel %vm8755, 0, %v8756
      %8758 = vst [vmem:[#allocation3 + $0x8] sm:$0x1] %v8757
      %v8759 = vld [vmem:[#allocation3 + $0x14] sm:$0x1]
      %v8760 = vsel %vm8755, 0, %v8759
      %8761 = vst [vmem:[#allocation3 + $0x14] sm:$0x1] %v8760
      %v8762 = vld [vmem:[#allocation3 + $0x20] sm:$0x1]
      %v8763 = vsel %vm8755, 0, %v8762
      %8764 = vst [vmem:[#allocation3 + $0x20] sm:$0x1] %v8763
      %v8765 = vld [vmem:[#allocation3 + $0x2c] sm:$0x1]
      %v8766 = vsel %vm8755, 0, %v8765
      %8767 = vst [vmem:[#allocation3 + $0x2c] sm:$0x1] %v8766
      %v8768 = vld [vmem:[#allocation3 + $0x38] sm:$0x1]
      %v8769 = vsel %vm8755, 0, %v8768
      %8770 = vst [vmem:[#allocation3 + $0x38] sm:$0x1] %v8769
      %v8771 = vld [vmem:[#allocation3 + $0x44] sm:$0x1]
      %v8772 = vsel %vm8755, 0, %v8771
      %8773 = vst [vmem:[#allocation3 + $0x44] sm:$0x1] %v8772
      %v8774 = vld [vmem:[#allocation3 + $0x50] sm:$0x1]
      %v8775 = vsel %vm8755, 0, %v8774
      %8776 = vst [vmem:[#allocation3 + $0x50] sm:$0x1] %v8775
      %v8777 = vld [vmem:[#allocation3 + $0x5c] sm:$0x1]
      %v8778 = vsel %vm8755, 0, %v8777
      %8779 = vst [vmem:[#allocation3 + $0x5c] sm:$0x1] %v8778
      %v8780 = vld [vmem:[#allocation3 + $0x68] sm:$0x1]
      %v8781 = vsel %vm8755, 0, %v8780
      %8782 = vst [vmem:[#allocation3 + $0x68] sm:$0x1] %v8781
      %v8783 = vld [vmem:[#allocation3 + $0x74] sm:$0x1]
      %v8784 = vsel %vm8755, 0, %v8783
      %8785 = vst [vmem:[#allocation3 + $0x74] sm:$0x1] %v8784
      // Predicated region
      $region73: #{_lambda_.2} parent=55 // pred_check
        %p8786 = pneg %p693
      $region74: #{_lambda_.2} parent=55 // pred_check_branch
        %8788 = sbr.rel (%p8786) target = $region76
      $region75: #{_lambda_.2} parent=55 // pred_region
        %8789 = vst.msk [vmem:[#allocation3] sm:$0xf] %vm8689, 0
        %8790 = vst.msk [vmem:[#allocation3 + $0x4] sm:$0xf] %vm8689, 0
        %8791 = vst.msk [vmem:[#allocation3 + $0x8] sm:$0x1] %vm8692, 0
      $region76: #{_lambda_.2} parent=55 // pred_fallthru
        _
      // Predicated region
      $region77: #{_lambda_.2} parent=55 // pred_check
        %p8792 = pneg %p738
      $region78: #{_lambda_.2} parent=55 // pred_check_branch
        %8794 = sbr.rel (%p8792) target = $region80
      $region79: #{_lambda_.2} parent=55 // pred_region
        %s8795 = scalar_lea.vmem [#allocation3], 108
        %8796 = vst.msk [vmem:[%s8795] sm:$0xf] %vm8689, 0
        %8797 = vst.msk [vmem:[%s8795 + $0x4] sm:$0xf] %vm8689, 0
        %8798 = vst.msk [vmem:[%s8795 + $0x8] sm:$0x1] %vm8692, 0
      $region80: #{_lambda_.2} parent=55 // pred_fallthru
        _
      %v8799 = vld [vmem:[#allocation3] sm:$0xf]
      %v8800 = vld [vmem:[#allocation3 + $0x4] sm:$0xf]
      %v8801 = vld [vmem:[#allocation3 + $0xc] sm:$0xf]
      %v8802 = vld [vmem:[#allocation3 + $0x10] sm:$0xf]
      %v8803 = vld [vmem:[#allocation3 + $0x18] sm:$0xf]
      %v8804 = vld [vmem:[#allocation3 + $0x1c] sm:$0xf]
      %v8805 = vld [vmem:[#allocation3 + $0x24] sm:$0xf]
      %v8806 = vld [vmem:[#allocation3 + $0x28] sm:$0xf]
      %v8807 = vld [vmem:[#allocation3 + $0x30] sm:$0xf]
      %v8808 = vld [vmem:[#allocation3 + $0x34] sm:$0xf]
      %v8809 = vld [vmem:[#allocation3 + $0x3c] sm:$0xf]
      %v8810 = vld [vmem:[#allocation3 + $0x40] sm:$0xf]
      %v8811 = vld [vmem:[#allocation3 + $0x48] sm:$0xf]
      %v8812 = vld [vmem:[#allocation3 + $0x4c] sm:$0xf]
      %v8813 = vld [vmem:[#allocation3 + $0x54] sm:$0xf]
      %v8814 = vld [vmem:[#allocation3 + $0x58] sm:$0xf]
      %v8815 = vld [vmem:[#allocation3 + $0x8] sm:$0x1]
      %v8816 = vld [vmem:[#allocation3 + $0x14] sm:$0x1]
      %v8817 = vld [vmem:[#allocation3 + $0x20] sm:$0x1]
      %v8818 = vld [vmem:[#allocation3 + $0x2c] sm:$0x1]
      %v8819 = vld [vmem:[#allocation3 + $0x38] sm:$0x1]
      %v8820 = vld [vmem:[#allocation3 + $0x44] sm:$0x1]
      %v8821 = vld [vmem:[#allocation3 + $0x50] sm:$0x1]
      %v8822 = vld [vmem:[#allocation3 + $0x5c] sm:$0x1]
      %v8823 = vld [vmem:[#allocation3] sm:$0xe]
      %v8824 = vld [vmem:[#allocation3 + $0xc] sm:$0xe]
      %v8825 = vld [vmem:[#allocation3 + $0x18] sm:$0xe]
      %v8826 = vld [vmem:[#allocation3 + $0x24] sm:$0xe]
      %v8827 = vld [vmem:[#allocation3 + $0x30] sm:$0xe]
      %v8828 = vld [vmem:[#allocation3 + $0x3c] sm:$0xe]
      %v8829 = vld [vmem:[#allocation3 + $0x48] sm:$0xe]
      %v8830 = vld [vmem:[#allocation3 + $0x54] sm:$0xe]
      %v8847 = vunpack.c.l.b16 %v8799
      %v8848 = vunpack.c.l.b16 %v8800
      %v8849 = vunpack.c.l.b16 %v8801
      %v8850 = vunpack.c.l.b16 %v8802
      %v8851 = vunpack.c.l.b16 %v8803
      %v8852 = vunpack.c.l.b16 %v8804
      %v8853 = vunpack.c.l.b16 %v8805
      %v8854 = vunpack.c.l.b16 %v8806
      %v8855 = vunpack.c.l.b16 %v8807
      %v8856 = vunpack.c.l.b16 %v8808
      %v8857 = vunpack.c.l.b16 %v8809
      %v8858 = vunpack.c.l.b16 %v8810
      %v8859 = vunpack.c.l.b16 %v8811
      %v8860 = vunpack.c.l.b16 %v8812
      %v8861 = vunpack.c.l.b16 %v8813
      %v8862 = vunpack.c.l.b16 %v8814
      %v8863 = vpack.c.b16 %v8848, %v8847
      %v8864 = vpack.c.b16 %v8850, %v8849
      %v8865 = vpack.c.b16 %v8852, %v8851
      %v8866 = vpack.c.b16 %v8854, %v8853
      %v8867 = vpack.c.b16 %v8856, %v8855
      %v8868 = vpack.c.b16 %v8858, %v8857
      %v8869 = vpack.c.b16 %v8860, %v8859
      %v8870 = vpack.c.b16 %v8862, %v8861
      %v8879 = vunpack.c.l.b16 %v8815
      %v8880 = vunpack.c.l.b16 %v8816
      %v8881 = vunpack.c.l.b16 %v8817
      %v8882 = vunpack.c.l.b16 %v8818
      %v8883 = vunpack.c.l.b16 %v8819
      %v8884 = vunpack.c.l.b16 %v8820
      %v8885 = vunpack.c.l.b16 %v8821
      %v8886 = vunpack.c.l.b16 %v8822
      %v8887 = vpack.c.b16 %v8879, %v8879
      %v8888 = vpack.c.b16 %v8880, %v8880
      %v8889 = vpack.c.b16 %v8881, %v8881
      %v8890 = vpack.c.b16 %v8882, %v8882
      %v8891 = vpack.c.b16 %v8883, %v8883
      %v8892 = vpack.c.b16 %v8884, %v8884
      %v8893 = vpack.c.b16 %v8885, %v8885
      %v8894 = vpack.c.b16 %v8886, %v8886
      %v8896 = vshrl.u32 %v8863, 16
      %v8898 = vshll.u32 %v8863, 16
      %v8900 = vrot.slane %v8898, 1
      %v8901 = vor.u32 %v8896, %v8900
      %v8903 = vshll.u32 %v8887, 16
      %v8905 = vrot.slane %v8903, 1
      %v8906 = vsel %vm909, %v8901, %v8905
      %v8908 = vshrl.u32 %v8864, 16
      %v8910 = vshll.u32 %v8864, 16
      %v8912 = vrot.slane %v8910, 1
      %v8913 = vor.u32 %v8908, %v8912
      %v8915 = vshll.u32 %v8888, 16
      %v8917 = vrot.slane %v8915, 1
      %v8918 = vsel %vm909, %v8913, %v8917
      %v8920 = vshrl.u32 %v8865, 16
      %v8922 = vshll.u32 %v8865, 16
      %v8924 = vrot.slane %v8922, 1
      %v8925 = vor.u32 %v8920, %v8924
      %v8927 = vshll.u32 %v8889, 16
      %v8929 = vrot.slane %v8927, 1
      %v8930 = vsel %vm909, %v8925, %v8929
      %v8932 = vshrl.u32 %v8866, 16
      %v8934 = vshll.u32 %v8866, 16
      %v8936 = vrot.slane %v8934, 1
      %v8937 = vor.u32 %v8932, %v8936
      %v8939 = vshll.u32 %v8890, 16
      %v8941 = vrot.slane %v8939, 1
      %v8942 = vsel %vm909, %v8937, %v8941
      %v8944 = vshrl.u32 %v8867, 16
      %v8946 = vshll.u32 %v8867, 16
      %v8948 = vrot.slane %v8946, 1
      %v8949 = vor.u32 %v8944, %v8948
      %v8951 = vshll.u32 %v8891, 16
      %v8953 = vrot.slane %v8951, 1
      %v8954 = vsel %vm909, %v8949, %v8953
      %v8956 = vshrl.u32 %v8868, 16
      %v8958 = vshll.u32 %v8868, 16
      %v8960 = vrot.slane %v8958, 1
      %v8961 = vor.u32 %v8956, %v8960
      %v8963 = vshll.u32 %v8892, 16
      %v8965 = vrot.slane %v8963, 1
      %v8966 = vsel %vm909, %v8961, %v8965
      %v8968 = vshrl.u32 %v8869, 16
      %v8970 = vshll.u32 %v8869, 16
      %v8972 = vrot.slane %v8970, 1
      %v8973 = vor.u32 %v8968, %v8972
      %v8975 = vshll.u32 %v8893, 16
      %v8977 = vrot.slane %v8975, 1
      %v8978 = vsel %vm909, %v8973, %v8977
      %v8980 = vshrl.u32 %v8870, 16
      %v8982 = vshll.u32 %v8870, 16
      %v8984 = vrot.slane %v8982, 1
      %v8985 = vor.u32 %v8980, %v8984
      %v8987 = vshll.u32 %v8894, 16
      %v8989 = vrot.slane %v8987, 1
      %v8990 = vsel %vm909, %v8985, %v8989
      %8991 = vrot.lane.b32.xlu0 %v8906, 32
      %v8992 = vpop.permute.xlu0 %8991
      %8993 = vrot.lane.b32.xlu0 %v8918, 32
      %v8994 = vpop.permute.xlu0 %8993
      %8995 = vrot.lane.b32.xlu0 %v8930, 32
      %v8996 = vpop.permute.xlu0 %8995
      %8997 = vrot.lane.b32.xlu0 %v8942, 32
      %v8998 = vpop.permute.xlu0 %8997
      %8999 = vrot.lane.b32.xlu0 %v8954, 32
      %v9000 = vpop.permute.xlu0 %8999
      %9001 = vrot.lane.b32.xlu0 %v8966, 32
      %v9002 = vpop.permute.xlu0 %9001
      %9003 = vrot.lane.b32.xlu0 %v8978, 32
      %v9004 = vpop.permute.xlu0 %9003
      %9005 = vrot.lane.b32.xlu0 %v8990, 32
      %v9006 = vpop.permute.xlu0 %9005
      %v9015 = vunpack.c.l.b16 %v8823
      %v9016 = vunpack.c.l.b16 %v8824
      %v9017 = vunpack.c.l.b16 %v8825
      %v9018 = vunpack.c.l.b16 %v8826
      %v9019 = vunpack.c.l.b16 %v8827
      %v9020 = vunpack.c.l.b16 %v8828
      %v9021 = vunpack.c.l.b16 %v8829
      %v9022 = vunpack.c.l.b16 %v8830
      %v9023 = vpack.c.b16 %v8848, %v9015
      %v9024 = vpack.c.b16 %v8850, %v9016
      %v9025 = vpack.c.b16 %v8852, %v9017
      %v9026 = vpack.c.b16 %v8854, %v9018
      %v9027 = vpack.c.b16 %v8856, %v9019
      %v9028 = vpack.c.b16 %v8858, %v9020
      %v9029 = vpack.c.b16 %v8860, %v9021
      %v9030 = vpack.c.b16 %v8862, %v9022
      %v9031 = vrot.slane %v9023, 1
      %v9032 = vrot.slane %v8887, 1
      %v9033 = vsel %vm1130, %v9031, %v9032
      %v9034 = vrot.slane %v9024, 1
      %v9035 = vrot.slane %v8888, 1
      %v9036 = vsel %vm1130, %v9034, %v9035
      %v9037 = vrot.slane %v9025, 1
      %v9038 = vrot.slane %v8889, 1
      %v9039 = vsel %vm1130, %v9037, %v9038
      %v9040 = vrot.slane %v9026, 1
      %v9041 = vrot.slane %v8890, 1
      %v9042 = vsel %vm1130, %v9040, %v9041
      %v9043 = vrot.slane %v9027, 1
      %v9044 = vrot.slane %v8891, 1
      %v9045 = vsel %vm1130, %v9043, %v9044
      %v9046 = vrot.slane %v9028, 1
      %v9047 = vrot.slane %v8892, 1
      %v9048 = vsel %vm1130, %v9046, %v9047
      %v9049 = vrot.slane %v9029, 1
      %v9050 = vrot.slane %v8893, 1
      %v9051 = vsel %vm1130, %v9049, %v9050
      %v9052 = vrot.slane %v9030, 1
      %v9053 = vrot.slane %v8894, 1
      %v9054 = vsel %vm1130, %v9052, %v9053
      %9055 = vrot.lane.b32.xlu0 %v9033, 64
      %v9056 = vpop.permute.xlu0 %9055
      %9057 = vrot.lane.b32.xlu0 %v9036, 64
      %v9058 = vpop.permute.xlu0 %9057
      %9059 = vrot.lane.b32.xlu0 %v9039, 64
      %v9060 = vpop.permute.xlu0 %9059
      %9061 = vrot.lane.b32.xlu0 %v9042, 64
      %v9062 = vpop.permute.xlu0 %9061
      %9063 = vrot.lane.b32.xlu0 %v9045, 64
      %v9064 = vpop.permute.xlu0 %9063
      %9065 = vrot.lane.b32.xlu0 %v9048, 64
      %v9066 = vpop.permute.xlu0 %9065
      %9067 = vrot.lane.b32.xlu0 %v9051, 64
      %v9068 = vpop.permute.xlu0 %9067
      %9069 = vrot.lane.b32.xlu0 %v9054, 64
      %v9070 = vpop.permute.xlu0 %9069
      %vm9071 = vcmask 261120
      %v9073 = vsel %vm9071, %v8863, %v8992
      %v9075 = vsel %vm9071, %v8864, %v8994
      %v9077 = vsel %vm9071, %v8865, %v8996
      %v9079 = vsel %vm9071, %v8866, %v8998
      %v9081 = vsel %vm9071, %v8867, %v9000
      %v9083 = vsel %vm9071, %v8868, %v9002
      %v9085 = vsel %vm9071, %v8869, %v9004
      %v9087 = vsel %vm9071, %v8870, %v9006
      %vm9088 = vcmask 523264
      %v9090 = vsel %vm9088, %v9073, %v9056
      %v9092 = vsel %vm9088, %v9075, %v9058
      %v9094 = vsel %vm9088, %v9077, %v9060
      %v9096 = vsel %vm9088, %v9079, %v9062
      %v9098 = vsel %vm9088, %v9081, %v9064
      %v9100 = vsel %vm9088, %v9083, %v9066
      %v9102 = vsel %vm9088, %v9085, %v9068
      %v9104 = vsel %vm9088, %v9087, %v9070
      %v9105 = vld [vmem:[%s5] sm:$0xf]
      %v9106 = vld [vmem:[%s5 + $0x4] sm:$0xf]
      %v9107 = vld [vmem:[%s5 + $0x8] sm:$0xf]
      %v9108 = vld [vmem:[%s5 + $0xc] sm:$0xf]
      %v9109 = vld [vmem:[%s5 + $0x10] sm:$0xf]
      %v9110 = vld [vmem:[%s5 + $0x14] sm:$0xf]
      %v9111 = vld [vmem:[%s5 + $0x18] sm:$0xf]
      %v9112 = vld [vmem:[%s5 + $0x1c] sm:$0xf]
      %v9113 = vld [vmem:[%s5 + $0x20] sm:$0xf]
      %v9114 = vld [vmem:[%s5 + $0x24] sm:$0xf]
      %v9115 = vld [vmem:[%s5 + $0x28] sm:$0xf]
      %v9116 = vld [vmem:[%s5 + $0x2c] sm:$0xf]
      %s9117 = scalar_lea.vmem [#allocation3], 12
      %v9118 = vld [vmem:[%s9117] sm:$0xf]
      %v9119 = vld [vmem:[%s9117 + $0x4] sm:$0xf]
      %v9120 = vld [vmem:[%s9117 + $0xc] sm:$0xf]
      %v9121 = vld [vmem:[%s9117 + $0x10] sm:$0xf]
      %v9122 = vld [vmem:[%s9117 + $0x18] sm:$0xf]
      %v9123 = vld [vmem:[%s9117 + $0x1c] sm:$0xf]
      %v9124 = vld [vmem:[%s9117 + $0x24] sm:$0xf]
      %v9125 = vld [vmem:[%s9117 + $0x28] sm:$0xf]
      %v9126 = vld [vmem:[%s9117 + $0x30] sm:$0xf]
      %v9127 = vld [vmem:[%s9117 + $0x34] sm:$0xf]
      %v9128 = vld [vmem:[%s9117 + $0x3c] sm:$0xf]
      %v9129 = vld [vmem:[%s9117 + $0x40] sm:$0xf]
      %v9130 = vld [vmem:[%s9117 + $0x48] sm:$0xf]
      %v9131 = vld [vmem:[%s9117 + $0x4c] sm:$0xf]
      %v9132 = vld [vmem:[%s9117 + $0x54] sm:$0xf]
      %v9133 = vld [vmem:[%s9117 + $0x58] sm:$0xf]
      %v9134 = vld [vmem:[%s9117 + $0x8] sm:$0x1]
      %v9135 = vld [vmem:[%s9117 + $0x14] sm:$0x1]
      %v9136 = vld [vmem:[%s9117 + $0x20] sm:$0x1]
      %v9137 = vld [vmem:[%s9117 + $0x2c] sm:$0x1]
      %v9138 = vld [vmem:[%s9117 + $0x38] sm:$0x1]
      %v9139 = vld [vmem:[%s9117 + $0x44] sm:$0x1]
      %v9140 = vld [vmem:[%s9117 + $0x50] sm:$0x1]
      %v9141 = vld [vmem:[%s9117 + $0x5c] sm:$0x1]
      %v9142 = vld [vmem:[%s9117] sm:$0xe]
      %v9143 = vld [vmem:[%s9117 + $0xc] sm:$0xe]
      %v9144 = vld [vmem:[%s9117 + $0x18] sm:$0xe]
      %v9145 = vld [vmem:[%s9117 + $0x24] sm:$0xe]
      %v9146 = vld [vmem:[%s9117 + $0x30] sm:$0xe]
      %v9147 = vld [vmem:[%s9117 + $0x3c] sm:$0xe]
      %v9148 = vld [vmem:[%s9117 + $0x48] sm:$0xe]
      %v9149 = vld [vmem:[%s9117 + $0x54] sm:$0xe]
      %v9166 = vunpack.c.l.b16 %v9118
      %v9167 = vunpack.c.l.b16 %v9119
      %v9168 = vunpack.c.l.b16 %v9120
      %v9169 = vunpack.c.l.b16 %v9121
      %v9170 = vunpack.c.l.b16 %v9122
      %v9171 = vunpack.c.l.b16 %v9123
      %v9172 = vunpack.c.l.b16 %v9124
      %v9173 = vunpack.c.l.b16 %v9125
      %v9174 = vunpack.c.l.b16 %v9126
      %v9175 = vunpack.c.l.b16 %v9127
      %v9176 = vunpack.c.l.b16 %v9128
      %v9177 = vunpack.c.l.b16 %v9129
      %v9178 = vunpack.c.l.b16 %v9130
      %v9179 = vunpack.c.l.b16 %v9131
      %v9180 = vunpack.c.l.b16 %v9132
      %v9181 = vunpack.c.l.b16 %v9133
      %v9182 = vpack.c.b16 %v9167, %v9166
      %v9183 = vpack.c.b16 %v9169, %v9168
      %v9184 = vpack.c.b16 %v9171, %v9170
      %v9185 = vpack.c.b16 %v9173, %v9172
      %v9186 = vpack.c.b16 %v9175, %v9174
      %v9187 = vpack.c.b16 %v9177, %v9176
      %v9188 = vpack.c.b16 %v9179, %v9178
      %v9189 = vpack.c.b16 %v9181, %v9180
      %v9198 = vunpack.c.l.b16 %v9134
      %v9199 = vunpack.c.l.b16 %v9135
      %v9200 = vunpack.c.l.b16 %v9136
      %v9201 = vunpack.c.l.b16 %v9137
      %v9202 = vunpack.c.l.b16 %v9138
      %v9203 = vunpack.c.l.b16 %v9139
      %v9204 = vunpack.c.l.b16 %v9140
      %v9205 = vunpack.c.l.b16 %v9141
      %v9206 = vpack.c.b16 %v9198, %v9198
      %v9207 = vpack.c.b16 %v9199, %v9199
      %v9208 = vpack.c.b16 %v9200, %v9200
      %v9209 = vpack.c.b16 %v9201, %v9201
      %v9210 = vpack.c.b16 %v9202, %v9202
      %v9211 = vpack.c.b16 %v9203, %v9203
      %v9212 = vpack.c.b16 %v9204, %v9204
      %v9213 = vpack.c.b16 %v9205, %v9205
      %v9215 = vshrl.u32 %v9182, 16
      %v9217 = vshll.u32 %v9182, 16
      %v9219 = vrot.slane %v9217, 1
      %v9220 = vor.u32 %v9215, %v9219
      %v9222 = vshll.u32 %v9206, 16
      %v9224 = vrot.slane %v9222, 1
      %v9225 = vsel %vm909, %v9220, %v9224
      %v9227 = vshrl.u32 %v9183, 16
      %v9229 = vshll.u32 %v9183, 16
      %v9231 = vrot.slane %v9229, 1
      %v9232 = vor.u32 %v9227, %v9231
      %v9234 = vshll.u32 %v9207, 16
      %v9236 = vrot.slane %v9234, 1
      %v9237 = vsel %vm909, %v9232, %v9236
      %v9239 = vshrl.u32 %v9184, 16
      %v9241 = vshll.u32 %v9184, 16
      %v9243 = vrot.slane %v9241, 1
      %v9244 = vor.u32 %v9239, %v9243
      %v9246 = vshll.u32 %v9208, 16
      %v9248 = vrot.slane %v9246, 1
      %v9249 = vsel %vm909, %v9244, %v9248
      %v9251 = vshrl.u32 %v9185, 16
      %v9253 = vshll.u32 %v9185, 16
      %v9255 = vrot.slane %v9253, 1
      %v9256 = vor.u32 %v9251, %v9255
      %v9258 = vshll.u32 %v9209, 16
      %v9260 = vrot.slane %v9258, 1
      %v9261 = vsel %vm909, %v9256, %v9260
      %v9263 = vshrl.u32 %v9186, 16
      %v9265 = vshll.u32 %v9186, 16
      %v9267 = vrot.slane %v9265, 1
      %v9268 = vor.u32 %v9263, %v9267
      %v9270 = vshll.u32 %v9210, 16
      %v9272 = vrot.slane %v9270, 1
      %v9273 = vsel %vm909, %v9268, %v9272
      %v9275 = vshrl.u32 %v9187, 16
      %v9277 = vshll.u32 %v9187, 16
      %v9279 = vrot.slane %v9277, 1
      %v9280 = vor.u32 %v9275, %v9279
      %v9282 = vshll.u32 %v9211, 16
      %v9284 = vrot.slane %v9282, 1
      %v9285 = vsel %vm909, %v9280, %v9284
      %v9287 = vshrl.u32 %v9188, 16
      %v9289 = vshll.u32 %v9188, 16
      %v9291 = vrot.slane %v9289, 1
      %v9292 = vor.u32 %v9287, %v9291
      %v9294 = vshll.u32 %v9212, 16
      %v9296 = vrot.slane %v9294, 1
      %v9297 = vsel %vm909, %v9292, %v9296
      %v9299 = vshrl.u32 %v9189, 16
      %v9301 = vshll.u32 %v9189, 16
      %v9303 = vrot.slane %v9301, 1
      %v9304 = vor.u32 %v9299, %v9303
      %v9306 = vshll.u32 %v9213, 16
      %v9308 = vrot.slane %v9306, 1
      %v9309 = vsel %vm909, %v9304, %v9308
      %9310 = vrot.lane.b32.xlu0 %v9225, 32
      %v9311 = vpop.permute.xlu0 %9310
      %9312 = vrot.lane.b32.xlu0 %v9237, 32
      %v9313 = vpop.permute.xlu0 %9312
      %9314 = vrot.lane.b32.xlu0 %v9249, 32
      %v9315 = vpop.permute.xlu0 %9314
      %9316 = vrot.lane.b32.xlu0 %v9261, 32
      %v9317 = vpop.permute.xlu0 %9316
      %9318 = vrot.lane.b32.xlu0 %v9273, 32
      %v9319 = vpop.permute.xlu0 %9318
      %9320 = vrot.lane.b32.xlu0 %v9285, 32
      %v9321 = vpop.permute.xlu0 %9320
      %9322 = vrot.lane.b32.xlu0 %v9297, 32
      %v9323 = vpop.permute.xlu0 %9322
      %9324 = vrot.lane.b32.xlu0 %v9309, 32
      %v9325 = vpop.permute.xlu0 %9324
      %v9334 = vunpack.c.l.b16 %v9142
      %v9335 = vunpack.c.l.b16 %v9143
      %v9336 = vunpack.c.l.b16 %v9144
      %v9337 = vunpack.c.l.b16 %v9145
      %v9338 = vunpack.c.l.b16 %v9146
      %v9339 = vunpack.c.l.b16 %v9147
      %v9340 = vunpack.c.l.b16 %v9148
      %v9341 = vunpack.c.l.b16 %v9149
      %v9342 = vpack.c.b16 %v9167, %v9334
      %v9343 = vpack.c.b16 %v9169, %v9335
      %v9344 = vpack.c.b16 %v9171, %v9336
      %v9345 = vpack.c.b16 %v9173, %v9337
      %v9346 = vpack.c.b16 %v9175, %v9338
      %v9347 = vpack.c.b16 %v9177, %v9339
      %v9348 = vpack.c.b16 %v9179, %v9340
      %v9349 = vpack.c.b16 %v9181, %v9341
      %v9350 = vrot.slane %v9342, 1
      %v9351 = vrot.slane %v9206, 1
      %v9352 = vsel %vm1130, %v9350, %v9351
      %v9353 = vrot.slane %v9343, 1
      %v9354 = vrot.slane %v9207, 1
      %v9355 = vsel %vm1130, %v9353, %v9354
      %v9356 = vrot.slane %v9344, 1
      %v9357 = vrot.slane %v9208, 1
      %v9358 = vsel %vm1130, %v9356, %v9357
      %v9359 = vrot.slane %v9345, 1
      %v9360 = vrot.slane %v9209, 1
      %v9361 = vsel %vm1130, %v9359, %v9360
      %v9362 = vrot.slane %v9346, 1
      %v9363 = vrot.slane %v9210, 1
      %v9364 = vsel %vm1130, %v9362, %v9363
      %v9365 = vrot.slane %v9347, 1
      %v9366 = vrot.slane %v9211, 1
      %v9367 = vsel %vm1130, %v9365, %v9366
      %v9368 = vrot.slane %v9348, 1
      %v9369 = vrot.slane %v9212, 1
      %v9370 = vsel %vm1130, %v9368, %v9369
      %v9371 = vrot.slane %v9349, 1
      %v9372 = vrot.slane %v9213, 1
      %v9373 = vsel %vm1130, %v9371, %v9372
      %9374 = vrot.lane.b32.xlu0 %v9352, 64
      %v9375 = vpop.permute.xlu0 %9374
      %9376 = vrot.lane.b32.xlu0 %v9355, 64
      %v9377 = vpop.permute.xlu0 %9376
      %9378 = vrot.lane.b32.xlu0 %v9358, 64
      %v9379 = vpop.permute.xlu0 %9378
      %9380 = vrot.lane.b32.xlu0 %v9361, 64
      %v9381 = vpop.permute.xlu0 %9380
      %9382 = vrot.lane.b32.xlu0 %v9364, 64
      %v9383 = vpop.permute.xlu0 %9382
      %9384 = vrot.lane.b32.xlu0 %v9367, 64
      %v9385 = vpop.permute.xlu0 %9384
      %9386 = vrot.lane.b32.xlu0 %v9370, 64
      %v9387 = vpop.permute.xlu0 %9386
      %9388 = vrot.lane.b32.xlu0 %v9373, 64
      %v9389 = vpop.permute.xlu0 %9388
      %v9391 = vsel %vm9071, %v9182, %v9311
      %v9393 = vsel %vm9071, %v9183, %v9313
      %v9395 = vsel %vm9071, %v9184, %v9315
      %v9397 = vsel %vm9071, %v9185, %v9317
      %v9399 = vsel %vm9071, %v9186, %v9319
      %v9401 = vsel %vm9071, %v9187, %v9321
      %v9403 = vsel %vm9071, %v9188, %v9323
      %v9405 = vsel %vm9071, %v9189, %v9325
      %v9407 = vsel %vm9088, %v9391, %v9375
      %v9409 = vsel %vm9088, %v9393, %v9377
      %v9411 = vsel %vm9088, %v9395, %v9379
      %v9413 = vsel %vm9088, %v9397, %v9381
      %v9415 = vsel %vm9088, %v9399, %v9383
      %v9417 = vsel %vm9088, %v9401, %v9385
      %v9419 = vsel %vm9088, %v9403, %v9387
      %v9421 = vsel %vm9088, %v9405, %v9389
      %s9422 = scalar_lea.vmem %s5, 48
      %v9423 = vld [vmem:[%s9422] sm:$0xf]
      %v9424 = vld [vmem:[%s9422 + $0x4] sm:$0xf]
      %v9425 = vld [vmem:[%s9422 + $0x8] sm:$0xf]
      %v9426 = vld [vmem:[%s9422 + $0xc] sm:$0xf]
      %v9427 = vld [vmem:[%s9422 + $0x10] sm:$0xf]
      %v9428 = vld [vmem:[%s9422 + $0x14] sm:$0xf]
      %v9429 = vld [vmem:[%s9422 + $0x18] sm:$0xf]
      %v9430 = vld [vmem:[%s9422 + $0x1c] sm:$0xf]
      %v9431 = vld [vmem:[%s9422 + $0x20] sm:$0xf]
      %v9432 = vld [vmem:[%s9422 + $0x24] sm:$0xf]
      %v9433 = vld [vmem:[%s9422 + $0x28] sm:$0xf]
      %v9434 = vld [vmem:[%s9422 + $0x2c] sm:$0xf]
      %v9447 = vunpack.c.l.b16 %v9423
      %v9448 = vunpack.c.l.b16 %v9424
      %v9449 = vunpack.c.l.b16 %v9425
      %v9450 = vunpack.c.l.b16 %v9426
      %v9451 = vunpack.c.l.b16 %v9427
      %v9452 = vunpack.c.l.b16 %v9428
      %v9453 = vunpack.c.l.b16 %v9429
      %v9454 = vunpack.c.l.b16 %v9430
      %v9455 = vunpack.c.l.b16 %v9431
      %v9456 = vunpack.c.l.b16 %v9432
      %v9457 = vunpack.c.l.b16 %v9433
      %v9458 = vunpack.c.l.b16 %v9434
      %v9459 = vpack.c.b16 %v9448, %v9447
      %v9460 = vpack.c.b16 %v9450, %v9449
      %v9461 = vpack.c.b16 %v9452, %v9451
      %v9462 = vpack.c.b16 %v9454, %v9453
      %v9463 = vpack.c.b16 %v9456, %v9455
      %v9464 = vpack.c.b16 %v9458, %v9457
      %v9471 = vsel %vm1252, %v9407, 0
      %v9473 = vsel %vm1252, %v9409, 0
      %v9475 = vsel %vm1252, %v9411, 0
      %v9477 = vsel %vm1252, %v9413, 0
      %v9479 = vsel %vm1252, %v9415, 0
      %v9481 = vsel %vm1252, %v9417, 0
      %v9483 = vsel %vm1252, %v9419, 0
      %v9485 = vsel %vm1252, %v9421, 0
      %9487 = vmatprep.subr.bf16.mxu0 0
      %9488 = vmatpush1.bf16.msra.mxu0 0
      %9489 = vmatprep.subr.bf16.mxu0 0
      %9490 = vmatpush1.bf16.msra.mxu0 0
      %9491 = vmatprep.subr.bf16.mxu0 0
      %9492 = vmatpush1.bf16.msra.mxu0 %v9464
      %9493 = vmatprep.subr.bf16.mxu0 0
      %9494 = vmatpush1.bf16.msra.mxu0 %v9463
      %9495 = vmatprep.subr.bf16.mxu0 0
      %9496 = vmatpush1.bf16.msra.mxu0 %v9462
      %9497 = vmatprep.subr.bf16.mxu0 0
      %9498 = vmatpush1.bf16.msra.mxu0 %v9461
      %9499 = vmatprep.subr.bf16.mxu0 0
      %9500 = vmatpush1.bf16.msra.mxu0 %v9460
      %9501 = vmatprep.subr.bf16.mxu0 0
      %9502 = vmatpush1.bf16.msra.mxu0 %v9459
      %9503 = vmatprep.subr.bf16.mxu0 0
      %9504 = vmatpush2.bf16.msra.mxu0 0
      %9505 = vmatprep.subr.bf16.mxu0 0
      %9506 = vmatpush2.bf16.msra.mxu0 0
      %9507 = vmatprep.subr.bf16.mxu0 0
      %9508 = vmatpush2.bf16.msra.mxu0 0
      %9509 = vmatprep.subr.bf16.mxu0 0
      %9510 = vmatpush2.bf16.msra.mxu0 0
      %9511 = vmatprep.subr.bf16.mxu0 0
      %9512 = vmatpush2.bf16.msra.mxu0 0
      %9513 = vmatprep.subr.bf16.mxu0 0
      %9514 = vmatpush2.bf16.msra.mxu0 0
      %9515 = vmatprep.subr.bf16.mxu0 0
      %9516 = vmatpush2.bf16.msra.mxu0 0
      %9517 = vmatprep.subr.bf16.mxu0 0
      %9518 = vmatpush2.bf16.msra.mxu0 0
      %9519 = vmatprep.mubr.bf16.mxu0 0
      %9520 = vmatmul.mubr.bf16.gmra.mxu0 %v9471
      %v9521 = vpop.f32.mrf.mxu0
      %v9522 = vadd.f32 0.0, %v9521
      %v9523 = vpop.f32.mrf.mxu0
      %v9524 = vpop.f32.mrf.mxu0
      %v9525 = vadd.f32 0.0, %v9524
      %v9526 = vpop.f32.mrf.mxu0
      %9527 = vmatprep.mubr.bf16.mxu0 0
      %9528 = vmatmul.mubr.bf16.gmra.mxu0 %v9473
      %v9529 = vpop.f32.mrf.mxu0
      %v9530 = vadd.f32 0.0, %v9529
      %v9531 = vpop.f32.mrf.mxu0
      %v9532 = vpop.f32.mrf.mxu0
      %v9533 = vadd.f32 0.0, %v9532
      %v9534 = vpop.f32.mrf.mxu0
      %9535 = vmatprep.mubr.bf16.mxu0 0
      %9536 = vmatmul.mubr.bf16.gmra.mxu0 %v9475
      %v9537 = vpop.f32.mrf.mxu0
      %v9538 = vadd.f32 0.0, %v9537
      %v9539 = vpop.f32.mrf.mxu0
      %v9540 = vpop.f32.mrf.mxu0
      %v9541 = vadd.f32 0.0, %v9540
      %v9542 = vpop.f32.mrf.mxu0
      %9543 = vmatprep.mubr.bf16.mxu0 0
      %9544 = vmatmul.mubr.bf16.gmra.mxu0 %v9477
      %v9545 = vpop.f32.mrf.mxu0
      %v9546 = vadd.f32 0.0, %v9545
      %v9547 = vpop.f32.mrf.mxu0
      %v9548 = vpop.f32.mrf.mxu0
      %v9549 = vadd.f32 0.0, %v9548
      %v9550 = vpop.f32.mrf.mxu0
      %9551 = vmatprep.mubr.bf16.mxu0 0
      %9552 = vmatmul.mubr.bf16.gmra.mxu0 %v9479
      %v9553 = vpop.f32.mrf.mxu0
      %v9554 = vadd.f32 0.0, %v9553
      %v9555 = vpop.f32.mrf.mxu0
      %v9556 = vpop.f32.mrf.mxu0
      %v9557 = vadd.f32 0.0, %v9556
      %v9558 = vpop.f32.mrf.mxu0
      %9559 = vmatprep.mubr.bf16.mxu0 0
      %9560 = vmatmul.mubr.bf16.gmra.mxu0 %v9481
      %v9561 = vpop.f32.mrf.mxu0
      %v9562 = vadd.f32 0.0, %v9561
      %v9563 = vpop.f32.mrf.mxu0
      %v9564 = vpop.f32.mrf.mxu0
      %v9565 = vadd.f32 0.0, %v9564
      %v9566 = vpop.f32.mrf.mxu0
      %9567 = vmatprep.mubr.bf16.mxu0 0
      %9568 = vmatmul.mubr.bf16.gmra.mxu0 %v9483
      %v9569 = vpop.f32.mrf.mxu0
      %v9570 = vadd.f32 0.0, %v9569
      %v9571 = vpop.f32.mrf.mxu0
      %v9572 = vpop.f32.mrf.mxu0
      %v9573 = vadd.f32 0.0, %v9572
      %v9574 = vpop.f32.mrf.mxu0
      %9575 = vmatprep.mubr.bf16.mxu0 0
      %9576 = vmatmul.mubr.bf16.gmra.mxu0 %v9485
      %v9577 = vpop.f32.mrf.mxu0
      %v9578 = vadd.f32 0.0, %v9577
      %v9579 = vpop.f32.mrf.mxu0
      %v9580 = vpop.f32.mrf.mxu0
      %v9581 = vadd.f32 0.0, %v9580
      %v9582 = vpop.f32.mrf.mxu0
      %9583 = vdwg.mxu0
      %v9596 = vunpack.c.l.b16 %v9105
      %v9597 = vunpack.c.l.b16 %v9106
      %v9598 = vunpack.c.l.b16 %v9107
      %v9599 = vunpack.c.l.b16 %v9108
      %v9600 = vunpack.c.l.b16 %v9109
      %v9601 = vunpack.c.l.b16 %v9110
      %v9602 = vunpack.c.l.b16 %v9111
      %v9603 = vunpack.c.l.b16 %v9112
      %v9604 = vunpack.c.l.b16 %v9113
      %v9605 = vunpack.c.l.b16 %v9114
      %v9606 = vunpack.c.l.b16 %v9115
      %v9607 = vunpack.c.l.b16 %v9116
      %v9608 = vpack.c.b16 %v9597, %v9596
      %v9609 = vpack.c.b16 %v9599, %v9598
      %v9610 = vpack.c.b16 %v9601, %v9600
      %v9611 = vpack.c.b16 %v9603, %v9602
      %v9612 = vpack.c.b16 %v9605, %v9604
      %v9613 = vpack.c.b16 %v9607, %v9606
      %v9620 = vsel %vm1252, %v9090, 0
      %v9622 = vsel %vm1252, %v9092, 0
      %v9624 = vsel %vm1252, %v9094, 0
      %v9626 = vsel %vm1252, %v9096, 0
      %v9628 = vsel %vm1252, %v9098, 0
      %v9630 = vsel %vm1252, %v9100, 0
      %v9632 = vsel %vm1252, %v9102, 0
      %v9634 = vsel %vm1252, %v9104, 0
      %9636 = vmatprep.subr.bf16.mxu0 0
      %9637 = vmatpush1.bf16.msra.mxu0 0
      %9638 = vmatprep.subr.bf16.mxu0 0
      %9639 = vmatpush1.bf16.msra.mxu0 0
      %9640 = vmatprep.subr.bf16.mxu0 0
      %9641 = vmatpush1.bf16.msra.mxu0 %v9613
      %9642 = vmatprep.subr.bf16.mxu0 0
      %9643 = vmatpush1.bf16.msra.mxu0 %v9612
      %9644 = vmatprep.subr.bf16.mxu0 0
      %9645 = vmatpush1.bf16.msra.mxu0 %v9611
      %9646 = vmatprep.subr.bf16.mxu0 0
      %9647 = vmatpush1.bf16.msra.mxu0 %v9610
      %9648 = vmatprep.subr.bf16.mxu0 0
      %9649 = vmatpush1.bf16.msra.mxu0 %v9609
      %9650 = vmatprep.subr.bf16.mxu0 0
      %9651 = vmatpush1.bf16.msra.mxu0 %v9608
      %9652 = vmatprep.subr.bf16.mxu0 0
      %9653 = vmatpush2.bf16.msra.mxu0 0
      %9654 = vmatprep.subr.bf16.mxu0 0
      %9655 = vmatpush2.bf16.msra.mxu0 0
      %9656 = vmatprep.subr.bf16.mxu0 0
      %9657 = vmatpush2.bf16.msra.mxu0 0
      %9658 = vmatprep.subr.bf16.mxu0 0
      %9659 = vmatpush2.bf16.msra.mxu0 0
      %9660 = vmatprep.subr.bf16.mxu0 0
      %9661 = vmatpush2.bf16.msra.mxu0 0
      %9662 = vmatprep.subr.bf16.mxu0 0
      %9663 = vmatpush2.bf16.msra.mxu0 0
      %9664 = vmatprep.subr.bf16.mxu0 0
      %9665 = vmatpush2.bf16.msra.mxu0 0
      %9666 = vmatprep.subr.bf16.mxu0 0
      %9667 = vmatpush2.bf16.msra.mxu0 0
      %9668 = vmatprep.mubr.bf16.mxu0 0
      %9669 = vmatmul.mubr.bf16.gmra.mxu0 %v9620
      %v9670 = vpop.f32.mrf.mxu0
      %v9671 = vadd.f32 %v9522, %v9670
      %v9672 = vpop.f32.mrf.mxu0
      %v9673 = vpop.f32.mrf.mxu0
      %v9674 = vadd.f32 %v9525, %v9673
      %v9675 = vpop.f32.mrf.mxu0
      %9676 = vmatprep.mubr.bf16.mxu0 0
      %9677 = vmatmul.mubr.bf16.gmra.mxu0 %v9622
      %v9678 = vpop.f32.mrf.mxu0
      %v9679 = vadd.f32 %v9530, %v9678
      %v9680 = vpop.f32.mrf.mxu0
      %v9681 = vpop.f32.mrf.mxu0
      %v9682 = vadd.f32 %v9533, %v9681
      %v9683 = vpop.f32.mrf.mxu0
      %9684 = vmatprep.mubr.bf16.mxu0 0
      %9685 = vmatmul.mubr.bf16.gmra.mxu0 %v9624
      %v9686 = vpop.f32.mrf.mxu0
      %v9687 = vadd.f32 %v9538, %v9686
      %v9688 = vpop.f32.mrf.mxu0
      %v9689 = vpop.f32.mrf.mxu0
      %v9690 = vadd.f32 %v9541, %v9689
      %v9691 = vpop.f32.mrf.mxu0
      %9692 = vmatprep.mubr.bf16.mxu0 0
      %9693 = vmatmul.mubr.bf16.gmra.mxu0 %v9626
      %v9694 = vpop.f32.mrf.mxu0
      %v9695 = vadd.f32 %v9546, %v9694
      %v9696 = vpop.f32.mrf.mxu0
      %v9697 = vpop.f32.mrf.mxu0
      %v9698 = vadd.f32 %v9549, %v9697
      %v9699 = vpop.f32.mrf.mxu0
      %9700 = vmatprep.mubr.bf16.mxu0 0
      %9701 = vmatmul.mubr.bf16.gmra.mxu0 %v9628
      %v9702 = vpop.f32.mrf.mxu0
      %v9703 = vadd.f32 %v9554, %v9702
      %v9704 = vpop.f32.mrf.mxu0
      %v9705 = vpop.f32.mrf.mxu0
      %v9706 = vadd.f32 %v9557, %v9705
      %v9707 = vpop.f32.mrf.mxu0
      %9708 = vmatprep.mubr.bf16.mxu0 0
      %9709 = vmatmul.mubr.bf16.gmra.mxu0 %v9630
      %v9710 = vpop.f32.mrf.mxu0
      %v9711 = vadd.f32 %v9562, %v9710
      %v9712 = vpop.f32.mrf.mxu0
      %v9713 = vpop.f32.mrf.mxu0
      %v9714 = vadd.f32 %v9565, %v9713
      %v9715 = vpop.f32.mrf.mxu0
      %9716 = vmatprep.mubr.bf16.mxu0 0
      %9717 = vmatmul.mubr.bf16.gmra.mxu0 %v9632
      %v9718 = vpop.f32.mrf.mxu0
      %v9719 = vadd.f32 %v9570, %v9718
      %v9720 = vpop.f32.mrf.mxu0
      %v9721 = vpop.f32.mrf.mxu0
      %v9722 = vadd.f32 %v9573, %v9721
      %v9723 = vpop.f32.mrf.mxu0
      %9724 = vmatprep.mubr.bf16.mxu0 0
      %9725 = vmatmul.mubr.bf16.gmra.mxu0 %v9634
      %v9726 = vpop.f32.mrf.mxu0
      %v9727 = vadd.f32 %v9578, %v9726
      %v9728 = vpop.f32.mrf.mxu0
      %v9729 = vpop.f32.mrf.mxu0
      %v9730 = vadd.f32 %v9581, %v9729
      %v9731 = vpop.f32.mrf.mxu0
      %9732 = vdwg.mxu0
      %s9733 = scalar_lea.vmem [#allocation3], 24
      %v9734 = vld [vmem:[%s9733] sm:$0xf]
      %v9735 = vld [vmem:[%s9733 + $0x4] sm:$0xf]
      %v9736 = vld [vmem:[%s9733 + $0xc] sm:$0xf]
      %v9737 = vld [vmem:[%s9733 + $0x10] sm:$0xf]
      %v9738 = vld [vmem:[%s9733 + $0x18] sm:$0xf]
      %v9739 = vld [vmem:[%s9733 + $0x1c] sm:$0xf]
      %v9740 = vld [vmem:[%s9733 + $0x24] sm:$0xf]
      %v9741 = vld [vmem:[%s9733 + $0x28] sm:$0xf]
      %v9742 = vld [vmem:[%s9733 + $0x30] sm:$0xf]
      %v9743 = vld [vmem:[%s9733 + $0x34] sm:$0xf]
      %v9744 = vld [vmem:[%s9733 + $0x3c] sm:$0xf]
      %v9745 = vld [vmem:[%s9733 + $0x40] sm:$0xf]
      %v9746 = vld [vmem:[%s9733 + $0x48] sm:$0xf]
      %v9747 = vld [vmem:[%s9733 + $0x4c] sm:$0xf]
      %v9748 = vld [vmem:[%s9733 + $0x54] sm:$0xf]
      %v9749 = vld [vmem:[%s9733 + $0x58] sm:$0xf]
      %v9750 = vld [vmem:[%s9733 + $0x8] sm:$0x1]
      %v9751 = vld [vmem:[%s9733 + $0x14] sm:$0x1]
      %v9752 = vld [vmem:[%s9733 + $0x20] sm:$0x1]
      %v9753 = vld [vmem:[%s9733 + $0x2c] sm:$0x1]
      %v9754 = vld [vmem:[%s9733 + $0x38] sm:$0x1]
      %v9755 = vld [vmem:[%s9733 + $0x44] sm:$0x1]
      %v9756 = vld [vmem:[%s9733 + $0x50] sm:$0x1]
      %v9757 = vld [vmem:[%s9733 + $0x5c] sm:$0x1]
      %v9758 = vld [vmem:[%s9733] sm:$0xe]
      %v9759 = vld [vmem:[%s9733 + $0xc] sm:$0xe]
      %v9760 = vld [vmem:[%s9733 + $0x18] sm:$0xe]
      %v9761 = vld [vmem:[%s9733 + $0x24] sm:$0xe]
      %v9762 = vld [vmem:[%s9733 + $0x30] sm:$0xe]
      %v9763 = vld [vmem:[%s9733 + $0x3c] sm:$0xe]
      %v9764 = vld [vmem:[%s9733 + $0x48] sm:$0xe]
      %v9765 = vld [vmem:[%s9733 + $0x54] sm:$0xe]
      %v9782 = vunpack.c.l.b16 %v9734
      %v9783 = vunpack.c.l.b16 %v9735
      %v9784 = vunpack.c.l.b16 %v9736
      %v9785 = vunpack.c.l.b16 %v9737
      %v9786 = vunpack.c.l.b16 %v9738
      %v9787 = vunpack.c.l.b16 %v9739
      %v9788 = vunpack.c.l.b16 %v9740
      %v9789 = vunpack.c.l.b16 %v9741
      %v9790 = vunpack.c.l.b16 %v9742
      %v9791 = vunpack.c.l.b16 %v9743
      %v9792 = vunpack.c.l.b16 %v9744
      %v9793 = vunpack.c.l.b16 %v9745
      %v9794 = vunpack.c.l.b16 %v9746
      %v9795 = vunpack.c.l.b16 %v9747
      %v9796 = vunpack.c.l.b16 %v9748
      %v9797 = vunpack.c.l.b16 %v9749
      %v9798 = vpack.c.b16 %v9783, %v9782
      %v9799 = vpack.c.b16 %v9785, %v9784
      %v9800 = vpack.c.b16 %v9787, %v9786
      %v9801 = vpack.c.b16 %v9789, %v9788
      %v9802 = vpack.c.b16 %v9791, %v9790
      %v9803 = vpack.c.b16 %v9793, %v9792
      %v9804 = vpack.c.b16 %v9795, %v9794
      %v9805 = vpack.c.b16 %v9797, %v9796
      %v9814 = vunpack.c.l.b16 %v9750
      %v9815 = vunpack.c.l.b16 %v9751
      %v9816 = vunpack.c.l.b16 %v9752
      %v9817 = vunpack.c.l.b16 %v9753
      %v9818 = vunpack.c.l.b16 %v9754
      %v9819 = vunpack.c.l.b16 %v9755
      %v9820 = vunpack.c.l.b16 %v9756
      %v9821 = vunpack.c.l.b16 %v9757
      %v9822 = vpack.c.b16 %v9814, %v9814
      %v9823 = vpack.c.b16 %v9815, %v9815
      %v9824 = vpack.c.b16 %v9816, %v9816
      %v9825 = vpack.c.b16 %v9817, %v9817
      %v9826 = vpack.c.b16 %v9818, %v9818
      %v9827 = vpack.c.b16 %v9819, %v9819
      %v9828 = vpack.c.b16 %v9820, %v9820
      %v9829 = vpack.c.b16 %v9821, %v9821
      %v9831 = vshrl.u32 %v9798, 16
      %v9833 = vshll.u32 %v9798, 16
      %v9835 = vrot.slane %v9833, 1
      %v9836 = vor.u32 %v9831, %v9835
      %v9838 = vshll.u32 %v9822, 16
      %v9840 = vrot.slane %v9838, 1
      %v9841 = vsel %vm909, %v9836, %v9840
      %v9843 = vshrl.u32 %v9799, 16
      %v9845 = vshll.u32 %v9799, 16
      %v9847 = vrot.slane %v9845, 1
      %v9848 = vor.u32 %v9843, %v9847
      %v9850 = vshll.u32 %v9823, 16
      %v9852 = vrot.slane %v9850, 1
      %v9853 = vsel %vm909, %v9848, %v9852
      %v9855 = vshrl.u32 %v9800, 16
      %v9857 = vshll.u32 %v9800, 16
      %v9859 = vrot.slane %v9857, 1
      %v9860 = vor.u32 %v9855, %v9859
      %v9862 = vshll.u32 %v9824, 16
      %v9864 = vrot.slane %v9862, 1
      %v9865 = vsel %vm909, %v9860, %v9864
      %v9867 = vshrl.u32 %v9801, 16
      %v9869 = vshll.u32 %v9801, 16
      %v9871 = vrot.slane %v9869, 1
      %v9872 = vor.u32 %v9867, %v9871
      %v9874 = vshll.u32 %v9825, 16
      %v9876 = vrot.slane %v9874, 1
      %v9877 = vsel %vm909, %v9872, %v9876
      %v9879 = vshrl.u32 %v9802, 16
      %v9881 = vshll.u32 %v9802, 16
      %v9883 = vrot.slane %v9881, 1
      %v9884 = vor.u32 %v9879, %v9883
      %v9886 = vshll.u32 %v9826, 16
      %v9888 = vrot.slane %v9886, 1
      %v9889 = vsel %vm909, %v9884, %v9888
      %v9891 = vshrl.u32 %v9803, 16
      %v9893 = vshll.u32 %v9803, 16
      %v9895 = vrot.slane %v9893, 1
      %v9896 = vor.u32 %v9891, %v9895
      %v9898 = vshll.u32 %v9827, 16
      %v9900 = vrot.slane %v9898, 1
      %v9901 = vsel %vm909, %v9896, %v9900
      %v9903 = vshrl.u32 %v9804, 16
      %v9905 = vshll.u32 %v9804, 16
      %v9907 = vrot.slane %v9905, 1
      %v9908 = vor.u32 %v9903, %v9907
      %v9910 = vshll.u32 %v9828, 16
      %v9912 = vrot.slane %v9910, 1
      %v9913 = vsel %vm909, %v9908, %v9912
      %v9915 = vshrl.u32 %v9805, 16
      %v9917 = vshll.u32 %v9805, 16
      %v9919 = vrot.slane %v9917, 1
      %v9920 = vor.u32 %v9915, %v9919
      %v9922 = vshll.u32 %v9829, 16
      %v9924 = vrot.slane %v9922, 1
      %v9925 = vsel %vm909, %v9920, %v9924
      %9926 = vrot.lane.b32.xlu0 %v9841, 32
      %v9927 = vpop.permute.xlu0 %9926
      %9928 = vrot.lane.b32.xlu0 %v9853, 32
      %v9929 = vpop.permute.xlu0 %9928
      %9930 = vrot.lane.b32.xlu0 %v9865, 32
      %v9931 = vpop.permute.xlu0 %9930
      %9932 = vrot.lane.b32.xlu0 %v9877, 32
      %v9933 = vpop.permute.xlu0 %9932
      %9934 = vrot.lane.b32.xlu0 %v9889, 32
      %v9935 = vpop.permute.xlu0 %9934
      %9936 = vrot.lane.b32.xlu0 %v9901, 32
      %v9937 = vpop.permute.xlu0 %9936
      %9938 = vrot.lane.b32.xlu0 %v9913, 32
      %v9939 = vpop.permute.xlu0 %9938
      %9940 = vrot.lane.b32.xlu0 %v9925, 32
      %v9941 = vpop.permute.xlu0 %9940
      %v9950 = vunpack.c.l.b16 %v9758
      %v9951 = vunpack.c.l.b16 %v9759
      %v9952 = vunpack.c.l.b16 %v9760
      %v9953 = vunpack.c.l.b16 %v9761
      %v9954 = vunpack.c.l.b16 %v9762
      %v9955 = vunpack.c.l.b16 %v9763
      %v9956 = vunpack.c.l.b16 %v9764
      %v9957 = vunpack.c.l.b16 %v9765
      %v9958 = vpack.c.b16 %v9783, %v9950
      %v9959 = vpack.c.b16 %v9785, %v9951
      %v9960 = vpack.c.b16 %v9787, %v9952
      %v9961 = vpack.c.b16 %v9789, %v9953
      %v9962 = vpack.c.b16 %v9791, %v9954
      %v9963 = vpack.c.b16 %v9793, %v9955
      %v9964 = vpack.c.b16 %v9795, %v9956
      %v9965 = vpack.c.b16 %v9797, %v9957
      %v9966 = vrot.slane %v9958, 1
      %v9967 = vrot.slane %v9822, 1
      %v9968 = vsel %vm1130, %v9966, %v9967
      %v9969 = vrot.slane %v9959, 1
      %v9970 = vrot.slane %v9823, 1
      %v9971 = vsel %vm1130, %v9969, %v9970
      %v9972 = vrot.slane %v9960, 1
      %v9973 = vrot.slane %v9824, 1
      %v9974 = vsel %vm1130, %v9972, %v9973
      %v9975 = vrot.slane %v9961, 1
      %v9976 = vrot.slane %v9825, 1
      %v9977 = vsel %vm1130, %v9975, %v9976
      %v9978 = vrot.slane %v9962, 1
      %v9979 = vrot.slane %v9826, 1
      %v9980 = vsel %vm1130, %v9978, %v9979
      %v9981 = vrot.slane %v9963, 1
      %v9982 = vrot.slane %v9827, 1
      %v9983 = vsel %vm1130, %v9981, %v9982
      %v9984 = vrot.slane %v9964, 1
      %v9985 = vrot.slane %v9828, 1
      %v9986 = vsel %vm1130, %v9984, %v9985
      %v9987 = vrot.slane %v9965, 1
      %v9988 = vrot.slane %v9829, 1
      %v9989 = vsel %vm1130, %v9987, %v9988
      %9990 = vrot.lane.b32.xlu0 %v9968, 64
      %v9991 = vpop.permute.xlu0 %9990
      %9992 = vrot.lane.b32.xlu0 %v9971, 64
      %v9993 = vpop.permute.xlu0 %9992
      %9994 = vrot.lane.b32.xlu0 %v9974, 64
      %v9995 = vpop.permute.xlu0 %9994
      %9996 = vrot.lane.b32.xlu0 %v9977, 64
      %v9997 = vpop.permute.xlu0 %9996
      %9998 = vrot.lane.b32.xlu0 %v9980, 64
      %v9999 = vpop.permute.xlu0 %9998
      %10000 = vrot.lane.b32.xlu0 %v9983, 64
      %v10001 = vpop.permute.xlu0 %10000
      %10002 = vrot.lane.b32.xlu0 %v9986, 64
      %v10003 = vpop.permute.xlu0 %10002
      %10004 = vrot.lane.b32.xlu0 %v9989, 64
      %v10005 = vpop.permute.xlu0 %10004
      %v10007 = vsel %vm9071, %v9798, %v9927
      %v10009 = vsel %vm9071, %v9799, %v9929
      %v10011 = vsel %vm9071, %v9800, %v9931
      %v10013 = vsel %vm9071, %v9801, %v9933
      %v10015 = vsel %vm9071, %v9802, %v9935
      %v10017 = vsel %vm9071, %v9803, %v9937
      %v10019 = vsel %vm9071, %v9804, %v9939
      %v10021 = vsel %vm9071, %v9805, %v9941
      %v10023 = vsel %vm9088, %v10007, %v9991
      %v10025 = vsel %vm9088, %v10009, %v9993
      %v10027 = vsel %vm9088, %v10011, %v9995
      %v10029 = vsel %vm9088, %v10013, %v9997
      %v10031 = vsel %vm9088, %v10015, %v9999
      %v10033 = vsel %vm9088, %v10017, %v10001
      %v10035 = vsel %vm9088, %v10019, %v10003
      %v10037 = vsel %vm9088, %v10021, %v10005
      %s10038 = scalar_lea.vmem %s5, 96
      %v10039 = vld [vmem:[%s10038] sm:$0xf]
      %v10040 = vld [vmem:[%s10038 + $0x4] sm:$0xf]
      %v10041 = vld [vmem:[%s10038 + $0x8] sm:$0xf]
      %v10042 = vld [vmem:[%s10038 + $0xc] sm:$0xf]
      %v10043 = vld [vmem:[%s10038 + $0x10] sm:$0xf]
      %v10044 = vld [vmem:[%s10038 + $0x14] sm:$0xf]
      %v10045 = vld [vmem:[%s10038 + $0x18] sm:$0xf]
      %v10046 = vld [vmem:[%s10038 + $0x1c] sm:$0xf]
      %v10047 = vld [vmem:[%s10038 + $0x20] sm:$0xf]
      %v10048 = vld [vmem:[%s10038 + $0x24] sm:$0xf]
      %v10049 = vld [vmem:[%s10038 + $0x28] sm:$0xf]
      %v10050 = vld [vmem:[%s10038 + $0x2c] sm:$0xf]
      %v10063 = vunpack.c.l.b16 %v10039
      %v10064 = vunpack.c.l.b16 %v10040
      %v10065 = vunpack.c.l.b16 %v10041
      %v10066 = vunpack.c.l.b16 %v10042
      %v10067 = vunpack.c.l.b16 %v10043
      %v10068 = vunpack.c.l.b16 %v10044
      %v10069 = vunpack.c.l.b16 %v10045
      %v10070 = vunpack.c.l.b16 %v10046
      %v10071 = vunpack.c.l.b16 %v10047
      %v10072 = vunpack.c.l.b16 %v10048
      %v10073 = vunpack.c.l.b16 %v10049
      %v10074 = vunpack.c.l.b16 %v10050
      %v10075 = vpack.c.b16 %v10064, %v10063
      %v10076 = vpack.c.b16 %v10066, %v10065
      %v10077 = vpack.c.b16 %v10068, %v10067
      %v10078 = vpack.c.b16 %v10070, %v10069
      %v10079 = vpack.c.b16 %v10072, %v10071
      %v10080 = vpack.c.b16 %v10074, %v10073
      %v10087 = vsel %vm1252, %v10023, 0
      %v10089 = vsel %vm1252, %v10025, 0
      %v10091 = vsel %vm1252, %v10027, 0
      %v10093 = vsel %vm1252, %v10029, 0
      %v10095 = vsel %vm1252, %v10031, 0
      %v10097 = vsel %vm1252, %v10033, 0
      %v10099 = vsel %vm1252, %v10035, 0
      %v10101 = vsel %vm1252, %v10037, 0
      %10103 = vmatprep.subr.bf16.mxu0 0
      %10104 = vmatpush1.bf16.msra.mxu0 0
      %10105 = vmatprep.subr.bf16.mxu0 0
      %10106 = vmatpush1.bf16.msra.mxu0 0
      %10107 = vmatprep.subr.bf16.mxu0 0
      %10108 = vmatpush1.bf16.msra.mxu0 %v10080
      %10109 = vmatprep.subr.bf16.mxu0 0
      %10110 = vmatpush1.bf16.msra.mxu0 %v10079
      %10111 = vmatprep.subr.bf16.mxu0 0
      %10112 = vmatpush1.bf16.msra.mxu0 %v10078
      %10113 = vmatprep.subr.bf16.mxu0 0
      %10114 = vmatpush1.bf16.msra.mxu0 %v10077
      %10115 = vmatprep.subr.bf16.mxu0 0
      %10116 = vmatpush1.bf16.msra.mxu0 %v10076
      %10117 = vmatprep.subr.bf16.mxu0 0
      %10118 = vmatpush1.bf16.msra.mxu0 %v10075
      %10119 = vmatprep.subr.bf16.mxu0 0
      %10120 = vmatpush2.bf16.msra.mxu0 0
      %10121 = vmatprep.subr.bf16.mxu0 0
      %10122 = vmatpush2.bf16.msra.mxu0 0
      %10123 = vmatprep.subr.bf16.mxu0 0
      %10124 = vmatpush2.bf16.msra.mxu0 0
      %10125 = vmatprep.subr.bf16.mxu0 0
      %10126 = vmatpush2.bf16.msra.mxu0 0
      %10127 = vmatprep.subr.bf16.mxu0 0
      %10128 = vmatpush2.bf16.msra.mxu0 0
      %10129 = vmatprep.subr.bf16.mxu0 0
      %10130 = vmatpush2.bf16.msra.mxu0 0
      %10131 = vmatprep.subr.bf16.mxu0 0
      %10132 = vmatpush2.bf16.msra.mxu0 0
      %10133 = vmatprep.subr.bf16.mxu0 0
      %10134 = vmatpush2.bf16.msra.mxu0 0
      %10135 = vmatprep.mubr.bf16.mxu0 0
      %10136 = vmatmul.mubr.bf16.gmra.mxu0 %v10087
      %v10137 = vpop.f32.mrf.mxu0
      %v10138 = vadd.f32 0.0, %v10137
      %v10139 = vpop.f32.mrf.mxu0
      %v10140 = vpop.f32.mrf.mxu0
      %v10141 = vadd.f32 0.0, %v10140
      %v10142 = vpop.f32.mrf.mxu0
      %10143 = vmatprep.mubr.bf16.mxu0 0
      %10144 = vmatmul.mubr.bf16.gmra.mxu0 %v10089
      %v10145 = vpop.f32.mrf.mxu0
      %v10146 = vadd.f32 0.0, %v10145
      %v10147 = vpop.f32.mrf.mxu0
      %v10148 = vpop.f32.mrf.mxu0
      %v10149 = vadd.f32 0.0, %v10148
      %v10150 = vpop.f32.mrf.mxu0
      %10151 = vmatprep.mubr.bf16.mxu0 0
      %10152 = vmatmul.mubr.bf16.gmra.mxu0 %v10091
      %v10153 = vpop.f32.mrf.mxu0
      %v10154 = vadd.f32 0.0, %v10153
      %v10155 = vpop.f32.mrf.mxu0
      %v10156 = vpop.f32.mrf.mxu0
      %v10157 = vadd.f32 0.0, %v10156
      %v10158 = vpop.f32.mrf.mxu0
      %10159 = vmatprep.mubr.bf16.mxu0 0
      %10160 = vmatmul.mubr.bf16.gmra.mxu0 %v10093
      %v10161 = vpop.f32.mrf.mxu0
      %v10162 = vadd.f32 0.0, %v10161
      %v10163 = vpop.f32.mrf.mxu0
      %v10164 = vpop.f32.mrf.mxu0
      %v10165 = vadd.f32 0.0, %v10164
      %v10166 = vpop.f32.mrf.mxu0
      %10167 = vmatprep.mubr.bf16.mxu0 0
      %10168 = vmatmul.mubr.bf16.gmra.mxu0 %v10095
      %v10169 = vpop.f32.mrf.mxu0
      %v10170 = vadd.f32 0.0, %v10169
      %v10171 = vpop.f32.mrf.mxu0
      %v10172 = vpop.f32.mrf.mxu0
      %v10173 = vadd.f32 0.0, %v10172
      %v10174 = vpop.f32.mrf.mxu0
      %10175 = vmatprep.mubr.bf16.mxu0 0
      %10176 = vmatmul.mubr.bf16.gmra.mxu0 %v10097
      %v10177 = vpop.f32.mrf.mxu0
      %v10178 = vadd.f32 0.0, %v10177
      %v10179 = vpop.f32.mrf.mxu0
      %v10180 = vpop.f32.mrf.mxu0
      %v10181 = vadd.f32 0.0, %v10180
      %v10182 = vpop.f32.mrf.mxu0
      %10183 = vmatprep.mubr.bf16.mxu0 0
      %10184 = vmatmul.mubr.bf16.gmra.mxu0 %v10099
      %v10185 = vpop.f32.mrf.mxu0
      %v10186 = vadd.f32 0.0, %v10185
      %v10187 = vpop.f32.mrf.mxu0
      %v10188 = vpop.f32.mrf.mxu0
      %v10189 = vadd.f32 0.0, %v10188
      %v10190 = vpop.f32.mrf.mxu0
      %10191 = vmatprep.mubr.bf16.mxu0 0
      %10192 = vmatmul.mubr.bf16.gmra.mxu0 %v10101
      %v10193 = vpop.f32.mrf.mxu0
      %v10194 = vadd.f32 0.0, %v10193
      %v10195 = vpop.f32.mrf.mxu0
      %v10196 = vpop.f32.mrf.mxu0
      %v10197 = vadd.f32 0.0, %v10196
      %v10198 = vpop.f32.mrf.mxu0
      %10199 = vdwg.mxu0
      %v10200 = vadd.f32 %v9671, %v10138
      %v10201 = vadd.f32 %v9674, %v10141
      %v10202 = vadd.f32 %v9679, %v10146
      %v10203 = vadd.f32 %v9682, %v10149
      %v10204 = vadd.f32 %v9687, %v10154
      %v10205 = vadd.f32 %v9690, %v10157
      %v10206 = vadd.f32 %v9695, %v10162
      %v10207 = vadd.f32 %v9698, %v10165
      %v10208 = vadd.f32 %v9703, %v10170
      %v10209 = vadd.f32 %v9706, %v10173
      %v10210 = vadd.f32 %v9711, %v10178
      %v10211 = vadd.f32 %v9714, %v10181
      %v10212 = vadd.f32 %v9719, %v10186
      %v10213 = vadd.f32 %v9722, %v10189
      %v10214 = vadd.f32 %v9727, %v10194
      %v10215 = vadd.f32 %v9730, %v10197
      %v10216 = vld [vmem:[%s6] sm:$0x1]
      %v10218 = vlaneseq
      %v10219 = vshrl.u32 %v10218, 7
      %v10220 = vsub.s32 0, %v10219
      %v10221 = vrot.slane %v10216, %v10220
      %v10223 = vadd.f32 %v10200, %v10221
      %v10224 = vadd.f32 %v10201, %v10221
      %v10225 = vadd.f32 %v10202, %v10221
      %v10226 = vadd.f32 %v10203, %v10221
      %v10227 = vadd.f32 %v10204, %v10221
      %v10228 = vadd.f32 %v10205, %v10221
      %v10229 = vadd.f32 %v10206, %v10221
      %v10230 = vadd.f32 %v10207, %v10221
      %v10231 = vadd.f32 %v10208, %v10221
      %v10232 = vadd.f32 %v10209, %v10221
      %v10233 = vadd.f32 %v10210, %v10221
      %v10234 = vadd.f32 %v10211, %v10221
      %v10235 = vadd.f32 %v10212, %v10221
      %v10236 = vadd.f32 %v10213, %v10221
      %v10237 = vadd.f32 %v10214, %v10221
      %v10238 = vadd.f32 %v10215, %v10221
      %v10239 = vmax.f32 %v10223, 0.0
      %v10240 = vmax.f32 %v10224, 0.0
      %v10241 = vmax.f32 %v10225, 0.0
      %v10242 = vmax.f32 %v10226, 0.0
      %v10243 = vmax.f32 %v10227, 0.0
      %v10244 = vmax.f32 %v10228, 0.0
      %v10245 = vmax.f32 %v10229, 0.0
      %v10246 = vmax.f32 %v10230, 0.0
      %v10247 = vmax.f32 %v10231, 0.0
      %v10248 = vmax.f32 %v10232, 0.0
      %v10249 = vmax.f32 %v10233, 0.0
      %v10250 = vmax.f32 %v10234, 0.0
      %v10251 = vmax.f32 %v10235, 0.0
      %v10252 = vmax.f32 %v10236, 0.0
      %v10253 = vmax.f32 %v10237, 0.0
      %v10254 = vmax.f32 %v10238, 0.0
      %v10255 = vld [vmem:[%s7] sm:$0xff]
      %v10256 = vld [vmem:[%s7 + $0x8] sm:$0xff]
      %v10257 = vld [vmem:[%s7 + $0x10] sm:$0xff]
      %v10258 = vld [vmem:[%s7 + $0x18] sm:$0xff]
      %v10259 = vld [vmem:[%s8] sm:$0x1]
      %v10261 = vlaneseq
      %v10262 = vshrl.u32 %v10261, 7
      %v10263 = vsub.s32 0, %v10262
      %v10264 = vrot.slane %v10259, %v10263
      %v10267 = vsel %vm9071, %v10239, 0
      %v10270 = vsel %vm9071, %v10240, 0
      %v10273 = vsel %vm9071, %v10241, 0
      %v10276 = vsel %vm9071, %v10242, 0
      %v10279 = vsel %vm9071, %v10243, 0
      %v10282 = vsel %vm9071, %v10244, 0
      %v10285 = vsel %vm9071, %v10245, 0
      %v10288 = vsel %vm9071, %v10246, 0
      %v10291 = vsel %vm9071, %v10247, 0
      %v10294 = vsel %vm9071, %v10248, 0
      %v10297 = vsel %vm9071, %v10249, 0
      %v10300 = vsel %vm9071, %v10250, 0
      %v10303 = vsel %vm9071, %v10251, 0
      %v10306 = vsel %vm9071, %v10252, 0
      %v10309 = vsel %vm9071, %v10253, 0
      %v10312 = vsel %vm9071, %v10254, 0
      %10314 = vmatprep.subr.mxu0 0.0
      %10315 = vmatpush1.msra.mxu0 0.0
      %10316 = vmatprep.subr.mxu0 0.0
      %10317 = vmatpush1.msra.mxu0 0.0
      %10318 = vmatprep.subr.mxu0 0.0
      %10319 = vmatpush1.msra.mxu0 0.0
      %10320 = vmatprep.subr.mxu0 0.0
      %10321 = vmatpush1.msra.mxu0 0.0
      %10322 = vmatprep.subr.mxu0 0.0
      %10323 = vmatpush1.msra.mxu0 0.0
      %10324 = vmatprep.subr.mxu0 0.0
      %10325 = vmatpush1.msra.mxu0 0.0
      %10326 = vmatprep.subr.mxu0 0.0
      %10327 = vmatpush1.msra.mxu0 0.0
      %10328 = vmatprep.subr.mxu0 0.0
      %10329 = vmatpush1.msra.mxu0 0.0
      %10330 = vmatprep.subr.mxu0 0.0
      %10331 = vmatpush1.msra.mxu0 0.0
      %10332 = vmatprep.subr.mxu0 0.0
      %10333 = vmatpush1.msra.mxu0 0.0
      %10334 = vmatprep.subr.mxu0 0.0
      %10335 = vmatpush1.msra.mxu0 0.0
      %10336 = vmatprep.subr.mxu0 0.0
      %10337 = vmatpush1.msra.mxu0 0.0
      %10338 = vmatprep.subr.mxu0 0.0
      %10339 = vmatpush1.msra.mxu0 %v10258
      %10340 = vmatprep.subr.mxu0 0.0
      %10341 = vmatpush1.msra.mxu0 %v10257
      %10342 = vmatprep.subr.mxu0 0.0
      %10343 = vmatpush1.msra.mxu0 %v10256
      %10344 = vmatprep.subr.mxu0 0.0
      %10345 = vmatpush1.msra.mxu0 %v10255
      %10346 = vmatprep.subr.mxu0 0.0
      %10347 = vmatpush2.msra.mxu0 0.0
      %10348 = vmatprep.subr.mxu0 0.0
      %10349 = vmatpush2.msra.mxu0 0.0
      %10350 = vmatprep.subr.mxu0 0.0
      %10351 = vmatpush2.msra.mxu0 0.0
      %10352 = vmatprep.subr.mxu0 0.0
      %10353 = vmatpush2.msra.mxu0 0.0
      %10354 = vmatprep.subr.mxu0 0.0
      %10355 = vmatpush2.msra.mxu0 0.0
      %10356 = vmatprep.subr.mxu0 0.0
      %10357 = vmatpush2.msra.mxu0 0.0
      %10358 = vmatprep.subr.mxu0 0.0
      %10359 = vmatpush2.msra.mxu0 0.0
      %10360 = vmatprep.subr.mxu0 0.0
      %10361 = vmatpush2.msra.mxu0 0.0
      %10362 = vmatprep.subr.mxu0 0.0
      %10363 = vmatpush2.msra.mxu0 0.0
      %10364 = vmatprep.subr.mxu0 0.0
      %10365 = vmatpush2.msra.mxu0 0.0
      %10366 = vmatprep.subr.mxu0 0.0
      %10367 = vmatpush2.msra.mxu0 0.0
      %10368 = vmatprep.subr.mxu0 0.0
      %10369 = vmatpush2.msra.mxu0 0.0
      %10370 = vmatprep.subr.mxu0 0.0
      %10371 = vmatpush2.msra.mxu0 0.0
      %10372 = vmatprep.subr.mxu0 0.0
      %10373 = vmatpush2.msra.mxu0 0.0
      %10374 = vmatprep.subr.mxu0 0.0
      %10375 = vmatpush2.msra.mxu0 0.0
      %10376 = vmatprep.subr.mxu0 0.0
      %10377 = vmatpush2.msra.mxu0 0.0
      %10378 = vmatprep.mubr.f32.mxu0 0.0
      %10379 = vmatmul.mubr.f32.gmra.mxu0 %v10267
      %v10380 = vpop.f32.mrf.mxu0
      %v10381 = vadd.f32 %v10264, %v10380
      %v10382 = vpop.f32.mrf.mxu0
      %10383 = vmatprep.mubr.f32.mxu0 0.0
      %10384 = vmatmul.mubr.f32.gmra.mxu0 %v10270
      %v10385 = vpop.f32.mrf.mxu0
      %v10386 = vadd.f32 %v10264, %v10385
      %v10387 = vpop.f32.mrf.mxu0
      %10388 = vmatprep.mubr.f32.mxu0 0.0
      %10389 = vmatmul.mubr.f32.gmra.mxu0 %v10273
      %v10390 = vpop.f32.mrf.mxu0
      %v10391 = vadd.f32 %v10264, %v10390
      %v10392 = vpop.f32.mrf.mxu0
      %10393 = vmatprep.mubr.f32.mxu0 0.0
      %10394 = vmatmul.mubr.f32.gmra.mxu0 %v10276
      %v10395 = vpop.f32.mrf.mxu0
      %v10396 = vadd.f32 %v10264, %v10395
      %v10397 = vpop.f32.mrf.mxu0
      %10398 = vmatprep.mubr.f32.mxu0 0.0
      %10399 = vmatmul.mubr.f32.gmra.mxu0 %v10279
      %v10400 = vpop.f32.mrf.mxu0
      %v10401 = vadd.f32 %v10264, %v10400
      %v10402 = vpop.f32.mrf.mxu0
      %10403 = vmatprep.mubr.f32.mxu0 0.0
      %10404 = vmatmul.mubr.f32.gmra.mxu0 %v10282
      %v10405 = vpop.f32.mrf.mxu0
      %v10406 = vadd.f32 %v10264, %v10405
      %v10407 = vpop.f32.mrf.mxu0
      %10408 = vmatprep.mubr.f32.mxu0 0.0
      %10409 = vmatmul.mubr.f32.gmra.mxu0 %v10285
      %v10410 = vpop.f32.mrf.mxu0
      %v10411 = vadd.f32 %v10264, %v10410
      %v10412 = vpop.f32.mrf.mxu0
      %10413 = vmatprep.mubr.f32.mxu0 0.0
      %10414 = vmatmul.mubr.f32.gmra.mxu0 %v10288
      %v10415 = vpop.f32.mrf.mxu0
      %v10416 = vadd.f32 %v10264, %v10415
      %v10417 = vpop.f32.mrf.mxu0
      %10418 = vmatprep.mubr.f32.mxu0 0.0
      %10419 = vmatmul.mubr.f32.gmra.mxu0 %v10291
      %v10420 = vpop.f32.mrf.mxu0
      %v10421 = vadd.f32 %v10264, %v10420
      %v10422 = vpop.f32.mrf.mxu0
      %10423 = vmatprep.mubr.f32.mxu0 0.0
      %10424 = vmatmul.mubr.f32.gmra.mxu0 %v10294
      %v10425 = vpop.f32.mrf.mxu0
      %v10426 = vadd.f32 %v10264, %v10425
      %v10427 = vpop.f32.mrf.mxu0
      %10428 = vmatprep.mubr.f32.mxu0 0.0
      %10429 = vmatmul.mubr.f32.gmra.mxu0 %v10297
      %v10430 = vpop.f32.mrf.mxu0
      %v10431 = vadd.f32 %v10264, %v10430
      %v10432 = vpop.f32.mrf.mxu0
      %10433 = vmatprep.mubr.f32.mxu0 0.0
      %10434 = vmatmul.mubr.f32.gmra.mxu0 %v10300
      %v10435 = vpop.f32.mrf.mxu0
      %v10436 = vadd.f32 %v10264, %v10435
      %v10437 = vpop.f32.mrf.mxu0
      %10438 = vmatprep.mubr.f32.mxu0 0.0
      %10439 = vmatmul.mubr.f32.gmra.mxu0 %v10303
      %v10440 = vpop.f32.mrf.mxu0
      %v10441 = vadd.f32 %v10264, %v10440
      %v10442 = vpop.f32.mrf.mxu0
      %10443 = vmatprep.mubr.f32.mxu0 0.0
      %10444 = vmatmul.mubr.f32.gmra.mxu0 %v10306
      %v10445 = vpop.f32.mrf.mxu0
      %v10446 = vadd.f32 %v10264, %v10445
      %v10447 = vpop.f32.mrf.mxu0
      %10448 = vmatprep.mubr.f32.mxu0 0.0
      %10449 = vmatmul.mubr.f32.gmra.mxu0 %v10309
      %v10450 = vpop.f32.mrf.mxu0
      %v10451 = vadd.f32 %v10264, %v10450
      %v10452 = vpop.f32.mrf.mxu0
      %10453 = vmatprep.mubr.f32.mxu0 0.0
      %10454 = vmatmul.mubr.f32.gmra.mxu0 %v10312
      %v10455 = vpop.f32.mrf.mxu0
      %v10456 = vadd.f32 %v10264, %v10455
      %v10457 = vpop.f32.mrf.mxu0
      %10458 = vdwg.mxu0
      %10459 = vxpose.xlu0.b32.start [1/16] %v10381, 128
      %10460 = vxpose.xlu0.b32.cont [2/16] %v10386, 128
      %10461 = vxpose.xlu0.b32.cont [3/16] %v10391, 128
      %10462 = vxpose.xlu0.b32.cont [4/16] %v10396, 128
      %10463 = vxpose.xlu0.b32.cont [5/16] %v10401, 128
      %10464 = vxpose.xlu0.b32.cont [6/16] %v10406, 128
      %10465 = vxpose.xlu0.b32.cont [7/16] %v10411, 128
      %10466 = vxpose.xlu0.b32.cont [8/16] %v10416, 128
      %10467 = vxpose.xlu0.b32.cont [9/16] %v10421, 128
      %10468 = vxpose.xlu0.b32.cont [10/16] %v10426, 128
      %10469 = vxpose.xlu0.b32.cont [11/16] %v10431, 128
      %10470 = vxpose.xlu0.b32.cont [12/16] %v10436, 128
      %10471 = vxpose.xlu0.b32.cont [13/16] %v10441, 128
      %10472 = vxpose.xlu0.b32.cont [14/16] %v10446, 128
      %10473 = vxpose.xlu0.b32.cont [15/16] %v10451, 128
      %10474 = vxpose.xlu0.b32.end [16/16] %v10456, 128
      %v10475 = vpop.trf.xlu0
      %v10476 = vpop.trf.xlu0
      %v10477 = vpop.trf.xlu0
      %v10478 = vpop.trf.xlu0
      %v10479 = vpop.trf.xlu0
      %v10480 = vpop.trf.xlu0
      %v10481 = vpop.trf.xlu0
      %v10482 = vpop.trf.xlu0
      %v10483 = vpop.trf.xlu0
      %v10484 = vpop.trf.xlu0
      %v10485 = vpop.trf.xlu0
      %v10486 = vpop.trf.xlu0
      %v10487 = vpop.trf.xlu0
      %v10488 = vpop.trf.xlu0
      %v10489 = vpop.trf.xlu0
      %v10490 = vpop.trf.xlu0
      %10491 = vst [vmem:[%s505] sm:$0xff] %v10475
      %p10492 = scmp.lt.s32.totalorder %s24, 1
      %s10493 = scalar_select %p10492, %s24, 1
      %p10494 = scmp.lt.s32.totalorder %s25, 1
      %s10495 = scalar_select %p10494, %s25, 1
      %s10496 = smul.addr %s10493, 2
      %s10497 = sadd.s32 %s10495, %s10496
      %s10498 = smul.addr %s10497, 8
      %s10499 = scalar_lea.vmem %s9, %s10498
      // Predicated region
      $region81: #{_lambda_.2} parent=55 // pred_check
        %p10500 = pneg %p278
      $region82: #{_lambda_.2} parent=55 // pred_check_branch
        %10502 = sbr.rel (%p10500) target = $region84
      $region83: #{_lambda_.2} parent=55 // pred_region
        _
      $region84: #{_lambda_.2} parent=55 // pred_fallthru
        _
    $region56: #{_lambda_.2} parent=5 // pred_fallthru
      _
    %p10503 = scmp.le.s32.totalorder 2, %s15
    // Predicated region
    $region85: #{_lambda_.2} parent=5 // pred_check
      %p10504 = pneg %p10503
    $region86: #{_lambda_.2} parent=5 // pred_check_branch
      %10506 = sbr.rel (%p10504) target = $region88
    $region87: #{_lambda_.2} parent=5 // pred_region
      %s10507 = ssub.s32 %s15, 2
      // Predicated region
      $region89: #{_lambda_.2} parent=87 // pred_check
        %p10508 = pneg %p284
      $region90: #{_lambda_.2} parent=87 // pred_check_branch
        %10510 = sbr.rel (%p10508) target = $region92
      $region91: #{_lambda_.2} parent=87 // pred_region
        %p10511 = scmp.lt.s32.totalorder %s26, 1
        %s10512 = scalar_select %p10511, %s26, 1
        %p10513 = scmp.lt.s32.totalorder %s27, 1
        %s10514 = scalar_select %p10513, %s27, 1
        %s10515 = smul.addr %s10512, 2
        %s10516 = sadd.s32 %s10514, %s10515
        %s10517 = smul.addr %s10516, 8
        %s10518 = scalar_lea.vmem %s9, %s10517
      $region92: #{_lambda_.2} parent=87 // pred_fallthru
        _
    $region88: #{_lambda_.2} parent=5 // pred_fallthru
      _
  $region6: #{_lambda_.2} parent=0 // loop_footer
    %s19 = sadd.s32 1, %s15
  $region7: #{_lambda_.2} parent=0 // loop_footer_branch
    %14 = sbr.rel target = $region3
  $region8: #{_lambda_.2} parent=0 // loop_exit
    _

</llo_original>
